<compile_context>
chip_gen: v7x
topology: tpu7x:2x2x1
jax: 0.10.0
libtpu: 0.0.40
codegen_flags: <defaults>
</compile_context>

<pallas_src>
import functools

import jax
import jax.numpy as jnp
from jax import lax
from jax.experimental import pallas as pl
from jax.experimental.pallas import tpu as pltpu

EPS = 1e-5


# ----------------------------------------------------------------------------------
# Fused BasicBlock Pallas kernel
# ----------------------------------------------------------------------------------
def basic_block_kernel(xp_ref, w1_ref, b1_ref, w2_ref, b2_ref, *rest,
                       Ho, Wo, stride, has_proj):
    """One batch element of: relu( ac2( relu(ac1(x)) ) + shortcut(x) ).

    xp_ref : (1, H+2, W+2, Cin)  zero-padded (pad=1) input, f32
    w1_ref : (3, 3, Cin, C)      fused ACBlock-1 weight (BN + 3 branches folded), bf16
    w2_ref : (3, 3, C,   C)      fused ACBlock-2 weight, bf16
    b*_ref : (1, C)              fused biases, f32
    wsc/bsc: optional 1x1 projection shortcut (BN folded), bf16 / f32
    h1p_ref: (Ho+2, Wo+2, C)     VMEM scratch holding the zero-padded ac1 output
    """
    if has_proj:
        wsc_ref, bsc_ref, o_ref, h1p_ref = rest
    else:
        o_ref, h1p_ref = rest

    def conv3x3(get_patch, w_ref):
        # 9 taps of a 3x3 conv as (Ho*Wo, Cin) @ (Cin, C) MXU matmuls, f32 accumulate.
        acc = None
        for kh in range(3):
            for kw in range(3):
                p = get_patch(kh, kw)                                # (Ho, Wo, Cin_)
                p2 = p.reshape(Ho * Wo, p.shape[-1]).astype(jnp.bfloat16)
                part = jnp.dot(p2, w_ref[kh, kw],
                               preferred_element_type=jnp.float32)    # (Ho*Wo, C)
                acc = part if acc is None else acc + part
        return acc

    # ---- ACBlock 1 (square + vertical + horizontal convs & BNs pre-fused) + ReLU --
    def ac1_patch(kh, kw):
        if stride == 1:
            return xp_ref[0, kh:kh + Ho, kw:kw + Wo, :]
        # stride > 1: only the strided output positions are computed.
        return xp_ref[0, pl.ds(kh, Ho, stride), pl.ds(kw, Wo, stride), :]

    h1 = jnp.maximum(conv3x3(ac1_patch, w1_ref) + b1_ref[...], 0.0)   # (Ho*Wo, C) f32

    # ---- ac1 output, zero-padded (pad=1), into VMEM scratch (never touches HBM) ---
    h1p_ref[...] = jnp.zeros_like(h1p_ref)
    for i in range(Ho):
        h1p_ref[1 + i, 1:1 + Wo, :] = h1[i * Wo:(i + 1) * Wo, :]

    # ---- ACBlock 2 -----------------------------------------------------------------
    y = conv3x3(lambda kh, kw: h1p_ref[kh:kh + Ho, kw:kw + Wo, :], w2_ref)
    y = y + b2_ref[...]

    # ---- shortcut (fused into the same kernel) --------------------------------------
    if has_proj:
        if stride == 1:
            xs = xp_ref[0, 1:1 + Ho, 1:1 + Wo, :]
        else:
            xs = xp_ref[0, pl.ds(1, Ho, stride), pl.ds(1, Wo, stride), :]
        xs2 = xs.reshape(Ho * Wo, xs.shape[-1]).astype(jnp.bfloat16)
        sc = jnp.dot(xs2, wsc_ref[...], preferred_element_type=jnp.float32)
        sc = sc + bsc_ref[...]
    else:
        # identity shortcut (module guarantees stride == 1 and Cin == C here)
        xs = xp_ref[0, 1:1 + Ho, 1:1 + Wo, :]
        sc = xs.reshape(Ho * Wo, xs.shape[-1]).astype(jnp.float32)

    o_ref[0] = jnp.maximum(y + sc, 0.0).astype(o_ref.dtype)


# ----------------------------------------------------------------------------------
# pallas_call wrapper
# ----------------------------------------------------------------------------------
def basic_block_pallas(xp, w1, b1, w2, b2, wsc, bsc, *, stride):
    N, Hp, Wp, Cin = xp.shape
    C = w1.shape[-1]
    H, W = Hp - 2, Wp - 2
    Ho = (H - 1) // stride + 1
    Wo = (W - 1) // stride + 1
    has_proj = wsc is not None

    kernel = functools.partial(basic_block_kernel, Ho=Ho, Wo=Wo,
                               stride=stride, has_proj=has_proj)

    in_specs = [
        pl.BlockSpec((1, Hp, Wp, Cin), lambda n: (n, 0, 0, 0)),
        pl.BlockSpec((3, 3, Cin, C), lambda n: (0, 0, 0, 0)),
        pl.BlockSpec((1, C), lambda n: (0, 0)),
        pl.BlockSpec((3, 3, C, C), lambda n: (0, 0, 0, 0)),
        pl.BlockSpec((1, C), lambda n: (0, 0)),
    ]
    args = [xp, w1, b1, w2, b2]
    if has_proj:
        in_specs += [pl.BlockSpec((Cin, C), lambda n: (0, 0)),
                     pl.BlockSpec((1, C), lambda n: (0, 0))]
        args += [wsc, bsc]

    out = pl.pallas_call(
        kernel,
        out_shape=jax.ShapeDtypeStruct((N, Ho * Wo, C), jnp.float32),
        grid=(N,),
        in_specs=in_specs,
        out_specs=pl.BlockSpec((1, Ho * Wo, C), lambda n: (n, 0, 0)),
        scratch_shapes=[pltpu.VMEM((Ho + 2, Wo + 2, C), jnp.float32)],
        compiler_params=pltpu.CompilerParams(dimension_semantics=("parallel",)),
    )(*args)
    return out.reshape(N, Ho, Wo, C)


# ----------------------------------------------------------------------------------
# Parameter setup (deterministic, synthetic) + BN/ACNet fusion + forward glue
# ----------------------------------------------------------------------------------
def init_bn(key, c):
    k1, k2, k3, k4 = jax.random.split(key, 4)
    return dict(
        gamma=1.0 + 0.1 * jax.random.normal(k1, (c,), dtype=jnp.float32),
        beta=0.1 * jax.random.normal(k2, (c,), dtype=jnp.float32),
        mean=0.1 * jax.random.normal(k3, (c,), dtype=jnp.float32),
        var=jax.random.uniform(k4, (c,), minval=0.5, maxval=1.5, dtype=jnp.float32),
    )


def bn_scale_bias(bn):
    s = bn["gamma"] / jnp.sqrt(bn["var"] + EPS)
    b = bn["beta"] - bn["mean"] * s
    return s, b


def init_acblock(key, cin, cout):
    ks = jax.random.split(key, 6)
    return dict(
        w_sq=0.1 * jax.random.normal(ks[0], (3, 3, cin, cout), dtype=jnp.float32),
        w_ver=0.1 * jax.random.normal(ks[1], (3, 1, cin, cout), dtype=jnp.float32),
        w_hor=0.1 * jax.random.normal(ks[2], (1, 3, cin, cout), dtype=jnp.float32),
        bn_sq=init_bn(ks[3], cout),
        bn_ver=init_bn(ks[4], cout),
        bn_hor=init_bn(ks[5], cout),
    )


def init_basic_block(key, in_planes, planes, stride=1):
    k1, k2, k3, k4 = jax.random.split(key, 4)
    params = dict(ac1=init_acblock(k1, in_planes, planes),
                  ac2=init_acblock(k2, planes, planes),
                  stride=stride)
    if stride != 1 or in_planes != planes:
        params["sc_w"] = 0.1 * jax.random.normal(k3, (in_planes, planes), dtype=jnp.float32)
        params["sc_bn"] = init_bn(k4, planes)
    return params


def fuse_acblock_weights(p):
    """ACNet deploy-style fusion: fold the three BNs into the conv weights and merge
    the square / vertical / horizontal branches into ONE 3x3 kernel + ONE bias.
    Exact for inference-mode BN."""
    s_sq, b_sq = bn_scale_bias(p["bn_sq"])
    s_ver, b_ver = bn_scale_bias(p["bn_ver"])
    s_hor, b_hor = bn_scale_bias(p["bn_hor"])
    w = p["w_sq"] * s_sq
    w = w.at[:, 1].add(p["w_ver"][:, 0] * s_ver)   # 3x1 conv, pad (1,0) == center column
    w = w.at[1, :].add(p["w_hor"][0] * s_hor)      # 1x3 conv, pad (0,1) == center row
    return w, b_sq + b_ver + b_hor


def basic_block_forward(x, params):
    """x: NHWC float32.  Returns NHWC float32."""
    stride = params["stride"]
    w1, b1 = fuse_acblock_weights(params["ac1"])
    w2, b2 = fuse_acblock_weights(params["ac2"])

    xp = jnp.pad(x, ((0, 0), (1, 1), (1, 1), (0, 0)))   # pad=1 for the 3x3 convs
    w1 = w1.astype(jnp.bfloat16)
    w2 = w2.astype(jnp.bfloat16)

    if "sc_w" in params:
        s_sc, b_sc = bn_scale_bias(params["sc_bn"])
        wsc = (params["sc_w"] * s_sc).astype(jnp.bfloat16)
        bsc = b_sc[None, :]
    else:
        wsc = bsc = None

    return basic_block_pallas(xp, w1, b1[None, :], w2, b2[None, :], wsc, bsc,
                              stride=stride)


# ----------------------------------------------------------------------------------
# Pure-JAX f32 reference (for correctness check)
# ----------------------------------------------------------------------------------
def conv_nhwc(x, w, stride, padding):
    return lax.conv_general_dilated(
        x, w, window_strides=(stride, stride), padding=padding,
        dimension_numbers=("NHWC", "HWIO", "NHWC"))


def bn_ref(y, bn):
    return (y - bn["mean"]) / jnp.sqrt(bn["var"] + EPS) * bn["gamma"] + bn["beta"]


def acblock_ref(x, p, stride):
    sq = bn_ref(conv_nhwc(x, p["w_sq"], stride, [(1, 1), (1, 1)]), p["bn_sq"])
    ver = bn_ref(conv_nhwc(x, p["w_ver"], stride, [(1, 1), (0, 0)]), p["bn_ver"])
    hor = bn_ref(conv_nhwc(x, p["w_hor"], stride, [(0, 0), (1, 1)]), p["bn_hor"])
    return sq + ver + hor


def basic_block_ref(x, params):
    stride = params["stride"]
    out = jax.nn.relu(acblock_ref(x, params["ac1"], stride))
    out = acblock_ref(out, params["ac2"], 1)
    if "sc_w" in params:
        sc = bn_ref(conv_nhwc(x, params["sc_w"][None, None], stride, [(0, 0), (0, 0)]),
                    params["sc_bn"])
    else:
        sc = x
    return jax.nn.relu(out + sc)


# ----------------------------------------------------------------------------------
if __name__ == "__main__":
    key = jax.random.PRNGKey(0)
    kx, kp = jax.random.split(key)

    N, Cin, H, W = 2, 4, 16, 16          # PyTorch-style NCHW sizes
    planes, stride = 8, 1                # in_planes != planes -> projection shortcut

    x_nchw = jax.random.normal(kx, (N, Cin, H, W), dtype=jnp.float32)
    x = jnp.transpose(x_nchw, (0, 2, 3, 1))   # NCHW -> NHWC for the kernel

    params = init_basic_block(kp, Cin, planes, stride=stride)

    out = jax.block_until_ready(basic_block_forward(x, params))
    ref = jax.block_until_ready(basic_block_ref(x, params))

    assert out.shape == (N, H // stride, W // stride, planes), out.shape
    # Matmul operands are bf16 (f32 accumulate), so allow a slightly looser tolerance
    # than a pure-f32 comparison would need.
    max_err = float(jnp.max(jnp.abs(out - ref)))
    assert max_err < 5e-2, f"max abs error vs f32 reference too large: {max_err}"

    print("KERNEL_OK")
</pallas_src>

<mosaic_0001>
module attributes {stable_mosaic.version = 11 : i64} {
  func.func @basic_block_kernel(%arg0: i32, %arg1: memref<1x18x18x4xf32, #tpu.memory_space<vmem>>, %arg2: memref<3x3x4x8xbf16, #tpu.memory_space<vmem>>, %arg3: memref<1x8xf32, #tpu.memory_space<vmem>>, %arg4: memref<3x3x8x8xbf16, #tpu.memory_space<vmem>>, %arg5: memref<1x8xf32, #tpu.memory_space<vmem>>, %arg6: memref<4x8xbf16, #tpu.memory_space<vmem>>, %arg7: memref<1x8xf32, #tpu.memory_space<vmem>>, %arg8: memref<1x256x8xf32, #tpu.memory_space<vmem>>, %arg9: memref<18x18x8xf32, #tpu.memory_space<vmem>>) attributes {dimension_semantics = [#tpu.dimension_semantics<parallel>], iteration_bounds = array<i64: 2>, scalar_prefetch = 0 : i64, scratch_operands = 1 : i64, tpu.core_type = #tpu.core_type<tc>, window_params = [{transform_indices = @transform_0, window_bounds = array<i64: 1, 18, 18, 4>}, {pipeline_mode = #tpu.pipeline_mode<synchronous>, transform_indices = @transform_1, window_bounds = array<i64: 3, 3, 4, 8>}, {pipeline_mode = #tpu.pipeline_mode<synchronous>, transform_indices = @transform_2, window_bounds = array<i64: 1, 8>}, {pipeline_mode = #tpu.pipeline_mode<synchronous>, transform_indices = @transform_3, window_bounds = array<i64: 3, 3, 8, 8>}, {pipeline_mode = #tpu.pipeline_mode<synchronous>, transform_indices = @transform_4, window_bounds = array<i64: 1, 8>}, {pipeline_mode = #tpu.pipeline_mode<synchronous>, transform_indices = @transform_5, window_bounds = array<i64: 4, 8>}, {pipeline_mode = #tpu.pipeline_mode<synchronous>, transform_indices = @transform_6, window_bounds = array<i64: 1, 8>}, {transform_indices = @transform_7, window_bounds = array<i64: 1, 256, 8>}]} {
    %c0 = arith.constant 0 : index
    %c0_0 = arith.constant 0 : index
    %c0_1 = arith.constant 0 : index
    %c0_2 = arith.constant 0 : index
    %0 = vector.load %arg1[%c0, %c0_0, %c0_1, %c0_2] : memref<1x18x18x4xf32, #tpu.memory_space<vmem>>, vector<1x16x16x4xf32>
    %1 = vector.shape_cast %0 : vector<1x16x16x4xf32> to vector<16x16x4xf32>
    %2 = vector.shape_cast %1 : vector<16x16x4xf32> to vector<256x4xf32>
    %3 = arith.truncf %2 : vector<256x4xf32> to vector<256x4xbf16>
    %c0_3 = arith.constant 0 : index
    %c0_4 = arith.constant 0 : index
    %c0_5 = arith.constant 0 : index
    %c0_6 = arith.constant 0 : index
    %4 = vector.load %arg2[%c0_3, %c0_4, %c0_5, %c0_6] : memref<3x3x4x8xbf16, #tpu.memory_space<vmem>>, vector<1x1x4x8xbf16>
    %5 = vector.shape_cast %4 : vector<1x1x4x8xbf16> to vector<4x8xbf16>
    %cst = arith.constant dense<0.000000e+00> : vector<256x8xf32>
    %6 = tpu.matmul %3, %5, %cst {dimension_numbers = #tpu.dot_dimension_numbers<[1], [0], [0], [1], [0, 0, 1, 1], [], []>} : vector<256x4xbf16>, vector<4x8xbf16>, vector<256x8xf32> -> vector<256x8xf32>
    %c0_7 = arith.constant 0 : index
    %c0_8 = arith.constant 0 : index
    %c1 = arith.constant 1 : index
    %c0_9 = arith.constant 0 : index
    %7 = vector.load %arg1[%c0_7, %c0_8, %c1, %c0_9] : memref<1x18x18x4xf32, #tpu.memory_space<vmem>>, vector<1x16x16x4xf32>
    %8 = vector.shape_cast %7 : vector<1x16x16x4xf32> to vector<16x16x4xf32>
    %9 = vector.shape_cast %8 : vector<16x16x4xf32> to vector<256x4xf32>
    %10 = arith.truncf %9 : vector<256x4xf32> to vector<256x4xbf16>
    %c0_10 = arith.constant 0 : index
    %c1_11 = arith.constant 1 : index
    %c0_12 = arith.constant 0 : index
    %c0_13 = arith.constant 0 : index
    %11 = vector.load %arg2[%c0_10, %c1_11, %c0_12, %c0_13] : memref<3x3x4x8xbf16, #tpu.memory_space<vmem>>, vector<1x1x4x8xbf16>
    %12 = vector.shape_cast %11 : vector<1x1x4x8xbf16> to vector<4x8xbf16>
    %cst_14 = arith.constant dense<0.000000e+00> : vector<256x8xf32>
    %13 = tpu.matmul %10, %12, %cst_14 {dimension_numbers = #tpu.dot_dimension_numbers<[1], [0], [0], [1], [0, 0, 1, 1], [], []>} : vector<256x4xbf16>, vector<4x8xbf16>, vector<256x8xf32> -> vector<256x8xf32>
    %14 = arith.addf %6, %13 : vector<256x8xf32>
    %c0_15 = arith.constant 0 : index
    %c0_16 = arith.constant 0 : index
    %c2 = arith.constant 2 : index
    %c0_17 = arith.constant 0 : index
    %15 = vector.load %arg1[%c0_15, %c0_16, %c2, %c0_17] : memref<1x18x18x4xf32, #tpu.memory_space<vmem>>, vector<1x16x16x4xf32>
    %16 = vector.shape_cast %15 : vector<1x16x16x4xf32> to vector<16x16x4xf32>
    %17 = vector.shape_cast %16 : vector<16x16x4xf32> to vector<256x4xf32>
    %18 = arith.truncf %17 : vector<256x4xf32> to vector<256x4xbf16>
    %c0_18 = arith.constant 0 : index
    %c2_19 = arith.constant 2 : index
    %c0_20 = arith.constant 0 : index
    %c0_21 = arith.constant 0 : index
    %19 = vector.load %arg2[%c0_18, %c2_19, %c0_20, %c0_21] : memref<3x3x4x8xbf16, #tpu.memory_space<vmem>>, vector<1x1x4x8xbf16>
    %20 = vector.shape_cast %19 : vector<1x1x4x8xbf16> to vector<4x8xbf16>
    %cst_22 = arith.constant dense<0.000000e+00> : vector<256x8xf32>
    %21 = tpu.matmul %18, %20, %cst_22 {dimension_numbers = #tpu.dot_dimension_numbers<[1], [0], [0], [1], [0, 0, 1, 1], [], []>} : vector<256x4xbf16>, vector<4x8xbf16>, vector<256x8xf32> -> vector<256x8xf32>
    %22 = arith.addf %14, %21 : vector<256x8xf32>
    %c0_23 = arith.constant 0 : index
    %c1_24 = arith.constant 1 : index
    %c0_25 = arith.constant 0 : index
    %c0_26 = arith.constant 0 : index
    %23 = vector.load %arg1[%c0_23, %c1_24, %c0_25, %c0_26] : memref<1x18x18x4xf32, #tpu.memory_space<vmem>>, vector<1x16x16x4xf32>
    %24 = vector.shape_cast %23 : vector<1x16x16x4xf32> to vector<16x16x4xf32>
    %25 = vector.shape_cast %24 : vector<16x16x4xf32> to vector<256x4xf32>
    %26 = arith.truncf %25 : vector<256x4xf32> to vector<256x4xbf16>
    %c1_27 = arith.constant 1 : index
    %c0_28 = arith.constant 0 : index
    %c0_29 = arith.constant 0 : index
    %c0_30 = arith.constant 0 : index
    %27 = vector.load %arg2[%c1_27, %c0_28, %c0_29, %c0_30] : memref<3x3x4x8xbf16, #tpu.memory_space<vmem>>, vector<1x1x4x8xbf16>
    %28 = vector.shape_cast %27 : vector<1x1x4x8xbf16> to vector<4x8xbf16>
    %cst_31 = arith.constant dense<0.000000e+00> : vector<256x8xf32>
    %29 = tpu.matmul %26, %28, %cst_31 {dimension_numbers = #tpu.dot_dimension_numbers<[1], [0], [0], [1], [0, 0, 1, 1], [], []>} : vector<256x4xbf16>, vector<4x8xbf16>, vector<256x8xf32> -> vector<256x8xf32>
    %30 = arith.addf %22, %29 : vector<256x8xf32>
    %c0_32 = arith.constant 0 : index
    %c1_33 = arith.constant 1 : index
    %c1_34 = arith.constant 1 : index
    %c0_35 = arith.constant 0 : index
    %31 = vector.load %arg1[%c0_32, %c1_33, %c1_34, %c0_35] : memref<1x18x18x4xf32, #tpu.memory_space<vmem>>, vector<1x16x16x4xf32>
    %32 = vector.shape_cast %31 : vector<1x16x16x4xf32> to vector<16x16x4xf32>
    %33 = vector.shape_cast %32 : vector<16x16x4xf32> to vector<256x4xf32>
    %34 = arith.truncf %33 : vector<256x4xf32> to vector<256x4xbf16>
    %c1_36 = arith.constant 1 : index
    %c1_37 = arith.constant 1 : index
    %c0_38 = arith.constant 0 : index
    %c0_39 = arith.constant 0 : index
    %35 = vector.load %arg2[%c1_36, %c1_37, %c0_38, %c0_39] : memref<3x3x4x8xbf16, #tpu.memory_space<vmem>>, vector<1x1x4x8xbf16>
    %36 = vector.shape_cast %35 : vector<1x1x4x8xbf16> to vector<4x8xbf16>
    %cst_40 = arith.constant dense<0.000000e+00> : vector<256x8xf32>
    %37 = tpu.matmul %34, %36, %cst_40 {dimension_numbers = #tpu.dot_dimension_numbers<[1], [0], [0], [1], [0, 0, 1, 1], [], []>} : vector<256x4xbf16>, vector<4x8xbf16>, vector<256x8xf32> -> vector<256x8xf32>
    %38 = arith.addf %30, %37 : vector<256x8xf32>
    %c0_41 = arith.constant 0 : index
    %c1_42 = arith.constant 1 : index
    %c2_43 = arith.constant 2 : index
    %c0_44 = arith.constant 0 : index
    %39 = vector.load %arg1[%c0_41, %c1_42, %c2_43, %c0_44] : memref<1x18x18x4xf32, #tpu.memory_space<vmem>>, vector<1x16x16x4xf32>
    %40 = vector.shape_cast %39 : vector<1x16x16x4xf32> to vector<16x16x4xf32>
    %41 = vector.shape_cast %40 : vector<16x16x4xf32> to vector<256x4xf32>
    %42 = arith.truncf %41 : vector<256x4xf32> to vector<256x4xbf16>
    %c1_45 = arith.constant 1 : index
    %c2_46 = arith.constant 2 : index
    %c0_47 = arith.constant 0 : index
    %c0_48 = arith.constant 0 : index
    %43 = vector.load %arg2[%c1_45, %c2_46, %c0_47, %c0_48] : memref<3x3x4x8xbf16, #tpu.memory_space<vmem>>, vector<1x1x4x8xbf16>
    %44 = vector.shape_cast %43 : vector<1x1x4x8xbf16> to vector<4x8xbf16>
    %cst_49 = arith.constant dense<0.000000e+00> : vector<256x8xf32>
    %45 = tpu.matmul %42, %44, %cst_49 {dimension_numbers = #tpu.dot_dimension_numbers<[1], [0], [0], [1], [0, 0, 1, 1], [], []>} : vector<256x4xbf16>, vector<4x8xbf16>, vector<256x8xf32> -> vector<256x8xf32>
    %46 = arith.addf %38, %45 : vector<256x8xf32>
    %c0_50 = arith.constant 0 : index
    %c2_51 = arith.constant 2 : index
    %c0_52 = arith.constant 0 : index
    %c0_53 = arith.constant 0 : index
    %47 = vector.load %arg1[%c0_50, %c2_51, %c0_52, %c0_53] : memref<1x18x18x4xf32, #tpu.memory_space<vmem>>, vector<1x16x16x4xf32>
    %48 = vector.shape_cast %47 : vector<1x16x16x4xf32> to vector<16x16x4xf32>
    %49 = vector.shape_cast %48 : vector<16x16x4xf32> to vector<256x4xf32>
    %50 = arith.truncf %49 : vector<256x4xf32> to vector<256x4xbf16>
    %c2_54 = arith.constant 2 : index
    %c0_55 = arith.constant 0 : index
    %c0_56 = arith.constant 0 : index
    %c0_57 = arith.constant 0 : index
    %51 = vector.load %arg2[%c2_54, %c0_55, %c0_56, %c0_57] : memref<3x3x4x8xbf16, #tpu.memory_space<vmem>>, vector<1x1x4x8xbf16>
    %52 = vector.shape_cast %51 : vector<1x1x4x8xbf16> to vector<4x8xbf16>
    %cst_58 = arith.constant dense<0.000000e+00> : vector<256x8xf32>
    %53 = tpu.matmul %50, %52, %cst_58 {dimension_numbers = #tpu.dot_dimension_numbers<[1], [0], [0], [1], [0, 0, 1, 1], [], []>} : vector<256x4xbf16>, vector<4x8xbf16>, vector<256x8xf32> -> vector<256x8xf32>
    %54 = arith.addf %46, %53 : vector<256x8xf32>
    %c0_59 = arith.constant 0 : index
    %c2_60 = arith.constant 2 : index
    %c1_61 = arith.constant 1 : index
    %c0_62 = arith.constant 0 : index
    %55 = vector.load %arg1[%c0_59, %c2_60, %c1_61, %c0_62] : memref<1x18x18x4xf32, #tpu.memory_space<vmem>>, vector<1x16x16x4xf32>
    %56 = vector.shape_cast %55 : vector<1x16x16x4xf32> to vector<16x16x4xf32>
    %57 = vector.shape_cast %56 : vector<16x16x4xf32> to vector<256x4xf32>
    %58 = arith.truncf %57 : vector<256x4xf32> to vector<256x4xbf16>
    %c2_63 = arith.constant 2 : index
    %c1_64 = arith.constant 1 : index
    %c0_65 = arith.constant 0 : index
    %c0_66 = arith.constant 0 : index
    %59 = vector.load %arg2[%c2_63, %c1_64, %c0_65, %c0_66] : memref<3x3x4x8xbf16, #tpu.memory_space<vmem>>, vector<1x1x4x8xbf16>
    %60 = vector.shape_cast %59 : vector<1x1x4x8xbf16> to vector<4x8xbf16>
    %cst_67 = arith.constant dense<0.000000e+00> : vector<256x8xf32>
    %61 = tpu.matmul %58, %60, %cst_67 {dimension_numbers = #tpu.dot_dimension_numbers<[1], [0], [0], [1], [0, 0, 1, 1], [], []>} : vector<256x4xbf16>, vector<4x8xbf16>, vector<256x8xf32> -> vector<256x8xf32>
    %62 = arith.addf %54, %61 : vector<256x8xf32>
    %c0_68 = arith.constant 0 : index
    %c2_69 = arith.constant 2 : index
    %c2_70 = arith.constant 2 : index
    %c0_71 = arith.constant 0 : index
    %63 = vector.load %arg1[%c0_68, %c2_69, %c2_70, %c0_71] : memref<1x18x18x4xf32, #tpu.memory_space<vmem>>, vector<1x16x16x4xf32>
    %64 = vector.shape_cast %63 : vector<1x16x16x4xf32> to vector<16x16x4xf32>
    %65 = vector.shape_cast %64 : vector<16x16x4xf32> to vector<256x4xf32>
    %66 = arith.truncf %65 : vector<256x4xf32> to vector<256x4xbf16>
    %c2_72 = arith.constant 2 : index
    %c2_73 = arith.constant 2 : index
    %c0_74 = arith.constant 0 : index
    %c0_75 = arith.constant 0 : index
    %67 = vector.load %arg2[%c2_72, %c2_73, %c0_74, %c0_75] : memref<3x3x4x8xbf16, #tpu.memory_space<vmem>>, vector<1x1x4x8xbf16>
    %68 = vector.shape_cast %67 : vector<1x1x4x8xbf16> to vector<4x8xbf16>
    %cst_76 = arith.constant dense<0.000000e+00> : vector<256x8xf32>
    %69 = tpu.matmul %66, %68, %cst_76 {dimension_numbers = #tpu.dot_dimension_numbers<[1], [0], [0], [1], [0, 0, 1, 1], [], []>} : vector<256x4xbf16>, vector<4x8xbf16>, vector<256x8xf32> -> vector<256x8xf32>
    %70 = arith.addf %62, %69 : vector<256x8xf32>
    %c0_77 = arith.constant 0 : index
    %c0_78 = arith.constant 0 : index
    %71 = vector.load %arg3[%c0_77, %c0_78] : memref<1x8xf32, #tpu.memory_space<vmem>>, vector<1x8xf32>
    %72 = vector.broadcast %71 : vector<1x8xf32> to vector<256x8xf32>
    %73 = arith.addf %70, %72 : vector<256x8xf32>
    %cst_79 = arith.constant 0.000000e+00 : f32
    %74 = vector.broadcast %cst_79 : f32 to vector<256x8xf32>
    %75 = arith.maximumf %73, %74 : vector<256x8xf32>
    %cst_80 = arith.constant 0.000000e+00 : f32
    %76 = vector.broadcast %cst_80 : f32 to vector<18x18x8xf32>
    %c0_81 = arith.constant 0 : index
    %c0_82 = arith.constant 0 : index
    %c0_83 = arith.constant 0 : index
    %77 = vector.load %arg9[%c0_81, %c0_82, %c0_83] : memref<18x18x8xf32, #tpu.memory_space<vmem>>, vector<18x18x8xf32>
    tpu.vector_store %arg9[%c0_81, %c0_82, %c0_83], %76 {strides = array<i32>} : memref<18x18x8xf32, #tpu.memory_space<vmem>>, vector<18x18x8xf32>,
    %78 = vector.extract_strided_slice %75 {offsets = [0, 0], sizes = [16, 8], strides = [1, 1]} : vector<256x8xf32> to vector<16x8xf32>
    %c1_84 = arith.constant 1 : index
    %c1_85 = arith.constant 1 : index
    %c0_86 = arith.constant 0 : index
    %79 = vector.load %arg9[%c1_84, %c1_85, %c0_86] : memref<18x18x8xf32, #tpu.memory_space<vmem>>, vector<1x16x8xf32>
    %80 = vector.shape_cast %79 : vector<1x16x8xf32> to vector<16x8xf32>
    %81 = vector.shape_cast %78 : vector<16x8xf32> to vector<1x16x8xf32>
    tpu.vector_store %arg9[%c1_84, %c1_85, %c0_86], %81 {strides = array<i32>} : memref<18x18x8xf32, #tpu.memory_space<vmem>>, vector<1x16x8xf32>,
    %82 = vector.extract_strided_slice %75 {offsets = [16, 0], sizes = [16, 8], strides = [1, 1]} : vector<256x8xf32> to vector<16x8xf32>
    %c2_87 = arith.constant 2 : index
    %c1_88 = arith.constant 1 : index
    %c0_89 = arith.constant 0 : index
    %83 = vector.load %arg9[%c2_87, %c1_88, %c0_89] : memref<18x18x8xf32, #tpu.memory_space<vmem>>, vector<1x16x8xf32>
    %84 = vector.shape_cast %83 : vector<1x16x8xf32> to vector<16x8xf32>
    %85 = vector.shape_cast %82 : vector<16x8xf32> to vector<1x16x8xf32>
    tpu.vector_store %arg9[%c2_87, %c1_88, %c0_89], %85 {strides = array<i32>} : memref<18x18x8xf32, #tpu.memory_space<vmem>>, vector<1x16x8xf32>,
    %86 = vector.extract_strided_slice %75 {offsets = [32, 0], sizes = [16, 8], strides = [1, 1]} : vector<256x8xf32> to vector<16x8xf32>
    %c3 = arith.constant 3 : index
    %c1_90 = arith.constant 1 : index
    %c0_91 = arith.constant 0 : index
    %87 = vector.load %arg9[%c3, %c1_90, %c0_91] : memref<18x18x8xf32, #tpu.memory_space<vmem>>, vector<1x16x8xf32>
    %88 = vector.shape_cast %87 : vector<1x16x8xf32> to vector<16x8xf32>
    %89 = vector.shape_cast %86 : vector<16x8xf32> to vector<1x16x8xf32>
    tpu.vector_store %arg9[%c3, %c1_90, %c0_91], %89 {strides = array<i32>} : memref<18x18x8xf32, #tpu.memory_space<vmem>>, vector<1x16x8xf32>,
    %90 = vector.extract_strided_slice %75 {offsets = [48, 0], sizes = [16, 8], strides = [1, 1]} : vector<256x8xf32> to vector<16x8xf32>
    %c4 = arith.constant 4 : index
    %c1_92 = arith.constant 1 : index
    %c0_93 = arith.constant 0 : index
    %91 = vector.load %arg9[%c4, %c1_92, %c0_93] : memref<18x18x8xf32, #tpu.memory_space<vmem>>, vector<1x16x8xf32>
    %92 = vector.shape_cast %91 : vector<1x16x8xf32> to vector<16x8xf32>
    %93 = vector.shape_cast %90 : vector<16x8xf32> to vector<1x16x8xf32>
    tpu.vector_store %arg9[%c4, %c1_92, %c0_93], %93 {strides = array<i32>} : memref<18x18x8xf32, #tpu.memory_space<vmem>>, vector<1x16x8xf32>,
    %94 = vector.extract_strided_slice %75 {offsets = [64, 0], sizes = [16, 8], strides = [1, 1]} : vector<256x8xf32> to vector<16x8xf32>
    %c5 = arith.constant 5 : index
    %c1_94 = arith.constant 1 : index
    %c0_95 = arith.constant 0 : index
    %95 = vector.load %arg9[%c5, %c1_94, %c0_95] : memref<18x18x8xf32, #tpu.memory_space<vmem>>, vector<1x16x8xf32>
    %96 = vector.shape_cast %95 : vector<1x16x8xf32> to vector<16x8xf32>
    %97 = vector.shape_cast %94 : vector<16x8xf32> to vector<1x16x8xf32>
    tpu.vector_store %arg9[%c5, %c1_94, %c0_95], %97 {strides = array<i32>} : memref<18x18x8xf32, #tpu.memory_space<vmem>>, vector<1x16x8xf32>,
    %98 = vector.extract_strided_slice %75 {offsets = [80, 0], sizes = [16, 8], strides = [1, 1]} : vector<256x8xf32> to vector<16x8xf32>
    %c6 = arith.constant 6 : index
    %c1_96 = arith.constant 1 : index
    %c0_97 = arith.constant 0 : index
    %99 = vector.load %arg9[%c6, %c1_96, %c0_97] : memref<18x18x8xf32, #tpu.memory_space<vmem>>, vector<1x16x8xf32>
    %100 = vector.shape_cast %99 : vector<1x16x8xf32> to vector<16x8xf32>
    %101 = vector.shape_cast %98 : vector<16x8xf32> to vector<1x16x8xf32>
    tpu.vector_store %arg9[%c6, %c1_96, %c0_97], %101 {strides = array<i32>} : memref<18x18x8xf32, #tpu.memory_space<vmem>>, vector<1x16x8xf32>,
    %102 = vector.extract_strided_slice %75 {offsets = [96, 0], sizes = [16, 8], strides = [1, 1]} : vector<256x8xf32> to vector<16x8xf32>
    %c7 = arith.constant 7 : index
    %c1_98 = arith.constant 1 : index
    %c0_99 = arith.constant 0 : index
    %103 = vector.load %arg9[%c7, %c1_98, %c0_99] : memref<18x18x8xf32, #tpu.memory_space<vmem>>, vector<1x16x8xf32>
    %104 = vector.shape_cast %103 : vector<1x16x8xf32> to vector<16x8xf32>
    %105 = vector.shape_cast %102 : vector<16x8xf32> to vector<1x16x8xf32>
    tpu.vector_store %arg9[%c7, %c1_98, %c0_99], %105 {strides = array<i32>} : memref<18x18x8xf32, #tpu.memory_space<vmem>>, vector<1x16x8xf32>,
    %106 = vector.extract_strided_slice %75 {offsets = [112, 0], sizes = [16, 8], strides = [1, 1]} : vector<256x8xf32> to vector<16x8xf32>
    %c8 = arith.constant 8 : index
    %c1_100 = arith.constant 1 : index
    %c0_101 = arith.constant 0 : index
    %107 = vector.load %arg9[%c8, %c1_100, %c0_101] : memref<18x18x8xf32, #tpu.memory_space<vmem>>, vector<1x16x8xf32>
    %108 = vector.shape_cast %107 : vector<1x16x8xf32> to vector<16x8xf32>
    %109 = vector.shape_cast %106 : vector<16x8xf32> to vector<1x16x8xf32>
    tpu.vector_store %arg9[%c8, %c1_100, %c0_101], %109 {strides = array<i32>} : memref<18x18x8xf32, #tpu.memory_space<vmem>>, vector<1x16x8xf32>,
    %110 = vector.extract_strided_slice %75 {offsets = [128, 0], sizes = [16, 8], strides = [1, 1]} : vector<256x8xf32> to vector<16x8xf32>
    %c9 = arith.constant 9 : index
    %c1_102 = arith.constant 1 : index
    %c0_103 = arith.constant 0 : index
    %111 = vector.load %arg9[%c9, %c1_102, %c0_103] : memref<18x18x8xf32, #tpu.memory_space<vmem>>, vector<1x16x8xf32>
    %112 = vector.shape_cast %111 : vector<1x16x8xf32> to vector<16x8xf32>
    %113 = vector.shape_cast %110 : vector<16x8xf32> to vector<1x16x8xf32>
    tpu.vector_store %arg9[%c9, %c1_102, %c0_103], %113 {strides = array<i32>} : memref<18x18x8xf32, #tpu.memory_space<vmem>>, vector<1x16x8xf32>,
    %114 = vector.extract_strided_slice %75 {offsets = [144, 0], sizes = [16, 8], strides = [1, 1]} : vector<256x8xf32> to vector<16x8xf32>
    %c10 = arith.constant 10 : index
    %c1_104 = arith.constant 1 : index
    %c0_105 = arith.constant 0 : index
    %115 = vector.load %arg9[%c10, %c1_104, %c0_105] : memref<18x18x8xf32, #tpu.memory_space<vmem>>, vector<1x16x8xf32>
    %116 = vector.shape_cast %115 : vector<1x16x8xf32> to vector<16x8xf32>
    %117 = vector.shape_cast %114 : vector<16x8xf32> to vector<1x16x8xf32>
    tpu.vector_store %arg9[%c10, %c1_104, %c0_105], %117 {strides = array<i32>} : memref<18x18x8xf32, #tpu.memory_space<vmem>>, vector<1x16x8xf32>,
    %118 = vector.extract_strided_slice %75 {offsets = [160, 0], sizes = [16, 8], strides = [1, 1]} : vector<256x8xf32> to vector<16x8xf32>
    %c11 = arith.constant 11 : index
    %c1_106 = arith.constant 1 : index
    %c0_107 = arith.constant 0 : index
    %119 = vector.load %arg9[%c11, %c1_106, %c0_107] : memref<18x18x8xf32, #tpu.memory_space<vmem>>, vector<1x16x8xf32>
    %120 = vector.shape_cast %119 : vector<1x16x8xf32> to vector<16x8xf32>
    %121 = vector.shape_cast %118 : vector<16x8xf32> to vector<1x16x8xf32>
    tpu.vector_store %arg9[%c11, %c1_106, %c0_107], %121 {strides = array<i32>} : memref<18x18x8xf32, #tpu.memory_space<vmem>>, vector<1x16x8xf32>,
    %122 = vector.extract_strided_slice %75 {offsets = [176, 0], sizes = [16, 8], strides = [1, 1]} : vector<256x8xf32> to vector<16x8xf32>
    %c12 = arith.constant 12 : index
    %c1_108 = arith.constant 1 : index
    %c0_109 = arith.constant 0 : index
    %123 = vector.load %arg9[%c12, %c1_108, %c0_109] : memref<18x18x8xf32, #tpu.memory_space<vmem>>, vector<1x16x8xf32>
    %124 = vector.shape_cast %123 : vector<1x16x8xf32> to vector<16x8xf32>
    %125 = vector.shape_cast %122 : vector<16x8xf32> to vector<1x16x8xf32>
    tpu.vector_store %arg9[%c12, %c1_108, %c0_109], %125 {strides = array<i32>} : memref<18x18x8xf32, #tpu.memory_space<vmem>>, vector<1x16x8xf32>,
    %126 = vector.extract_strided_slice %75 {offsets = [192, 0], sizes = [16, 8], strides = [1, 1]} : vector<256x8xf32> to vector<16x8xf32>
    %c13 = arith.constant 13 : index
    %c1_110 = arith.constant 1 : index
    %c0_111 = arith.constant 0 : index
    %127 = vector.load %arg9[%c13, %c1_110, %c0_111] : memref<18x18x8xf32, #tpu.memory_space<vmem>>, vector<1x16x8xf32>
    %128 = vector.shape_cast %127 : vector<1x16x8xf32> to vector<16x8xf32>
    %129 = vector.shape_cast %126 : vector<16x8xf32> to vector<1x16x8xf32>
    tpu.vector_store %arg9[%c13, %c1_110, %c0_111], %129 {strides = array<i32>} : memref<18x18x8xf32, #tpu.memory_space<vmem>>, vector<1x16x8xf32>,
    %130 = vector.extract_strided_slice %75 {offsets = [208, 0], sizes = [16, 8], strides = [1, 1]} : vector<256x8xf32> to vector<16x8xf32>
    %c14 = arith.constant 14 : index
    %c1_112 = arith.constant 1 : index
    %c0_113 = arith.constant 0 : index
    %131 = vector.load %arg9[%c14, %c1_112, %c0_113] : memref<18x18x8xf32, #tpu.memory_space<vmem>>, vector<1x16x8xf32>
    %132 = vector.shape_cast %131 : vector<1x16x8xf32> to vector<16x8xf32>
    %133 = vector.shape_cast %130 : vector<16x8xf32> to vector<1x16x8xf32>
    tpu.vector_store %arg9[%c14, %c1_112, %c0_113], %133 {strides = array<i32>} : memref<18x18x8xf32, #tpu.memory_space<vmem>>, vector<1x16x8xf32>,
    %134 = vector.extract_strided_slice %75 {offsets = [224, 0], sizes = [16, 8], strides = [1, 1]} : vector<256x8xf32> to vector<16x8xf32>
    %c15 = arith.constant 15 : index
    %c1_114 = arith.constant 1 : index
    %c0_115 = arith.constant 0 : index
    %135 = vector.load %arg9[%c15, %c1_114, %c0_115] : memref<18x18x8xf32, #tpu.memory_space<vmem>>, vector<1x16x8xf32>
    %136 = vector.shape_cast %135 : vector<1x16x8xf32> to vector<16x8xf32>
    %137 = vector.shape_cast %134 : vector<16x8xf32> to vector<1x16x8xf32>
    tpu.vector_store %arg9[%c15, %c1_114, %c0_115], %137 {strides = array<i32>} : memref<18x18x8xf32, #tpu.memory_space<vmem>>, vector<1x16x8xf32>,
    %138 = vector.extract_strided_slice %75 {offsets = [240, 0], sizes = [16, 8], strides = [1, 1]} : vector<256x8xf32> to vector<16x8xf32>
    %c16 = arith.constant 16 : index
    %c1_116 = arith.constant 1 : index
    %c0_117 = arith.constant 0 : index
    %139 = vector.load %arg9[%c16, %c1_116, %c0_117] : memref<18x18x8xf32, #tpu.memory_space<vmem>>, vector<1x16x8xf32>
    %140 = vector.shape_cast %139 : vector<1x16x8xf32> to vector<16x8xf32>
    %141 = vector.shape_cast %138 : vector<16x8xf32> to vector<1x16x8xf32>
    tpu.vector_store %arg9[%c16, %c1_116, %c0_117], %141 {strides = array<i32>} : memref<18x18x8xf32, #tpu.memory_space<vmem>>, vector<1x16x8xf32>,
    %c0_118 = arith.constant 0 : index
    %c0_119 = arith.constant 0 : index
    %c0_120 = arith.constant 0 : index
    %142 = vector.load %arg9[%c0_118, %c0_119, %c0_120] : memref<18x18x8xf32, #tpu.memory_space<vmem>>, vector<16x16x8xf32>
    %143 = vector.shape_cast %142 : vector<16x16x8xf32> to vector<256x8xf32>
    %144 = arith.truncf %143 : vector<256x8xf32> to vector<256x8xbf16>
    %c0_121 = arith.constant 0 : index
    %c0_122 = arith.constant 0 : index
    %c0_123 = arith.constant 0 : index
    %c0_124 = arith.constant 0 : index
    %145 = vector.load %arg4[%c0_121, %c0_122, %c0_123, %c0_124] : memref<3x3x8x8xbf16, #tpu.memory_space<vmem>>, vector<1x1x8x8xbf16>
    %146 = vector.shape_cast %145 : vector<1x1x8x8xbf16> to vector<8x8xbf16>
    %cst_125 = arith.constant dense<0.000000e+00> : vector<256x8xf32>
    %147 = tpu.matmul %144, %146, %cst_125 {dimension_numbers = #tpu.dot_dimension_numbers<[1], [0], [0], [1], [0, 0, 1, 1], [], []>} : vector<256x8xbf16>, vector<8x8xbf16>, vector<256x8xf32> -> vector<256x8xf32>
    %c0_126 = arith.constant 0 : index
    %c1_127 = arith.constant 1 : index
    %c0_128 = arith.constant 0 : index
    %148 = vector.load %arg9[%c0_126, %c1_127, %c0_128] : memref<18x18x8xf32, #tpu.memory_space<vmem>>, vector<16x16x8xf32>
    %149 = vector.shape_cast %148 : vector<16x16x8xf32> to vector<256x8xf32>
    %150 = arith.truncf %149 : vector<256x8xf32> to vector<256x8xbf16>
    %c0_129 = arith.constant 0 : index
    %c1_130 = arith.constant 1 : index
    %c0_131 = arith.constant 0 : index
    %c0_132 = arith.constant 0 : index
    %151 = vector.load %arg4[%c0_129, %c1_130, %c0_131, %c0_132] : memref<3x3x8x8xbf16, #tpu.memory_space<vmem>>, vector<1x1x8x8xbf16>
    %152 = vector.shape_cast %151 : vector<1x1x8x8xbf16> to vector<8x8xbf16>
    %cst_133 = arith.constant dense<0.000000e+00> : vector<256x8xf32>
    %153 = tpu.matmul %150, %152, %cst_133 {dimension_numbers = #tpu.dot_dimension_numbers<[1], [0], [0], [1], [0, 0, 1, 1], [], []>} : vector<256x8xbf16>, vector<8x8xbf16>, vector<256x8xf32> -> vector<256x8xf32>
    %154 = arith.addf %147, %153 : vector<256x8xf32>
    %c0_134 = arith.constant 0 : index
    %c2_135 = arith.constant 2 : index
    %c0_136 = arith.constant 0 : index
    %155 = vector.load %arg9[%c0_134, %c2_135, %c0_136] : memref<18x18x8xf32, #tpu.memory_space<vmem>>, vector<16x16x8xf32>
    %156 = vector.shape_cast %155 : vector<16x16x8xf32> to vector<256x8xf32>
    %157 = arith.truncf %156 : vector<256x8xf32> to vector<256x8xbf16>
    %c0_137 = arith.constant 0 : index
    %c2_138 = arith.constant 2 : index
    %c0_139 = arith.constant 0 : index
    %c0_140 = arith.constant 0 : index
    %158 = vector.load %arg4[%c0_137, %c2_138, %c0_139, %c0_140] : memref<3x3x8x8xbf16, #tpu.memory_space<vmem>>, vector<1x1x8x8xbf16>
    %159 = vector.shape_cast %158 : vector<1x1x8x8xbf16> to vector<8x8xbf16>
    %cst_141 = arith.constant dense<0.000000e+00> : vector<256x8xf32>
    %160 = tpu.matmul %157, %159, %cst_141 {dimension_numbers = #tpu.dot_dimension_numbers<[1], [0], [0], [1], [0, 0, 1, 1], [], []>} : vector<256x8xbf16>, vector<8x8xbf16>, vector<256x8xf32> -> vector<256x8xf32>
    %161 = arith.addf %154, %160 : vector<256x8xf32>
    %c1_142 = arith.constant 1 : index
    %c0_143 = arith.constant 0 : index
    %c0_144 = arith.constant 0 : index
    %162 = vector.load %arg9[%c1_142, %c0_143, %c0_144] : memref<18x18x8xf32, #tpu.memory_space<vmem>>, vector<16x16x8xf32>
    %163 = vector.shape_cast %162 : vector<16x16x8xf32> to vector<256x8xf32>
    %164 = arith.truncf %163 : vector<256x8xf32> to vector<256x8xbf16>
    %c1_145 = arith.constant 1 : index
    %c0_146 = arith.constant 0 : index
    %c0_147 = arith.constant 0 : index
    %c0_148 = arith.constant 0 : index
    %165 = vector.load %arg4[%c1_145, %c0_146, %c0_147, %c0_148] : memref<3x3x8x8xbf16, #tpu.memory_space<vmem>>, vector<1x1x8x8xbf16>
    %166 = vector.shape_cast %165 : vector<1x1x8x8xbf16> to vector<8x8xbf16>
    %cst_149 = arith.constant dense<0.000000e+00> : vector<256x8xf32>
    %167 = tpu.matmul %164, %166, %cst_149 {dimension_numbers = #tpu.dot_dimension_numbers<[1], [0], [0], [1], [0, 0, 1, 1], [], []>} : vector<256x8xbf16>, vector<8x8xbf16>, vector<256x8xf32> -> vector<256x8xf32>
    %168 = arith.addf %161, %167 : vector<256x8xf32>
    %c1_150 = arith.constant 1 : index
    %c1_151 = arith.constant 1 : index
    %c0_152 = arith.constant 0 : index
    %169 = vector.load %arg9[%c1_150, %c1_151, %c0_152] : memref<18x18x8xf32, #tpu.memory_space<vmem>>, vector<16x16x8xf32>
    %170 = vector.shape_cast %169 : vector<16x16x8xf32> to vector<256x8xf32>
    %171 = arith.truncf %170 : vector<256x8xf32> to vector<256x8xbf16>
    %c1_153 = arith.constant 1 : index
    %c1_154 = arith.constant 1 : index
    %c0_155 = arith.constant 0 : index
    %c0_156 = arith.constant 0 : index
    %172 = vector.load %arg4[%c1_153, %c1_154, %c0_155, %c0_156] : memref<3x3x8x8xbf16, #tpu.memory_space<vmem>>, vector<1x1x8x8xbf16>
    %173 = vector.shape_cast %172 : vector<1x1x8x8xbf16> to vector<8x8xbf16>
    %cst_157 = arith.constant dense<0.000000e+00> : vector<256x8xf32>
    %174 = tpu.matmul %171, %173, %cst_157 {dimension_numbers = #tpu.dot_dimension_numbers<[1], [0], [0], [1], [0, 0, 1, 1], [], []>} : vector<256x8xbf16>, vector<8x8xbf16>, vector<256x8xf32> -> vector<256x8xf32>
    %175 = arith.addf %168, %174 : vector<256x8xf32>
    %c1_158 = arith.constant 1 : index
    %c2_159 = arith.constant 2 : index
    %c0_160 = arith.constant 0 : index
    %176 = vector.load %arg9[%c1_158, %c2_159, %c0_160] : memref<18x18x8xf32, #tpu.memory_space<vmem>>, vector<16x16x8xf32>
    %177 = vector.shape_cast %176 : vector<16x16x8xf32> to vector<256x8xf32>
    %178 = arith.truncf %177 : vector<256x8xf32> to vector<256x8xbf16>
    %c1_161 = arith.constant 1 : index
    %c2_162 = arith.constant 2 : index
    %c0_163 = arith.constant 0 : index
    %c0_164 = arith.constant 0 : index
    %179 = vector.load %arg4[%c1_161, %c2_162, %c0_163, %c0_164] : memref<3x3x8x8xbf16, #tpu.memory_space<vmem>>, vector<1x1x8x8xbf16>
    %180 = vector.shape_cast %179 : vector<1x1x8x8xbf16> to vector<8x8xbf16>
    %cst_165 = arith.constant dense<0.000000e+00> : vector<256x8xf32>
    %181 = tpu.matmul %178, %180, %cst_165 {dimension_numbers = #tpu.dot_dimension_numbers<[1], [0], [0], [1], [0, 0, 1, 1], [], []>} : vector<256x8xbf16>, vector<8x8xbf16>, vector<256x8xf32> -> vector<256x8xf32>
    %182 = arith.addf %175, %181 : vector<256x8xf32>
    %c2_166 = arith.constant 2 : index
    %c0_167 = arith.constant 0 : index
    %c0_168 = arith.constant 0 : index
    %183 = vector.load %arg9[%c2_166, %c0_167, %c0_168] : memref<18x18x8xf32, #tpu.memory_space<vmem>>, vector<16x16x8xf32>
    %184 = vector.shape_cast %183 : vector<16x16x8xf32> to vector<256x8xf32>
    %185 = arith.truncf %184 : vector<256x8xf32> to vector<256x8xbf16>
    %c2_169 = arith.constant 2 : index
    %c0_170 = arith.constant 0 : index
    %c0_171 = arith.constant 0 : index
    %c0_172 = arith.constant 0 : index
    %186 = vector.load %arg4[%c2_169, %c0_170, %c0_171, %c0_172] : memref<3x3x8x8xbf16, #tpu.memory_space<vmem>>, vector<1x1x8x8xbf16>
    %187 = vector.shape_cast %186 : vector<1x1x8x8xbf16> to vector<8x8xbf16>
    %cst_173 = arith.constant dense<0.000000e+00> : vector<256x8xf32>
    %188 = tpu.matmul %185, %187, %cst_173 {dimension_numbers = #tpu.dot_dimension_numbers<[1], [0], [0], [1], [0, 0, 1, 1], [], []>} : vector<256x8xbf16>, vector<8x8xbf16>, vector<256x8xf32> -> vector<256x8xf32>
    %189 = arith.addf %182, %188 : vector<256x8xf32>
    %c2_174 = arith.constant 2 : index
    %c1_175 = arith.constant 1 : index
    %c0_176 = arith.constant 0 : index
    %190 = vector.load %arg9[%c2_174, %c1_175, %c0_176] : memref<18x18x8xf32, #tpu.memory_space<vmem>>, vector<16x16x8xf32>
    %191 = vector.shape_cast %190 : vector<16x16x8xf32> to vector<256x8xf32>
    %192 = arith.truncf %191 : vector<256x8xf32> to vector<256x8xbf16>
    %c2_177 = arith.constant 2 : index
    %c1_178 = arith.constant 1 : index
    %c0_179 = arith.constant 0 : index
    %c0_180 = arith.constant 0 : index
    %193 = vector.load %arg4[%c2_177, %c1_178, %c0_179, %c0_180] : memref<3x3x8x8xbf16, #tpu.memory_space<vmem>>, vector<1x1x8x8xbf16>
    %194 = vector.shape_cast %193 : vector<1x1x8x8xbf16> to vector<8x8xbf16>
    %cst_181 = arith.constant dense<0.000000e+00> : vector<256x8xf32>
    %195 = tpu.matmul %192, %194, %cst_181 {dimension_numbers = #tpu.dot_dimension_numbers<[1], [0], [0], [1], [0, 0, 1, 1], [], []>} : vector<256x8xbf16>, vector<8x8xbf16>, vector<256x8xf32> -> vector<256x8xf32>
    %196 = arith.addf %189, %195 : vector<256x8xf32>
    %c2_182 = arith.constant 2 : index
    %c2_183 = arith.constant 2 : index
    %c0_184 = arith.constant 0 : index
    %197 = vector.load %arg9[%c2_182, %c2_183, %c0_184] : memref<18x18x8xf32, #tpu.memory_space<vmem>>, vector<16x16x8xf32>
    %198 = vector.shape_cast %197 : vector<16x16x8xf32> to vector<256x8xf32>
    %199 = arith.truncf %198 : vector<256x8xf32> to vector<256x8xbf16>
    %c2_185 = arith.constant 2 : index
    %c2_186 = arith.constant 2 : index
    %c0_187 = arith.constant 0 : index
    %c0_188 = arith.constant 0 : index
    %200 = vector.load %arg4[%c2_185, %c2_186, %c0_187, %c0_188] : memref<3x3x8x8xbf16, #tpu.memory_space<vmem>>, vector<1x1x8x8xbf16>
    %201 = vector.shape_cast %200 : vector<1x1x8x8xbf16> to vector<8x8xbf16>
    %cst_189 = arith.constant dense<0.000000e+00> : vector<256x8xf32>
    %202 = tpu.matmul %199, %201, %cst_189 {dimension_numbers = #tpu.dot_dimension_numbers<[1], [0], [0], [1], [0, 0, 1, 1], [], []>} : vector<256x8xbf16>, vector<8x8xbf16>, vector<256x8xf32> -> vector<256x8xf32>
    %203 = arith.addf %196, %202 : vector<256x8xf32>
    %c0_190 = arith.constant 0 : index
    %c0_191 = arith.constant 0 : index
    %204 = vector.load %arg5[%c0_190, %c0_191] : memref<1x8xf32, #tpu.memory_space<vmem>>, vector<1x8xf32>
    %205 = vector.broadcast %204 : vector<1x8xf32> to vector<256x8xf32>
    %206 = arith.addf %203, %205 : vector<256x8xf32>
    %c0_192 = arith.constant 0 : index
    %c1_193 = arith.constant 1 : index
    %c1_194 = arith.constant 1 : index
    %c0_195 = arith.constant 0 : index
    %207 = vector.load %arg1[%c0_192, %c1_193, %c1_194, %c0_195] : memref<1x18x18x4xf32, #tpu.memory_space<vmem>>, vector<1x16x16x4xf32>
    %208 = vector.shape_cast %207 : vector<1x16x16x4xf32> to vector<16x16x4xf32>
    %209 = vector.shape_cast %208 : vector<16x16x4xf32> to vector<256x4xf32>
    %210 = arith.truncf %209 : vector<256x4xf32> to vector<256x4xbf16>
    %c0_196 = arith.constant 0 : index
    %c0_197 = arith.constant 0 : index
    %211 = vector.load %arg6[%c0_196, %c0_197] : memref<4x8xbf16, #tpu.memory_space<vmem>>, vector<4x8xbf16>
    %cst_198 = arith.constant dense<0.000000e+00> : vector<256x8xf32>
    %212 = tpu.matmul %210, %211, %cst_198 {dimension_numbers = #tpu.dot_dimension_numbers<[1], [0], [0], [1], [0, 0, 1, 1], [], []>} : vector<256x4xbf16>, vector<4x8xbf16>, vector<256x8xf32> -> vector<256x8xf32>
    %c0_199 = arith.constant 0 : index
    %c0_200 = arith.constant 0 : index
    %213 = vector.load %arg7[%c0_199, %c0_200] : memref<1x8xf32, #tpu.memory_space<vmem>>, vector<1x8xf32>
    %214 = vector.broadcast %213 : vector<1x8xf32> to vector<256x8xf32>
    %215 = arith.addf %212, %214 : vector<256x8xf32>
    %216 = arith.addf %206, %215 : vector<256x8xf32>
    %cst_201 = arith.constant 0.000000e+00 : f32
    %217 = vector.broadcast %cst_201 : f32 to vector<256x8xf32>
    %218 = arith.maximumf %216, %217 : vector<256x8xf32>
    %c0_202 = arith.constant 0 : index
    %c0_203 = arith.constant 0 : index
    %c0_204 = arith.constant 0 : index
    %219 = vector.load %arg8[%c0_202, %c0_203, %c0_204] : memref<1x256x8xf32, #tpu.memory_space<vmem>>, vector<1x256x8xf32>
    %220 = vector.shape_cast %219 : vector<1x256x8xf32> to vector<256x8xf32>
    %221 = vector.shape_cast %218 : vector<256x8xf32> to vector<1x256x8xf32>
    tpu.vector_store %arg8[%c0_202, %c0_203, %c0_204], %221 {strides = array<i32>} : memref<1x256x8xf32, #tpu.memory_space<vmem>>, vector<1x256x8xf32>,
    return
  }
  func.func @transform_0(%arg0: i32) -> (i32, i32, i32, i32) {
    %c0_i32 = arith.constant 0 : i32
    %c0_i32_0 = arith.constant 0 : i32
    %c0_i32_1 = arith.constant 0 : i32
    %c0_i32_2 = arith.constant 0 : i32
    return %arg0, %c0_i32, %c0_i32_0, %c0_i32_1 : i32, i32, i32, i32
  }
  func.func @transform_1(%arg0: i32) -> (i32, i32, i32, i32) {
    %c0_i32 = arith.constant 0 : i32
    %c0_i32_0 = arith.constant 0 : i32
    %c0_i32_1 = arith.constant 0 : i32
    %c0_i32_2 = arith.constant 0 : i32
    %c0_i32_3 = arith.constant 0 : i32
    return %c0_i32, %c0_i32_0, %c0_i32_1, %c0_i32_2 : i32, i32, i32, i32
  }
  func.func @transform_2(%arg0: i32) -> (i32, i32) {
    %c0_i32 = arith.constant 0 : i32
    %c0_i32_0 = arith.constant 0 : i32
    %c0_i32_1 = arith.constant 0 : i32
    return %c0_i32, %c0_i32_0 : i32, i32
  }
  func.func @transform_3(%arg0: i32) -> (i32, i32, i32, i32) {
    %c0_i32 = arith.constant 0 : i32
    %c0_i32_0 = arith.constant 0 : i32
    %c0_i32_1 = arith.constant 0 : i32
    %c0_i32_2 = arith.constant 0 : i32
    %c0_i32_3 = arith.constant 0 : i32
    return %c0_i32, %c0_i32_0, %c0_i32_1, %c0_i32_2 : i32, i32, i32, i32
  }
  func.func @transform_4(%arg0: i32) -> (i32, i32) {
    %c0_i32 = arith.constant 0 : i32
    %c0_i32_0 = arith.constant 0 : i32
    %c0_i32_1 = arith.constant 0 : i32
    return %c0_i32, %c0_i32_0 : i32, i32
  }
  func.func @transform_5(%arg0: i32) -> (i32, i32) {
    %c0_i32 = arith.constant 0 : i32
    %c0_i32_0 = arith.constant 0 : i32
    %c0_i32_1 = arith.constant 0 : i32
    return %c0_i32, %c0_i32_0 : i32, i32
  }
  func.func @transform_6(%arg0: i32) -> (i32, i32) {
    %c0_i32 = arith.constant 0 : i32
    %c0_i32_0 = arith.constant 0 : i32
    %c0_i32_1 = arith.constant 0 : i32
    return %c0_i32, %c0_i32_0 : i32, i32
  }
  func.func @transform_7(%arg0: i32) -> (i32, i32, i32) {
    %c0_i32 = arith.constant 0 : i32
    %c0_i32_0 = arith.constant 0 : i32
    %c0_i32_1 = arith.constant 0 : i32
    return %arg0, %c0_i32, %c0_i32_0 : i32, i32, i32
  }
}

</mosaic_0001>

<llo_original>
// kernel: tpu_custom_call.1
$region0: #{tpu_custom_call.1}
  #allocation0 [shape = 'u32[]', space=smem, size = 0x4, offset = 0x4, fixed_abs, tag = 'smem constant byte address 0x4 - core index']
  #allocation1 [shape = 'u32[144,128]{1,0:T(1,128)}', space=vmem, size = 0x12000, scoped, tag = 'internal scratch']
  #allocation2 [shape = 'f32[18,18,8]{2,1,0:T(8,128)}', space=vmem, size = 0x36000, scoped, tag = 'scratch operand']
  %s0 = inlined_call_operand.vmem [shape: f32[2,18,18,4], index: 0, kind: input, shape index: {}]
  %s1 = inlined_call_operand.vmem [shape: bf16[3,3,4,8], index: 1, kind: input, shape index: {}]
  %s2 = inlined_call_operand.vmem [shape: f32[1,8], index: 2, kind: input, shape index: {}]
  %s3 = inlined_call_operand.vmem [shape: bf16[3,3,8,8], index: 3, kind: input, shape index: {}]
  %s4 = inlined_call_operand.vmem [shape: f32[1,8], index: 4, kind: input, shape index: {}]
  %s5 = inlined_call_operand.vmem [shape: bf16[4,8], index: 5, kind: input, shape index: {}]
  %s6 = inlined_call_operand.vmem [shape: f32[1,8], index: 6, kind: input, shape index: {}]
  %s7 = inlined_call_operand.vmem [shape: f32[2,256,8], index: 7, kind: output, shape index: {}]
  %s8 = sld [smem:[#allocation0]]
  $region61: #{tpu_custom_call.1} parent=0
    _
  %s10 = ssub.s32 1, %s8
  %s11 = scalar_select 0, %s10, %s8
  loop: start=0, step=1, limit=4
  $region2: #{tpu_custom_call.1} parent=0 // loop_pre_header
    _
  $region3: #{tpu_custom_call.1} parent=0 // loop_header
    %s13 = sphi 0, %s17
    %p14 = scmp.ge.s32.totalorder %s13, 4
    %s23 = sphi 0, %s25
    %s26 = sphi 0, %s23
    %s27 = sphi 0, %s26
    %s43 = sphi 0, %s27
    %s47 = sphi 0, %s47
    %s49 = sphi 0, %s47
    %s50 = sphi 0, %s49
    %s64 = sphi 0, %s50
    %s68 = sphi 0, %s68
    %s70 = sphi 0, %s68
    %s71 = sphi 0, %s70
    %s85 = sphi 0, %s71
    %s89 = sphi 0, %s89
    %s91 = sphi 0, %s89
    %s92 = sphi 0, %s91
    %s106 = sphi 0, %s92
    %s110 = sphi 0, %s110
    %s112 = sphi 0, %s110
    %s113 = sphi 0, %s112
    %s127 = sphi 0, %s113
    %s131 = sphi 0, %s131
    %s133 = sphi 0, %s131
    %s134 = sphi 0, %s133
    %s148 = sphi 0, %s134
    %s152 = sphi 0, %s152
    %s154 = sphi 0, %s152
    %s155 = sphi 0, %s154
    %s169 = sphi 0, %s155
    %s175 = sphi 0, %s177
    %s178 = sphi 0, %s175
    %s179 = sphi 0, %s178
    %s195 = sphi 0, %s179
  $region4: #{tpu_custom_call.1} parent=0 // loop_header_branch
    %16 = sbr.rel (%p14) target = $region8
  $region5: #{tpu_custom_call.1} parent=0 // loop_body
    %s18 = ssub.s32 %s13, 1
    %s19 = ssub.s32 %s13, 2
    %s20 = sadd.s32 %s13, 1
    %s21 = ssub.s32 %s13, %s20
    %p22 = scmp.eq.s32.totalorder %s21, 0
    %s24 = sadd.s32 %s23, 1
    %s25 = scalar_select %p22, %s23, %s24
    %p28 = pneg %p22
    %p29 = scmp.eq.s32.totalorder %s13, 1
    %p30 = por %p28, %p29
    %p31 = scmp.ne.s32.totalorder %s23, %s26
    %p32 = scmp.eq.s32.totalorder %s13, 0
    %p33 = por %p31, %p32
    %p34 = scmp.ne.s32.totalorder %s23, %s26
    %p35 = scmp.eq.s32.totalorder %s18, 1
    %p36 = por %p34, %p35
    %p37 = scmp.ne.s32.totalorder %s26, %s27
    %p38 = scmp.eq.s32.totalorder %s18, 0
    %p39 = por %p37, %p38
    %p40 = scmp.ne.s32.totalorder %s26, %s27
    %p41 = scmp.eq.s32.totalorder %s19, 1
    %p42 = por %p40, %p41
    %p44 = scmp.ne.s32.totalorder %s27, %s43
    %p45 = scmp.eq.s32.totalorder %s19, 0
    %p46 = por %p44, %p45
    %s48 = sadd.s32 %s47, 1
    %p51 = scmp.eq.s32.totalorder %s13, 1
    %p52 = scmp.ne.s32.totalorder %s47, %s49
    %p53 = scmp.eq.s32.totalorder %s13, 0
    %p54 = por %p52, %p53
    %p55 = scmp.ne.s32.totalorder %s47, %s49
    %p56 = scmp.eq.s32.totalorder %s18, 1
    %p57 = por %p55, %p56
    %p58 = scmp.ne.s32.totalorder %s49, %s50
    %p59 = scmp.eq.s32.totalorder %s18, 0
    %p60 = por %p58, %p59
    %p61 = scmp.ne.s32.totalorder %s49, %s50
    %p62 = scmp.eq.s32.totalorder %s19, 1
    %p63 = por %p61, %p62
    %p65 = scmp.ne.s32.totalorder %s50, %s64
    %p66 = scmp.eq.s32.totalorder %s19, 0
    %p67 = por %p65, %p66
    %s69 = sadd.s32 %s68, 1
    %p72 = scmp.eq.s32.totalorder %s13, 1
    %p73 = scmp.ne.s32.totalorder %s68, %s70
    %p74 = scmp.eq.s32.totalorder %s13, 0
    %p75 = por %p73, %p74
    %p76 = scmp.ne.s32.totalorder %s68, %s70
    %p77 = scmp.eq.s32.totalorder %s18, 1
    %p78 = por %p76, %p77
    %p79 = scmp.ne.s32.totalorder %s70, %s71
    %p80 = scmp.eq.s32.totalorder %s18, 0
    %p81 = por %p79, %p80
    %p82 = scmp.ne.s32.totalorder %s70, %s71
    %p83 = scmp.eq.s32.totalorder %s19, 1
    %p84 = por %p82, %p83
    %p86 = scmp.ne.s32.totalorder %s71, %s85
    %p87 = scmp.eq.s32.totalorder %s19, 0
    %p88 = por %p86, %p87
    %s90 = sadd.s32 %s89, 1
    %p93 = scmp.eq.s32.totalorder %s13, 1
    %p94 = scmp.ne.s32.totalorder %s89, %s91
    %p95 = scmp.eq.s32.totalorder %s13, 0
    %p96 = por %p94, %p95
    %p97 = scmp.ne.s32.totalorder %s89, %s91
    %p98 = scmp.eq.s32.totalorder %s18, 1
    %p99 = por %p97, %p98
    %p100 = scmp.ne.s32.totalorder %s91, %s92
    %p101 = scmp.eq.s32.totalorder %s18, 0
    %p102 = por %p100, %p101
    %p103 = scmp.ne.s32.totalorder %s91, %s92
    %p104 = scmp.eq.s32.totalorder %s19, 1
    %p105 = por %p103, %p104
    %p107 = scmp.ne.s32.totalorder %s92, %s106
    %p108 = scmp.eq.s32.totalorder %s19, 0
    %p109 = por %p107, %p108
    %s111 = sadd.s32 %s110, 1
    %p114 = scmp.eq.s32.totalorder %s13, 1
    %p115 = scmp.ne.s32.totalorder %s110, %s112
    %p116 = scmp.eq.s32.totalorder %s13, 0
    %p117 = por %p115, %p116
    %p118 = scmp.ne.s32.totalorder %s110, %s112
    %p119 = scmp.eq.s32.totalorder %s18, 1
    %p120 = por %p118, %p119
    %p121 = scmp.ne.s32.totalorder %s112, %s113
    %p122 = scmp.eq.s32.totalorder %s18, 0
    %p123 = por %p121, %p122
    %p124 = scmp.ne.s32.totalorder %s112, %s113
    %p125 = scmp.eq.s32.totalorder %s19, 1
    %p126 = por %p124, %p125
    %p128 = scmp.ne.s32.totalorder %s113, %s127
    %p129 = scmp.eq.s32.totalorder %s19, 0
    %p130 = por %p128, %p129
    %s132 = sadd.s32 %s131, 1
    %p135 = scmp.eq.s32.totalorder %s13, 1
    %p136 = scmp.ne.s32.totalorder %s131, %s133
    %p137 = scmp.eq.s32.totalorder %s13, 0
    %p138 = por %p136, %p137
    %p139 = scmp.ne.s32.totalorder %s131, %s133
    %p140 = scmp.eq.s32.totalorder %s18, 1
    %p141 = por %p139, %p140
    %p142 = scmp.ne.s32.totalorder %s133, %s134
    %p143 = scmp.eq.s32.totalorder %s18, 0
    %p144 = por %p142, %p143
    %p145 = scmp.ne.s32.totalorder %s133, %s134
    %p146 = scmp.eq.s32.totalorder %s19, 1
    %p147 = por %p145, %p146
    %p149 = scmp.ne.s32.totalorder %s134, %s148
    %p150 = scmp.eq.s32.totalorder %s19, 0
    %p151 = por %p149, %p150
    %s153 = sadd.s32 %s152, 1
    %p156 = scmp.eq.s32.totalorder %s13, 1
    %p157 = scmp.ne.s32.totalorder %s152, %s154
    %p158 = scmp.eq.s32.totalorder %s13, 0
    %p159 = por %p157, %p158
    %p160 = scmp.ne.s32.totalorder %s152, %s154
    %p161 = scmp.eq.s32.totalorder %s18, 1
    %p162 = por %p160, %p161
    %p163 = scmp.ne.s32.totalorder %s154, %s155
    %p164 = scmp.eq.s32.totalorder %s18, 0
    %p165 = por %p163, %p164
    %p166 = scmp.ne.s32.totalorder %s154, %s155
    %p167 = scmp.eq.s32.totalorder %s19, 1
    %p168 = por %p166, %p167
    %p170 = scmp.ne.s32.totalorder %s155, %s169
    %p171 = scmp.eq.s32.totalorder %s19, 0
    %p172 = por %p170, %p171
    %s173 = ssub.s32 %s13, %s20
    %p174 = scmp.eq.s32.totalorder %s173, 0
    %s176 = sadd.s32 %s175, 1
    %s177 = scalar_select %p174, %s175, %s176
    %p180 = pneg %p174
    %p181 = scmp.eq.s32.totalorder %s13, 1
    %p182 = por %p180, %p181
    %p183 = scmp.ne.s32.totalorder %s175, %s178
    %p184 = scmp.eq.s32.totalorder %s13, 0
    %p185 = por %p183, %p184
    %p186 = scmp.ne.s32.totalorder %s175, %s178
    %p187 = scmp.eq.s32.totalorder %s18, 1
    %p188 = por %p186, %p187
    %p189 = scmp.ne.s32.totalorder %s178, %s179
    %p190 = scmp.eq.s32.totalorder %s18, 0
    %p191 = por %p189, %p190
    %p192 = scmp.ne.s32.totalorder %s178, %s179
    %p193 = scmp.eq.s32.totalorder %s19, 1
    %p194 = por %p192, %p193
    %p196 = scmp.ne.s32.totalorder %s179, %s195
    %p197 = scmp.eq.s32.totalorder %s19, 0
    %p198 = por %p196, %p197
    %p199 = scmp.le.s32.totalorder 1, %s13
    %p200 = scmp.lt.s32.totalorder %s13, 3
    %p201 = pnand %p199, %p200
    %p202 = pneg %p201
    // Predicated region
    $region9: #{tpu_custom_call.1} parent=5 // pred_check
      _
    $region10: #{tpu_custom_call.1} parent=5 // pred_check_branch
      %204 = sbr.rel (%p201) target = $region12
    $region11: #{tpu_custom_call.1} parent=5 // pred_region
      %s205 = ssub.s32 %s13, 1
      // Predicated region
      $region13: #{tpu_custom_call.1} parent=11 // pred_check
        %p206 = pneg %p60
      $region14: #{tpu_custom_call.1} parent=11 // pred_check_branch
        %208 = sbr.rel (%p206) target = $region16
      $region15: #{tpu_custom_call.1} parent=11 // pred_region
        _
      $region16: #{tpu_custom_call.1} parent=11 // pred_fallthru
        _
      // Predicated region
      $region17: #{tpu_custom_call.1} parent=11 // pred_check
        %p209 = pneg %p81
      $region18: #{tpu_custom_call.1} parent=11 // pred_check_branch
        %211 = sbr.rel (%p209) target = $region20
      $region19: #{tpu_custom_call.1} parent=11 // pred_region
        _
      $region20: #{tpu_custom_call.1} parent=11 // pred_fallthru
        _
      // Predicated region
      $region21: #{tpu_custom_call.1} parent=11 // pred_check
        %p212 = pneg %p102
      $region22: #{tpu_custom_call.1} parent=11 // pred_check_branch
        %214 = sbr.rel (%p212) target = $region24
      $region23: #{tpu_custom_call.1} parent=11 // pred_region
        _
      $region24: #{tpu_custom_call.1} parent=11 // pred_fallthru
        _
      // Predicated region
      $region25: #{tpu_custom_call.1} parent=11 // pred_check
        %p215 = pneg %p123
      $region26: #{tpu_custom_call.1} parent=11 // pred_check_branch
        %217 = sbr.rel (%p215) target = $region28
      $region27: #{tpu_custom_call.1} parent=11 // pred_region
        _
      $region28: #{tpu_custom_call.1} parent=11 // pred_fallthru
        _
      // Predicated region
      $region29: #{tpu_custom_call.1} parent=11 // pred_check
        %p218 = pneg %p144
      $region30: #{tpu_custom_call.1} parent=11 // pred_check_branch
        %220 = sbr.rel (%p218) target = $region32
      $region31: #{tpu_custom_call.1} parent=11 // pred_region
        _
      $region32: #{tpu_custom_call.1} parent=11 // pred_fallthru
        _
      // Predicated region
      $region33: #{tpu_custom_call.1} parent=11 // pred_check
        %p221 = pneg %p165
      $region34: #{tpu_custom_call.1} parent=11 // pred_check_branch
        %223 = sbr.rel (%p221) target = $region36
      $region35: #{tpu_custom_call.1} parent=11 // pred_region
        _
      $region36: #{tpu_custom_call.1} parent=11 // pred_fallthru
        _
    $region12: #{tpu_custom_call.1} parent=5 // pred_fallthru
      _
    %p224 = scmp.lt.s32.totalorder %s13, 2
    // Predicated region
    $region37: #{tpu_custom_call.1} parent=5 // pred_check
      %p225 = pneg %p224
    $region38: #{tpu_custom_call.1} parent=5 // pred_check_branch
      %227 = sbr.rel (%p225) target = $region40
    $region39: #{tpu_custom_call.1} parent=5 // pred_region
      // Predicated region
      $region41: #{tpu_custom_call.1} parent=39 // pred_check
        %p228 = pneg %p33
      $region42: #{tpu_custom_call.1} parent=39 // pred_check_branch
        %230 = sbr.rel (%p228) target = $region44
      $region43: #{tpu_custom_call.1} parent=39 // pred_region
        %p231 = scmp.lt.s32.totalorder %s13, 1
        %s232 = scalar_select %p231, %s13, 1
        %s233 = smul.addr %s232, 54
        %s234 = smul.addr %s233, 8
        %s235 = scalar_lea.vmem %s0, %s234
      $region44: #{tpu_custom_call.1} parent=39 // pred_fallthru
        _
    $region40: #{tpu_custom_call.1} parent=5 // pred_fallthru
      _
    %p236 = scmp.le.s32.totalorder 1, %s13
    %p237 = scmp.lt.s32.totalorder %s13, 3
    %p238 = pnand %p236, %p237
    %p239 = pneg %p238
    // Predicated region
    $region45: #{tpu_custom_call.1} parent=5 // pred_check
      _
    $region46: #{tpu_custom_call.1} parent=5 // pred_check_branch
      %241 = sbr.rel (%p238) target = $region48
    $region47: #{tpu_custom_call.1} parent=5 // pred_region
      %s242 = ssub.s32 %s13, 1
      %p243 = scmp.lt.s32.totalorder %s18, 1
      %s244 = scalar_select %p243, %s18, 1
      %s245 = smul.addr %s244, 54
      %s246 = smul.addr %s245, 8
      %s247 = scalar_lea.vmem %s0, %s246
      %p248 = pneg %p39
      %p249 = pneg %p36
      %p250 = pneg %p60
      %p251 = pneg %p57
      %p252 = pneg %p81
      %p253 = pneg %p78
      %p254 = pneg %p102
      %p255 = pneg %p99
      %p256 = pneg %p123
      %p257 = pneg %p120
      %p258 = pneg %p144
      %p259 = pneg %p141
      %p260 = pneg %p165
      %p261 = pneg %p162
      %p262 = pneg %p191
      %p263 = pneg %p188
      %p264 = scmp.lt.s32.totalorder %s18, 1
      %s265 = scalar_select %p264, %s18, 1
      %s266 = smul.addr %s265, 32
      %s267 = smul.addr %s266, 8
      %s268 = scalar_lea.vmem %s7, %s267
      %p269 = scmp.lt.s32.totalorder %s18, 1
      %s270 = scalar_select %p269, %s18, 1
      %s271 = smul.addr %s270, 54
      %s272 = smul.addr %s271, 8
      %s273 = scalar_lea.vmem %s0, %s272
      %p274 = scmp.lt.s32.totalorder %s18, 1
      %s275 = scalar_select %p274, %s18, 1
      %s276 = smul.addr %s275, 32
      %s277 = smul.addr %s276, 8
      %s278 = scalar_lea.vmem %s7, %s277
      %v280 = vld [vmem:[%s273] sm:$0xff]
      %v281 = vld [vmem:[%s273 + $0x8] sm:$0xff]
      %v282 = vld [vmem:[%s273 + $0x18] sm:$0xff]
      %v283 = vld [vmem:[%s273 + $0x20] sm:$0xff]
      %v284 = vld [vmem:[%s273 + $0x30] sm:$0xff]
      %v285 = vld [vmem:[%s273 + $0x38] sm:$0xff]
      %v286 = vld [vmem:[%s273 + $0x48] sm:$0xff]
      %v287 = vld [vmem:[%s273 + $0x50] sm:$0xff]
      %v288 = vld [vmem:[%s273 + $0x60] sm:$0xff]
      %v289 = vld [vmem:[%s273 + $0x68] sm:$0xff]
      %v290 = vld [vmem:[%s273 + $0x78] sm:$0xff]
      %v291 = vld [vmem:[%s273 + $0x80] sm:$0xff]
      %v292 = vld [vmem:[%s273 + $0x90] sm:$0xff]
      %v293 = vld [vmem:[%s273 + $0x98] sm:$0xff]
      %v294 = vld [vmem:[%s273 + $0xa8] sm:$0xff]
      %v295 = vld [vmem:[%s273 + $0xb0] sm:$0xff]
      %v296 = vld [vmem:[%s273 + $0xc0] sm:$0xff]
      %v297 = vld [vmem:[%s273 + $0xc8] sm:$0xff]
      %v298 = vld [vmem:[%s273 + $0xd8] sm:$0xff]
      %v299 = vld [vmem:[%s273 + $0xe0] sm:$0xff]
      %v300 = vld [vmem:[%s273 + $0xf0] sm:$0xff]
      %v301 = vld [vmem:[%s273 + $0xf8] sm:$0xff]
      %v302 = vld [vmem:[%s273 + $0x108] sm:$0xff]
      %v303 = vld [vmem:[%s273 + $0x110] sm:$0xff]
      %v304 = vld [vmem:[%s273 + $0x120] sm:$0xff]
      %v305 = vld [vmem:[%s273 + $0x128] sm:$0xff]
      %v306 = vld [vmem:[%s273 + $0x138] sm:$0xff]
      %v307 = vld [vmem:[%s273 + $0x140] sm:$0xff]
      %v308 = vld [vmem:[%s273 + $0x150] sm:$0xff]
      %v309 = vld [vmem:[%s273 + $0x158] sm:$0xff]
      %v310 = vld [vmem:[%s273 + $0x168] sm:$0xff]
      %v311 = vld [vmem:[%s273 + $0x170] sm:$0xff]
      %v312 = vpack.c.bf16 %v281, %v280
      %v313 = vpack.c.bf16 %v283, %v282
      %v314 = vpack.c.bf16 %v285, %v284
      %v315 = vpack.c.bf16 %v287, %v286
      %v316 = vpack.c.bf16 %v289, %v288
      %v317 = vpack.c.bf16 %v291, %v290
      %v318 = vpack.c.bf16 %v293, %v292
      %v319 = vpack.c.bf16 %v295, %v294
      %v320 = vpack.c.bf16 %v297, %v296
      %v321 = vpack.c.bf16 %v299, %v298
      %v322 = vpack.c.bf16 %v301, %v300
      %v323 = vpack.c.bf16 %v303, %v302
      %v324 = vpack.c.bf16 %v305, %v304
      %v325 = vpack.c.bf16 %v307, %v306
      %v326 = vpack.c.bf16 %v309, %v308
      %v327 = vpack.c.bf16 %v311, %v310
      %v328 = vld [vmem:[%s1] sm:$0x3]
      %v329 = vld [vmem:[%s273 + $0x1] sm:$0xff]
      %v330 = vld [vmem:[%s273 + $0x9] sm:$0xff]
      %v331 = vld [vmem:[%s273 + $0x19] sm:$0xff]
      %v332 = vld [vmem:[%s273 + $0x21] sm:$0xff]
      %v333 = vld [vmem:[%s273 + $0x31] sm:$0xff]
      %v334 = vld [vmem:[%s273 + $0x39] sm:$0xff]
      %v335 = vld [vmem:[%s273 + $0x49] sm:$0xff]
      %v336 = vld [vmem:[%s273 + $0x51] sm:$0xff]
      %v337 = vld [vmem:[%s273 + $0x61] sm:$0xff]
      %v338 = vld [vmem:[%s273 + $0x69] sm:$0xff]
      %v339 = vld [vmem:[%s273 + $0x79] sm:$0xff]
      %v340 = vld [vmem:[%s273 + $0x81] sm:$0xff]
      %v341 = vld [vmem:[%s273 + $0x91] sm:$0xff]
      %v342 = vld [vmem:[%s273 + $0x99] sm:$0xff]
      %v343 = vld [vmem:[%s273 + $0xa9] sm:$0xff]
      %v344 = vld [vmem:[%s273 + $0xb1] sm:$0xff]
      %v345 = vld [vmem:[%s273 + $0xc1] sm:$0xff]
      %v346 = vld [vmem:[%s273 + $0xc9] sm:$0xff]
      %v347 = vld [vmem:[%s273 + $0xd9] sm:$0xff]
      %v348 = vld [vmem:[%s273 + $0xe1] sm:$0xff]
      %v349 = vld [vmem:[%s273 + $0xf1] sm:$0xff]
      %v350 = vld [vmem:[%s273 + $0xf9] sm:$0xff]
      %v351 = vld [vmem:[%s273 + $0x109] sm:$0xff]
      %v352 = vld [vmem:[%s273 + $0x111] sm:$0xff]
      %v353 = vld [vmem:[%s273 + $0x121] sm:$0xff]
      %v354 = vld [vmem:[%s273 + $0x129] sm:$0xff]
      %v355 = vld [vmem:[%s273 + $0x139] sm:$0xff]
      %v356 = vld [vmem:[%s273 + $0x141] sm:$0xff]
      %v357 = vld [vmem:[%s273 + $0x151] sm:$0xff]
      %v358 = vld [vmem:[%s273 + $0x159] sm:$0xff]
      %v359 = vld [vmem:[%s273 + $0x169] sm:$0xff]
      %v360 = vld [vmem:[%s273 + $0x171] sm:$0xff]
      %v361 = vpack.c.bf16 %v330, %v329
      %v362 = vpack.c.bf16 %v332, %v331
      %v363 = vpack.c.bf16 %v334, %v333
      %v364 = vpack.c.bf16 %v336, %v335
      %v365 = vpack.c.bf16 %v338, %v337
      %v366 = vpack.c.bf16 %v340, %v339
      %v367 = vpack.c.bf16 %v342, %v341
      %v368 = vpack.c.bf16 %v344, %v343
      %v369 = vpack.c.bf16 %v346, %v345
      %v370 = vpack.c.bf16 %v348, %v347
      %v371 = vpack.c.bf16 %v350, %v349
      %v372 = vpack.c.bf16 %v352, %v351
      %v373 = vpack.c.bf16 %v354, %v353
      %v374 = vpack.c.bf16 %v356, %v355
      %v375 = vpack.c.bf16 %v358, %v357
      %v376 = vpack.c.bf16 %v360, %v359
      %s377 = scalar_lea.vmem %s1, 2
      %v378 = vld [vmem:[%s377] sm:$0x3]
      %vm379 = vcmask 31744
      %v381 = vsel %vm379, %v361, 0
      %v384 = vsel %vm379, %v362, 0
      %v387 = vsel %vm379, %v363, 0
      %v390 = vsel %vm379, %v364, 0
      %v393 = vsel %vm379, %v365, 0
      %v396 = vsel %vm379, %v366, 0
      %v399 = vsel %vm379, %v367, 0
      %v402 = vsel %vm379, %v368, 0
      %v405 = vsel %vm379, %v369, 0
      %v408 = vsel %vm379, %v370, 0
      %v411 = vsel %vm379, %v371, 0
      %v414 = vsel %vm379, %v372, 0
      %v417 = vsel %vm379, %v373, 0
      %v420 = vsel %vm379, %v374, 0
      %v423 = vsel %vm379, %v375, 0
      %v426 = vsel %vm379, %v376, 0
      %vm428 = vcmask 1041408
      %v430 = vsel %vm428, %v378, 0
      %432 = vmatprep.subr.bf16.mxu0 0
      %433 = vmatpush1.bf16.msra.mxu0 %v430
      %434 = vmatprep.subr.bf16.mxu0 0
      %435 = vmatpush1.bf16.msra.mxu0 0
      %436 = vmatprep.subr.bf16.mxu0 0
      %437 = vmatpush1.bf16.msra.mxu0 0
      %438 = vmatprep.subr.bf16.mxu0 0
      %439 = vmatpush1.bf16.msra.mxu0 0
      %440 = vmatprep.subr.bf16.mxu0 0
      %441 = vmatpush1.bf16.msra.mxu0 0
      %442 = vmatprep.subr.bf16.mxu0 0
      %443 = vmatpush1.bf16.msra.mxu0 0
      %444 = vmatprep.subr.bf16.mxu0 0
      %445 = vmatpush1.bf16.msra.mxu0 0
      %446 = vmatprep.subr.bf16.mxu0 0
      %447 = vmatpush1.bf16.msra.mxu0 0
      %448 = vmatprep.subr.bf16.mxu0 0
      %449 = vmatpush1.bf16.msra.mxu0 0
      %450 = vmatprep.subr.bf16.mxu0 0
      %451 = vmatpush1.bf16.msra.mxu0 0
      %452 = vmatprep.subr.bf16.mxu0 0
      %453 = vmatpush1.bf16.msra.mxu0 0
      %454 = vmatprep.subr.bf16.mxu0 0
      %455 = vmatpush1.bf16.msra.mxu0 0
      %456 = vmatprep.subr.bf16.mxu0 0
      %457 = vmatpush1.bf16.msra.mxu0 0
      %458 = vmatprep.subr.bf16.mxu0 0
      %459 = vmatpush1.bf16.msra.mxu0 0
      %460 = vmatprep.subr.bf16.mxu0 0
      %461 = vmatpush1.bf16.msra.mxu0 0
      %462 = vmatprep.subr.bf16.mxu0 0
      %463 = vmatpush1.bf16.msra.mxu0 0
      %464 = vmatprep.mubr.bf16.mxu0 0
      %465 = vmatmul.mubr.bf16.gmra.mrb[0].mxu0 %v381
      %v466 = vpop.f32.mrb[0].mxu0
      %v467 = vadd.f32 0.0, %v466
      %v468 = vpop.f32.mrb[0].mxu0
      %v469 = vpop.f32.mrb[0].mxu0
      %v470 = vadd.f32 0.0, %v469
      %v471 = vpop.f32.mrb[0].mxu0
      %472 = vmatprep.mubr.bf16.mxu0 0
      %473 = vmatmul.mubr.bf16.gmra.mrb[0].mxu0 %v384
      %v474 = vpop.f32.mrb[0].mxu0
      %v475 = vadd.f32 0.0, %v474
      %v476 = vpop.f32.mrb[0].mxu0
      %v477 = vpop.f32.mrb[0].mxu0
      %v478 = vadd.f32 0.0, %v477
      %v479 = vpop.f32.mrb[0].mxu0
      %480 = vmatprep.mubr.bf16.mxu0 0
      %481 = vmatmul.mubr.bf16.gmra.mrb[0].mxu0 %v387
      %v482 = vpop.f32.mrb[0].mxu0
      %v483 = vadd.f32 0.0, %v482
      %v484 = vpop.f32.mrb[0].mxu0
      %v485 = vpop.f32.mrb[0].mxu0
      %v486 = vadd.f32 0.0, %v485
      %v487 = vpop.f32.mrb[0].mxu0
      %488 = vmatprep.mubr.bf16.mxu0 0
      %489 = vmatmul.mubr.bf16.gmra.mrb[0].mxu0 %v390
      %v490 = vpop.f32.mrb[0].mxu0
      %v491 = vadd.f32 0.0, %v490
      %v492 = vpop.f32.mrb[0].mxu0
      %v493 = vpop.f32.mrb[0].mxu0
      %v494 = vadd.f32 0.0, %v493
      %v495 = vpop.f32.mrb[0].mxu0
      %496 = vmatprep.mubr.bf16.mxu0 0
      %497 = vmatmul.mubr.bf16.gmra.mrb[0].mxu0 %v393
      %v498 = vpop.f32.mrb[0].mxu0
      %v499 = vadd.f32 0.0, %v498
      %v500 = vpop.f32.mrb[0].mxu0
      %v501 = vpop.f32.mrb[0].mxu0
      %v502 = vadd.f32 0.0, %v501
      %v503 = vpop.f32.mrb[0].mxu0
      %504 = vmatprep.mubr.bf16.mxu0 0
      %505 = vmatmul.mubr.bf16.gmra.mrb[0].mxu0 %v396
      %v506 = vpop.f32.mrb[0].mxu0
      %v507 = vadd.f32 0.0, %v506
      %v508 = vpop.f32.mrb[0].mxu0
      %v509 = vpop.f32.mrb[0].mxu0
      %v510 = vadd.f32 0.0, %v509
      %v511 = vpop.f32.mrb[0].mxu0
      %512 = vmatprep.mubr.bf16.mxu0 0
      %513 = vmatmul.mubr.bf16.gmra.mrb[0].mxu0 %v399
      %v514 = vpop.f32.mrb[0].mxu0
      %v515 = vadd.f32 0.0, %v514
      %v516 = vpop.f32.mrb[0].mxu0
      %v517 = vpop.f32.mrb[0].mxu0
      %v518 = vadd.f32 0.0, %v517
      %v519 = vpop.f32.mrb[0].mxu0
      %520 = vmatprep.mubr.bf16.mxu0 0
      %521 = vmatmul.mubr.bf16.gmra.mrb[0].mxu0 %v402
      %v522 = vpop.f32.mrb[0].mxu0
      %v523 = vadd.f32 0.0, %v522
      %v524 = vpop.f32.mrb[0].mxu0
      %v525 = vpop.f32.mrb[0].mxu0
      %v526 = vadd.f32 0.0, %v525
      %v527 = vpop.f32.mrb[0].mxu0
      %528 = vmatprep.mubr.bf16.mxu0 0
      %529 = vmatmul.mubr.bf16.gmra.mrb[0].mxu0 %v405
      %v530 = vpop.f32.mrb[0].mxu0
      %v531 = vadd.f32 0.0, %v530
      %v532 = vpop.f32.mrb[0].mxu0
      %v533 = vpop.f32.mrb[0].mxu0
      %v534 = vadd.f32 0.0, %v533
      %v535 = vpop.f32.mrb[0].mxu0
      %536 = vmatprep.mubr.bf16.mxu0 0
      %537 = vmatmul.mubr.bf16.gmra.mrb[0].mxu0 %v408
      %v538 = vpop.f32.mrb[0].mxu0
      %v539 = vadd.f32 0.0, %v538
      %v540 = vpop.f32.mrb[0].mxu0
      %v541 = vpop.f32.mrb[0].mxu0
      %v542 = vadd.f32 0.0, %v541
      %v543 = vpop.f32.mrb[0].mxu0
      %544 = vmatprep.mubr.bf16.mxu0 0
      %545 = vmatmul.mubr.bf16.gmra.mrb[0].mxu0 %v411
      %v546 = vpop.f32.mrb[0].mxu0
      %v547 = vadd.f32 0.0, %v546
      %v548 = vpop.f32.mrb[0].mxu0
      %v549 = vpop.f32.mrb[0].mxu0
      %v550 = vadd.f32 0.0, %v549
      %v551 = vpop.f32.mrb[0].mxu0
      %552 = vmatprep.mubr.bf16.mxu0 0
      %553 = vmatmul.mubr.bf16.gmra.mrb[0].mxu0 %v414
      %v554 = vpop.f32.mrb[0].mxu0
      %v555 = vadd.f32 0.0, %v554
      %v556 = vpop.f32.mrb[0].mxu0
      %v557 = vpop.f32.mrb[0].mxu0
      %v558 = vadd.f32 0.0, %v557
      %v559 = vpop.f32.mrb[0].mxu0
      %560 = vmatprep.mubr.bf16.mxu0 0
      %561 = vmatmul.mubr.bf16.gmra.mrb[0].mxu0 %v417
      %v562 = vpop.f32.mrb[0].mxu0
      %v563 = vadd.f32 0.0, %v562
      %v564 = vpop.f32.mrb[0].mxu0
      %v565 = vpop.f32.mrb[0].mxu0
      %v566 = vadd.f32 0.0, %v565
      %v567 = vpop.f32.mrb[0].mxu0
      %568 = vmatprep.mubr.bf16.mxu0 0
      %569 = vmatmul.mubr.bf16.gmra.mrb[0].mxu0 %v420
      %v570 = vpop.f32.mrb[0].mxu0
      %v571 = vadd.f32 0.0, %v570
      %v572 = vpop.f32.mrb[0].mxu0
      %v573 = vpop.f32.mrb[0].mxu0
      %v574 = vadd.f32 0.0, %v573
      %v575 = vpop.f32.mrb[0].mxu0
      %576 = vmatprep.mubr.bf16.mxu0 0
      %577 = vmatmul.mubr.bf16.gmra.mrb[0].mxu0 %v423
      %v578 = vpop.f32.mrb[0].mxu0
      %v579 = vadd.f32 0.0, %v578
      %v580 = vpop.f32.mrb[0].mxu0
      %v581 = vpop.f32.mrb[0].mxu0
      %v582 = vadd.f32 0.0, %v581
      %v583 = vpop.f32.mrb[0].mxu0
      %584 = vmatprep.mubr.bf16.mxu0 0
      %585 = vmatmul.mubr.bf16.gmra.mrb[0].mxu0 %v426
      %v586 = vpop.f32.mrb[0].mxu0
      %v587 = vadd.f32 0.0, %v586
      %v588 = vpop.f32.mrb[0].mxu0
      %v589 = vpop.f32.mrb[0].mxu0
      %v590 = vadd.f32 0.0, %v589
      %v591 = vpop.f32.mrb[0].mxu0
      %592 = vdwg.mxu0
      %v594 = vsel %vm379, %v312, 0
      %v597 = vsel %vm379, %v313, 0
      %v600 = vsel %vm379, %v314, 0
      %v603 = vsel %vm379, %v315, 0
      %v606 = vsel %vm379, %v316, 0
      %v609 = vsel %vm379, %v317, 0
      %v612 = vsel %vm379, %v318, 0
      %v615 = vsel %vm379, %v319, 0
      %v618 = vsel %vm379, %v320, 0
      %v621 = vsel %vm379, %v321, 0
      %v624 = vsel %vm379, %v322, 0
      %v627 = vsel %vm379, %v323, 0
      %v630 = vsel %vm379, %v324, 0
      %v633 = vsel %vm379, %v325, 0
      %v636 = vsel %vm379, %v326, 0
      %v639 = vsel %vm379, %v327, 0
      %v642 = vsel %vm428, %v328, 0
      %644 = vmatprep.subr.bf16.mxu0 0
      %645 = vmatpush1.bf16.msra.mxu0 %v642
      %646 = vmatprep.subr.bf16.mxu0 0
      %647 = vmatpush1.bf16.msra.mxu0 0
      %648 = vmatprep.subr.bf16.mxu0 0
      %649 = vmatpush1.bf16.msra.mxu0 0
      %650 = vmatprep.subr.bf16.mxu0 0
      %651 = vmatpush1.bf16.msra.mxu0 0
      %652 = vmatprep.subr.bf16.mxu0 0
      %653 = vmatpush1.bf16.msra.mxu0 0
      %654 = vmatprep.subr.bf16.mxu0 0
      %655 = vmatpush1.bf16.msra.mxu0 0
      %656 = vmatprep.subr.bf16.mxu0 0
      %657 = vmatpush1.bf16.msra.mxu0 0
      %658 = vmatprep.subr.bf16.mxu0 0
      %659 = vmatpush1.bf16.msra.mxu0 0
      %660 = vmatprep.subr.bf16.mxu0 0
      %661 = vmatpush1.bf16.msra.mxu0 0
      %662 = vmatprep.subr.bf16.mxu0 0
      %663 = vmatpush1.bf16.msra.mxu0 0
      %664 = vmatprep.subr.bf16.mxu0 0
      %665 = vmatpush1.bf16.msra.mxu0 0
      %666 = vmatprep.subr.bf16.mxu0 0
      %667 = vmatpush1.bf16.msra.mxu0 0
      %668 = vmatprep.subr.bf16.mxu0 0
      %669 = vmatpush1.bf16.msra.mxu0 0
      %670 = vmatprep.subr.bf16.mxu0 0
      %671 = vmatpush1.bf16.msra.mxu0 0
      %672 = vmatprep.subr.bf16.mxu0 0
      %673 = vmatpush1.bf16.msra.mxu0 0
      %674 = vmatprep.subr.bf16.mxu0 0
      %675 = vmatpush1.bf16.msra.mxu0 0
      %676 = vmatprep.mubr.bf16.mxu0 0
      %677 = vmatmul.mubr.bf16.gmra.mrb[0].mxu0 %v594
      %v678 = vpop.f32.mrb[0].mxu0
      %v679 = vadd.f32 %v467, %v678
      %v680 = vpop.f32.mrb[0].mxu0
      %v681 = vpop.f32.mrb[0].mxu0
      %v682 = vadd.f32 %v470, %v681
      %v683 = vpop.f32.mrb[0].mxu0
      %684 = vmatprep.mubr.bf16.mxu0 0
      %685 = vmatmul.mubr.bf16.gmra.mrb[0].mxu0 %v597
      %v686 = vpop.f32.mrb[0].mxu0
      %v687 = vadd.f32 %v475, %v686
      %v688 = vpop.f32.mrb[0].mxu0
      %v689 = vpop.f32.mrb[0].mxu0
      %v690 = vadd.f32 %v478, %v689
      %v691 = vpop.f32.mrb[0].mxu0
      %692 = vmatprep.mubr.bf16.mxu0 0
      %693 = vmatmul.mubr.bf16.gmra.mrb[0].mxu0 %v600
      %v694 = vpop.f32.mrb[0].mxu0
      %v695 = vadd.f32 %v483, %v694
      %v696 = vpop.f32.mrb[0].mxu0
      %v697 = vpop.f32.mrb[0].mxu0
      %v698 = vadd.f32 %v486, %v697
      %v699 = vpop.f32.mrb[0].mxu0
      %700 = vmatprep.mubr.bf16.mxu0 0
      %701 = vmatmul.mubr.bf16.gmra.mrb[0].mxu0 %v603
      %v702 = vpop.f32.mrb[0].mxu0
      %v703 = vadd.f32 %v491, %v702
      %v704 = vpop.f32.mrb[0].mxu0
      %v705 = vpop.f32.mrb[0].mxu0
      %v706 = vadd.f32 %v494, %v705
      %v707 = vpop.f32.mrb[0].mxu0
      %708 = vmatprep.mubr.bf16.mxu0 0
      %709 = vmatmul.mubr.bf16.gmra.mrb[0].mxu0 %v606
      %v710 = vpop.f32.mrb[0].mxu0
      %v711 = vadd.f32 %v499, %v710
      %v712 = vpop.f32.mrb[0].mxu0
      %v713 = vpop.f32.mrb[0].mxu0
      %v714 = vadd.f32 %v502, %v713
      %v715 = vpop.f32.mrb[0].mxu0
      %716 = vmatprep.mubr.bf16.mxu0 0
      %717 = vmatmul.mubr.bf16.gmra.mrb[0].mxu0 %v609
      %v718 = vpop.f32.mrb[0].mxu0
      %v719 = vadd.f32 %v507, %v718
      %v720 = vpop.f32.mrb[0].mxu0
      %v721 = vpop.f32.mrb[0].mxu0
      %v722 = vadd.f32 %v510, %v721
      %v723 = vpop.f32.mrb[0].mxu0
      %724 = vmatprep.mubr.bf16.mxu0 0
      %725 = vmatmul.mubr.bf16.gmra.mrb[0].mxu0 %v612
      %v726 = vpop.f32.mrb[0].mxu0
      %v727 = vadd.f32 %v515, %v726
      %v728 = vpop.f32.mrb[0].mxu0
      %v729 = vpop.f32.mrb[0].mxu0
      %v730 = vadd.f32 %v518, %v729
      %v731 = vpop.f32.mrb[0].mxu0
      %732 = vmatprep.mubr.bf16.mxu0 0
      %733 = vmatmul.mubr.bf16.gmra.mrb[0].mxu0 %v615
      %v734 = vpop.f32.mrb[0].mxu0
      %v735 = vadd.f32 %v523, %v734
      %v736 = vpop.f32.mrb[0].mxu0
      %v737 = vpop.f32.mrb[0].mxu0
      %v738 = vadd.f32 %v526, %v737
      %v739 = vpop.f32.mrb[0].mxu0
      %740 = vmatprep.mubr.bf16.mxu0 0
      %741 = vmatmul.mubr.bf16.gmra.mrb[0].mxu0 %v618
      %v742 = vpop.f32.mrb[0].mxu0
      %v743 = vadd.f32 %v531, %v742
      %v744 = vpop.f32.mrb[0].mxu0
      %v745 = vpop.f32.mrb[0].mxu0
      %v746 = vadd.f32 %v534, %v745
      %v747 = vpop.f32.mrb[0].mxu0
      %748 = vmatprep.mubr.bf16.mxu0 0
      %749 = vmatmul.mubr.bf16.gmra.mrb[0].mxu0 %v621
      %v750 = vpop.f32.mrb[0].mxu0
      %v751 = vadd.f32 %v539, %v750
      %v752 = vpop.f32.mrb[0].mxu0
      %v753 = vpop.f32.mrb[0].mxu0
      %v754 = vadd.f32 %v542, %v753
      %v755 = vpop.f32.mrb[0].mxu0
      %756 = vmatprep.mubr.bf16.mxu0 0
      %757 = vmatmul.mubr.bf16.gmra.mrb[0].mxu0 %v624
      %v758 = vpop.f32.mrb[0].mxu0
      %v759 = vadd.f32 %v547, %v758
      %v760 = vpop.f32.mrb[0].mxu0
      %v761 = vpop.f32.mrb[0].mxu0
      %v762 = vadd.f32 %v550, %v761
      %v763 = vpop.f32.mrb[0].mxu0
      %764 = vmatprep.mubr.bf16.mxu0 0
      %765 = vmatmul.mubr.bf16.gmra.mrb[0].mxu0 %v627
      %v766 = vpop.f32.mrb[0].mxu0
      %v767 = vadd.f32 %v555, %v766
      %v768 = vpop.f32.mrb[0].mxu0
      %v769 = vpop.f32.mrb[0].mxu0
      %v770 = vadd.f32 %v558, %v769
      %v771 = vpop.f32.mrb[0].mxu0
      %772 = vmatprep.mubr.bf16.mxu0 0
      %773 = vmatmul.mubr.bf16.gmra.mrb[0].mxu0 %v630
      %v774 = vpop.f32.mrb[0].mxu0
      %v775 = vadd.f32 %v563, %v774
      %v776 = vpop.f32.mrb[0].mxu0
      %v777 = vpop.f32.mrb[0].mxu0
      %v778 = vadd.f32 %v566, %v777
      %v779 = vpop.f32.mrb[0].mxu0
      %780 = vmatprep.mubr.bf16.mxu0 0
      %781 = vmatmul.mubr.bf16.gmra.mrb[0].mxu0 %v633
      %v782 = vpop.f32.mrb[0].mxu0
      %v783 = vadd.f32 %v571, %v782
      %v784 = vpop.f32.mrb[0].mxu0
      %v785 = vpop.f32.mrb[0].mxu0
      %v786 = vadd.f32 %v574, %v785
      %v787 = vpop.f32.mrb[0].mxu0
      %788 = vmatprep.mubr.bf16.mxu0 0
      %789 = vmatmul.mubr.bf16.gmra.mrb[0].mxu0 %v636
      %v790 = vpop.f32.mrb[0].mxu0
      %v791 = vadd.f32 %v579, %v790
      %v792 = vpop.f32.mrb[0].mxu0
      %v793 = vpop.f32.mrb[0].mxu0
      %v794 = vadd.f32 %v582, %v793
      %v795 = vpop.f32.mrb[0].mxu0
      %796 = vmatprep.mubr.bf16.mxu0 0
      %797 = vmatmul.mubr.bf16.gmra.mrb[0].mxu0 %v639
      %v798 = vpop.f32.mrb[0].mxu0
      %v799 = vadd.f32 %v587, %v798
      %v800 = vpop.f32.mrb[0].mxu0
      %v801 = vpop.f32.mrb[0].mxu0
      %v802 = vadd.f32 %v590, %v801
      %v803 = vpop.f32.mrb[0].mxu0
      %804 = vdwg.mxu0
      %v805 = vld [vmem:[%s273 + $0x2] sm:$0xff]
      %v806 = vld [vmem:[%s273 + $0xa] sm:$0xff]
      %v807 = vld [vmem:[%s273 + $0x1a] sm:$0xff]
      %v808 = vld [vmem:[%s273 + $0x22] sm:$0xff]
      %v809 = vld [vmem:[%s273 + $0x32] sm:$0xff]
      %v810 = vld [vmem:[%s273 + $0x3a] sm:$0xff]
      %v811 = vld [vmem:[%s273 + $0x4a] sm:$0xff]
      %v812 = vld [vmem:[%s273 + $0x52] sm:$0xff]
      %v813 = vld [vmem:[%s273 + $0x62] sm:$0xff]
      %v814 = vld [vmem:[%s273 + $0x6a] sm:$0xff]
      %v815 = vld [vmem:[%s273 + $0x7a] sm:$0xff]
      %v816 = vld [vmem:[%s273 + $0x82] sm:$0xff]
      %v817 = vld [vmem:[%s273 + $0x92] sm:$0xff]
      %v818 = vld [vmem:[%s273 + $0x9a] sm:$0xff]
      %v819 = vld [vmem:[%s273 + $0xaa] sm:$0xff]
      %v820 = vld [vmem:[%s273 + $0xb2] sm:$0xff]
      %v821 = vld [vmem:[%s273 + $0xc2] sm:$0xff]
      %v822 = vld [vmem:[%s273 + $0xca] sm:$0xff]
      %v823 = vld [vmem:[%s273 + $0xda] sm:$0xff]
      %v824 = vld [vmem:[%s273 + $0xe2] sm:$0xff]
      %v825 = vld [vmem:[%s273 + $0xf2] sm:$0xff]
      %v826 = vld [vmem:[%s273 + $0xfa] sm:$0xff]
      %v827 = vld [vmem:[%s273 + $0x10a] sm:$0xff]
      %v828 = vld [vmem:[%s273 + $0x112] sm:$0xff]
      %v829 = vld [vmem:[%s273 + $0x122] sm:$0xff]
      %v830 = vld [vmem:[%s273 + $0x12a] sm:$0xff]
      %v831 = vld [vmem:[%s273 + $0x13a] sm:$0xff]
      %v832 = vld [vmem:[%s273 + $0x142] sm:$0xff]
      %v833 = vld [vmem:[%s273 + $0x152] sm:$0xff]
      %v834 = vld [vmem:[%s273 + $0x15a] sm:$0xff]
      %v835 = vld [vmem:[%s273 + $0x16a] sm:$0xff]
      %v836 = vld [vmem:[%s273 + $0x172] sm:$0xff]
      %v837 = vpack.c.bf16 %v806, %v805
      %v838 = vpack.c.bf16 %v808, %v807
      %v839 = vpack.c.bf16 %v810, %v809
      %v840 = vpack.c.bf16 %v812, %v811
      %v841 = vpack.c.bf16 %v814, %v813
      %v842 = vpack.c.bf16 %v816, %v815
      %v843 = vpack.c.bf16 %v818, %v817
      %v844 = vpack.c.bf16 %v820, %v819
      %v845 = vpack.c.bf16 %v822, %v821
      %v846 = vpack.c.bf16 %v824, %v823
      %v847 = vpack.c.bf16 %v826, %v825
      %v848 = vpack.c.bf16 %v828, %v827
      %v849 = vpack.c.bf16 %v830, %v829
      %v850 = vpack.c.bf16 %v832, %v831
      %v851 = vpack.c.bf16 %v834, %v833
      %v852 = vpack.c.bf16 %v836, %v835
      %s853 = scalar_lea.vmem %s1, 4
      %v854 = vld [vmem:[%s853] sm:$0x3]
      %v856 = vsel %vm379, %v837, 0
      %v859 = vsel %vm379, %v838, 0
      %v862 = vsel %vm379, %v839, 0
      %v865 = vsel %vm379, %v840, 0
      %v868 = vsel %vm379, %v841, 0
      %v871 = vsel %vm379, %v842, 0
      %v874 = vsel %vm379, %v843, 0
      %v877 = vsel %vm379, %v844, 0
      %v880 = vsel %vm379, %v845, 0
      %v883 = vsel %vm379, %v846, 0
      %v886 = vsel %vm379, %v847, 0
      %v889 = vsel %vm379, %v848, 0
      %v892 = vsel %vm379, %v849, 0
      %v895 = vsel %vm379, %v850, 0
      %v898 = vsel %vm379, %v851, 0
      %v901 = vsel %vm379, %v852, 0
      %v904 = vsel %vm428, %v854, 0
      %906 = vmatprep.subr.bf16.mxu0 0
      %907 = vmatpush1.bf16.msra.mxu0 %v904
      %908 = vmatprep.subr.bf16.mxu0 0
      %909 = vmatpush1.bf16.msra.mxu0 0
      %910 = vmatprep.subr.bf16.mxu0 0
      %911 = vmatpush1.bf16.msra.mxu0 0
      %912 = vmatprep.subr.bf16.mxu0 0
      %913 = vmatpush1.bf16.msra.mxu0 0
      %914 = vmatprep.subr.bf16.mxu0 0
      %915 = vmatpush1.bf16.msra.mxu0 0
      %916 = vmatprep.subr.bf16.mxu0 0
      %917 = vmatpush1.bf16.msra.mxu0 0
      %918 = vmatprep.subr.bf16.mxu0 0
      %919 = vmatpush1.bf16.msra.mxu0 0
      %920 = vmatprep.subr.bf16.mxu0 0
      %921 = vmatpush1.bf16.msra.mxu0 0
      %922 = vmatprep.subr.bf16.mxu0 0
      %923 = vmatpush1.bf16.msra.mxu0 0
      %924 = vmatprep.subr.bf16.mxu0 0
      %925 = vmatpush1.bf16.msra.mxu0 0
      %926 = vmatprep.subr.bf16.mxu0 0
      %927 = vmatpush1.bf16.msra.mxu0 0
      %928 = vmatprep.subr.bf16.mxu0 0
      %929 = vmatpush1.bf16.msra.mxu0 0
      %930 = vmatprep.subr.bf16.mxu0 0
      %931 = vmatpush1.bf16.msra.mxu0 0
      %932 = vmatprep.subr.bf16.mxu0 0
      %933 = vmatpush1.bf16.msra.mxu0 0
      %934 = vmatprep.subr.bf16.mxu0 0
      %935 = vmatpush1.bf16.msra.mxu0 0
      %936 = vmatprep.subr.bf16.mxu0 0
      %937 = vmatpush1.bf16.msra.mxu0 0
      %938 = vmatprep.mubr.bf16.mxu0 0
      %939 = vmatmul.mubr.bf16.gmra.mrb[0].mxu0 %v856
      %v940 = vpop.f32.mrb[0].mxu0
      %v941 = vadd.f32 0.0, %v940
      %v942 = vpop.f32.mrb[0].mxu0
      %v943 = vpop.f32.mrb[0].mxu0
      %v944 = vadd.f32 0.0, %v943
      %v945 = vpop.f32.mrb[0].mxu0
      %946 = vmatprep.mubr.bf16.mxu0 0
      %947 = vmatmul.mubr.bf16.gmra.mrb[0].mxu0 %v859
      %v948 = vpop.f32.mrb[0].mxu0
      %v949 = vadd.f32 0.0, %v948
      %v950 = vpop.f32.mrb[0].mxu0
      %v951 = vpop.f32.mrb[0].mxu0
      %v952 = vadd.f32 0.0, %v951
      %v953 = vpop.f32.mrb[0].mxu0
      %954 = vmatprep.mubr.bf16.mxu0 0
      %955 = vmatmul.mubr.bf16.gmra.mrb[0].mxu0 %v862
      %v956 = vpop.f32.mrb[0].mxu0
      %v957 = vadd.f32 0.0, %v956
      %v958 = vpop.f32.mrb[0].mxu0
      %v959 = vpop.f32.mrb[0].mxu0
      %v960 = vadd.f32 0.0, %v959
      %v961 = vpop.f32.mrb[0].mxu0
      %962 = vmatprep.mubr.bf16.mxu0 0
      %963 = vmatmul.mubr.bf16.gmra.mrb[0].mxu0 %v865
      %v964 = vpop.f32.mrb[0].mxu0
      %v965 = vadd.f32 0.0, %v964
      %v966 = vpop.f32.mrb[0].mxu0
      %v967 = vpop.f32.mrb[0].mxu0
      %v968 = vadd.f32 0.0, %v967
      %v969 = vpop.f32.mrb[0].mxu0
      %970 = vmatprep.mubr.bf16.mxu0 0
      %971 = vmatmul.mubr.bf16.gmra.mrb[0].mxu0 %v868
      %v972 = vpop.f32.mrb[0].mxu0
      %v973 = vadd.f32 0.0, %v972
      %v974 = vpop.f32.mrb[0].mxu0
      %v975 = vpop.f32.mrb[0].mxu0
      %v976 = vadd.f32 0.0, %v975
      %v977 = vpop.f32.mrb[0].mxu0
      %978 = vmatprep.mubr.bf16.mxu0 0
      %979 = vmatmul.mubr.bf16.gmra.mrb[0].mxu0 %v871
      %v980 = vpop.f32.mrb[0].mxu0
      %v981 = vadd.f32 0.0, %v980
      %v982 = vpop.f32.mrb[0].mxu0
      %v983 = vpop.f32.mrb[0].mxu0
      %v984 = vadd.f32 0.0, %v983
      %v985 = vpop.f32.mrb[0].mxu0
      %986 = vmatprep.mubr.bf16.mxu0 0
      %987 = vmatmul.mubr.bf16.gmra.mrb[0].mxu0 %v874
      %v988 = vpop.f32.mrb[0].mxu0
      %v989 = vadd.f32 0.0, %v988
      %v990 = vpop.f32.mrb[0].mxu0
      %v991 = vpop.f32.mrb[0].mxu0
      %v992 = vadd.f32 0.0, %v991
      %v993 = vpop.f32.mrb[0].mxu0
      %994 = vmatprep.mubr.bf16.mxu0 0
      %995 = vmatmul.mubr.bf16.gmra.mrb[0].mxu0 %v877
      %v996 = vpop.f32.mrb[0].mxu0
      %v997 = vadd.f32 0.0, %v996
      %v998 = vpop.f32.mrb[0].mxu0
      %v999 = vpop.f32.mrb[0].mxu0
      %v1000 = vadd.f32 0.0, %v999
      %v1001 = vpop.f32.mrb[0].mxu0
      %1002 = vmatprep.mubr.bf16.mxu0 0
      %1003 = vmatmul.mubr.bf16.gmra.mrb[0].mxu0 %v880
      %v1004 = vpop.f32.mrb[0].mxu0
      %v1005 = vadd.f32 0.0, %v1004
      %v1006 = vpop.f32.mrb[0].mxu0
      %v1007 = vpop.f32.mrb[0].mxu0
      %v1008 = vadd.f32 0.0, %v1007
      %v1009 = vpop.f32.mrb[0].mxu0
      %1010 = vmatprep.mubr.bf16.mxu0 0
      %1011 = vmatmul.mubr.bf16.gmra.mrb[0].mxu0 %v883
      %v1012 = vpop.f32.mrb[0].mxu0
      %v1013 = vadd.f32 0.0, %v1012
      %v1014 = vpop.f32.mrb[0].mxu0
      %v1015 = vpop.f32.mrb[0].mxu0
      %v1016 = vadd.f32 0.0, %v1015
      %v1017 = vpop.f32.mrb[0].mxu0
      %1018 = vmatprep.mubr.bf16.mxu0 0
      %1019 = vmatmul.mubr.bf16.gmra.mrb[0].mxu0 %v886
      %v1020 = vpop.f32.mrb[0].mxu0
      %v1021 = vadd.f32 0.0, %v1020
      %v1022 = vpop.f32.mrb[0].mxu0
      %v1023 = vpop.f32.mrb[0].mxu0
      %v1024 = vadd.f32 0.0, %v1023
      %v1025 = vpop.f32.mrb[0].mxu0
      %1026 = vmatprep.mubr.bf16.mxu0 0
      %1027 = vmatmul.mubr.bf16.gmra.mrb[0].mxu0 %v889
      %v1028 = vpop.f32.mrb[0].mxu0
      %v1029 = vadd.f32 0.0, %v1028
      %v1030 = vpop.f32.mrb[0].mxu0
      %v1031 = vpop.f32.mrb[0].mxu0
      %v1032 = vadd.f32 0.0, %v1031
      %v1033 = vpop.f32.mrb[0].mxu0
      %1034 = vmatprep.mubr.bf16.mxu0 0
      %1035 = vmatmul.mubr.bf16.gmra.mrb[0].mxu0 %v892
      %v1036 = vpop.f32.mrb[0].mxu0
      %v1037 = vadd.f32 0.0, %v1036
      %v1038 = vpop.f32.mrb[0].mxu0
      %v1039 = vpop.f32.mrb[0].mxu0
      %v1040 = vadd.f32 0.0, %v1039
      %v1041 = vpop.f32.mrb[0].mxu0
      %1042 = vmatprep.mubr.bf16.mxu0 0
      %1043 = vmatmul.mubr.bf16.gmra.mrb[0].mxu0 %v895
      %v1044 = vpop.f32.mrb[0].mxu0
      %v1045 = vadd.f32 0.0, %v1044
      %v1046 = vpop.f32.mrb[0].mxu0
      %v1047 = vpop.f32.mrb[0].mxu0
      %v1048 = vadd.f32 0.0, %v1047
      %v1049 = vpop.f32.mrb[0].mxu0
      %1050 = vmatprep.mubr.bf16.mxu0 0
      %1051 = vmatmul.mubr.bf16.gmra.mrb[0].mxu0 %v898
      %v1052 = vpop.f32.mrb[0].mxu0
      %v1053 = vadd.f32 0.0, %v1052
      %v1054 = vpop.f32.mrb[0].mxu0
      %v1055 = vpop.f32.mrb[0].mxu0
      %v1056 = vadd.f32 0.0, %v1055
      %v1057 = vpop.f32.mrb[0].mxu0
      %1058 = vmatprep.mubr.bf16.mxu0 0
      %1059 = vmatmul.mubr.bf16.gmra.mrb[0].mxu0 %v901
      %v1060 = vpop.f32.mrb[0].mxu0
      %v1061 = vadd.f32 0.0, %v1060
      %v1062 = vpop.f32.mrb[0].mxu0
      %v1063 = vpop.f32.mrb[0].mxu0
      %v1064 = vadd.f32 0.0, %v1063
      %v1065 = vpop.f32.mrb[0].mxu0
      %1066 = vdwg.mxu0
      %v1067 = vadd.f32 %v679, %v941
      %v1068 = vadd.f32 %v682, %v944
      %v1069 = vadd.f32 %v687, %v949
      %v1070 = vadd.f32 %v690, %v952
      %v1071 = vadd.f32 %v695, %v957
      %v1072 = vadd.f32 %v698, %v960
      %v1073 = vadd.f32 %v703, %v965
      %v1074 = vadd.f32 %v706, %v968
      %v1075 = vadd.f32 %v711, %v973
      %v1076 = vadd.f32 %v714, %v976
      %v1077 = vadd.f32 %v719, %v981
      %v1078 = vadd.f32 %v722, %v984
      %v1079 = vadd.f32 %v727, %v989
      %v1080 = vadd.f32 %v730, %v992
      %v1081 = vadd.f32 %v735, %v997
      %v1082 = vadd.f32 %v738, %v1000
      %v1083 = vadd.f32 %v743, %v1005
      %v1084 = vadd.f32 %v746, %v1008
      %v1085 = vadd.f32 %v751, %v1013
      %v1086 = vadd.f32 %v754, %v1016
      %v1087 = vadd.f32 %v759, %v1021
      %v1088 = vadd.f32 %v762, %v1024
      %v1089 = vadd.f32 %v767, %v1029
      %v1090 = vadd.f32 %v770, %v1032
      %v1091 = vadd.f32 %v775, %v1037
      %v1092 = vadd.f32 %v778, %v1040
      %v1093 = vadd.f32 %v783, %v1045
      %v1094 = vadd.f32 %v786, %v1048
      %v1095 = vadd.f32 %v791, %v1053
      %v1096 = vadd.f32 %v794, %v1056
      %v1097 = vadd.f32 %v799, %v1061
      %v1098 = vadd.f32 %v802, %v1064
      %s1099 = scalar_lea.vmem %s273, 24
      %v1100 = vld [vmem:[%s1099] sm:$0xff]
      %v1101 = vld [vmem:[%s1099 + $0x8] sm:$0xff]
      %v1102 = vld [vmem:[%s1099 + $0x18] sm:$0xff]
      %v1103 = vld [vmem:[%s1099 + $0x20] sm:$0xff]
      %v1104 = vld [vmem:[%s1099 + $0x30] sm:$0xff]
      %v1105 = vld [vmem:[%s1099 + $0x38] sm:$0xff]
      %v1106 = vld [vmem:[%s1099 + $0x48] sm:$0xff]
      %v1107 = vld [vmem:[%s1099 + $0x50] sm:$0xff]
      %v1108 = vld [vmem:[%s1099 + $0x60] sm:$0xff]
      %v1109 = vld [vmem:[%s1099 + $0x68] sm:$0xff]
      %v1110 = vld [vmem:[%s1099 + $0x78] sm:$0xff]
      %v1111 = vld [vmem:[%s1099 + $0x80] sm:$0xff]
      %v1112 = vld [vmem:[%s1099 + $0x90] sm:$0xff]
      %v1113 = vld [vmem:[%s1099 + $0x98] sm:$0xff]
      %v1114 = vld [vmem:[%s1099 + $0xa8] sm:$0xff]
      %v1115 = vld [vmem:[%s1099 + $0xb0] sm:$0xff]
      %v1116 = vld [vmem:[%s1099 + $0xc0] sm:$0xff]
      %v1117 = vld [vmem:[%s1099 + $0xc8] sm:$0xff]
      %v1118 = vld [vmem:[%s1099 + $0xd8] sm:$0xff]
      %v1119 = vld [vmem:[%s1099 + $0xe0] sm:$0xff]
      %v1120 = vld [vmem:[%s1099 + $0xf0] sm:$0xff]
      %v1121 = vld [vmem:[%s1099 + $0xf8] sm:$0xff]
      %v1122 = vld [vmem:[%s1099 + $0x108] sm:$0xff]
      %v1123 = vld [vmem:[%s1099 + $0x110] sm:$0xff]
      %v1124 = vld [vmem:[%s1099 + $0x120] sm:$0xff]
      %v1125 = vld [vmem:[%s1099 + $0x128] sm:$0xff]
      %v1126 = vld [vmem:[%s1099 + $0x138] sm:$0xff]
      %v1127 = vld [vmem:[%s1099 + $0x140] sm:$0xff]
      %v1128 = vld [vmem:[%s1099 + $0x150] sm:$0xff]
      %v1129 = vld [vmem:[%s1099 + $0x158] sm:$0xff]
      %v1130 = vld [vmem:[%s1099 + $0x168] sm:$0xff]
      %v1131 = vld [vmem:[%s1099 + $0x170] sm:$0xff]
      %v1132 = vpack.c.bf16 %v1101, %v1100
      %v1133 = vpack.c.bf16 %v1103, %v1102
      %v1134 = vpack.c.bf16 %v1105, %v1104
      %v1135 = vpack.c.bf16 %v1107, %v1106
      %v1136 = vpack.c.bf16 %v1109, %v1108
      %v1137 = vpack.c.bf16 %v1111, %v1110
      %v1138 = vpack.c.bf16 %v1113, %v1112
      %v1139 = vpack.c.bf16 %v1115, %v1114
      %v1140 = vpack.c.bf16 %v1117, %v1116
      %v1141 = vpack.c.bf16 %v1119, %v1118
      %v1142 = vpack.c.bf16 %v1121, %v1120
      %v1143 = vpack.c.bf16 %v1123, %v1122
      %v1144 = vpack.c.bf16 %v1125, %v1124
      %v1145 = vpack.c.bf16 %v1127, %v1126
      %v1146 = vpack.c.bf16 %v1129, %v1128
      %v1147 = vpack.c.bf16 %v1131, %v1130
      %s1148 = scalar_lea.vmem %s1, 6
      %v1149 = vld [vmem:[%s1148] sm:$0x3]
      %v1151 = vsel %vm379, %v1132, 0
      %v1154 = vsel %vm379, %v1133, 0
      %v1157 = vsel %vm379, %v1134, 0
      %v1160 = vsel %vm379, %v1135, 0
      %v1163 = vsel %vm379, %v1136, 0
      %v1166 = vsel %vm379, %v1137, 0
      %v1169 = vsel %vm379, %v1138, 0
      %v1172 = vsel %vm379, %v1139, 0
      %v1175 = vsel %vm379, %v1140, 0
      %v1178 = vsel %vm379, %v1141, 0
      %v1181 = vsel %vm379, %v1142, 0
      %v1184 = vsel %vm379, %v1143, 0
      %v1187 = vsel %vm379, %v1144, 0
      %v1190 = vsel %vm379, %v1145, 0
      %v1193 = vsel %vm379, %v1146, 0
      %v1196 = vsel %vm379, %v1147, 0
      %v1199 = vsel %vm428, %v1149, 0
      %1201 = vmatprep.subr.bf16.mxu0 0
      %1202 = vmatpush1.bf16.msra.mxu0 %v1199
      %1203 = vmatprep.subr.bf16.mxu0 0
      %1204 = vmatpush1.bf16.msra.mxu0 0
      %1205 = vmatprep.subr.bf16.mxu0 0
      %1206 = vmatpush1.bf16.msra.mxu0 0
      %1207 = vmatprep.subr.bf16.mxu0 0
      %1208 = vmatpush1.bf16.msra.mxu0 0
      %1209 = vmatprep.subr.bf16.mxu0 0
      %1210 = vmatpush1.bf16.msra.mxu0 0
      %1211 = vmatprep.subr.bf16.mxu0 0
      %1212 = vmatpush1.bf16.msra.mxu0 0
      %1213 = vmatprep.subr.bf16.mxu0 0
      %1214 = vmatpush1.bf16.msra.mxu0 0
      %1215 = vmatprep.subr.bf16.mxu0 0
      %1216 = vmatpush1.bf16.msra.mxu0 0
      %1217 = vmatprep.subr.bf16.mxu0 0
      %1218 = vmatpush1.bf16.msra.mxu0 0
      %1219 = vmatprep.subr.bf16.mxu0 0
      %1220 = vmatpush1.bf16.msra.mxu0 0
      %1221 = vmatprep.subr.bf16.mxu0 0
      %1222 = vmatpush1.bf16.msra.mxu0 0
      %1223 = vmatprep.subr.bf16.mxu0 0
      %1224 = vmatpush1.bf16.msra.mxu0 0
      %1225 = vmatprep.subr.bf16.mxu0 0
      %1226 = vmatpush1.bf16.msra.mxu0 0
      %1227 = vmatprep.subr.bf16.mxu0 0
      %1228 = vmatpush1.bf16.msra.mxu0 0
      %1229 = vmatprep.subr.bf16.mxu0 0
      %1230 = vmatpush1.bf16.msra.mxu0 0
      %1231 = vmatprep.subr.bf16.mxu0 0
      %1232 = vmatpush1.bf16.msra.mxu0 0
      %1233 = vmatprep.mubr.bf16.mxu0 0
      %1234 = vmatmul.mubr.bf16.gmra.mrb[0].mxu0 %v1151
      %v1235 = vpop.f32.mrb[0].mxu0
      %v1236 = vadd.f32 0.0, %v1235
      %v1237 = vpop.f32.mrb[0].mxu0
      %v1238 = vpop.f32.mrb[0].mxu0
      %v1239 = vadd.f32 0.0, %v1238
      %v1240 = vpop.f32.mrb[0].mxu0
      %1241 = vmatprep.mubr.bf16.mxu0 0
      %1242 = vmatmul.mubr.bf16.gmra.mrb[0].mxu0 %v1154
      %v1243 = vpop.f32.mrb[0].mxu0
      %v1244 = vadd.f32 0.0, %v1243
      %v1245 = vpop.f32.mrb[0].mxu0
      %v1246 = vpop.f32.mrb[0].mxu0
      %v1247 = vadd.f32 0.0, %v1246
      %v1248 = vpop.f32.mrb[0].mxu0
      %1249 = vmatprep.mubr.bf16.mxu0 0
      %1250 = vmatmul.mubr.bf16.gmra.mrb[0].mxu0 %v1157
      %v1251 = vpop.f32.mrb[0].mxu0
      %v1252 = vadd.f32 0.0, %v1251
      %v1253 = vpop.f32.mrb[0].mxu0
      %v1254 = vpop.f32.mrb[0].mxu0
      %v1255 = vadd.f32 0.0, %v1254
      %v1256 = vpop.f32.mrb[0].mxu0
      %1257 = vmatprep.mubr.bf16.mxu0 0
      %1258 = vmatmul.mubr.bf16.gmra.mrb[0].mxu0 %v1160
      %v1259 = vpop.f32.mrb[0].mxu0
      %v1260 = vadd.f32 0.0, %v1259
      %v1261 = vpop.f32.mrb[0].mxu0
      %v1262 = vpop.f32.mrb[0].mxu0
      %v1263 = vadd.f32 0.0, %v1262
      %v1264 = vpop.f32.mrb[0].mxu0
      %1265 = vmatprep.mubr.bf16.mxu0 0
      %1266 = vmatmul.mubr.bf16.gmra.mrb[0].mxu0 %v1163
      %v1267 = vpop.f32.mrb[0].mxu0
      %v1268 = vadd.f32 0.0, %v1267
      %v1269 = vpop.f32.mrb[0].mxu0
      %v1270 = vpop.f32.mrb[0].mxu0
      %v1271 = vadd.f32 0.0, %v1270
      %v1272 = vpop.f32.mrb[0].mxu0
      %1273 = vmatprep.mubr.bf16.mxu0 0
      %1274 = vmatmul.mubr.bf16.gmra.mrb[0].mxu0 %v1166
      %v1275 = vpop.f32.mrb[0].mxu0
      %v1276 = vadd.f32 0.0, %v1275
      %v1277 = vpop.f32.mrb[0].mxu0
      %v1278 = vpop.f32.mrb[0].mxu0
      %v1279 = vadd.f32 0.0, %v1278
      %v1280 = vpop.f32.mrb[0].mxu0
      %1281 = vmatprep.mubr.bf16.mxu0 0
      %1282 = vmatmul.mubr.bf16.gmra.mrb[0].mxu0 %v1169
      %v1283 = vpop.f32.mrb[0].mxu0
      %v1284 = vadd.f32 0.0, %v1283
      %v1285 = vpop.f32.mrb[0].mxu0
      %v1286 = vpop.f32.mrb[0].mxu0
      %v1287 = vadd.f32 0.0, %v1286
      %v1288 = vpop.f32.mrb[0].mxu0
      %1289 = vmatprep.mubr.bf16.mxu0 0
      %1290 = vmatmul.mubr.bf16.gmra.mrb[0].mxu0 %v1172
      %v1291 = vpop.f32.mrb[0].mxu0
      %v1292 = vadd.f32 0.0, %v1291
      %v1293 = vpop.f32.mrb[0].mxu0
      %v1294 = vpop.f32.mrb[0].mxu0
      %v1295 = vadd.f32 0.0, %v1294
      %v1296 = vpop.f32.mrb[0].mxu0
      %1297 = vmatprep.mubr.bf16.mxu0 0
      %1298 = vmatmul.mubr.bf16.gmra.mrb[0].mxu0 %v1175
      %v1299 = vpop.f32.mrb[0].mxu0
      %v1300 = vadd.f32 0.0, %v1299
      %v1301 = vpop.f32.mrb[0].mxu0
      %v1302 = vpop.f32.mrb[0].mxu0
      %v1303 = vadd.f32 0.0, %v1302
      %v1304 = vpop.f32.mrb[0].mxu0
      %1305 = vmatprep.mubr.bf16.mxu0 0
      %1306 = vmatmul.mubr.bf16.gmra.mrb[0].mxu0 %v1178
      %v1307 = vpop.f32.mrb[0].mxu0
      %v1308 = vadd.f32 0.0, %v1307
      %v1309 = vpop.f32.mrb[0].mxu0
      %v1310 = vpop.f32.mrb[0].mxu0
      %v1311 = vadd.f32 0.0, %v1310
      %v1312 = vpop.f32.mrb[0].mxu0
      %1313 = vmatprep.mubr.bf16.mxu0 0
      %1314 = vmatmul.mubr.bf16.gmra.mrb[0].mxu0 %v1181
      %v1315 = vpop.f32.mrb[0].mxu0
      %v1316 = vadd.f32 0.0, %v1315
      %v1317 = vpop.f32.mrb[0].mxu0
      %v1318 = vpop.f32.mrb[0].mxu0
      %v1319 = vadd.f32 0.0, %v1318
      %v1320 = vpop.f32.mrb[0].mxu0
      %1321 = vmatprep.mubr.bf16.mxu0 0
      %1322 = vmatmul.mubr.bf16.gmra.mrb[0].mxu0 %v1184
      %v1323 = vpop.f32.mrb[0].mxu0
      %v1324 = vadd.f32 0.0, %v1323
      %v1325 = vpop.f32.mrb[0].mxu0
      %v1326 = vpop.f32.mrb[0].mxu0
      %v1327 = vadd.f32 0.0, %v1326
      %v1328 = vpop.f32.mrb[0].mxu0
      %1329 = vmatprep.mubr.bf16.mxu0 0
      %1330 = vmatmul.mubr.bf16.gmra.mrb[0].mxu0 %v1187
      %v1331 = vpop.f32.mrb[0].mxu0
      %v1332 = vadd.f32 0.0, %v1331
      %v1333 = vpop.f32.mrb[0].mxu0
      %v1334 = vpop.f32.mrb[0].mxu0
      %v1335 = vadd.f32 0.0, %v1334
      %v1336 = vpop.f32.mrb[0].mxu0
      %1337 = vmatprep.mubr.bf16.mxu0 0
      %1338 = vmatmul.mubr.bf16.gmra.mrb[0].mxu0 %v1190
      %v1339 = vpop.f32.mrb[0].mxu0
      %v1340 = vadd.f32 0.0, %v1339
      %v1341 = vpop.f32.mrb[0].mxu0
      %v1342 = vpop.f32.mrb[0].mxu0
      %v1343 = vadd.f32 0.0, %v1342
      %v1344 = vpop.f32.mrb[0].mxu0
      %1345 = vmatprep.mubr.bf16.mxu0 0
      %1346 = vmatmul.mubr.bf16.gmra.mrb[0].mxu0 %v1193
      %v1347 = vpop.f32.mrb[0].mxu0
      %v1348 = vadd.f32 0.0, %v1347
      %v1349 = vpop.f32.mrb[0].mxu0
      %v1350 = vpop.f32.mrb[0].mxu0
      %v1351 = vadd.f32 0.0, %v1350
      %v1352 = vpop.f32.mrb[0].mxu0
      %1353 = vmatprep.mubr.bf16.mxu0 0
      %1354 = vmatmul.mubr.bf16.gmra.mrb[0].mxu0 %v1196
      %v1355 = vpop.f32.mrb[0].mxu0
      %v1356 = vadd.f32 0.0, %v1355
      %v1357 = vpop.f32.mrb[0].mxu0
      %v1358 = vpop.f32.mrb[0].mxu0
      %v1359 = vadd.f32 0.0, %v1358
      %v1360 = vpop.f32.mrb[0].mxu0
      %1361 = vdwg.mxu0
      %v1362 = vadd.f32 %v1067, %v1236
      %v1363 = vadd.f32 %v1068, %v1239
      %v1364 = vadd.f32 %v1069, %v1244
      %v1365 = vadd.f32 %v1070, %v1247
      %v1366 = vadd.f32 %v1071, %v1252
      %v1367 = vadd.f32 %v1072, %v1255
      %v1368 = vadd.f32 %v1073, %v1260
      %v1369 = vadd.f32 %v1074, %v1263
      %v1370 = vadd.f32 %v1075, %v1268
      %v1371 = vadd.f32 %v1076, %v1271
      %v1372 = vadd.f32 %v1077, %v1276
      %v1373 = vadd.f32 %v1078, %v1279
      %v1374 = vadd.f32 %v1079, %v1284
      %v1375 = vadd.f32 %v1080, %v1287
      %v1376 = vadd.f32 %v1081, %v1292
      %v1377 = vadd.f32 %v1082, %v1295
      %v1378 = vadd.f32 %v1083, %v1300
      %v1379 = vadd.f32 %v1084, %v1303
      %v1380 = vadd.f32 %v1085, %v1308
      %v1381 = vadd.f32 %v1086, %v1311
      %v1382 = vadd.f32 %v1087, %v1316
      %v1383 = vadd.f32 %v1088, %v1319
      %v1384 = vadd.f32 %v1089, %v1324
      %v1385 = vadd.f32 %v1090, %v1327
      %v1386 = vadd.f32 %v1091, %v1332
      %v1387 = vadd.f32 %v1092, %v1335
      %v1388 = vadd.f32 %v1093, %v1340
      %v1389 = vadd.f32 %v1094, %v1343
      %v1390 = vadd.f32 %v1095, %v1348
      %v1391 = vadd.f32 %v1096, %v1351
      %v1392 = vadd.f32 %v1097, %v1356
      %v1393 = vadd.f32 %v1098, %v1359
      %v1394 = vld [vmem:[%s1099 + $0x1] sm:$0xff]
      %v1395 = vld [vmem:[%s1099 + $0x9] sm:$0xff]
      %v1396 = vld [vmem:[%s1099 + $0x19] sm:$0xff]
      %v1397 = vld [vmem:[%s1099 + $0x21] sm:$0xff]
      %v1398 = vld [vmem:[%s1099 + $0x31] sm:$0xff]
      %v1399 = vld [vmem:[%s1099 + $0x39] sm:$0xff]
      %v1400 = vld [vmem:[%s1099 + $0x49] sm:$0xff]
      %v1401 = vld [vmem:[%s1099 + $0x51] sm:$0xff]
      %v1402 = vld [vmem:[%s1099 + $0x61] sm:$0xff]
      %v1403 = vld [vmem:[%s1099 + $0x69] sm:$0xff]
      %v1404 = vld [vmem:[%s1099 + $0x79] sm:$0xff]
      %v1405 = vld [vmem:[%s1099 + $0x81] sm:$0xff]
      %v1406 = vld [vmem:[%s1099 + $0x91] sm:$0xff]
      %v1407 = vld [vmem:[%s1099 + $0x99] sm:$0xff]
      %v1408 = vld [vmem:[%s1099 + $0xa9] sm:$0xff]
      %v1409 = vld [vmem:[%s1099 + $0xb1] sm:$0xff]
      %v1410 = vld [vmem:[%s1099 + $0xc1] sm:$0xff]
      %v1411 = vld [vmem:[%s1099 + $0xc9] sm:$0xff]
      %v1412 = vld [vmem:[%s1099 + $0xd9] sm:$0xff]
      %v1413 = vld [vmem:[%s1099 + $0xe1] sm:$0xff]
      %v1414 = vld [vmem:[%s1099 + $0xf1] sm:$0xff]
      %v1415 = vld [vmem:[%s1099 + $0xf9] sm:$0xff]
      %v1416 = vld [vmem:[%s1099 + $0x109] sm:$0xff]
      %v1417 = vld [vmem:[%s1099 + $0x111] sm:$0xff]
      %v1418 = vld [vmem:[%s1099 + $0x121] sm:$0xff]
      %v1419 = vld [vmem:[%s1099 + $0x129] sm:$0xff]
      %v1420 = vld [vmem:[%s1099 + $0x139] sm:$0xff]
      %v1421 = vld [vmem:[%s1099 + $0x141] sm:$0xff]
      %v1422 = vld [vmem:[%s1099 + $0x151] sm:$0xff]
      %v1423 = vld [vmem:[%s1099 + $0x159] sm:$0xff]
      %v1424 = vld [vmem:[%s1099 + $0x169] sm:$0xff]
      %v1425 = vld [vmem:[%s1099 + $0x171] sm:$0xff]
      %v1426 = vpack.c.bf16 %v1395, %v1394
      %v1427 = vpack.c.bf16 %v1397, %v1396
      %v1428 = vpack.c.bf16 %v1399, %v1398
      %v1429 = vpack.c.bf16 %v1401, %v1400
      %v1430 = vpack.c.bf16 %v1403, %v1402
      %v1431 = vpack.c.bf16 %v1405, %v1404
      %v1432 = vpack.c.bf16 %v1407, %v1406
      %v1433 = vpack.c.bf16 %v1409, %v1408
      %v1434 = vpack.c.bf16 %v1411, %v1410
      %v1435 = vpack.c.bf16 %v1413, %v1412
      %v1436 = vpack.c.bf16 %v1415, %v1414
      %v1437 = vpack.c.bf16 %v1417, %v1416
      %v1438 = vpack.c.bf16 %v1419, %v1418
      %v1439 = vpack.c.bf16 %v1421, %v1420
      %v1440 = vpack.c.bf16 %v1423, %v1422
      %v1441 = vpack.c.bf16 %v1425, %v1424
      %s1442 = scalar_lea.vmem %s1, 8
      %v1443 = vld [vmem:[%s1442] sm:$0x3]
      %v1445 = vsel %vm379, %v1426, 0
      %v1448 = vsel %vm379, %v1427, 0
      %v1451 = vsel %vm379, %v1428, 0
      %v1454 = vsel %vm379, %v1429, 0
      %v1457 = vsel %vm379, %v1430, 0
      %v1460 = vsel %vm379, %v1431, 0
      %v1463 = vsel %vm379, %v1432, 0
      %v1466 = vsel %vm379, %v1433, 0
      %v1469 = vsel %vm379, %v1434, 0
      %v1472 = vsel %vm379, %v1435, 0
      %v1475 = vsel %vm379, %v1436, 0
      %v1478 = vsel %vm379, %v1437, 0
      %v1481 = vsel %vm379, %v1438, 0
      %v1484 = vsel %vm379, %v1439, 0
      %v1487 = vsel %vm379, %v1440, 0
      %v1490 = vsel %vm379, %v1441, 0
      %v1493 = vsel %vm428, %v1443, 0
      %1495 = vmatprep.subr.bf16.mxu0 0
      %1496 = vmatpush1.bf16.msra.mxu0 %v1493
      %1497 = vmatprep.subr.bf16.mxu0 0
      %1498 = vmatpush1.bf16.msra.mxu0 0
      %1499 = vmatprep.subr.bf16.mxu0 0
      %1500 = vmatpush1.bf16.msra.mxu0 0
      %1501 = vmatprep.subr.bf16.mxu0 0
      %1502 = vmatpush1.bf16.msra.mxu0 0
      %1503 = vmatprep.subr.bf16.mxu0 0
      %1504 = vmatpush1.bf16.msra.mxu0 0
      %1505 = vmatprep.subr.bf16.mxu0 0
      %1506 = vmatpush1.bf16.msra.mxu0 0
      %1507 = vmatprep.subr.bf16.mxu0 0
      %1508 = vmatpush1.bf16.msra.mxu0 0
      %1509 = vmatprep.subr.bf16.mxu0 0
      %1510 = vmatpush1.bf16.msra.mxu0 0
      %1511 = vmatprep.subr.bf16.mxu0 0
      %1512 = vmatpush1.bf16.msra.mxu0 0
      %1513 = vmatprep.subr.bf16.mxu0 0
      %1514 = vmatpush1.bf16.msra.mxu0 0
      %1515 = vmatprep.subr.bf16.mxu0 0
      %1516 = vmatpush1.bf16.msra.mxu0 0
      %1517 = vmatprep.subr.bf16.mxu0 0
      %1518 = vmatpush1.bf16.msra.mxu0 0
      %1519 = vmatprep.subr.bf16.mxu0 0
      %1520 = vmatpush1.bf16.msra.mxu0 0
      %1521 = vmatprep.subr.bf16.mxu0 0
      %1522 = vmatpush1.bf16.msra.mxu0 0
      %1523 = vmatprep.subr.bf16.mxu0 0
      %1524 = vmatpush1.bf16.msra.mxu0 0
      %1525 = vmatprep.subr.bf16.mxu0 0
      %1526 = vmatpush1.bf16.msra.mxu0 0
      %1527 = vmatprep.mubr.bf16.mxu0 0
      %1528 = vmatmul.mubr.bf16.gmra.mrb[0].mxu0 %v1445
      %v1529 = vpop.f32.mrb[0].mxu0
      %v1530 = vadd.f32 0.0, %v1529
      %v1531 = vpop.f32.mrb[0].mxu0
      %v1532 = vpop.f32.mrb[0].mxu0
      %v1533 = vadd.f32 0.0, %v1532
      %v1534 = vpop.f32.mrb[0].mxu0
      %1535 = vmatprep.mubr.bf16.mxu0 0
      %1536 = vmatmul.mubr.bf16.gmra.mrb[0].mxu0 %v1448
      %v1537 = vpop.f32.mrb[0].mxu0
      %v1538 = vadd.f32 0.0, %v1537
      %v1539 = vpop.f32.mrb[0].mxu0
      %v1540 = vpop.f32.mrb[0].mxu0
      %v1541 = vadd.f32 0.0, %v1540
      %v1542 = vpop.f32.mrb[0].mxu0
      %1543 = vmatprep.mubr.bf16.mxu0 0
      %1544 = vmatmul.mubr.bf16.gmra.mrb[0].mxu0 %v1451
      %v1545 = vpop.f32.mrb[0].mxu0
      %v1546 = vadd.f32 0.0, %v1545
      %v1547 = vpop.f32.mrb[0].mxu0
      %v1548 = vpop.f32.mrb[0].mxu0
      %v1549 = vadd.f32 0.0, %v1548
      %v1550 = vpop.f32.mrb[0].mxu0
      %1551 = vmatprep.mubr.bf16.mxu0 0
      %1552 = vmatmul.mubr.bf16.gmra.mrb[0].mxu0 %v1454
      %v1553 = vpop.f32.mrb[0].mxu0
      %v1554 = vadd.f32 0.0, %v1553
      %v1555 = vpop.f32.mrb[0].mxu0
      %v1556 = vpop.f32.mrb[0].mxu0
      %v1557 = vadd.f32 0.0, %v1556
      %v1558 = vpop.f32.mrb[0].mxu0
      %1559 = vmatprep.mubr.bf16.mxu0 0
      %1560 = vmatmul.mubr.bf16.gmra.mrb[0].mxu0 %v1457
      %v1561 = vpop.f32.mrb[0].mxu0
      %v1562 = vadd.f32 0.0, %v1561
      %v1563 = vpop.f32.mrb[0].mxu0
      %v1564 = vpop.f32.mrb[0].mxu0
      %v1565 = vadd.f32 0.0, %v1564
      %v1566 = vpop.f32.mrb[0].mxu0
      %1567 = vmatprep.mubr.bf16.mxu0 0
      %1568 = vmatmul.mubr.bf16.gmra.mrb[0].mxu0 %v1460
      %v1569 = vpop.f32.mrb[0].mxu0
      %v1570 = vadd.f32 0.0, %v1569
      %v1571 = vpop.f32.mrb[0].mxu0
      %v1572 = vpop.f32.mrb[0].mxu0
      %v1573 = vadd.f32 0.0, %v1572
      %v1574 = vpop.f32.mrb[0].mxu0
      %1575 = vmatprep.mubr.bf16.mxu0 0
      %1576 = vmatmul.mubr.bf16.gmra.mrb[0].mxu0 %v1463
      %v1577 = vpop.f32.mrb[0].mxu0
      %v1578 = vadd.f32 0.0, %v1577
      %v1579 = vpop.f32.mrb[0].mxu0
      %v1580 = vpop.f32.mrb[0].mxu0
      %v1581 = vadd.f32 0.0, %v1580
      %v1582 = vpop.f32.mrb[0].mxu0
      %1583 = vmatprep.mubr.bf16.mxu0 0
      %1584 = vmatmul.mubr.bf16.gmra.mrb[0].mxu0 %v1466
      %v1585 = vpop.f32.mrb[0].mxu0
      %v1586 = vadd.f32 0.0, %v1585
      %v1587 = vpop.f32.mrb[0].mxu0
      %v1588 = vpop.f32.mrb[0].mxu0
      %v1589 = vadd.f32 0.0, %v1588
      %v1590 = vpop.f32.mrb[0].mxu0
      %1591 = vmatprep.mubr.bf16.mxu0 0
      %1592 = vmatmul.mubr.bf16.gmra.mrb[0].mxu0 %v1469
      %v1593 = vpop.f32.mrb[0].mxu0
      %v1594 = vadd.f32 0.0, %v1593
      %v1595 = vpop.f32.mrb[0].mxu0
      %v1596 = vpop.f32.mrb[0].mxu0
      %v1597 = vadd.f32 0.0, %v1596
      %v1598 = vpop.f32.mrb[0].mxu0
      %1599 = vmatprep.mubr.bf16.mxu0 0
      %1600 = vmatmul.mubr.bf16.gmra.mrb[0].mxu0 %v1472
      %v1601 = vpop.f32.mrb[0].mxu0
      %v1602 = vadd.f32 0.0, %v1601
      %v1603 = vpop.f32.mrb[0].mxu0
      %v1604 = vpop.f32.mrb[0].mxu0
      %v1605 = vadd.f32 0.0, %v1604
      %v1606 = vpop.f32.mrb[0].mxu0
      %1607 = vmatprep.mubr.bf16.mxu0 0
      %1608 = vmatmul.mubr.bf16.gmra.mrb[0].mxu0 %v1475
      %v1609 = vpop.f32.mrb[0].mxu0
      %v1610 = vadd.f32 0.0, %v1609
      %v1611 = vpop.f32.mrb[0].mxu0
      %v1612 = vpop.f32.mrb[0].mxu0
      %v1613 = vadd.f32 0.0, %v1612
      %v1614 = vpop.f32.mrb[0].mxu0
      %1615 = vmatprep.mubr.bf16.mxu0 0
      %1616 = vmatmul.mubr.bf16.gmra.mrb[0].mxu0 %v1478
      %v1617 = vpop.f32.mrb[0].mxu0
      %v1618 = vadd.f32 0.0, %v1617
      %v1619 = vpop.f32.mrb[0].mxu0
      %v1620 = vpop.f32.mrb[0].mxu0
      %v1621 = vadd.f32 0.0, %v1620
      %v1622 = vpop.f32.mrb[0].mxu0
      %1623 = vmatprep.mubr.bf16.mxu0 0
      %1624 = vmatmul.mubr.bf16.gmra.mrb[0].mxu0 %v1481
      %v1625 = vpop.f32.mrb[0].mxu0
      %v1626 = vadd.f32 0.0, %v1625
      %v1627 = vpop.f32.mrb[0].mxu0
      %v1628 = vpop.f32.mrb[0].mxu0
      %v1629 = vadd.f32 0.0, %v1628
      %v1630 = vpop.f32.mrb[0].mxu0
      %1631 = vmatprep.mubr.bf16.mxu0 0
      %1632 = vmatmul.mubr.bf16.gmra.mrb[0].mxu0 %v1484
      %v1633 = vpop.f32.mrb[0].mxu0
      %v1634 = vadd.f32 0.0, %v1633
      %v1635 = vpop.f32.mrb[0].mxu0
      %v1636 = vpop.f32.mrb[0].mxu0
      %v1637 = vadd.f32 0.0, %v1636
      %v1638 = vpop.f32.mrb[0].mxu0
      %1639 = vmatprep.mubr.bf16.mxu0 0
      %1640 = vmatmul.mubr.bf16.gmra.mrb[0].mxu0 %v1487
      %v1641 = vpop.f32.mrb[0].mxu0
      %v1642 = vadd.f32 0.0, %v1641
      %v1643 = vpop.f32.mrb[0].mxu0
      %v1644 = vpop.f32.mrb[0].mxu0
      %v1645 = vadd.f32 0.0, %v1644
      %v1646 = vpop.f32.mrb[0].mxu0
      %1647 = vmatprep.mubr.bf16.mxu0 0
      %1648 = vmatmul.mubr.bf16.gmra.mrb[0].mxu0 %v1490
      %v1649 = vpop.f32.mrb[0].mxu0
      %v1650 = vadd.f32 0.0, %v1649
      %v1651 = vpop.f32.mrb[0].mxu0
      %v1652 = vpop.f32.mrb[0].mxu0
      %v1653 = vadd.f32 0.0, %v1652
      %v1654 = vpop.f32.mrb[0].mxu0
      %1655 = vdwg.mxu0
      %v1656 = vadd.f32 %v1362, %v1530
      %v1657 = vadd.f32 %v1363, %v1533
      %v1658 = vadd.f32 %v1364, %v1538
      %v1659 = vadd.f32 %v1365, %v1541
      %v1660 = vadd.f32 %v1366, %v1546
      %v1661 = vadd.f32 %v1367, %v1549
      %v1662 = vadd.f32 %v1368, %v1554
      %v1663 = vadd.f32 %v1369, %v1557
      %v1664 = vadd.f32 %v1370, %v1562
      %v1665 = vadd.f32 %v1371, %v1565
      %v1666 = vadd.f32 %v1372, %v1570
      %v1667 = vadd.f32 %v1373, %v1573
      %v1668 = vadd.f32 %v1374, %v1578
      %v1669 = vadd.f32 %v1375, %v1581
      %v1670 = vadd.f32 %v1376, %v1586
      %v1671 = vadd.f32 %v1377, %v1589
      %v1672 = vadd.f32 %v1378, %v1594
      %v1673 = vadd.f32 %v1379, %v1597
      %v1674 = vadd.f32 %v1380, %v1602
      %v1675 = vadd.f32 %v1381, %v1605
      %v1676 = vadd.f32 %v1382, %v1610
      %v1677 = vadd.f32 %v1383, %v1613
      %v1678 = vadd.f32 %v1384, %v1618
      %v1679 = vadd.f32 %v1385, %v1621
      %v1680 = vadd.f32 %v1386, %v1626
      %v1681 = vadd.f32 %v1387, %v1629
      %v1682 = vadd.f32 %v1388, %v1634
      %v1683 = vadd.f32 %v1389, %v1637
      %v1684 = vadd.f32 %v1390, %v1642
      %v1685 = vadd.f32 %v1391, %v1645
      %v1686 = vadd.f32 %v1392, %v1650
      %v1687 = vadd.f32 %v1393, %v1653
      %v1688 = vld [vmem:[%s1099 + $0x2] sm:$0xff]
      %v1689 = vld [vmem:[%s1099 + $0xa] sm:$0xff]
      %v1690 = vld [vmem:[%s1099 + $0x1a] sm:$0xff]
      %v1691 = vld [vmem:[%s1099 + $0x22] sm:$0xff]
      %v1692 = vld [vmem:[%s1099 + $0x32] sm:$0xff]
      %v1693 = vld [vmem:[%s1099 + $0x3a] sm:$0xff]
      %v1694 = vld [vmem:[%s1099 + $0x4a] sm:$0xff]
      %v1695 = vld [vmem:[%s1099 + $0x52] sm:$0xff]
      %v1696 = vld [vmem:[%s1099 + $0x62] sm:$0xff]
      %v1697 = vld [vmem:[%s1099 + $0x6a] sm:$0xff]
      %v1698 = vld [vmem:[%s1099 + $0x7a] sm:$0xff]
      %v1699 = vld [vmem:[%s1099 + $0x82] sm:$0xff]
      %v1700 = vld [vmem:[%s1099 + $0x92] sm:$0xff]
      %v1701 = vld [vmem:[%s1099 + $0x9a] sm:$0xff]
      %v1702 = vld [vmem:[%s1099 + $0xaa] sm:$0xff]
      %v1703 = vld [vmem:[%s1099 + $0xb2] sm:$0xff]
      %v1704 = vld [vmem:[%s1099 + $0xc2] sm:$0xff]
      %v1705 = vld [vmem:[%s1099 + $0xca] sm:$0xff]
      %v1706 = vld [vmem:[%s1099 + $0xda] sm:$0xff]
      %v1707 = vld [vmem:[%s1099 + $0xe2] sm:$0xff]
      %v1708 = vld [vmem:[%s1099 + $0xf2] sm:$0xff]
      %v1709 = vld [vmem:[%s1099 + $0xfa] sm:$0xff]
      %v1710 = vld [vmem:[%s1099 + $0x10a] sm:$0xff]
      %v1711 = vld [vmem:[%s1099 + $0x112] sm:$0xff]
      %v1712 = vld [vmem:[%s1099 + $0x122] sm:$0xff]
      %v1713 = vld [vmem:[%s1099 + $0x12a] sm:$0xff]
      %v1714 = vld [vmem:[%s1099 + $0x13a] sm:$0xff]
      %v1715 = vld [vmem:[%s1099 + $0x142] sm:$0xff]
      %v1716 = vld [vmem:[%s1099 + $0x152] sm:$0xff]
      %v1717 = vld [vmem:[%s1099 + $0x15a] sm:$0xff]
      %v1718 = vld [vmem:[%s1099 + $0x16a] sm:$0xff]
      %v1719 = vld [vmem:[%s1099 + $0x172] sm:$0xff]
      %v1720 = vpack.c.bf16 %v1689, %v1688
      %v1721 = vpack.c.bf16 %v1691, %v1690
      %v1722 = vpack.c.bf16 %v1693, %v1692
      %v1723 = vpack.c.bf16 %v1695, %v1694
      %v1724 = vpack.c.bf16 %v1697, %v1696
      %v1725 = vpack.c.bf16 %v1699, %v1698
      %v1726 = vpack.c.bf16 %v1701, %v1700
      %v1727 = vpack.c.bf16 %v1703, %v1702
      %v1728 = vpack.c.bf16 %v1705, %v1704
      %v1729 = vpack.c.bf16 %v1707, %v1706
      %v1730 = vpack.c.bf16 %v1709, %v1708
      %v1731 = vpack.c.bf16 %v1711, %v1710
      %v1732 = vpack.c.bf16 %v1713, %v1712
      %v1733 = vpack.c.bf16 %v1715, %v1714
      %v1734 = vpack.c.bf16 %v1717, %v1716
      %v1735 = vpack.c.bf16 %v1719, %v1718
      %s1736 = scalar_lea.vmem %s1, 10
      %v1737 = vld [vmem:[%s1736] sm:$0x3]
      %v1739 = vsel %vm379, %v1720, 0
      %v1742 = vsel %vm379, %v1721, 0
      %v1745 = vsel %vm379, %v1722, 0
      %v1748 = vsel %vm379, %v1723, 0
      %v1751 = vsel %vm379, %v1724, 0
      %v1754 = vsel %vm379, %v1725, 0
      %v1757 = vsel %vm379, %v1726, 0
      %v1760 = vsel %vm379, %v1727, 0
      %v1763 = vsel %vm379, %v1728, 0
      %v1766 = vsel %vm379, %v1729, 0
      %v1769 = vsel %vm379, %v1730, 0
      %v1772 = vsel %vm379, %v1731, 0
      %v1775 = vsel %vm379, %v1732, 0
      %v1778 = vsel %vm379, %v1733, 0
      %v1781 = vsel %vm379, %v1734, 0
      %v1784 = vsel %vm379, %v1735, 0
      %v1787 = vsel %vm428, %v1737, 0
      %1789 = vmatprep.subr.bf16.mxu0 0
      %1790 = vmatpush1.bf16.msra.mxu0 %v1787
      %1791 = vmatprep.subr.bf16.mxu0 0
      %1792 = vmatpush1.bf16.msra.mxu0 0
      %1793 = vmatprep.subr.bf16.mxu0 0
      %1794 = vmatpush1.bf16.msra.mxu0 0
      %1795 = vmatprep.subr.bf16.mxu0 0
      %1796 = vmatpush1.bf16.msra.mxu0 0
      %1797 = vmatprep.subr.bf16.mxu0 0
      %1798 = vmatpush1.bf16.msra.mxu0 0
      %1799 = vmatprep.subr.bf16.mxu0 0
      %1800 = vmatpush1.bf16.msra.mxu0 0
      %1801 = vmatprep.subr.bf16.mxu0 0
      %1802 = vmatpush1.bf16.msra.mxu0 0
      %1803 = vmatprep.subr.bf16.mxu0 0
      %1804 = vmatpush1.bf16.msra.mxu0 0
      %1805 = vmatprep.subr.bf16.mxu0 0
      %1806 = vmatpush1.bf16.msra.mxu0 0
      %1807 = vmatprep.subr.bf16.mxu0 0
      %1808 = vmatpush1.bf16.msra.mxu0 0
      %1809 = vmatprep.subr.bf16.mxu0 0
      %1810 = vmatpush1.bf16.msra.mxu0 0
      %1811 = vmatprep.subr.bf16.mxu0 0
      %1812 = vmatpush1.bf16.msra.mxu0 0
      %1813 = vmatprep.subr.bf16.mxu0 0
      %1814 = vmatpush1.bf16.msra.mxu0 0
      %1815 = vmatprep.subr.bf16.mxu0 0
      %1816 = vmatpush1.bf16.msra.mxu0 0
      %1817 = vmatprep.subr.bf16.mxu0 0
      %1818 = vmatpush1.bf16.msra.mxu0 0
      %1819 = vmatprep.subr.bf16.mxu0 0
      %1820 = vmatpush1.bf16.msra.mxu0 0
      %1821 = vmatprep.mubr.bf16.mxu0 0
      %1822 = vmatmul.mubr.bf16.gmra.mrb[0].mxu0 %v1739
      %v1823 = vpop.f32.mrb[0].mxu0
      %v1824 = vadd.f32 0.0, %v1823
      %v1825 = vpop.f32.mrb[0].mxu0
      %v1826 = vpop.f32.mrb[0].mxu0
      %v1827 = vadd.f32 0.0, %v1826
      %v1828 = vpop.f32.mrb[0].mxu0
      %1829 = vmatprep.mubr.bf16.mxu0 0
      %1830 = vmatmul.mubr.bf16.gmra.mrb[0].mxu0 %v1742
      %v1831 = vpop.f32.mrb[0].mxu0
      %v1832 = vadd.f32 0.0, %v1831
      %v1833 = vpop.f32.mrb[0].mxu0
      %v1834 = vpop.f32.mrb[0].mxu0
      %v1835 = vadd.f32 0.0, %v1834
      %v1836 = vpop.f32.mrb[0].mxu0
      %1837 = vmatprep.mubr.bf16.mxu0 0
      %1838 = vmatmul.mubr.bf16.gmra.mrb[0].mxu0 %v1745
      %v1839 = vpop.f32.mrb[0].mxu0
      %v1840 = vadd.f32 0.0, %v1839
      %v1841 = vpop.f32.mrb[0].mxu0
      %v1842 = vpop.f32.mrb[0].mxu0
      %v1843 = vadd.f32 0.0, %v1842
      %v1844 = vpop.f32.mrb[0].mxu0
      %1845 = vmatprep.mubr.bf16.mxu0 0
      %1846 = vmatmul.mubr.bf16.gmra.mrb[0].mxu0 %v1748
      %v1847 = vpop.f32.mrb[0].mxu0
      %v1848 = vadd.f32 0.0, %v1847
      %v1849 = vpop.f32.mrb[0].mxu0
      %v1850 = vpop.f32.mrb[0].mxu0
      %v1851 = vadd.f32 0.0, %v1850
      %v1852 = vpop.f32.mrb[0].mxu0
      %1853 = vmatprep.mubr.bf16.mxu0 0
      %1854 = vmatmul.mubr.bf16.gmra.mrb[0].mxu0 %v1751
      %v1855 = vpop.f32.mrb[0].mxu0
      %v1856 = vadd.f32 0.0, %v1855
      %v1857 = vpop.f32.mrb[0].mxu0
      %v1858 = vpop.f32.mrb[0].mxu0
      %v1859 = vadd.f32 0.0, %v1858
      %v1860 = vpop.f32.mrb[0].mxu0
      %1861 = vmatprep.mubr.bf16.mxu0 0
      %1862 = vmatmul.mubr.bf16.gmra.mrb[0].mxu0 %v1754
      %v1863 = vpop.f32.mrb[0].mxu0
      %v1864 = vadd.f32 0.0, %v1863
      %v1865 = vpop.f32.mrb[0].mxu0
      %v1866 = vpop.f32.mrb[0].mxu0
      %v1867 = vadd.f32 0.0, %v1866
      %v1868 = vpop.f32.mrb[0].mxu0
      %1869 = vmatprep.mubr.bf16.mxu0 0
      %1870 = vmatmul.mubr.bf16.gmra.mrb[0].mxu0 %v1757
      %v1871 = vpop.f32.mrb[0].mxu0
      %v1872 = vadd.f32 0.0, %v1871
      %v1873 = vpop.f32.mrb[0].mxu0
      %v1874 = vpop.f32.mrb[0].mxu0
      %v1875 = vadd.f32 0.0, %v1874
      %v1876 = vpop.f32.mrb[0].mxu0
      %1877 = vmatprep.mubr.bf16.mxu0 0
      %1878 = vmatmul.mubr.bf16.gmra.mrb[0].mxu0 %v1760
      %v1879 = vpop.f32.mrb[0].mxu0
      %v1880 = vadd.f32 0.0, %v1879
      %v1881 = vpop.f32.mrb[0].mxu0
      %v1882 = vpop.f32.mrb[0].mxu0
      %v1883 = vadd.f32 0.0, %v1882
      %v1884 = vpop.f32.mrb[0].mxu0
      %1885 = vmatprep.mubr.bf16.mxu0 0
      %1886 = vmatmul.mubr.bf16.gmra.mrb[0].mxu0 %v1763
      %v1887 = vpop.f32.mrb[0].mxu0
      %v1888 = vadd.f32 0.0, %v1887
      %v1889 = vpop.f32.mrb[0].mxu0
      %v1890 = vpop.f32.mrb[0].mxu0
      %v1891 = vadd.f32 0.0, %v1890
      %v1892 = vpop.f32.mrb[0].mxu0
      %1893 = vmatprep.mubr.bf16.mxu0 0
      %1894 = vmatmul.mubr.bf16.gmra.mrb[0].mxu0 %v1766
      %v1895 = vpop.f32.mrb[0].mxu0
      %v1896 = vadd.f32 0.0, %v1895
      %v1897 = vpop.f32.mrb[0].mxu0
      %v1898 = vpop.f32.mrb[0].mxu0
      %v1899 = vadd.f32 0.0, %v1898
      %v1900 = vpop.f32.mrb[0].mxu0
      %1901 = vmatprep.mubr.bf16.mxu0 0
      %1902 = vmatmul.mubr.bf16.gmra.mrb[0].mxu0 %v1769
      %v1903 = vpop.f32.mrb[0].mxu0
      %v1904 = vadd.f32 0.0, %v1903
      %v1905 = vpop.f32.mrb[0].mxu0
      %v1906 = vpop.f32.mrb[0].mxu0
      %v1907 = vadd.f32 0.0, %v1906
      %v1908 = vpop.f32.mrb[0].mxu0
      %1909 = vmatprep.mubr.bf16.mxu0 0
      %1910 = vmatmul.mubr.bf16.gmra.mrb[0].mxu0 %v1772
      %v1911 = vpop.f32.mrb[0].mxu0
      %v1912 = vadd.f32 0.0, %v1911
      %v1913 = vpop.f32.mrb[0].mxu0
      %v1914 = vpop.f32.mrb[0].mxu0
      %v1915 = vadd.f32 0.0, %v1914
      %v1916 = vpop.f32.mrb[0].mxu0
      %1917 = vmatprep.mubr.bf16.mxu0 0
      %1918 = vmatmul.mubr.bf16.gmra.mrb[0].mxu0 %v1775
      %v1919 = vpop.f32.mrb[0].mxu0
      %v1920 = vadd.f32 0.0, %v1919
      %v1921 = vpop.f32.mrb[0].mxu0
      %v1922 = vpop.f32.mrb[0].mxu0
      %v1923 = vadd.f32 0.0, %v1922
      %v1924 = vpop.f32.mrb[0].mxu0
      %1925 = vmatprep.mubr.bf16.mxu0 0
      %1926 = vmatmul.mubr.bf16.gmra.mrb[0].mxu0 %v1778
      %v1927 = vpop.f32.mrb[0].mxu0
      %v1928 = vadd.f32 0.0, %v1927
      %v1929 = vpop.f32.mrb[0].mxu0
      %v1930 = vpop.f32.mrb[0].mxu0
      %v1931 = vadd.f32 0.0, %v1930
      %v1932 = vpop.f32.mrb[0].mxu0
      %1933 = vmatprep.mubr.bf16.mxu0 0
      %1934 = vmatmul.mubr.bf16.gmra.mrb[0].mxu0 %v1781
      %v1935 = vpop.f32.mrb[0].mxu0
      %v1936 = vadd.f32 0.0, %v1935
      %v1937 = vpop.f32.mrb[0].mxu0
      %v1938 = vpop.f32.mrb[0].mxu0
      %v1939 = vadd.f32 0.0, %v1938
      %v1940 = vpop.f32.mrb[0].mxu0
      %1941 = vmatprep.mubr.bf16.mxu0 0
      %1942 = vmatmul.mubr.bf16.gmra.mrb[0].mxu0 %v1784
      %v1943 = vpop.f32.mrb[0].mxu0
      %v1944 = vadd.f32 0.0, %v1943
      %v1945 = vpop.f32.mrb[0].mxu0
      %v1946 = vpop.f32.mrb[0].mxu0
      %v1947 = vadd.f32 0.0, %v1946
      %v1948 = vpop.f32.mrb[0].mxu0
      %1949 = vdwg.mxu0
      %v1950 = vadd.f32 %v1656, %v1824
      %v1951 = vadd.f32 %v1657, %v1827
      %v1952 = vadd.f32 %v1658, %v1832
      %v1953 = vadd.f32 %v1659, %v1835
      %v1954 = vadd.f32 %v1660, %v1840
      %v1955 = vadd.f32 %v1661, %v1843
      %v1956 = vadd.f32 %v1662, %v1848
      %v1957 = vadd.f32 %v1663, %v1851
      %v1958 = vadd.f32 %v1664, %v1856
      %v1959 = vadd.f32 %v1665, %v1859
      %v1960 = vadd.f32 %v1666, %v1864
      %v1961 = vadd.f32 %v1667, %v1867
      %v1962 = vadd.f32 %v1668, %v1872
      %v1963 = vadd.f32 %v1669, %v1875
      %v1964 = vadd.f32 %v1670, %v1880
      %v1965 = vadd.f32 %v1671, %v1883
      %v1966 = vadd.f32 %v1672, %v1888
      %v1967 = vadd.f32 %v1673, %v1891
      %v1968 = vadd.f32 %v1674, %v1896
      %v1969 = vadd.f32 %v1675, %v1899
      %v1970 = vadd.f32 %v1676, %v1904
      %v1971 = vadd.f32 %v1677, %v1907
      %v1972 = vadd.f32 %v1678, %v1912
      %v1973 = vadd.f32 %v1679, %v1915
      %v1974 = vadd.f32 %v1680, %v1920
      %v1975 = vadd.f32 %v1681, %v1923
      %v1976 = vadd.f32 %v1682, %v1928
      %v1977 = vadd.f32 %v1683, %v1931
      %v1978 = vadd.f32 %v1684, %v1936
      %v1979 = vadd.f32 %v1685, %v1939
      %v1980 = vadd.f32 %v1686, %v1944
      %v1981 = vadd.f32 %v1687, %v1947
      %s1982 = scalar_lea.vmem %s273, 48
      %v1983 = vld [vmem:[%s1982] sm:$0xff]
      %v1984 = vld [vmem:[%s1982 + $0x8] sm:$0xff]
      %v1985 = vld [vmem:[%s1982 + $0x18] sm:$0xff]
      %v1986 = vld [vmem:[%s1982 + $0x20] sm:$0xff]
      %v1987 = vld [vmem:[%s1982 + $0x30] sm:$0xff]
      %v1988 = vld [vmem:[%s1982 + $0x38] sm:$0xff]
      %v1989 = vld [vmem:[%s1982 + $0x48] sm:$0xff]
      %v1990 = vld [vmem:[%s1982 + $0x50] sm:$0xff]
      %v1991 = vld [vmem:[%s1982 + $0x60] sm:$0xff]
      %v1992 = vld [vmem:[%s1982 + $0x68] sm:$0xff]
      %v1993 = vld [vmem:[%s1982 + $0x78] sm:$0xff]
      %v1994 = vld [vmem:[%s1982 + $0x80] sm:$0xff]
      %v1995 = vld [vmem:[%s1982 + $0x90] sm:$0xff]
      %v1996 = vld [vmem:[%s1982 + $0x98] sm:$0xff]
      %v1997 = vld [vmem:[%s1982 + $0xa8] sm:$0xff]
      %v1998 = vld [vmem:[%s1982 + $0xb0] sm:$0xff]
      %v1999 = vld [vmem:[%s1982 + $0xc0] sm:$0xff]
      %v2000 = vld [vmem:[%s1982 + $0xc8] sm:$0xff]
      %v2001 = vld [vmem:[%s1982 + $0xd8] sm:$0xff]
      %v2002 = vld [vmem:[%s1982 + $0xe0] sm:$0xff]
      %v2003 = vld [vmem:[%s1982 + $0xf0] sm:$0xff]
      %v2004 = vld [vmem:[%s1982 + $0xf8] sm:$0xff]
      %v2005 = vld [vmem:[%s1982 + $0x108] sm:$0xff]
      %v2006 = vld [vmem:[%s1982 + $0x110] sm:$0xff]
      %v2007 = vld [vmem:[%s1982 + $0x120] sm:$0xff]
      %v2008 = vld [vmem:[%s1982 + $0x128] sm:$0xff]
      %v2009 = vld [vmem:[%s1982 + $0x138] sm:$0xff]
      %v2010 = vld [vmem:[%s1982 + $0x140] sm:$0xff]
      %v2011 = vld [vmem:[%s1982 + $0x150] sm:$0xff]
      %v2012 = vld [vmem:[%s1982 + $0x158] sm:$0xff]
      %v2013 = vld [vmem:[%s1982 + $0x168] sm:$0xff]
      %v2014 = vld [vmem:[%s1982 + $0x170] sm:$0xff]
      %v2015 = vpack.c.bf16 %v1984, %v1983
      %v2016 = vpack.c.bf16 %v1986, %v1985
      %v2017 = vpack.c.bf16 %v1988, %v1987
      %v2018 = vpack.c.bf16 %v1990, %v1989
      %v2019 = vpack.c.bf16 %v1992, %v1991
      %v2020 = vpack.c.bf16 %v1994, %v1993
      %v2021 = vpack.c.bf16 %v1996, %v1995
      %v2022 = vpack.c.bf16 %v1998, %v1997
      %v2023 = vpack.c.bf16 %v2000, %v1999
      %v2024 = vpack.c.bf16 %v2002, %v2001
      %v2025 = vpack.c.bf16 %v2004, %v2003
      %v2026 = vpack.c.bf16 %v2006, %v2005
      %v2027 = vpack.c.bf16 %v2008, %v2007
      %v2028 = vpack.c.bf16 %v2010, %v2009
      %v2029 = vpack.c.bf16 %v2012, %v2011
      %v2030 = vpack.c.bf16 %v2014, %v2013
      %s2031 = scalar_lea.vmem %s1, 12
      %v2032 = vld [vmem:[%s2031] sm:$0x3]
      %v2034 = vsel %vm379, %v2015, 0
      %v2037 = vsel %vm379, %v2016, 0
      %v2040 = vsel %vm379, %v2017, 0
      %v2043 = vsel %vm379, %v2018, 0
      %v2046 = vsel %vm379, %v2019, 0
      %v2049 = vsel %vm379, %v2020, 0
      %v2052 = vsel %vm379, %v2021, 0
      %v2055 = vsel %vm379, %v2022, 0
      %v2058 = vsel %vm379, %v2023, 0
      %v2061 = vsel %vm379, %v2024, 0
      %v2064 = vsel %vm379, %v2025, 0
      %v2067 = vsel %vm379, %v2026, 0
      %v2070 = vsel %vm379, %v2027, 0
      %v2073 = vsel %vm379, %v2028, 0
      %v2076 = vsel %vm379, %v2029, 0
      %v2079 = vsel %vm379, %v2030, 0
      %v2082 = vsel %vm428, %v2032, 0
      %2084 = vmatprep.subr.bf16.mxu0 0
      %2085 = vmatpush1.bf16.msra.mxu0 %v2082
      %2086 = vmatprep.subr.bf16.mxu0 0
      %2087 = vmatpush1.bf16.msra.mxu0 0
      %2088 = vmatprep.subr.bf16.mxu0 0
      %2089 = vmatpush1.bf16.msra.mxu0 0
      %2090 = vmatprep.subr.bf16.mxu0 0
      %2091 = vmatpush1.bf16.msra.mxu0 0
      %2092 = vmatprep.subr.bf16.mxu0 0
      %2093 = vmatpush1.bf16.msra.mxu0 0
      %2094 = vmatprep.subr.bf16.mxu0 0
      %2095 = vmatpush1.bf16.msra.mxu0 0
      %2096 = vmatprep.subr.bf16.mxu0 0
      %2097 = vmatpush1.bf16.msra.mxu0 0
      %2098 = vmatprep.subr.bf16.mxu0 0
      %2099 = vmatpush1.bf16.msra.mxu0 0
      %2100 = vmatprep.subr.bf16.mxu0 0
      %2101 = vmatpush1.bf16.msra.mxu0 0
      %2102 = vmatprep.subr.bf16.mxu0 0
      %2103 = vmatpush1.bf16.msra.mxu0 0
      %2104 = vmatprep.subr.bf16.mxu0 0
      %2105 = vmatpush1.bf16.msra.mxu0 0
      %2106 = vmatprep.subr.bf16.mxu0 0
      %2107 = vmatpush1.bf16.msra.mxu0 0
      %2108 = vmatprep.subr.bf16.mxu0 0
      %2109 = vmatpush1.bf16.msra.mxu0 0
      %2110 = vmatprep.subr.bf16.mxu0 0
      %2111 = vmatpush1.bf16.msra.mxu0 0
      %2112 = vmatprep.subr.bf16.mxu0 0
      %2113 = vmatpush1.bf16.msra.mxu0 0
      %2114 = vmatprep.subr.bf16.mxu0 0
      %2115 = vmatpush1.bf16.msra.mxu0 0
      %2116 = vmatprep.mubr.bf16.mxu0 0
      %2117 = vmatmul.mubr.bf16.gmra.mrb[0].mxu0 %v2034
      %v2118 = vpop.f32.mrb[0].mxu0
      %v2119 = vadd.f32 0.0, %v2118
      %v2120 = vpop.f32.mrb[0].mxu0
      %v2121 = vpop.f32.mrb[0].mxu0
      %v2122 = vadd.f32 0.0, %v2121
      %v2123 = vpop.f32.mrb[0].mxu0
      %2124 = vmatprep.mubr.bf16.mxu0 0
      %2125 = vmatmul.mubr.bf16.gmra.mrb[0].mxu0 %v2037
      %v2126 = vpop.f32.mrb[0].mxu0
      %v2127 = vadd.f32 0.0, %v2126
      %v2128 = vpop.f32.mrb[0].mxu0
      %v2129 = vpop.f32.mrb[0].mxu0
      %v2130 = vadd.f32 0.0, %v2129
      %v2131 = vpop.f32.mrb[0].mxu0
      %2132 = vmatprep.mubr.bf16.mxu0 0
      %2133 = vmatmul.mubr.bf16.gmra.mrb[0].mxu0 %v2040
      %v2134 = vpop.f32.mrb[0].mxu0
      %v2135 = vadd.f32 0.0, %v2134
      %v2136 = vpop.f32.mrb[0].mxu0
      %v2137 = vpop.f32.mrb[0].mxu0
      %v2138 = vadd.f32 0.0, %v2137
      %v2139 = vpop.f32.mrb[0].mxu0
      %2140 = vmatprep.mubr.bf16.mxu0 0
      %2141 = vmatmul.mubr.bf16.gmra.mrb[0].mxu0 %v2043
      %v2142 = vpop.f32.mrb[0].mxu0
      %v2143 = vadd.f32 0.0, %v2142
      %v2144 = vpop.f32.mrb[0].mxu0
      %v2145 = vpop.f32.mrb[0].mxu0
      %v2146 = vadd.f32 0.0, %v2145
      %v2147 = vpop.f32.mrb[0].mxu0
      %2148 = vmatprep.mubr.bf16.mxu0 0
      %2149 = vmatmul.mubr.bf16.gmra.mrb[0].mxu0 %v2046
      %v2150 = vpop.f32.mrb[0].mxu0
      %v2151 = vadd.f32 0.0, %v2150
      %v2152 = vpop.f32.mrb[0].mxu0
      %v2153 = vpop.f32.mrb[0].mxu0
      %v2154 = vadd.f32 0.0, %v2153
      %v2155 = vpop.f32.mrb[0].mxu0
      %2156 = vmatprep.mubr.bf16.mxu0 0
      %2157 = vmatmul.mubr.bf16.gmra.mrb[0].mxu0 %v2049
      %v2158 = vpop.f32.mrb[0].mxu0
      %v2159 = vadd.f32 0.0, %v2158
      %v2160 = vpop.f32.mrb[0].mxu0
      %v2161 = vpop.f32.mrb[0].mxu0
      %v2162 = vadd.f32 0.0, %v2161
      %v2163 = vpop.f32.mrb[0].mxu0
      %2164 = vmatprep.mubr.bf16.mxu0 0
      %2165 = vmatmul.mubr.bf16.gmra.mrb[0].mxu0 %v2052
      %v2166 = vpop.f32.mrb[0].mxu0
      %v2167 = vadd.f32 0.0, %v2166
      %v2168 = vpop.f32.mrb[0].mxu0
      %v2169 = vpop.f32.mrb[0].mxu0
      %v2170 = vadd.f32 0.0, %v2169
      %v2171 = vpop.f32.mrb[0].mxu0
      %2172 = vmatprep.mubr.bf16.mxu0 0
      %2173 = vmatmul.mubr.bf16.gmra.mrb[0].mxu0 %v2055
      %v2174 = vpop.f32.mrb[0].mxu0
      %v2175 = vadd.f32 0.0, %v2174
      %v2176 = vpop.f32.mrb[0].mxu0
      %v2177 = vpop.f32.mrb[0].mxu0
      %v2178 = vadd.f32 0.0, %v2177
      %v2179 = vpop.f32.mrb[0].mxu0
      %2180 = vmatprep.mubr.bf16.mxu0 0
      %2181 = vmatmul.mubr.bf16.gmra.mrb[0].mxu0 %v2058
      %v2182 = vpop.f32.mrb[0].mxu0
      %v2183 = vadd.f32 0.0, %v2182
      %v2184 = vpop.f32.mrb[0].mxu0
      %v2185 = vpop.f32.mrb[0].mxu0
      %v2186 = vadd.f32 0.0, %v2185
      %v2187 = vpop.f32.mrb[0].mxu0
      %2188 = vmatprep.mubr.bf16.mxu0 0
      %2189 = vmatmul.mubr.bf16.gmra.mrb[0].mxu0 %v2061
      %v2190 = vpop.f32.mrb[0].mxu0
      %v2191 = vadd.f32 0.0, %v2190
      %v2192 = vpop.f32.mrb[0].mxu0
      %v2193 = vpop.f32.mrb[0].mxu0
      %v2194 = vadd.f32 0.0, %v2193
      %v2195 = vpop.f32.mrb[0].mxu0
      %2196 = vmatprep.mubr.bf16.mxu0 0
      %2197 = vmatmul.mubr.bf16.gmra.mrb[0].mxu0 %v2064
      %v2198 = vpop.f32.mrb[0].mxu0
      %v2199 = vadd.f32 0.0, %v2198
      %v2200 = vpop.f32.mrb[0].mxu0
      %v2201 = vpop.f32.mrb[0].mxu0
      %v2202 = vadd.f32 0.0, %v2201
      %v2203 = vpop.f32.mrb[0].mxu0
      %2204 = vmatprep.mubr.bf16.mxu0 0
      %2205 = vmatmul.mubr.bf16.gmra.mrb[0].mxu0 %v2067
      %v2206 = vpop.f32.mrb[0].mxu0
      %v2207 = vadd.f32 0.0, %v2206
      %v2208 = vpop.f32.mrb[0].mxu0
      %v2209 = vpop.f32.mrb[0].mxu0
      %v2210 = vadd.f32 0.0, %v2209
      %v2211 = vpop.f32.mrb[0].mxu0
      %2212 = vmatprep.mubr.bf16.mxu0 0
      %2213 = vmatmul.mubr.bf16.gmra.mrb[0].mxu0 %v2070
      %v2214 = vpop.f32.mrb[0].mxu0
      %v2215 = vadd.f32 0.0, %v2214
      %v2216 = vpop.f32.mrb[0].mxu0
      %v2217 = vpop.f32.mrb[0].mxu0
      %v2218 = vadd.f32 0.0, %v2217
      %v2219 = vpop.f32.mrb[0].mxu0
      %2220 = vmatprep.mubr.bf16.mxu0 0
      %2221 = vmatmul.mubr.bf16.gmra.mrb[0].mxu0 %v2073
      %v2222 = vpop.f32.mrb[0].mxu0
      %v2223 = vadd.f32 0.0, %v2222
      %v2224 = vpop.f32.mrb[0].mxu0
      %v2225 = vpop.f32.mrb[0].mxu0
      %v2226 = vadd.f32 0.0, %v2225
      %v2227 = vpop.f32.mrb[0].mxu0
      %2228 = vmatprep.mubr.bf16.mxu0 0
      %2229 = vmatmul.mubr.bf16.gmra.mrb[0].mxu0 %v2076
      %v2230 = vpop.f32.mrb[0].mxu0
      %v2231 = vadd.f32 0.0, %v2230
      %v2232 = vpop.f32.mrb[0].mxu0
      %v2233 = vpop.f32.mrb[0].mxu0
      %v2234 = vadd.f32 0.0, %v2233
      %v2235 = vpop.f32.mrb[0].mxu0
      %2236 = vmatprep.mubr.bf16.mxu0 0
      %2237 = vmatmul.mubr.bf16.gmra.mrb[0].mxu0 %v2079
      %v2238 = vpop.f32.mrb[0].mxu0
      %v2239 = vadd.f32 0.0, %v2238
      %v2240 = vpop.f32.mrb[0].mxu0
      %v2241 = vpop.f32.mrb[0].mxu0
      %v2242 = vadd.f32 0.0, %v2241
      %v2243 = vpop.f32.mrb[0].mxu0
      %2244 = vdwg.mxu0
      %v2245 = vadd.f32 %v1950, %v2119
      %v2246 = vadd.f32 %v1951, %v2122
      %v2247 = vadd.f32 %v1952, %v2127
      %v2248 = vadd.f32 %v1953, %v2130
      %v2249 = vadd.f32 %v1954, %v2135
      %v2250 = vadd.f32 %v1955, %v2138
      %v2251 = vadd.f32 %v1956, %v2143
      %v2252 = vadd.f32 %v1957, %v2146
      %v2253 = vadd.f32 %v1958, %v2151
      %v2254 = vadd.f32 %v1959, %v2154
      %v2255 = vadd.f32 %v1960, %v2159
      %v2256 = vadd.f32 %v1961, %v2162
      %v2257 = vadd.f32 %v1962, %v2167
      %v2258 = vadd.f32 %v1963, %v2170
      %v2259 = vadd.f32 %v1964, %v2175
      %v2260 = vadd.f32 %v1965, %v2178
      %v2261 = vadd.f32 %v1966, %v2183
      %v2262 = vadd.f32 %v1967, %v2186
      %v2263 = vadd.f32 %v1968, %v2191
      %v2264 = vadd.f32 %v1969, %v2194
      %v2265 = vadd.f32 %v1970, %v2199
      %v2266 = vadd.f32 %v1971, %v2202
      %v2267 = vadd.f32 %v1972, %v2207
      %v2268 = vadd.f32 %v1973, %v2210
      %v2269 = vadd.f32 %v1974, %v2215
      %v2270 = vadd.f32 %v1975, %v2218
      %v2271 = vadd.f32 %v1976, %v2223
      %v2272 = vadd.f32 %v1977, %v2226
      %v2273 = vadd.f32 %v1978, %v2231
      %v2274 = vadd.f32 %v1979, %v2234
      %v2275 = vadd.f32 %v1980, %v2239
      %v2276 = vadd.f32 %v1981, %v2242
      %v2277 = vld [vmem:[%s1982 + $0x1] sm:$0xff]
      %v2278 = vld [vmem:[%s1982 + $0x9] sm:$0xff]
      %v2279 = vld [vmem:[%s1982 + $0x19] sm:$0xff]
      %v2280 = vld [vmem:[%s1982 + $0x21] sm:$0xff]
      %v2281 = vld [vmem:[%s1982 + $0x31] sm:$0xff]
      %v2282 = vld [vmem:[%s1982 + $0x39] sm:$0xff]
      %v2283 = vld [vmem:[%s1982 + $0x49] sm:$0xff]
      %v2284 = vld [vmem:[%s1982 + $0x51] sm:$0xff]
      %v2285 = vld [vmem:[%s1982 + $0x61] sm:$0xff]
      %v2286 = vld [vmem:[%s1982 + $0x69] sm:$0xff]
      %v2287 = vld [vmem:[%s1982 + $0x79] sm:$0xff]
      %v2288 = vld [vmem:[%s1982 + $0x81] sm:$0xff]
      %v2289 = vld [vmem:[%s1982 + $0x91] sm:$0xff]
      %v2290 = vld [vmem:[%s1982 + $0x99] sm:$0xff]
      %v2291 = vld [vmem:[%s1982 + $0xa9] sm:$0xff]
      %v2292 = vld [vmem:[%s1982 + $0xb1] sm:$0xff]
      %v2293 = vld [vmem:[%s1982 + $0xc1] sm:$0xff]
      %v2294 = vld [vmem:[%s1982 + $0xc9] sm:$0xff]
      %v2295 = vld [vmem:[%s1982 + $0xd9] sm:$0xff]
      %v2296 = vld [vmem:[%s1982 + $0xe1] sm:$0xff]
      %v2297 = vld [vmem:[%s1982 + $0xf1] sm:$0xff]
      %v2298 = vld [vmem:[%s1982 + $0xf9] sm:$0xff]
      %v2299 = vld [vmem:[%s1982 + $0x109] sm:$0xff]
      %v2300 = vld [vmem:[%s1982 + $0x111] sm:$0xff]
      %v2301 = vld [vmem:[%s1982 + $0x121] sm:$0xff]
      %v2302 = vld [vmem:[%s1982 + $0x129] sm:$0xff]
      %v2303 = vld [vmem:[%s1982 + $0x139] sm:$0xff]
      %v2304 = vld [vmem:[%s1982 + $0x141] sm:$0xff]
      %v2305 = vld [vmem:[%s1982 + $0x151] sm:$0xff]
      %v2306 = vld [vmem:[%s1982 + $0x159] sm:$0xff]
      %v2307 = vld [vmem:[%s1982 + $0x169] sm:$0xff]
      %v2308 = vld [vmem:[%s1982 + $0x171] sm:$0xff]
      %v2309 = vpack.c.bf16 %v2278, %v2277
      %v2310 = vpack.c.bf16 %v2280, %v2279
      %v2311 = vpack.c.bf16 %v2282, %v2281
      %v2312 = vpack.c.bf16 %v2284, %v2283
      %v2313 = vpack.c.bf16 %v2286, %v2285
      %v2314 = vpack.c.bf16 %v2288, %v2287
      %v2315 = vpack.c.bf16 %v2290, %v2289
      %v2316 = vpack.c.bf16 %v2292, %v2291
      %v2317 = vpack.c.bf16 %v2294, %v2293
      %v2318 = vpack.c.bf16 %v2296, %v2295
      %v2319 = vpack.c.bf16 %v2298, %v2297
      %v2320 = vpack.c.bf16 %v2300, %v2299
      %v2321 = vpack.c.bf16 %v2302, %v2301
      %v2322 = vpack.c.bf16 %v2304, %v2303
      %v2323 = vpack.c.bf16 %v2306, %v2305
      %v2324 = vpack.c.bf16 %v2308, %v2307
      %s2325 = scalar_lea.vmem %s1, 14
      %v2326 = vld [vmem:[%s2325] sm:$0x3]
      %v2328 = vsel %vm379, %v2309, 0
      %v2331 = vsel %vm379, %v2310, 0
      %v2334 = vsel %vm379, %v2311, 0
      %v2337 = vsel %vm379, %v2312, 0
      %v2340 = vsel %vm379, %v2313, 0
      %v2343 = vsel %vm379, %v2314, 0
      %v2346 = vsel %vm379, %v2315, 0
      %v2349 = vsel %vm379, %v2316, 0
      %v2352 = vsel %vm379, %v2317, 0
      %v2355 = vsel %vm379, %v2318, 0
      %v2358 = vsel %vm379, %v2319, 0
      %v2361 = vsel %vm379, %v2320, 0
      %v2364 = vsel %vm379, %v2321, 0
      %v2367 = vsel %vm379, %v2322, 0
      %v2370 = vsel %vm379, %v2323, 0
      %v2373 = vsel %vm379, %v2324, 0
      %v2376 = vsel %vm428, %v2326, 0
      %2378 = vmatprep.subr.bf16.mxu0 0
      %2379 = vmatpush1.bf16.msra.mxu0 %v2376
      %2380 = vmatprep.subr.bf16.mxu0 0
      %2381 = vmatpush1.bf16.msra.mxu0 0
      %2382 = vmatprep.subr.bf16.mxu0 0
      %2383 = vmatpush1.bf16.msra.mxu0 0
      %2384 = vmatprep.subr.bf16.mxu0 0
      %2385 = vmatpush1.bf16.msra.mxu0 0
      %2386 = vmatprep.subr.bf16.mxu0 0
      %2387 = vmatpush1.bf16.msra.mxu0 0
      %2388 = vmatprep.subr.bf16.mxu0 0
      %2389 = vmatpush1.bf16.msra.mxu0 0
      %2390 = vmatprep.subr.bf16.mxu0 0
      %2391 = vmatpush1.bf16.msra.mxu0 0
      %2392 = vmatprep.subr.bf16.mxu0 0
      %2393 = vmatpush1.bf16.msra.mxu0 0
      %2394 = vmatprep.subr.bf16.mxu0 0
      %2395 = vmatpush1.bf16.msra.mxu0 0
      %2396 = vmatprep.subr.bf16.mxu0 0
      %2397 = vmatpush1.bf16.msra.mxu0 0
      %2398 = vmatprep.subr.bf16.mxu0 0
      %2399 = vmatpush1.bf16.msra.mxu0 0
      %2400 = vmatprep.subr.bf16.mxu0 0
      %2401 = vmatpush1.bf16.msra.mxu0 0
      %2402 = vmatprep.subr.bf16.mxu0 0
      %2403 = vmatpush1.bf16.msra.mxu0 0
      %2404 = vmatprep.subr.bf16.mxu0 0
      %2405 = vmatpush1.bf16.msra.mxu0 0
      %2406 = vmatprep.subr.bf16.mxu0 0
      %2407 = vmatpush1.bf16.msra.mxu0 0
      %2408 = vmatprep.subr.bf16.mxu0 0
      %2409 = vmatpush1.bf16.msra.mxu0 0
      %2410 = vmatprep.mubr.bf16.mxu0 0
      %2411 = vmatmul.mubr.bf16.gmra.mrb[0].mxu0 %v2328
      %v2412 = vpop.f32.mrb[0].mxu0
      %v2413 = vadd.f32 0.0, %v2412
      %v2414 = vpop.f32.mrb[0].mxu0
      %v2415 = vpop.f32.mrb[0].mxu0
      %v2416 = vadd.f32 0.0, %v2415
      %v2417 = vpop.f32.mrb[0].mxu0
      %2418 = vmatprep.mubr.bf16.mxu0 0
      %2419 = vmatmul.mubr.bf16.gmra.mrb[0].mxu0 %v2331
      %v2420 = vpop.f32.mrb[0].mxu0
      %v2421 = vadd.f32 0.0, %v2420
      %v2422 = vpop.f32.mrb[0].mxu0
      %v2423 = vpop.f32.mrb[0].mxu0
      %v2424 = vadd.f32 0.0, %v2423
      %v2425 = vpop.f32.mrb[0].mxu0
      %2426 = vmatprep.mubr.bf16.mxu0 0
      %2427 = vmatmul.mubr.bf16.gmra.mrb[0].mxu0 %v2334
      %v2428 = vpop.f32.mrb[0].mxu0
      %v2429 = vadd.f32 0.0, %v2428
      %v2430 = vpop.f32.mrb[0].mxu0
      %v2431 = vpop.f32.mrb[0].mxu0
      %v2432 = vadd.f32 0.0, %v2431
      %v2433 = vpop.f32.mrb[0].mxu0
      %2434 = vmatprep.mubr.bf16.mxu0 0
      %2435 = vmatmul.mubr.bf16.gmra.mrb[0].mxu0 %v2337
      %v2436 = vpop.f32.mrb[0].mxu0
      %v2437 = vadd.f32 0.0, %v2436
      %v2438 = vpop.f32.mrb[0].mxu0
      %v2439 = vpop.f32.mrb[0].mxu0
      %v2440 = vadd.f32 0.0, %v2439
      %v2441 = vpop.f32.mrb[0].mxu0
      %2442 = vmatprep.mubr.bf16.mxu0 0
      %2443 = vmatmul.mubr.bf16.gmra.mrb[0].mxu0 %v2340
      %v2444 = vpop.f32.mrb[0].mxu0
      %v2445 = vadd.f32 0.0, %v2444
      %v2446 = vpop.f32.mrb[0].mxu0
      %v2447 = vpop.f32.mrb[0].mxu0
      %v2448 = vadd.f32 0.0, %v2447
      %v2449 = vpop.f32.mrb[0].mxu0
      %2450 = vmatprep.mubr.bf16.mxu0 0
      %2451 = vmatmul.mubr.bf16.gmra.mrb[0].mxu0 %v2343
      %v2452 = vpop.f32.mrb[0].mxu0
      %v2453 = vadd.f32 0.0, %v2452
      %v2454 = vpop.f32.mrb[0].mxu0
      %v2455 = vpop.f32.mrb[0].mxu0
      %v2456 = vadd.f32 0.0, %v2455
      %v2457 = vpop.f32.mrb[0].mxu0
      %2458 = vmatprep.mubr.bf16.mxu0 0
      %2459 = vmatmul.mubr.bf16.gmra.mrb[0].mxu0 %v2346
      %v2460 = vpop.f32.mrb[0].mxu0
      %v2461 = vadd.f32 0.0, %v2460
      %v2462 = vpop.f32.mrb[0].mxu0
      %v2463 = vpop.f32.mrb[0].mxu0
      %v2464 = vadd.f32 0.0, %v2463
      %v2465 = vpop.f32.mrb[0].mxu0
      %2466 = vmatprep.mubr.bf16.mxu0 0
      %2467 = vmatmul.mubr.bf16.gmra.mrb[0].mxu0 %v2349
      %v2468 = vpop.f32.mrb[0].mxu0
      %v2469 = vadd.f32 0.0, %v2468
      %v2470 = vpop.f32.mrb[0].mxu0
      %v2471 = vpop.f32.mrb[0].mxu0
      %v2472 = vadd.f32 0.0, %v2471
      %v2473 = vpop.f32.mrb[0].mxu0
      %2474 = vmatprep.mubr.bf16.mxu0 0
      %2475 = vmatmul.mubr.bf16.gmra.mrb[0].mxu0 %v2352
      %v2476 = vpop.f32.mrb[0].mxu0
      %v2477 = vadd.f32 0.0, %v2476
      %v2478 = vpop.f32.mrb[0].mxu0
      %v2479 = vpop.f32.mrb[0].mxu0
      %v2480 = vadd.f32 0.0, %v2479
      %v2481 = vpop.f32.mrb[0].mxu0
      %2482 = vmatprep.mubr.bf16.mxu0 0
      %2483 = vmatmul.mubr.bf16.gmra.mrb[0].mxu0 %v2355
      %v2484 = vpop.f32.mrb[0].mxu0
      %v2485 = vadd.f32 0.0, %v2484
      %v2486 = vpop.f32.mrb[0].mxu0
      %v2487 = vpop.f32.mrb[0].mxu0
      %v2488 = vadd.f32 0.0, %v2487
      %v2489 = vpop.f32.mrb[0].mxu0
      %2490 = vmatprep.mubr.bf16.mxu0 0
      %2491 = vmatmul.mubr.bf16.gmra.mrb[0].mxu0 %v2358
      %v2492 = vpop.f32.mrb[0].mxu0
      %v2493 = vadd.f32 0.0, %v2492
      %v2494 = vpop.f32.mrb[0].mxu0
      %v2495 = vpop.f32.mrb[0].mxu0
      %v2496 = vadd.f32 0.0, %v2495
      %v2497 = vpop.f32.mrb[0].mxu0
      %2498 = vmatprep.mubr.bf16.mxu0 0
      %2499 = vmatmul.mubr.bf16.gmra.mrb[0].mxu0 %v2361
      %v2500 = vpop.f32.mrb[0].mxu0
      %v2501 = vadd.f32 0.0, %v2500
      %v2502 = vpop.f32.mrb[0].mxu0
      %v2503 = vpop.f32.mrb[0].mxu0
      %v2504 = vadd.f32 0.0, %v2503
      %v2505 = vpop.f32.mrb[0].mxu0
      %2506 = vmatprep.mubr.bf16.mxu0 0
      %2507 = vmatmul.mubr.bf16.gmra.mrb[0].mxu0 %v2364
      %v2508 = vpop.f32.mrb[0].mxu0
      %v2509 = vadd.f32 0.0, %v2508
      %v2510 = vpop.f32.mrb[0].mxu0
      %v2511 = vpop.f32.mrb[0].mxu0
      %v2512 = vadd.f32 0.0, %v2511
      %v2513 = vpop.f32.mrb[0].mxu0
      %2514 = vmatprep.mubr.bf16.mxu0 0
      %2515 = vmatmul.mubr.bf16.gmra.mrb[0].mxu0 %v2367
      %v2516 = vpop.f32.mrb[0].mxu0
      %v2517 = vadd.f32 0.0, %v2516
      %v2518 = vpop.f32.mrb[0].mxu0
      %v2519 = vpop.f32.mrb[0].mxu0
      %v2520 = vadd.f32 0.0, %v2519
      %v2521 = vpop.f32.mrb[0].mxu0
      %2522 = vmatprep.mubr.bf16.mxu0 0
      %2523 = vmatmul.mubr.bf16.gmra.mrb[0].mxu0 %v2370
      %v2524 = vpop.f32.mrb[0].mxu0
      %v2525 = vadd.f32 0.0, %v2524
      %v2526 = vpop.f32.mrb[0].mxu0
      %v2527 = vpop.f32.mrb[0].mxu0
      %v2528 = vadd.f32 0.0, %v2527
      %v2529 = vpop.f32.mrb[0].mxu0
      %2530 = vmatprep.mubr.bf16.mxu0 0
      %2531 = vmatmul.mubr.bf16.gmra.mrb[0].mxu0 %v2373
      %v2532 = vpop.f32.mrb[0].mxu0
      %v2533 = vadd.f32 0.0, %v2532
      %v2534 = vpop.f32.mrb[0].mxu0
      %v2535 = vpop.f32.mrb[0].mxu0
      %v2536 = vadd.f32 0.0, %v2535
      %v2537 = vpop.f32.mrb[0].mxu0
      %2538 = vdwg.mxu0
      %v2539 = vadd.f32 %v2245, %v2413
      %v2540 = vadd.f32 %v2246, %v2416
      %v2541 = vadd.f32 %v2247, %v2421
      %v2542 = vadd.f32 %v2248, %v2424
      %v2543 = vadd.f32 %v2249, %v2429
      %v2544 = vadd.f32 %v2250, %v2432
      %v2545 = vadd.f32 %v2251, %v2437
      %v2546 = vadd.f32 %v2252, %v2440
      %v2547 = vadd.f32 %v2253, %v2445
      %v2548 = vadd.f32 %v2254, %v2448
      %v2549 = vadd.f32 %v2255, %v2453
      %v2550 = vadd.f32 %v2256, %v2456
      %v2551 = vadd.f32 %v2257, %v2461
      %v2552 = vadd.f32 %v2258, %v2464
      %v2553 = vadd.f32 %v2259, %v2469
      %v2554 = vadd.f32 %v2260, %v2472
      %v2555 = vadd.f32 %v2261, %v2477
      %v2556 = vadd.f32 %v2262, %v2480
      %v2557 = vadd.f32 %v2263, %v2485
      %v2558 = vadd.f32 %v2264, %v2488
      %v2559 = vadd.f32 %v2265, %v2493
      %v2560 = vadd.f32 %v2266, %v2496
      %v2561 = vadd.f32 %v2267, %v2501
      %v2562 = vadd.f32 %v2268, %v2504
      %v2563 = vadd.f32 %v2269, %v2509
      %v2564 = vadd.f32 %v2270, %v2512
      %v2565 = vadd.f32 %v2271, %v2517
      %v2566 = vadd.f32 %v2272, %v2520
      %v2567 = vadd.f32 %v2273, %v2525
      %v2568 = vadd.f32 %v2274, %v2528
      %v2569 = vadd.f32 %v2275, %v2533
      %v2570 = vadd.f32 %v2276, %v2536
      %v2571 = vld [vmem:[%s1982 + $0x2] sm:$0xff]
      %v2572 = vld [vmem:[%s1982 + $0xa] sm:$0xff]
      %v2573 = vld [vmem:[%s1982 + $0x1a] sm:$0xff]
      %v2574 = vld [vmem:[%s1982 + $0x22] sm:$0xff]
      %v2575 = vld [vmem:[%s1982 + $0x32] sm:$0xff]
      %v2576 = vld [vmem:[%s1982 + $0x3a] sm:$0xff]
      %v2577 = vld [vmem:[%s1982 + $0x4a] sm:$0xff]
      %v2578 = vld [vmem:[%s1982 + $0x52] sm:$0xff]
      %v2579 = vld [vmem:[%s1982 + $0x62] sm:$0xff]
      %v2580 = vld [vmem:[%s1982 + $0x6a] sm:$0xff]
      %v2581 = vld [vmem:[%s1982 + $0x7a] sm:$0xff]
      %v2582 = vld [vmem:[%s1982 + $0x82] sm:$0xff]
      %v2583 = vld [vmem:[%s1982 + $0x92] sm:$0xff]
      %v2584 = vld [vmem:[%s1982 + $0x9a] sm:$0xff]
      %v2585 = vld [vmem:[%s1982 + $0xaa] sm:$0xff]
      %v2586 = vld [vmem:[%s1982 + $0xb2] sm:$0xff]
      %v2587 = vld [vmem:[%s1982 + $0xc2] sm:$0xff]
      %v2588 = vld [vmem:[%s1982 + $0xca] sm:$0xff]
      %v2589 = vld [vmem:[%s1982 + $0xda] sm:$0xff]
      %v2590 = vld [vmem:[%s1982 + $0xe2] sm:$0xff]
      %v2591 = vld [vmem:[%s1982 + $0xf2] sm:$0xff]
      %v2592 = vld [vmem:[%s1982 + $0xfa] sm:$0xff]
      %v2593 = vld [vmem:[%s1982 + $0x10a] sm:$0xff]
      %v2594 = vld [vmem:[%s1982 + $0x112] sm:$0xff]
      %v2595 = vld [vmem:[%s1982 + $0x122] sm:$0xff]
      %v2596 = vld [vmem:[%s1982 + $0x12a] sm:$0xff]
      %v2597 = vld [vmem:[%s1982 + $0x13a] sm:$0xff]
      %v2598 = vld [vmem:[%s1982 + $0x142] sm:$0xff]
      %v2599 = vld [vmem:[%s1982 + $0x152] sm:$0xff]
      %v2600 = vld [vmem:[%s1982 + $0x15a] sm:$0xff]
      %v2601 = vld [vmem:[%s1982 + $0x16a] sm:$0xff]
      %v2602 = vld [vmem:[%s1982 + $0x172] sm:$0xff]
      %v2603 = vpack.c.bf16 %v2572, %v2571
      %v2604 = vpack.c.bf16 %v2574, %v2573
      %v2605 = vpack.c.bf16 %v2576, %v2575
      %v2606 = vpack.c.bf16 %v2578, %v2577
      %v2607 = vpack.c.bf16 %v2580, %v2579
      %v2608 = vpack.c.bf16 %v2582, %v2581
      %v2609 = vpack.c.bf16 %v2584, %v2583
      %v2610 = vpack.c.bf16 %v2586, %v2585
      %v2611 = vpack.c.bf16 %v2588, %v2587
      %v2612 = vpack.c.bf16 %v2590, %v2589
      %v2613 = vpack.c.bf16 %v2592, %v2591
      %v2614 = vpack.c.bf16 %v2594, %v2593
      %v2615 = vpack.c.bf16 %v2596, %v2595
      %v2616 = vpack.c.bf16 %v2598, %v2597
      %v2617 = vpack.c.bf16 %v2600, %v2599
      %v2618 = vpack.c.bf16 %v2602, %v2601
      %s2619 = scalar_lea.vmem %s1, 16
      %v2620 = vld [vmem:[%s2619] sm:$0x3]
      %v2622 = vsel %vm379, %v2603, 0
      %v2625 = vsel %vm379, %v2604, 0
      %v2628 = vsel %vm379, %v2605, 0
      %v2631 = vsel %vm379, %v2606, 0
      %v2634 = vsel %vm379, %v2607, 0
      %v2637 = vsel %vm379, %v2608, 0
      %v2640 = vsel %vm379, %v2609, 0
      %v2643 = vsel %vm379, %v2610, 0
      %v2646 = vsel %vm379, %v2611, 0
      %v2649 = vsel %vm379, %v2612, 0
      %v2652 = vsel %vm379, %v2613, 0
      %v2655 = vsel %vm379, %v2614, 0
      %v2658 = vsel %vm379, %v2615, 0
      %v2661 = vsel %vm379, %v2616, 0
      %v2664 = vsel %vm379, %v2617, 0
      %v2667 = vsel %vm379, %v2618, 0
      %v2670 = vsel %vm428, %v2620, 0
      %2672 = vmatprep.subr.bf16.mxu0 0
      %2673 = vmatpush1.bf16.msra.mxu0 %v2670
      %2674 = vmatprep.subr.bf16.mxu0 0
      %2675 = vmatpush1.bf16.msra.mxu0 0
      %2676 = vmatprep.subr.bf16.mxu0 0
      %2677 = vmatpush1.bf16.msra.mxu0 0
      %2678 = vmatprep.subr.bf16.mxu0 0
      %2679 = vmatpush1.bf16.msra.mxu0 0
      %2680 = vmatprep.subr.bf16.mxu0 0
      %2681 = vmatpush1.bf16.msra.mxu0 0
      %2682 = vmatprep.subr.bf16.mxu0 0
      %2683 = vmatpush1.bf16.msra.mxu0 0
      %2684 = vmatprep.subr.bf16.mxu0 0
      %2685 = vmatpush1.bf16.msra.mxu0 0
      %2686 = vmatprep.subr.bf16.mxu0 0
      %2687 = vmatpush1.bf16.msra.mxu0 0
      %2688 = vmatprep.subr.bf16.mxu0 0
      %2689 = vmatpush1.bf16.msra.mxu0 0
      %2690 = vmatprep.subr.bf16.mxu0 0
      %2691 = vmatpush1.bf16.msra.mxu0 0
      %2692 = vmatprep.subr.bf16.mxu0 0
      %2693 = vmatpush1.bf16.msra.mxu0 0
      %2694 = vmatprep.subr.bf16.mxu0 0
      %2695 = vmatpush1.bf16.msra.mxu0 0
      %2696 = vmatprep.subr.bf16.mxu0 0
      %2697 = vmatpush1.bf16.msra.mxu0 0
      %2698 = vmatprep.subr.bf16.mxu0 0
      %2699 = vmatpush1.bf16.msra.mxu0 0
      %2700 = vmatprep.subr.bf16.mxu0 0
      %2701 = vmatpush1.bf16.msra.mxu0 0
      %2702 = vmatprep.subr.bf16.mxu0 0
      %2703 = vmatpush1.bf16.msra.mxu0 0
      %2704 = vmatprep.mubr.bf16.mxu0 0
      %2705 = vmatmul.mubr.bf16.gmra.mrb[0].mxu0 %v2622
      %v2706 = vpop.f32.mrb[0].mxu0
      %v2707 = vadd.f32 0.0, %v2706
      %v2708 = vpop.f32.mrb[0].mxu0
      %v2709 = vpop.f32.mrb[0].mxu0
      %v2710 = vadd.f32 0.0, %v2709
      %v2711 = vpop.f32.mrb[0].mxu0
      %2712 = vmatprep.mubr.bf16.mxu0 0
      %2713 = vmatmul.mubr.bf16.gmra.mrb[0].mxu0 %v2625
      %v2714 = vpop.f32.mrb[0].mxu0
      %v2715 = vadd.f32 0.0, %v2714
      %v2716 = vpop.f32.mrb[0].mxu0
      %v2717 = vpop.f32.mrb[0].mxu0
      %v2718 = vadd.f32 0.0, %v2717
      %v2719 = vpop.f32.mrb[0].mxu0
      %2720 = vmatprep.mubr.bf16.mxu0 0
      %2721 = vmatmul.mubr.bf16.gmra.mrb[0].mxu0 %v2628
      %v2722 = vpop.f32.mrb[0].mxu0
      %v2723 = vadd.f32 0.0, %v2722
      %v2724 = vpop.f32.mrb[0].mxu0
      %v2725 = vpop.f32.mrb[0].mxu0
      %v2726 = vadd.f32 0.0, %v2725
      %v2727 = vpop.f32.mrb[0].mxu0
      %2728 = vmatprep.mubr.bf16.mxu0 0
      %2729 = vmatmul.mubr.bf16.gmra.mrb[0].mxu0 %v2631
      %v2730 = vpop.f32.mrb[0].mxu0
      %v2731 = vadd.f32 0.0, %v2730
      %v2732 = vpop.f32.mrb[0].mxu0
      %v2733 = vpop.f32.mrb[0].mxu0
      %v2734 = vadd.f32 0.0, %v2733
      %v2735 = vpop.f32.mrb[0].mxu0
      %2736 = vmatprep.mubr.bf16.mxu0 0
      %2737 = vmatmul.mubr.bf16.gmra.mrb[0].mxu0 %v2634
      %v2738 = vpop.f32.mrb[0].mxu0
      %v2739 = vadd.f32 0.0, %v2738
      %v2740 = vpop.f32.mrb[0].mxu0
      %v2741 = vpop.f32.mrb[0].mxu0
      %v2742 = vadd.f32 0.0, %v2741
      %v2743 = vpop.f32.mrb[0].mxu0
      %2744 = vmatprep.mubr.bf16.mxu0 0
      %2745 = vmatmul.mubr.bf16.gmra.mrb[0].mxu0 %v2637
      %v2746 = vpop.f32.mrb[0].mxu0
      %v2747 = vadd.f32 0.0, %v2746
      %v2748 = vpop.f32.mrb[0].mxu0
      %v2749 = vpop.f32.mrb[0].mxu0
      %v2750 = vadd.f32 0.0, %v2749
      %v2751 = vpop.f32.mrb[0].mxu0
      %2752 = vmatprep.mubr.bf16.mxu0 0
      %2753 = vmatmul.mubr.bf16.gmra.mrb[0].mxu0 %v2640
      %v2754 = vpop.f32.mrb[0].mxu0
      %v2755 = vadd.f32 0.0, %v2754
      %v2756 = vpop.f32.mrb[0].mxu0
      %v2757 = vpop.f32.mrb[0].mxu0
      %v2758 = vadd.f32 0.0, %v2757
      %v2759 = vpop.f32.mrb[0].mxu0
      %2760 = vmatprep.mubr.bf16.mxu0 0
      %2761 = vmatmul.mubr.bf16.gmra.mrb[0].mxu0 %v2643
      %v2762 = vpop.f32.mrb[0].mxu0
      %v2763 = vadd.f32 0.0, %v2762
      %v2764 = vpop.f32.mrb[0].mxu0
      %v2765 = vpop.f32.mrb[0].mxu0
      %v2766 = vadd.f32 0.0, %v2765
      %v2767 = vpop.f32.mrb[0].mxu0
      %2768 = vmatprep.mubr.bf16.mxu0 0
      %2769 = vmatmul.mubr.bf16.gmra.mrb[0].mxu0 %v2646
      %v2770 = vpop.f32.mrb[0].mxu0
      %v2771 = vadd.f32 0.0, %v2770
      %v2772 = vpop.f32.mrb[0].mxu0
      %v2773 = vpop.f32.mrb[0].mxu0
      %v2774 = vadd.f32 0.0, %v2773
      %v2775 = vpop.f32.mrb[0].mxu0
      %2776 = vmatprep.mubr.bf16.mxu0 0
      %2777 = vmatmul.mubr.bf16.gmra.mrb[0].mxu0 %v2649
      %v2778 = vpop.f32.mrb[0].mxu0
      %v2779 = vadd.f32 0.0, %v2778
      %v2780 = vpop.f32.mrb[0].mxu0
      %v2781 = vpop.f32.mrb[0].mxu0
      %v2782 = vadd.f32 0.0, %v2781
      %v2783 = vpop.f32.mrb[0].mxu0
      %2784 = vmatprep.mubr.bf16.mxu0 0
      %2785 = vmatmul.mubr.bf16.gmra.mrb[0].mxu0 %v2652
      %v2786 = vpop.f32.mrb[0].mxu0
      %v2787 = vadd.f32 0.0, %v2786
      %v2788 = vpop.f32.mrb[0].mxu0
      %v2789 = vpop.f32.mrb[0].mxu0
      %v2790 = vadd.f32 0.0, %v2789
      %v2791 = vpop.f32.mrb[0].mxu0
      %2792 = vmatprep.mubr.bf16.mxu0 0
      %2793 = vmatmul.mubr.bf16.gmra.mrb[0].mxu0 %v2655
      %v2794 = vpop.f32.mrb[0].mxu0
      %v2795 = vadd.f32 0.0, %v2794
      %v2796 = vpop.f32.mrb[0].mxu0
      %v2797 = vpop.f32.mrb[0].mxu0
      %v2798 = vadd.f32 0.0, %v2797
      %v2799 = vpop.f32.mrb[0].mxu0
      %2800 = vmatprep.mubr.bf16.mxu0 0
      %2801 = vmatmul.mubr.bf16.gmra.mrb[0].mxu0 %v2658
      %v2802 = vpop.f32.mrb[0].mxu0
      %v2803 = vadd.f32 0.0, %v2802
      %v2804 = vpop.f32.mrb[0].mxu0
      %v2805 = vpop.f32.mrb[0].mxu0
      %v2806 = vadd.f32 0.0, %v2805
      %v2807 = vpop.f32.mrb[0].mxu0
      %2808 = vmatprep.mubr.bf16.mxu0 0
      %2809 = vmatmul.mubr.bf16.gmra.mrb[0].mxu0 %v2661
      %v2810 = vpop.f32.mrb[0].mxu0
      %v2811 = vadd.f32 0.0, %v2810
      %v2812 = vpop.f32.mrb[0].mxu0
      %v2813 = vpop.f32.mrb[0].mxu0
      %v2814 = vadd.f32 0.0, %v2813
      %v2815 = vpop.f32.mrb[0].mxu0
      %2816 = vmatprep.mubr.bf16.mxu0 0
      %2817 = vmatmul.mubr.bf16.gmra.mrb[0].mxu0 %v2664
      %v2818 = vpop.f32.mrb[0].mxu0
      %v2819 = vadd.f32 0.0, %v2818
      %v2820 = vpop.f32.mrb[0].mxu0
      %v2821 = vpop.f32.mrb[0].mxu0
      %v2822 = vadd.f32 0.0, %v2821
      %v2823 = vpop.f32.mrb[0].mxu0
      %2824 = vmatprep.mubr.bf16.mxu0 0
      %2825 = vmatmul.mubr.bf16.gmra.mrb[0].mxu0 %v2667
      %v2826 = vpop.f32.mrb[0].mxu0
      %v2827 = vadd.f32 0.0, %v2826
      %v2828 = vpop.f32.mrb[0].mxu0
      %v2829 = vpop.f32.mrb[0].mxu0
      %v2830 = vadd.f32 0.0, %v2829
      %v2831 = vpop.f32.mrb[0].mxu0
      %2832 = vdwg.mxu0
      %v2833 = vadd.f32 %v2539, %v2707
      %v2834 = vadd.f32 %v2540, %v2710
      %v2835 = vadd.f32 %v2541, %v2715
      %v2836 = vadd.f32 %v2542, %v2718
      %v2837 = vadd.f32 %v2543, %v2723
      %v2838 = vadd.f32 %v2544, %v2726
      %v2839 = vadd.f32 %v2545, %v2731
      %v2840 = vadd.f32 %v2546, %v2734
      %v2841 = vadd.f32 %v2547, %v2739
      %v2842 = vadd.f32 %v2548, %v2742
      %v2843 = vadd.f32 %v2549, %v2747
      %v2844 = vadd.f32 %v2550, %v2750
      %v2845 = vadd.f32 %v2551, %v2755
      %v2846 = vadd.f32 %v2552, %v2758
      %v2847 = vadd.f32 %v2553, %v2763
      %v2848 = vadd.f32 %v2554, %v2766
      %v2849 = vadd.f32 %v2555, %v2771
      %v2850 = vadd.f32 %v2556, %v2774
      %v2851 = vadd.f32 %v2557, %v2779
      %v2852 = vadd.f32 %v2558, %v2782
      %v2853 = vadd.f32 %v2559, %v2787
      %v2854 = vadd.f32 %v2560, %v2790
      %v2855 = vadd.f32 %v2561, %v2795
      %v2856 = vadd.f32 %v2562, %v2798
      %v2857 = vadd.f32 %v2563, %v2803
      %v2858 = vadd.f32 %v2564, %v2806
      %v2859 = vadd.f32 %v2565, %v2811
      %v2860 = vadd.f32 %v2566, %v2814
      %v2861 = vadd.f32 %v2567, %v2819
      %v2862 = vadd.f32 %v2568, %v2822
      %v2863 = vadd.f32 %v2569, %v2827
      %v2864 = vadd.f32 %v2570, %v2830
      %v2865 = vld [vmem:[%s2] sm:$0x1]
      %v2867 = vlaneseq
      %v2868 = vshrl.u32 %v2867, 7
      %v2869 = vsub.s32 0, %v2868
      %v2870 = vrot.slane %v2865, %v2869
      %v2872 = vadd.f32 %v2833, %v2870
      %v2873 = vadd.f32 %v2834, %v2870
      %v2874 = vadd.f32 %v2835, %v2870
      %v2875 = vadd.f32 %v2836, %v2870
      %v2876 = vadd.f32 %v2837, %v2870
      %v2877 = vadd.f32 %v2838, %v2870
      %v2878 = vadd.f32 %v2839, %v2870
      %v2879 = vadd.f32 %v2840, %v2870
      %v2880 = vadd.f32 %v2841, %v2870
      %v2881 = vadd.f32 %v2842, %v2870
      %v2882 = vadd.f32 %v2843, %v2870
      %v2883 = vadd.f32 %v2844, %v2870
      %v2884 = vadd.f32 %v2845, %v2870
      %v2885 = vadd.f32 %v2846, %v2870
      %v2886 = vadd.f32 %v2847, %v2870
      %v2887 = vadd.f32 %v2848, %v2870
      %v2888 = vadd.f32 %v2849, %v2870
      %v2889 = vadd.f32 %v2850, %v2870
      %v2890 = vadd.f32 %v2851, %v2870
      %v2891 = vadd.f32 %v2852, %v2870
      %v2892 = vadd.f32 %v2853, %v2870
      %v2893 = vadd.f32 %v2854, %v2870
      %v2894 = vadd.f32 %v2855, %v2870
      %v2895 = vadd.f32 %v2856, %v2870
      %v2896 = vadd.f32 %v2857, %v2870
      %v2897 = vadd.f32 %v2858, %v2870
      %v2898 = vadd.f32 %v2859, %v2870
      %v2899 = vadd.f32 %v2860, %v2870
      %v2900 = vadd.f32 %v2861, %v2870
      %v2901 = vadd.f32 %v2862, %v2870
      %v2902 = vadd.f32 %v2863, %v2870
      %v2903 = vadd.f32 %v2864, %v2870
      %v2904 = vmax.f32 %v2872, 0.0
      %v2905 = vmax.f32 %v2873, 0.0
      %v2906 = vmax.f32 %v2874, 0.0
      %v2907 = vmax.f32 %v2875, 0.0
      %v2908 = vmax.f32 %v2876, 0.0
      %v2909 = vmax.f32 %v2877, 0.0
      %v2910 = vmax.f32 %v2878, 0.0
      %v2911 = vmax.f32 %v2879, 0.0
      %v2912 = vmax.f32 %v2880, 0.0
      %v2913 = vmax.f32 %v2881, 0.0
      %v2914 = vmax.f32 %v2882, 0.0
      %v2915 = vmax.f32 %v2883, 0.0
      %v2916 = vmax.f32 %v2884, 0.0
      %v2917 = vmax.f32 %v2885, 0.0
      %v2918 = vmax.f32 %v2886, 0.0
      %v2919 = vmax.f32 %v2887, 0.0
      %v2920 = vmax.f32 %v2888, 0.0
      %v2921 = vmax.f32 %v2889, 0.0
      %v2922 = vmax.f32 %v2890, 0.0
      %v2923 = vmax.f32 %v2891, 0.0
      %v2924 = vmax.f32 %v2892, 0.0
      %v2925 = vmax.f32 %v2893, 0.0
      %v2926 = vmax.f32 %v2894, 0.0
      %v2927 = vmax.f32 %v2895, 0.0
      %v2928 = vmax.f32 %v2896, 0.0
      %v2929 = vmax.f32 %v2897, 0.0
      %v2930 = vmax.f32 %v2898, 0.0
      %v2931 = vmax.f32 %v2899, 0.0
      %v2932 = vmax.f32 %v2900, 0.0
      %v2933 = vmax.f32 %v2901, 0.0
      %v2934 = vmax.f32 %v2902, 0.0
      %v2935 = vmax.f32 %v2903, 0.0
      %vm2936 = vcmask 64512
      %2937 = vst.msk [vmem:[#allocation2] sm:$0xff] %vm2936, 0.0
      %2938 = vst.msk [vmem:[#allocation2 + $0x8] sm:$0xff] %vm2936, 0.0
      %vm2939 = vcmask 58368
      %2940 = vst.msk [vmem:[#allocation2 + $0x10] sm:$0x3] %vm2939, 0.0
      %2941 = vst.msk [vmem:[#allocation2 + $0x18] sm:$0xff] %vm2936, 0.0
      %2942 = vst.msk [vmem:[#allocation2 + $0x20] sm:$0xff] %vm2936, 0.0
      %2943 = vst.msk [vmem:[#allocation2 + $0x28] sm:$0x3] %vm2939, 0.0
      %2944 = vst.msk [vmem:[#allocation2 + $0x30] sm:$0xff] %vm2936, 0.0
      %2945 = vst.msk [vmem:[#allocation2 + $0x38] sm:$0xff] %vm2936, 0.0
      %2946 = vst.msk [vmem:[#allocation2 + $0x40] sm:$0x3] %vm2939, 0.0
      %2947 = vst.msk [vmem:[#allocation2 + $0x48] sm:$0xff] %vm2936, 0.0
      %2948 = vst.msk [vmem:[#allocation2 + $0x50] sm:$0xff] %vm2936, 0.0
      %2949 = vst.msk [vmem:[#allocation2 + $0x58] sm:$0x3] %vm2939, 0.0
      %2950 = vst.msk [vmem:[#allocation2 + $0x60] sm:$0xff] %vm2936, 0.0
      %2951 = vst.msk [vmem:[#allocation2 + $0x68] sm:$0xff] %vm2936, 0.0
      %2952 = vst.msk [vmem:[#allocation2 + $0x70] sm:$0x3] %vm2939, 0.0
      %2953 = vst.msk [vmem:[#allocation2 + $0x78] sm:$0xff] %vm2936, 0.0
      %2954 = vst.msk [vmem:[#allocation2 + $0x80] sm:$0xff] %vm2936, 0.0
      %2955 = vst.msk [vmem:[#allocation2 + $0x88] sm:$0x3] %vm2939, 0.0
      %2956 = vst.msk [vmem:[#allocation2 + $0x90] sm:$0xff] %vm2936, 0.0
      %2957 = vst.msk [vmem:[#allocation2 + $0x98] sm:$0xff] %vm2936, 0.0
      %2958 = vst.msk [vmem:[#allocation2 + $0xa0] sm:$0x3] %vm2939, 0.0
      %2959 = vst.msk [vmem:[#allocation2 + $0xa8] sm:$0xff] %vm2936, 0.0
      %2960 = vst.msk [vmem:[#allocation2 + $0xb0] sm:$0xff] %vm2936, 0.0
      %2961 = vst.msk [vmem:[#allocation2 + $0xb8] sm:$0x3] %vm2939, 0.0
      %2962 = vst.msk [vmem:[#allocation2 + $0xc0] sm:$0xff] %vm2936, 0.0
      %2963 = vst.msk [vmem:[#allocation2 + $0xc8] sm:$0xff] %vm2936, 0.0
      %2964 = vst.msk [vmem:[#allocation2 + $0xd0] sm:$0x3] %vm2939, 0.0
      %2965 = vst.msk [vmem:[#allocation2 + $0xd8] sm:$0xff] %vm2936, 0.0
      %2966 = vst.msk [vmem:[#allocation2 + $0xe0] sm:$0xff] %vm2936, 0.0
      %2967 = vst.msk [vmem:[#allocation2 + $0xe8] sm:$0x3] %vm2939, 0.0
      %2968 = vst.msk [vmem:[#allocation2 + $0xf0] sm:$0xff] %vm2936, 0.0
      %2969 = vst.msk [vmem:[#allocation2 + $0xf8] sm:$0xff] %vm2936, 0.0
      %2970 = vst.msk [vmem:[#allocation2 + $0x100] sm:$0x3] %vm2939, 0.0
      %2971 = vst.msk [vmem:[#allocation2 + $0x108] sm:$0xff] %vm2936, 0.0
      %2972 = vst.msk [vmem:[#allocation2 + $0x110] sm:$0xff] %vm2936, 0.0
      %2973 = vst.msk [vmem:[#allocation2 + $0x118] sm:$0x3] %vm2939, 0.0
      %2974 = vst.msk [vmem:[#allocation2 + $0x120] sm:$0xff] %vm2936, 0.0
      %2975 = vst.msk [vmem:[#allocation2 + $0x128] sm:$0xff] %vm2936, 0.0
      %2976 = vst.msk [vmem:[#allocation2 + $0x130] sm:$0x3] %vm2939, 0.0
      %2977 = vst.msk [vmem:[#allocation2 + $0x138] sm:$0xff] %vm2936, 0.0
      %2978 = vst.msk [vmem:[#allocation2 + $0x140] sm:$0xff] %vm2936, 0.0
      %2979 = vst.msk [vmem:[#allocation2 + $0x148] sm:$0x3] %vm2939, 0.0
      %2980 = vst.msk [vmem:[#allocation2 + $0x150] sm:$0xff] %vm2936, 0.0
      %2981 = vst.msk [vmem:[#allocation2 + $0x158] sm:$0xff] %vm2936, 0.0
      %2982 = vst.msk [vmem:[#allocation2 + $0x160] sm:$0x3] %vm2939, 0.0
      %2983 = vst.msk [vmem:[#allocation2 + $0x168] sm:$0xff] %vm2936, 0.0
      %2984 = vst.msk [vmem:[#allocation2 + $0x170] sm:$0xff] %vm2936, 0.0
      %2985 = vst.msk [vmem:[#allocation2 + $0x178] sm:$0x3] %vm2939, 0.0
      %2986 = vst.msk [vmem:[#allocation2 + $0x180] sm:$0xff] %vm2936, 0.0
      %2987 = vst.msk [vmem:[#allocation2 + $0x188] sm:$0xff] %vm2936, 0.0
      %2988 = vst.msk [vmem:[#allocation2 + $0x190] sm:$0x3] %vm2939, 0.0
      %2989 = vst.msk [vmem:[#allocation2 + $0x198] sm:$0xff] %vm2936, 0.0
      %2990 = vst.msk [vmem:[#allocation2 + $0x1a0] sm:$0xff] %vm2936, 0.0
      %2991 = vst.msk [vmem:[#allocation2 + $0x1a8] sm:$0x3] %vm2939, 0.0
      %s2992 = scalar_lea.vmem [#allocation2], 24
      %2993 = vst.msk [vmem:[%s2992 + $0x1] sm:$0xff] %vm2936, %v2904
      %2994 = vst.msk [vmem:[%s2992 + $0x9] sm:$0xff] %vm2936, %v2905
      %s2995 = scalar_lea.vmem [#allocation2], 48
      %2996 = vst.msk [vmem:[%s2995 + $0x1] sm:$0xff] %vm2936, %v2906
      %2997 = vst.msk [vmem:[%s2995 + $0x9] sm:$0xff] %vm2936, %v2907
      %s2998 = scalar_lea.vmem [#allocation2], 72
      %2999 = vst.msk [vmem:[%s2998 + $0x1] sm:$0xff] %vm2936, %v2908
      %3000 = vst.msk [vmem:[%s2998 + $0x9] sm:$0xff] %vm2936, %v2909
      %s3001 = scalar_lea.vmem [#allocation2], 96
      %3002 = vst.msk [vmem:[%s3001 + $0x1] sm:$0xff] %vm2936, %v2910
      %3003 = vst.msk [vmem:[%s3001 + $0x9] sm:$0xff] %vm2936, %v2911
      %s3004 = scalar_lea.vmem [#allocation2], 120
      %3005 = vst.msk [vmem:[%s3004 + $0x1] sm:$0xff] %vm2936, %v2912
      %3006 = vst.msk [vmem:[%s3004 + $0x9] sm:$0xff] %vm2936, %v2913
      %s3007 = scalar_lea.vmem [#allocation2], 144
      %3008 = vst.msk [vmem:[%s3007 + $0x1] sm:$0xff] %vm2936, %v2914
      %3009 = vst.msk [vmem:[%s3007 + $0x9] sm:$0xff] %vm2936, %v2915
      %s3010 = scalar_lea.vmem [#allocation2], 168
      %3011 = vst.msk [vmem:[%s3010 + $0x1] sm:$0xff] %vm2936, %v2916
      %3012 = vst.msk [vmem:[%s3010 + $0x9] sm:$0xff] %vm2936, %v2917
      %s3013 = scalar_lea.vmem [#allocation2], 192
      %3014 = vst.msk [vmem:[%s3013 + $0x1] sm:$0xff] %vm2936, %v2918
      %3015 = vst.msk [vmem:[%s3013 + $0x9] sm:$0xff] %vm2936, %v2919
      %s3016 = scalar_lea.vmem [#allocation2], 216
      %3017 = vst.msk [vmem:[%s3016 + $0x1] sm:$0xff] %vm2936, %v2920
      %3018 = vst.msk [vmem:[%s3016 + $0x9] sm:$0xff] %vm2936, %v2921
      %s3019 = scalar_lea.vmem [#allocation2], 240
      %3020 = vst.msk [vmem:[%s3019 + $0x1] sm:$0xff] %vm2936, %v2922
      %3021 = vst.msk [vmem:[%s3019 + $0x9] sm:$0xff] %vm2936, %v2923
      %s3022 = scalar_lea.vmem [#allocation2], 264
      %3023 = vst.msk [vmem:[%s3022 + $0x1] sm:$0xff] %vm2936, %v2924
      %3024 = vst.msk [vmem:[%s3022 + $0x9] sm:$0xff] %vm2936, %v2925
      %s3025 = scalar_lea.vmem [#allocation2], 288
      %3026 = vst.msk [vmem:[%s3025 + $0x1] sm:$0xff] %vm2936, %v2926
      %3027 = vst.msk [vmem:[%s3025 + $0x9] sm:$0xff] %vm2936, %v2927
      %s3028 = scalar_lea.vmem [#allocation2], 312
      %3029 = vst.msk [vmem:[%s3028 + $0x1] sm:$0xff] %vm2936, %v2928
      %3030 = vst.msk [vmem:[%s3028 + $0x9] sm:$0xff] %vm2936, %v2929
      %s3031 = scalar_lea.vmem [#allocation2], 336
      %3032 = vst.msk [vmem:[%s3031 + $0x1] sm:$0xff] %vm2936, %v2930
      %3033 = vst.msk [vmem:[%s3031 + $0x9] sm:$0xff] %vm2936, %v2931
      %s3034 = scalar_lea.vmem [#allocation2], 360
      %3035 = vst.msk [vmem:[%s3034 + $0x1] sm:$0xff] %vm2936, %v2932
      %3036 = vst.msk [vmem:[%s3034 + $0x9] sm:$0xff] %vm2936, %v2933
      %s3037 = scalar_lea.vmem [#allocation2], 384
      %3038 = vst.msk [vmem:[%s3037 + $0x1] sm:$0xff] %vm2936, %v2934
      %3039 = vst.msk [vmem:[%s3037 + $0x9] sm:$0xff] %vm2936, %v2935
      %v3040 = vld [vmem:[#allocation2] sm:$0xff]
      %v3041 = vld [vmem:[#allocation2 + $0x8] sm:$0xff]
      %v3042 = vld [vmem:[#allocation2 + $0x18] sm:$0xff]
      %v3043 = vld [vmem:[#allocation2 + $0x20] sm:$0xff]
      %v3044 = vld [vmem:[#allocation2 + $0x30] sm:$0xff]
      %v3045 = vld [vmem:[#allocation2 + $0x38] sm:$0xff]
      %v3046 = vld [vmem:[#allocation2 + $0x48] sm:$0xff]
      %v3047 = vld [vmem:[#allocation2 + $0x50] sm:$0xff]
      %v3048 = vld [vmem:[#allocation2 + $0x60] sm:$0xff]
      %v3049 = vld [vmem:[#allocation2 + $0x68] sm:$0xff]
      %v3050 = vld [vmem:[#allocation2 + $0x78] sm:$0xff]
      %v3051 = vld [vmem:[#allocation2 + $0x80] sm:$0xff]
      %v3052 = vld [vmem:[#allocation2 + $0x90] sm:$0xff]
      %v3053 = vld [vmem:[#allocation2 + $0x98] sm:$0xff]
      %v3054 = vld [vmem:[#allocation2 + $0xa8] sm:$0xff]
      %v3055 = vld [vmem:[#allocation2 + $0xb0] sm:$0xff]
      %v3056 = vld [vmem:[#allocation2 + $0xc0] sm:$0xff]
      %v3057 = vld [vmem:[#allocation2 + $0xc8] sm:$0xff]
      %v3058 = vld [vmem:[#allocation2 + $0xd8] sm:$0xff]
      %v3059 = vld [vmem:[#allocation2 + $0xe0] sm:$0xff]
      %v3060 = vld [vmem:[#allocation2 + $0xf0] sm:$0xff]
      %v3061 = vld [vmem:[#allocation2 + $0xf8] sm:$0xff]
      %v3062 = vld [vmem:[#allocation2 + $0x108] sm:$0xff]
      %v3063 = vld [vmem:[#allocation2 + $0x110] sm:$0xff]
      %v3064 = vld [vmem:[#allocation2 + $0x120] sm:$0xff]
      %v3065 = vld [vmem:[#allocation2 + $0x128] sm:$0xff]
      %v3066 = vld [vmem:[#allocation2 + $0x138] sm:$0xff]
      %v3067 = vld [vmem:[#allocation2 + $0x140] sm:$0xff]
      %v3068 = vld [vmem:[#allocation2 + $0x150] sm:$0xff]
      %v3069 = vld [vmem:[#allocation2 + $0x158] sm:$0xff]
      %v3070 = vld [vmem:[#allocation2 + $0x168] sm:$0xff]
      %v3071 = vld [vmem:[#allocation2 + $0x170] sm:$0xff]
      %v3072 = vpack.c.bf16 %v3041, %v3040
      %v3073 = vpack.c.bf16 %v3043, %v3042
      %v3074 = vpack.c.bf16 %v3045, %v3044
      %v3075 = vpack.c.bf16 %v3047, %v3046
      %v3076 = vpack.c.bf16 %v3049, %v3048
      %v3077 = vpack.c.bf16 %v3051, %v3050
      %v3078 = vpack.c.bf16 %v3053, %v3052
      %v3079 = vpack.c.bf16 %v3055, %v3054
      %v3080 = vpack.c.bf16 %v3057, %v3056
      %v3081 = vpack.c.bf16 %v3059, %v3058
      %v3082 = vpack.c.bf16 %v3061, %v3060
      %v3083 = vpack.c.bf16 %v3063, %v3062
      %v3084 = vpack.c.bf16 %v3065, %v3064
      %v3085 = vpack.c.bf16 %v3067, %v3066
      %v3086 = vpack.c.bf16 %v3069, %v3068
      %v3087 = vpack.c.bf16 %v3071, %v3070
      %v3088 = vld [vmem:[%s3] sm:$0xf]
      %v3089 = vld [vmem:[#allocation2 + $0x1] sm:$0xff]
      %v3090 = vld [vmem:[#allocation2 + $0x9] sm:$0xff]
      %v3091 = vld [vmem:[#allocation2 + $0x19] sm:$0xff]
      %v3092 = vld [vmem:[#allocation2 + $0x21] sm:$0xff]
      %v3093 = vld [vmem:[#allocation2 + $0x31] sm:$0xff]
      %v3094 = vld [vmem:[#allocation2 + $0x39] sm:$0xff]
      %v3095 = vld [vmem:[#allocation2 + $0x49] sm:$0xff]
      %v3096 = vld [vmem:[#allocation2 + $0x51] sm:$0xff]
      %v3097 = vld [vmem:[#allocation2 + $0x61] sm:$0xff]
      %v3098 = vld [vmem:[#allocation2 + $0x69] sm:$0xff]
      %v3099 = vld [vmem:[#allocation2 + $0x79] sm:$0xff]
      %v3100 = vld [vmem:[#allocation2 + $0x81] sm:$0xff]
      %v3101 = vld [vmem:[#allocation2 + $0x91] sm:$0xff]
      %v3102 = vld [vmem:[#allocation2 + $0x99] sm:$0xff]
      %v3103 = vld [vmem:[#allocation2 + $0xa9] sm:$0xff]
      %v3104 = vld [vmem:[#allocation2 + $0xb1] sm:$0xff]
      %v3105 = vld [vmem:[#allocation2 + $0xc1] sm:$0xff]
      %v3106 = vld [vmem:[#allocation2 + $0xc9] sm:$0xff]
      %v3107 = vld [vmem:[#allocation2 + $0xd9] sm:$0xff]
      %v3108 = vld [vmem:[#allocation2 + $0xe1] sm:$0xff]
      %v3109 = vld [vmem:[#allocation2 + $0xf1] sm:$0xff]
      %v3110 = vld [vmem:[#allocation2 + $0xf9] sm:$0xff]
      %v3111 = vld [vmem:[#allocation2 + $0x109] sm:$0xff]
      %v3112 = vld [vmem:[#allocation2 + $0x111] sm:$0xff]
      %v3113 = vld [vmem:[#allocation2 + $0x121] sm:$0xff]
      %v3114 = vld [vmem:[#allocation2 + $0x129] sm:$0xff]
      %v3115 = vld [vmem:[#allocation2 + $0x139] sm:$0xff]
      %v3116 = vld [vmem:[#allocation2 + $0x141] sm:$0xff]
      %v3117 = vld [vmem:[#allocation2 + $0x151] sm:$0xff]
      %v3118 = vld [vmem:[#allocation2 + $0x159] sm:$0xff]
      %v3119 = vld [vmem:[#allocation2 + $0x169] sm:$0xff]
      %v3120 = vld [vmem:[#allocation2 + $0x171] sm:$0xff]
      %v3121 = vpack.c.bf16 %v3090, %v3089
      %v3122 = vpack.c.bf16 %v3092, %v3091
      %v3123 = vpack.c.bf16 %v3094, %v3093
      %v3124 = vpack.c.bf16 %v3096, %v3095
      %v3125 = vpack.c.bf16 %v3098, %v3097
      %v3126 = vpack.c.bf16 %v3100, %v3099
      %v3127 = vpack.c.bf16 %v3102, %v3101
      %v3128 = vpack.c.bf16 %v3104, %v3103
      %v3129 = vpack.c.bf16 %v3106, %v3105
      %v3130 = vpack.c.bf16 %v3108, %v3107
      %v3131 = vpack.c.bf16 %v3110, %v3109
      %v3132 = vpack.c.bf16 %v3112, %v3111
      %v3133 = vpack.c.bf16 %v3114, %v3113
      %v3134 = vpack.c.bf16 %v3116, %v3115
      %v3135 = vpack.c.bf16 %v3118, %v3117
      %v3136 = vpack.c.bf16 %v3120, %v3119
      %s3137 = scalar_lea.vmem %s3, 4
      %v3138 = vld [vmem:[%s3137] sm:$0xf]
      %v3140 = vsel %vm2936, %v3121, 0
      %v3143 = vsel %vm2936, %v3122, 0
      %v3146 = vsel %vm2936, %v3123, 0
      %v3149 = vsel %vm2936, %v3124, 0
      %v3152 = vsel %vm2936, %v3125, 0
      %v3155 = vsel %vm2936, %v3126, 0
      %v3158 = vsel %vm2936, %v3127, 0
      %v3161 = vsel %vm2936, %v3128, 0
      %v3164 = vsel %vm2936, %v3129, 0
      %v3167 = vsel %vm2936, %v3130, 0
      %v3170 = vsel %vm2936, %v3131, 0
      %v3173 = vsel %vm2936, %v3132, 0
      %v3176 = vsel %vm2936, %v3133, 0
      %v3179 = vsel %vm2936, %v3134, 0
      %v3182 = vsel %vm2936, %v3135, 0
      %v3185 = vsel %vm2936, %v3136, 0
      %vm3187 = vcmask 1043456
      %v3189 = vsel %vm3187, %v3138, 0
      %3191 = vmatprep.subr.bf16.mxu0 0
      %3192 = vmatpush1.bf16.msra.mxu0 %v3189
      %3193 = vmatprep.subr.bf16.mxu0 0
      %3194 = vmatpush1.bf16.msra.mxu0 0
      %3195 = vmatprep.subr.bf16.mxu0 0
      %3196 = vmatpush1.bf16.msra.mxu0 0
      %3197 = vmatprep.subr.bf16.mxu0 0
      %3198 = vmatpush1.bf16.msra.mxu0 0
      %3199 = vmatprep.subr.bf16.mxu0 0
      %3200 = vmatpush1.bf16.msra.mxu0 0
      %3201 = vmatprep.subr.bf16.mxu0 0
      %3202 = vmatpush1.bf16.msra.mxu0 0
      %3203 = vmatprep.subr.bf16.mxu0 0
      %3204 = vmatpush1.bf16.msra.mxu0 0
      %3205 = vmatprep.subr.bf16.mxu0 0
      %3206 = vmatpush1.bf16.msra.mxu0 0
      %3207 = vmatprep.subr.bf16.mxu0 0
      %3208 = vmatpush1.bf16.msra.mxu0 0
      %3209 = vmatprep.subr.bf16.mxu0 0
      %3210 = vmatpush1.bf16.msra.mxu0 0
      %3211 = vmatprep.subr.bf16.mxu0 0
      %3212 = vmatpush1.bf16.msra.mxu0 0
      %3213 = vmatprep.subr.bf16.mxu0 0
      %3214 = vmatpush1.bf16.msra.mxu0 0
      %3215 = vmatprep.subr.bf16.mxu0 0
      %3216 = vmatpush1.bf16.msra.mxu0 0
      %3217 = vmatprep.subr.bf16.mxu0 0
      %3218 = vmatpush1.bf16.msra.mxu0 0
      %3219 = vmatprep.subr.bf16.mxu0 0
      %3220 = vmatpush1.bf16.msra.mxu0 0
      %3221 = vmatprep.subr.bf16.mxu0 0
      %3222 = vmatpush1.bf16.msra.mxu0 0
      %3223 = vmatprep.mubr.bf16.mxu0 0
      %3224 = vmatmul.mubr.bf16.gmra.mrb[0].mxu0 %v3140
      %v3225 = vpop.f32.mrb[0].mxu0
      %v3226 = vadd.f32 0.0, %v3225
      %v3227 = vpop.f32.mrb[0].mxu0
      %v3228 = vpop.f32.mrb[0].mxu0
      %v3229 = vadd.f32 0.0, %v3228
      %v3230 = vpop.f32.mrb[0].mxu0
      %3231 = vmatprep.mubr.bf16.mxu0 0
      %3232 = vmatmul.mubr.bf16.gmra.mrb[0].mxu0 %v3143
      %v3233 = vpop.f32.mrb[0].mxu0
      %v3234 = vadd.f32 0.0, %v3233
      %v3235 = vpop.f32.mrb[0].mxu0
      %v3236 = vpop.f32.mrb[0].mxu0
      %v3237 = vadd.f32 0.0, %v3236
      %v3238 = vpop.f32.mrb[0].mxu0
      %3239 = vmatprep.mubr.bf16.mxu0 0
      %3240 = vmatmul.mubr.bf16.gmra.mrb[0].mxu0 %v3146
      %v3241 = vpop.f32.mrb[0].mxu0
      %v3242 = vadd.f32 0.0, %v3241
      %v3243 = vpop.f32.mrb[0].mxu0
      %v3244 = vpop.f32.mrb[0].mxu0
      %v3245 = vadd.f32 0.0, %v3244
      %v3246 = vpop.f32.mrb[0].mxu0
      %3247 = vmatprep.mubr.bf16.mxu0 0
      %3248 = vmatmul.mubr.bf16.gmra.mrb[0].mxu0 %v3149
      %v3249 = vpop.f32.mrb[0].mxu0
      %v3250 = vadd.f32 0.0, %v3249
      %v3251 = vpop.f32.mrb[0].mxu0
      %v3252 = vpop.f32.mrb[0].mxu0
      %v3253 = vadd.f32 0.0, %v3252
      %v3254 = vpop.f32.mrb[0].mxu0
      %3255 = vmatprep.mubr.bf16.mxu0 0
      %3256 = vmatmul.mubr.bf16.gmra.mrb[0].mxu0 %v3152
      %v3257 = vpop.f32.mrb[0].mxu0
      %v3258 = vadd.f32 0.0, %v3257
      %v3259 = vpop.f32.mrb[0].mxu0
      %v3260 = vpop.f32.mrb[0].mxu0
      %v3261 = vadd.f32 0.0, %v3260
      %v3262 = vpop.f32.mrb[0].mxu0
      %3263 = vmatprep.mubr.bf16.mxu0 0
      %3264 = vmatmul.mubr.bf16.gmra.mrb[0].mxu0 %v3155
      %v3265 = vpop.f32.mrb[0].mxu0
      %v3266 = vadd.f32 0.0, %v3265
      %v3267 = vpop.f32.mrb[0].mxu0
      %v3268 = vpop.f32.mrb[0].mxu0
      %v3269 = vadd.f32 0.0, %v3268
      %v3270 = vpop.f32.mrb[0].mxu0
      %3271 = vmatprep.mubr.bf16.mxu0 0
      %3272 = vmatmul.mubr.bf16.gmra.mrb[0].mxu0 %v3158
      %v3273 = vpop.f32.mrb[0].mxu0
      %v3274 = vadd.f32 0.0, %v3273
      %v3275 = vpop.f32.mrb[0].mxu0
      %v3276 = vpop.f32.mrb[0].mxu0
      %v3277 = vadd.f32 0.0, %v3276
      %v3278 = vpop.f32.mrb[0].mxu0
      %3279 = vmatprep.mubr.bf16.mxu0 0
      %3280 = vmatmul.mubr.bf16.gmra.mrb[0].mxu0 %v3161
      %v3281 = vpop.f32.mrb[0].mxu0
      %v3282 = vadd.f32 0.0, %v3281
      %v3283 = vpop.f32.mrb[0].mxu0
      %v3284 = vpop.f32.mrb[0].mxu0
      %v3285 = vadd.f32 0.0, %v3284
      %v3286 = vpop.f32.mrb[0].mxu0
      %3287 = vmatprep.mubr.bf16.mxu0 0
      %3288 = vmatmul.mubr.bf16.gmra.mrb[0].mxu0 %v3164
      %v3289 = vpop.f32.mrb[0].mxu0
      %v3290 = vadd.f32 0.0, %v3289
      %v3291 = vpop.f32.mrb[0].mxu0
      %v3292 = vpop.f32.mrb[0].mxu0
      %v3293 = vadd.f32 0.0, %v3292
      %v3294 = vpop.f32.mrb[0].mxu0
      %3295 = vmatprep.mubr.bf16.mxu0 0
      %3296 = vmatmul.mubr.bf16.gmra.mrb[0].mxu0 %v3167
      %v3297 = vpop.f32.mrb[0].mxu0
      %v3298 = vadd.f32 0.0, %v3297
      %v3299 = vpop.f32.mrb[0].mxu0
      %v3300 = vpop.f32.mrb[0].mxu0
      %v3301 = vadd.f32 0.0, %v3300
      %v3302 = vpop.f32.mrb[0].mxu0
      %3303 = vmatprep.mubr.bf16.mxu0 0
      %3304 = vmatmul.mubr.bf16.gmra.mrb[0].mxu0 %v3170
      %v3305 = vpop.f32.mrb[0].mxu0
      %v3306 = vadd.f32 0.0, %v3305
      %v3307 = vpop.f32.mrb[0].mxu0
      %v3308 = vpop.f32.mrb[0].mxu0
      %v3309 = vadd.f32 0.0, %v3308
      %v3310 = vpop.f32.mrb[0].mxu0
      %3311 = vmatprep.mubr.bf16.mxu0 0
      %3312 = vmatmul.mubr.bf16.gmra.mrb[0].mxu0 %v3173
      %v3313 = vpop.f32.mrb[0].mxu0
      %v3314 = vadd.f32 0.0, %v3313
      %v3315 = vpop.f32.mrb[0].mxu0
      %v3316 = vpop.f32.mrb[0].mxu0
      %v3317 = vadd.f32 0.0, %v3316
      %v3318 = vpop.f32.mrb[0].mxu0
      %3319 = vmatprep.mubr.bf16.mxu0 0
      %3320 = vmatmul.mubr.bf16.gmra.mrb[0].mxu0 %v3176
      %v3321 = vpop.f32.mrb[0].mxu0
      %v3322 = vadd.f32 0.0, %v3321
      %v3323 = vpop.f32.mrb[0].mxu0
      %v3324 = vpop.f32.mrb[0].mxu0
      %v3325 = vadd.f32 0.0, %v3324
      %v3326 = vpop.f32.mrb[0].mxu0
      %3327 = vmatprep.mubr.bf16.mxu0 0
      %3328 = vmatmul.mubr.bf16.gmra.mrb[0].mxu0 %v3179
      %v3329 = vpop.f32.mrb[0].mxu0
      %v3330 = vadd.f32 0.0, %v3329
      %v3331 = vpop.f32.mrb[0].mxu0
      %v3332 = vpop.f32.mrb[0].mxu0
      %v3333 = vadd.f32 0.0, %v3332
      %v3334 = vpop.f32.mrb[0].mxu0
      %3335 = vmatprep.mubr.bf16.mxu0 0
      %3336 = vmatmul.mubr.bf16.gmra.mrb[0].mxu0 %v3182
      %v3337 = vpop.f32.mrb[0].mxu0
      %v3338 = vadd.f32 0.0, %v3337
      %v3339 = vpop.f32.mrb[0].mxu0
      %v3340 = vpop.f32.mrb[0].mxu0
      %v3341 = vadd.f32 0.0, %v3340
      %v3342 = vpop.f32.mrb[0].mxu0
      %3343 = vmatprep.mubr.bf16.mxu0 0
      %3344 = vmatmul.mubr.bf16.gmra.mrb[0].mxu0 %v3185
      %v3345 = vpop.f32.mrb[0].mxu0
      %v3346 = vadd.f32 0.0, %v3345
      %v3347 = vpop.f32.mrb[0].mxu0
      %v3348 = vpop.f32.mrb[0].mxu0
      %v3349 = vadd.f32 0.0, %v3348
      %v3350 = vpop.f32.mrb[0].mxu0
      %3351 = vdwg.mxu0
      %v3353 = vsel %vm2936, %v3072, 0
      %v3356 = vsel %vm2936, %v3073, 0
      %v3359 = vsel %vm2936, %v3074, 0
      %v3362 = vsel %vm2936, %v3075, 0
      %v3365 = vsel %vm2936, %v3076, 0
      %v3368 = vsel %vm2936, %v3077, 0
      %v3371 = vsel %vm2936, %v3078, 0
      %v3374 = vsel %vm2936, %v3079, 0
      %v3377 = vsel %vm2936, %v3080, 0
      %v3380 = vsel %vm2936, %v3081, 0
      %v3383 = vsel %vm2936, %v3082, 0
      %v3386 = vsel %vm2936, %v3083, 0
      %v3389 = vsel %vm2936, %v3084, 0
      %v3392 = vsel %vm2936, %v3085, 0
      %v3395 = vsel %vm2936, %v3086, 0
      %v3398 = vsel %vm2936, %v3087, 0
      %v3401 = vsel %vm3187, %v3088, 0
      %3403 = vmatprep.subr.bf16.mxu0 0
      %3404 = vmatpush1.bf16.msra.mxu0 %v3401
      %3405 = vmatprep.subr.bf16.mxu0 0
      %3406 = vmatpush1.bf16.msra.mxu0 0
      %3407 = vmatprep.subr.bf16.mxu0 0
      %3408 = vmatpush1.bf16.msra.mxu0 0
      %3409 = vmatprep.subr.bf16.mxu0 0
      %3410 = vmatpush1.bf16.msra.mxu0 0
      %3411 = vmatprep.subr.bf16.mxu0 0
      %3412 = vmatpush1.bf16.msra.mxu0 0
      %3413 = vmatprep.subr.bf16.mxu0 0
      %3414 = vmatpush1.bf16.msra.mxu0 0
      %3415 = vmatprep.subr.bf16.mxu0 0
      %3416 = vmatpush1.bf16.msra.mxu0 0
      %3417 = vmatprep.subr.bf16.mxu0 0
      %3418 = vmatpush1.bf16.msra.mxu0 0
      %3419 = vmatprep.subr.bf16.mxu0 0
      %3420 = vmatpush1.bf16.msra.mxu0 0
      %3421 = vmatprep.subr.bf16.mxu0 0
      %3422 = vmatpush1.bf16.msra.mxu0 0
      %3423 = vmatprep.subr.bf16.mxu0 0
      %3424 = vmatpush1.bf16.msra.mxu0 0
      %3425 = vmatprep.subr.bf16.mxu0 0
      %3426 = vmatpush1.bf16.msra.mxu0 0
      %3427 = vmatprep.subr.bf16.mxu0 0
      %3428 = vmatpush1.bf16.msra.mxu0 0
      %3429 = vmatprep.subr.bf16.mxu0 0
      %3430 = vmatpush1.bf16.msra.mxu0 0
      %3431 = vmatprep.subr.bf16.mxu0 0
      %3432 = vmatpush1.bf16.msra.mxu0 0
      %3433 = vmatprep.subr.bf16.mxu0 0
      %3434 = vmatpush1.bf16.msra.mxu0 0
      %3435 = vmatprep.mubr.bf16.mxu0 0
      %3436 = vmatmul.mubr.bf16.gmra.mrb[0].mxu0 %v3353
      %v3437 = vpop.f32.mrb[0].mxu0
      %v3438 = vadd.f32 %v3226, %v3437
      %v3439 = vpop.f32.mrb[0].mxu0
      %v3440 = vpop.f32.mrb[0].mxu0
      %v3441 = vadd.f32 %v3229, %v3440
      %v3442 = vpop.f32.mrb[0].mxu0
      %3443 = vmatprep.mubr.bf16.mxu0 0
      %3444 = vmatmul.mubr.bf16.gmra.mrb[0].mxu0 %v3356
      %v3445 = vpop.f32.mrb[0].mxu0
      %v3446 = vadd.f32 %v3234, %v3445
      %v3447 = vpop.f32.mrb[0].mxu0
      %v3448 = vpop.f32.mrb[0].mxu0
      %v3449 = vadd.f32 %v3237, %v3448
      %v3450 = vpop.f32.mrb[0].mxu0
      %3451 = vmatprep.mubr.bf16.mxu0 0
      %3452 = vmatmul.mubr.bf16.gmra.mrb[0].mxu0 %v3359
      %v3453 = vpop.f32.mrb[0].mxu0
      %v3454 = vadd.f32 %v3242, %v3453
      %v3455 = vpop.f32.mrb[0].mxu0
      %v3456 = vpop.f32.mrb[0].mxu0
      %v3457 = vadd.f32 %v3245, %v3456
      %v3458 = vpop.f32.mrb[0].mxu0
      %3459 = vmatprep.mubr.bf16.mxu0 0
      %3460 = vmatmul.mubr.bf16.gmra.mrb[0].mxu0 %v3362
      %v3461 = vpop.f32.mrb[0].mxu0
      %v3462 = vadd.f32 %v3250, %v3461
      %v3463 = vpop.f32.mrb[0].mxu0
      %v3464 = vpop.f32.mrb[0].mxu0
      %v3465 = vadd.f32 %v3253, %v3464
      %v3466 = vpop.f32.mrb[0].mxu0
      %3467 = vmatprep.mubr.bf16.mxu0 0
      %3468 = vmatmul.mubr.bf16.gmra.mrb[0].mxu0 %v3365
      %v3469 = vpop.f32.mrb[0].mxu0
      %v3470 = vadd.f32 %v3258, %v3469
      %v3471 = vpop.f32.mrb[0].mxu0
      %v3472 = vpop.f32.mrb[0].mxu0
      %v3473 = vadd.f32 %v3261, %v3472
      %v3474 = vpop.f32.mrb[0].mxu0
      %3475 = vmatprep.mubr.bf16.mxu0 0
      %3476 = vmatmul.mubr.bf16.gmra.mrb[0].mxu0 %v3368
      %v3477 = vpop.f32.mrb[0].mxu0
      %v3478 = vadd.f32 %v3266, %v3477
      %v3479 = vpop.f32.mrb[0].mxu0
      %v3480 = vpop.f32.mrb[0].mxu0
      %v3481 = vadd.f32 %v3269, %v3480
      %v3482 = vpop.f32.mrb[0].mxu0
      %3483 = vmatprep.mubr.bf16.mxu0 0
      %3484 = vmatmul.mubr.bf16.gmra.mrb[0].mxu0 %v3371
      %v3485 = vpop.f32.mrb[0].mxu0
      %v3486 = vadd.f32 %v3274, %v3485
      %v3487 = vpop.f32.mrb[0].mxu0
      %v3488 = vpop.f32.mrb[0].mxu0
      %v3489 = vadd.f32 %v3277, %v3488
      %v3490 = vpop.f32.mrb[0].mxu0
      %3491 = vmatprep.mubr.bf16.mxu0 0
      %3492 = vmatmul.mubr.bf16.gmra.mrb[0].mxu0 %v3374
      %v3493 = vpop.f32.mrb[0].mxu0
      %v3494 = vadd.f32 %v3282, %v3493
      %v3495 = vpop.f32.mrb[0].mxu0
      %v3496 = vpop.f32.mrb[0].mxu0
      %v3497 = vadd.f32 %v3285, %v3496
      %v3498 = vpop.f32.mrb[0].mxu0
      %3499 = vmatprep.mubr.bf16.mxu0 0
      %3500 = vmatmul.mubr.bf16.gmra.mrb[0].mxu0 %v3377
      %v3501 = vpop.f32.mrb[0].mxu0
      %v3502 = vadd.f32 %v3290, %v3501
      %v3503 = vpop.f32.mrb[0].mxu0
      %v3504 = vpop.f32.mrb[0].mxu0
      %v3505 = vadd.f32 %v3293, %v3504
      %v3506 = vpop.f32.mrb[0].mxu0
      %3507 = vmatprep.mubr.bf16.mxu0 0
      %3508 = vmatmul.mubr.bf16.gmra.mrb[0].mxu0 %v3380
      %v3509 = vpop.f32.mrb[0].mxu0
      %v3510 = vadd.f32 %v3298, %v3509
      %v3511 = vpop.f32.mrb[0].mxu0
      %v3512 = vpop.f32.mrb[0].mxu0
      %v3513 = vadd.f32 %v3301, %v3512
      %v3514 = vpop.f32.mrb[0].mxu0
      %3515 = vmatprep.mubr.bf16.mxu0 0
      %3516 = vmatmul.mubr.bf16.gmra.mrb[0].mxu0 %v3383
      %v3517 = vpop.f32.mrb[0].mxu0
      %v3518 = vadd.f32 %v3306, %v3517
      %v3519 = vpop.f32.mrb[0].mxu0
      %v3520 = vpop.f32.mrb[0].mxu0
      %v3521 = vadd.f32 %v3309, %v3520
      %v3522 = vpop.f32.mrb[0].mxu0
      %3523 = vmatprep.mubr.bf16.mxu0 0
      %3524 = vmatmul.mubr.bf16.gmra.mrb[0].mxu0 %v3386
      %v3525 = vpop.f32.mrb[0].mxu0
      %v3526 = vadd.f32 %v3314, %v3525
      %v3527 = vpop.f32.mrb[0].mxu0
      %v3528 = vpop.f32.mrb[0].mxu0
      %v3529 = vadd.f32 %v3317, %v3528
      %v3530 = vpop.f32.mrb[0].mxu0
      %3531 = vmatprep.mubr.bf16.mxu0 0
      %3532 = vmatmul.mubr.bf16.gmra.mrb[0].mxu0 %v3389
      %v3533 = vpop.f32.mrb[0].mxu0
      %v3534 = vadd.f32 %v3322, %v3533
      %v3535 = vpop.f32.mrb[0].mxu0
      %v3536 = vpop.f32.mrb[0].mxu0
      %v3537 = vadd.f32 %v3325, %v3536
      %v3538 = vpop.f32.mrb[0].mxu0
      %3539 = vmatprep.mubr.bf16.mxu0 0
      %3540 = vmatmul.mubr.bf16.gmra.mrb[0].mxu0 %v3392
      %v3541 = vpop.f32.mrb[0].mxu0
      %v3542 = vadd.f32 %v3330, %v3541
      %v3543 = vpop.f32.mrb[0].mxu0
      %v3544 = vpop.f32.mrb[0].mxu0
      %v3545 = vadd.f32 %v3333, %v3544
      %v3546 = vpop.f32.mrb[0].mxu0
      %3547 = vmatprep.mubr.bf16.mxu0 0
      %3548 = vmatmul.mubr.bf16.gmra.mrb[0].mxu0 %v3395
      %v3549 = vpop.f32.mrb[0].mxu0
      %v3550 = vadd.f32 %v3338, %v3549
      %v3551 = vpop.f32.mrb[0].mxu0
      %v3552 = vpop.f32.mrb[0].mxu0
      %v3553 = vadd.f32 %v3341, %v3552
      %v3554 = vpop.f32.mrb[0].mxu0
      %3555 = vmatprep.mubr.bf16.mxu0 0
      %3556 = vmatmul.mubr.bf16.gmra.mrb[0].mxu0 %v3398
      %v3557 = vpop.f32.mrb[0].mxu0
      %v3558 = vadd.f32 %v3346, %v3557
      %v3559 = vpop.f32.mrb[0].mxu0
      %v3560 = vpop.f32.mrb[0].mxu0
      %v3561 = vadd.f32 %v3349, %v3560
      %v3562 = vpop.f32.mrb[0].mxu0
      %3563 = vdwg.mxu0
      %v3564 = vld [vmem:[#allocation2 + $0x2] sm:$0xff]
      %v3565 = vld [vmem:[#allocation2 + $0xa] sm:$0xff]
      %v3566 = vld [vmem:[#allocation2 + $0x1a] sm:$0xff]
      %v3567 = vld [vmem:[#allocation2 + $0x22] sm:$0xff]
      %v3568 = vld [vmem:[#allocation2 + $0x32] sm:$0xff]
      %v3569 = vld [vmem:[#allocation2 + $0x3a] sm:$0xff]
      %v3570 = vld [vmem:[#allocation2 + $0x4a] sm:$0xff]
      %v3571 = vld [vmem:[#allocation2 + $0x52] sm:$0xff]
      %v3572 = vld [vmem:[#allocation2 + $0x62] sm:$0xff]
      %v3573 = vld [vmem:[#allocation2 + $0x6a] sm:$0xff]
      %v3574 = vld [vmem:[#allocation2 + $0x7a] sm:$0xff]
      %v3575 = vld [vmem:[#allocation2 + $0x82] sm:$0xff]
      %v3576 = vld [vmem:[#allocation2 + $0x92] sm:$0xff]
      %v3577 = vld [vmem:[#allocation2 + $0x9a] sm:$0xff]
      %v3578 = vld [vmem:[#allocation2 + $0xaa] sm:$0xff]
      %v3579 = vld [vmem:[#allocation2 + $0xb2] sm:$0xff]
      %v3580 = vld [vmem:[#allocation2 + $0xc2] sm:$0xff]
      %v3581 = vld [vmem:[#allocation2 + $0xca] sm:$0xff]
      %v3582 = vld [vmem:[#allocation2 + $0xda] sm:$0xff]
      %v3583 = vld [vmem:[#allocation2 + $0xe2] sm:$0xff]
      %v3584 = vld [vmem:[#allocation2 + $0xf2] sm:$0xff]
      %v3585 = vld [vmem:[#allocation2 + $0xfa] sm:$0xff]
      %v3586 = vld [vmem:[#allocation2 + $0x10a] sm:$0xff]
      %v3587 = vld [vmem:[#allocation2 + $0x112] sm:$0xff]
      %v3588 = vld [vmem:[#allocation2 + $0x122] sm:$0xff]
      %v3589 = vld [vmem:[#allocation2 + $0x12a] sm:$0xff]
      %v3590 = vld [vmem:[#allocation2 + $0x13a] sm:$0xff]
      %v3591 = vld [vmem:[#allocation2 + $0x142] sm:$0xff]
      %v3592 = vld [vmem:[#allocation2 + $0x152] sm:$0xff]
      %v3593 = vld [vmem:[#allocation2 + $0x15a] sm:$0xff]
      %v3594 = vld [vmem:[#allocation2 + $0x16a] sm:$0xff]
      %v3595 = vld [vmem:[#allocation2 + $0x172] sm:$0xff]
      %v3596 = vpack.c.bf16 %v3565, %v3564
      %v3597 = vpack.c.bf16 %v3567, %v3566
      %v3598 = vpack.c.bf16 %v3569, %v3568
      %v3599 = vpack.c.bf16 %v3571, %v3570
      %v3600 = vpack.c.bf16 %v3573, %v3572
      %v3601 = vpack.c.bf16 %v3575, %v3574
      %v3602 = vpack.c.bf16 %v3577, %v3576
      %v3603 = vpack.c.bf16 %v3579, %v3578
      %v3604 = vpack.c.bf16 %v3581, %v3580
      %v3605 = vpack.c.bf16 %v3583, %v3582
      %v3606 = vpack.c.bf16 %v3585, %v3584
      %v3607 = vpack.c.bf16 %v3587, %v3586
      %v3608 = vpack.c.bf16 %v3589, %v3588
      %v3609 = vpack.c.bf16 %v3591, %v3590
      %v3610 = vpack.c.bf16 %v3593, %v3592
      %v3611 = vpack.c.bf16 %v3595, %v3594
      %s3612 = scalar_lea.vmem %s3, 8
      %v3613 = vld [vmem:[%s3612] sm:$0xf]
      %v3615 = vsel %vm2936, %v3596, 0
      %v3618 = vsel %vm2936, %v3597, 0
      %v3621 = vsel %vm2936, %v3598, 0
      %v3624 = vsel %vm2936, %v3599, 0
      %v3627 = vsel %vm2936, %v3600, 0
      %v3630 = vsel %vm2936, %v3601, 0
      %v3633 = vsel %vm2936, %v3602, 0
      %v3636 = vsel %vm2936, %v3603, 0
      %v3639 = vsel %vm2936, %v3604, 0
      %v3642 = vsel %vm2936, %v3605, 0
      %v3645 = vsel %vm2936, %v3606, 0
      %v3648 = vsel %vm2936, %v3607, 0
      %v3651 = vsel %vm2936, %v3608, 0
      %v3654 = vsel %vm2936, %v3609, 0
      %v3657 = vsel %vm2936, %v3610, 0
      %v3660 = vsel %vm2936, %v3611, 0
      %v3663 = vsel %vm3187, %v3613, 0
      %3665 = vmatprep.subr.bf16.mxu0 0
      %3666 = vmatpush1.bf16.msra.mxu0 %v3663
      %3667 = vmatprep.subr.bf16.mxu0 0
      %3668 = vmatpush1.bf16.msra.mxu0 0
      %3669 = vmatprep.subr.bf16.mxu0 0
      %3670 = vmatpush1.bf16.msra.mxu0 0
      %3671 = vmatprep.subr.bf16.mxu0 0
      %3672 = vmatpush1.bf16.msra.mxu0 0
      %3673 = vmatprep.subr.bf16.mxu0 0
      %3674 = vmatpush1.bf16.msra.mxu0 0
      %3675 = vmatprep.subr.bf16.mxu0 0
      %3676 = vmatpush1.bf16.msra.mxu0 0
      %3677 = vmatprep.subr.bf16.mxu0 0
      %3678 = vmatpush1.bf16.msra.mxu0 0
      %3679 = vmatprep.subr.bf16.mxu0 0
      %3680 = vmatpush1.bf16.msra.mxu0 0
      %3681 = vmatprep.subr.bf16.mxu0 0
      %3682 = vmatpush1.bf16.msra.mxu0 0
      %3683 = vmatprep.subr.bf16.mxu0 0
      %3684 = vmatpush1.bf16.msra.mxu0 0
      %3685 = vmatprep.subr.bf16.mxu0 0
      %3686 = vmatpush1.bf16.msra.mxu0 0
      %3687 = vmatprep.subr.bf16.mxu0 0
      %3688 = vmatpush1.bf16.msra.mxu0 0
      %3689 = vmatprep.subr.bf16.mxu0 0
      %3690 = vmatpush1.bf16.msra.mxu0 0
      %3691 = vmatprep.subr.bf16.mxu0 0
      %3692 = vmatpush1.bf16.msra.mxu0 0
      %3693 = vmatprep.subr.bf16.mxu0 0
      %3694 = vmatpush1.bf16.msra.mxu0 0
      %3695 = vmatprep.subr.bf16.mxu0 0
      %3696 = vmatpush1.bf16.msra.mxu0 0
      %3697 = vmatprep.mubr.bf16.mxu0 0
      %3698 = vmatmul.mubr.bf16.gmra.mrb[0].mxu0 %v3615
      %v3699 = vpop.f32.mrb[0].mxu0
      %v3700 = vadd.f32 0.0, %v3699
      %v3701 = vpop.f32.mrb[0].mxu0
      %v3702 = vpop.f32.mrb[0].mxu0
      %v3703 = vadd.f32 0.0, %v3702
      %v3704 = vpop.f32.mrb[0].mxu0
      %3705 = vmatprep.mubr.bf16.mxu0 0
      %3706 = vmatmul.mubr.bf16.gmra.mrb[0].mxu0 %v3618
      %v3707 = vpop.f32.mrb[0].mxu0
      %v3708 = vadd.f32 0.0, %v3707
      %v3709 = vpop.f32.mrb[0].mxu0
      %v3710 = vpop.f32.mrb[0].mxu0
      %v3711 = vadd.f32 0.0, %v3710
      %v3712 = vpop.f32.mrb[0].mxu0
      %3713 = vmatprep.mubr.bf16.mxu0 0
      %3714 = vmatmul.mubr.bf16.gmra.mrb[0].mxu0 %v3621
      %v3715 = vpop.f32.mrb[0].mxu0
      %v3716 = vadd.f32 0.0, %v3715
      %v3717 = vpop.f32.mrb[0].mxu0
      %v3718 = vpop.f32.mrb[0].mxu0
      %v3719 = vadd.f32 0.0, %v3718
      %v3720 = vpop.f32.mrb[0].mxu0
      %3721 = vmatprep.mubr.bf16.mxu0 0
      %3722 = vmatmul.mubr.bf16.gmra.mrb[0].mxu0 %v3624
      %v3723 = vpop.f32.mrb[0].mxu0
      %v3724 = vadd.f32 0.0, %v3723
      %v3725 = vpop.f32.mrb[0].mxu0
      %v3726 = vpop.f32.mrb[0].mxu0
      %v3727 = vadd.f32 0.0, %v3726
      %v3728 = vpop.f32.mrb[0].mxu0
      %3729 = vmatprep.mubr.bf16.mxu0 0
      %3730 = vmatmul.mubr.bf16.gmra.mrb[0].mxu0 %v3627
      %v3731 = vpop.f32.mrb[0].mxu0
      %v3732 = vadd.f32 0.0, %v3731
      %v3733 = vpop.f32.mrb[0].mxu0
      %v3734 = vpop.f32.mrb[0].mxu0
      %v3735 = vadd.f32 0.0, %v3734
      %v3736 = vpop.f32.mrb[0].mxu0
      %3737 = vmatprep.mubr.bf16.mxu0 0
      %3738 = vmatmul.mubr.bf16.gmra.mrb[0].mxu0 %v3630
      %v3739 = vpop.f32.mrb[0].mxu0
      %v3740 = vadd.f32 0.0, %v3739
      %v3741 = vpop.f32.mrb[0].mxu0
      %v3742 = vpop.f32.mrb[0].mxu0
      %v3743 = vadd.f32 0.0, %v3742
      %v3744 = vpop.f32.mrb[0].mxu0
      %3745 = vmatprep.mubr.bf16.mxu0 0
      %3746 = vmatmul.mubr.bf16.gmra.mrb[0].mxu0 %v3633
      %v3747 = vpop.f32.mrb[0].mxu0
      %v3748 = vadd.f32 0.0, %v3747
      %v3749 = vpop.f32.mrb[0].mxu0
      %v3750 = vpop.f32.mrb[0].mxu0
      %v3751 = vadd.f32 0.0, %v3750
      %v3752 = vpop.f32.mrb[0].mxu0
      %3753 = vmatprep.mubr.bf16.mxu0 0
      %3754 = vmatmul.mubr.bf16.gmra.mrb[0].mxu0 %v3636
      %v3755 = vpop.f32.mrb[0].mxu0
      %v3756 = vadd.f32 0.0, %v3755
      %v3757 = vpop.f32.mrb[0].mxu0
      %v3758 = vpop.f32.mrb[0].mxu0
      %v3759 = vadd.f32 0.0, %v3758
      %v3760 = vpop.f32.mrb[0].mxu0
      %3761 = vmatprep.mubr.bf16.mxu0 0
      %3762 = vmatmul.mubr.bf16.gmra.mrb[0].mxu0 %v3639
      %v3763 = vpop.f32.mrb[0].mxu0
      %v3764 = vadd.f32 0.0, %v3763
      %v3765 = vpop.f32.mrb[0].mxu0
      %v3766 = vpop.f32.mrb[0].mxu0
      %v3767 = vadd.f32 0.0, %v3766
      %v3768 = vpop.f32.mrb[0].mxu0
      %3769 = vmatprep.mubr.bf16.mxu0 0
      %3770 = vmatmul.mubr.bf16.gmra.mrb[0].mxu0 %v3642
      %v3771 = vpop.f32.mrb[0].mxu0
      %v3772 = vadd.f32 0.0, %v3771
      %v3773 = vpop.f32.mrb[0].mxu0
      %v3774 = vpop.f32.mrb[0].mxu0
      %v3775 = vadd.f32 0.0, %v3774
      %v3776 = vpop.f32.mrb[0].mxu0
      %3777 = vmatprep.mubr.bf16.mxu0 0
      %3778 = vmatmul.mubr.bf16.gmra.mrb[0].mxu0 %v3645
      %v3779 = vpop.f32.mrb[0].mxu0
      %v3780 = vadd.f32 0.0, %v3779
      %v3781 = vpop.f32.mrb[0].mxu0
      %v3782 = vpop.f32.mrb[0].mxu0
      %v3783 = vadd.f32 0.0, %v3782
      %v3784 = vpop.f32.mrb[0].mxu0
      %3785 = vmatprep.mubr.bf16.mxu0 0
      %3786 = vmatmul.mubr.bf16.gmra.mrb[0].mxu0 %v3648
      %v3787 = vpop.f32.mrb[0].mxu0
      %v3788 = vadd.f32 0.0, %v3787
      %v3789 = vpop.f32.mrb[0].mxu0
      %v3790 = vpop.f32.mrb[0].mxu0
      %v3791 = vadd.f32 0.0, %v3790
      %v3792 = vpop.f32.mrb[0].mxu0
      %3793 = vmatprep.mubr.bf16.mxu0 0
      %3794 = vmatmul.mubr.bf16.gmra.mrb[0].mxu0 %v3651
      %v3795 = vpop.f32.mrb[0].mxu0
      %v3796 = vadd.f32 0.0, %v3795
      %v3797 = vpop.f32.mrb[0].mxu0
      %v3798 = vpop.f32.mrb[0].mxu0
      %v3799 = vadd.f32 0.0, %v3798
      %v3800 = vpop.f32.mrb[0].mxu0
      %3801 = vmatprep.mubr.bf16.mxu0 0
      %3802 = vmatmul.mubr.bf16.gmra.mrb[0].mxu0 %v3654
      %v3803 = vpop.f32.mrb[0].mxu0
      %v3804 = vadd.f32 0.0, %v3803
      %v3805 = vpop.f32.mrb[0].mxu0
      %v3806 = vpop.f32.mrb[0].mxu0
      %v3807 = vadd.f32 0.0, %v3806
      %v3808 = vpop.f32.mrb[0].mxu0
      %3809 = vmatprep.mubr.bf16.mxu0 0
      %3810 = vmatmul.mubr.bf16.gmra.mrb[0].mxu0 %v3657
      %v3811 = vpop.f32.mrb[0].mxu0
      %v3812 = vadd.f32 0.0, %v3811
      %v3813 = vpop.f32.mrb[0].mxu0
      %v3814 = vpop.f32.mrb[0].mxu0
      %v3815 = vadd.f32 0.0, %v3814
      %v3816 = vpop.f32.mrb[0].mxu0
      %3817 = vmatprep.mubr.bf16.mxu0 0
      %3818 = vmatmul.mubr.bf16.gmra.mrb[0].mxu0 %v3660
      %v3819 = vpop.f32.mrb[0].mxu0
      %v3820 = vadd.f32 0.0, %v3819
      %v3821 = vpop.f32.mrb[0].mxu0
      %v3822 = vpop.f32.mrb[0].mxu0
      %v3823 = vadd.f32 0.0, %v3822
      %v3824 = vpop.f32.mrb[0].mxu0
      %3825 = vdwg.mxu0
      %v3826 = vadd.f32 %v3438, %v3700
      %v3827 = vadd.f32 %v3441, %v3703
      %v3828 = vadd.f32 %v3446, %v3708
      %v3829 = vadd.f32 %v3449, %v3711
      %v3830 = vadd.f32 %v3454, %v3716
      %v3831 = vadd.f32 %v3457, %v3719
      %v3832 = vadd.f32 %v3462, %v3724
      %v3833 = vadd.f32 %v3465, %v3727
      %v3834 = vadd.f32 %v3470, %v3732
      %v3835 = vadd.f32 %v3473, %v3735
      %v3836 = vadd.f32 %v3478, %v3740
      %v3837 = vadd.f32 %v3481, %v3743
      %v3838 = vadd.f32 %v3486, %v3748
      %v3839 = vadd.f32 %v3489, %v3751
      %v3840 = vadd.f32 %v3494, %v3756
      %v3841 = vadd.f32 %v3497, %v3759
      %v3842 = vadd.f32 %v3502, %v3764
      %v3843 = vadd.f32 %v3505, %v3767
      %v3844 = vadd.f32 %v3510, %v3772
      %v3845 = vadd.f32 %v3513, %v3775
      %v3846 = vadd.f32 %v3518, %v3780
      %v3847 = vadd.f32 %v3521, %v3783
      %v3848 = vadd.f32 %v3526, %v3788
      %v3849 = vadd.f32 %v3529, %v3791
      %v3850 = vadd.f32 %v3534, %v3796
      %v3851 = vadd.f32 %v3537, %v3799
      %v3852 = vadd.f32 %v3542, %v3804
      %v3853 = vadd.f32 %v3545, %v3807
      %v3854 = vadd.f32 %v3550, %v3812
      %v3855 = vadd.f32 %v3553, %v3815
      %v3856 = vadd.f32 %v3558, %v3820
      %v3857 = vadd.f32 %v3561, %v3823
      %v3858 = vld [vmem:[%s2992] sm:$0xff]
      %v3859 = vld [vmem:[%s2992 + $0x8] sm:$0xff]
      %v3860 = vld [vmem:[%s2992 + $0x18] sm:$0xff]
      %v3861 = vld [vmem:[%s2992 + $0x20] sm:$0xff]
      %v3862 = vld [vmem:[%s2992 + $0x30] sm:$0xff]
      %v3863 = vld [vmem:[%s2992 + $0x38] sm:$0xff]
      %v3864 = vld [vmem:[%s2992 + $0x48] sm:$0xff]
      %v3865 = vld [vmem:[%s2992 + $0x50] sm:$0xff]
      %v3866 = vld [vmem:[%s2992 + $0x60] sm:$0xff]
      %v3867 = vld [vmem:[%s2992 + $0x68] sm:$0xff]
      %v3868 = vld [vmem:[%s2992 + $0x78] sm:$0xff]
      %v3869 = vld [vmem:[%s2992 + $0x80] sm:$0xff]
      %v3870 = vld [vmem:[%s2992 + $0x90] sm:$0xff]
      %v3871 = vld [vmem:[%s2992 + $0x98] sm:$0xff]
      %v3872 = vld [vmem:[%s2992 + $0xa8] sm:$0xff]
      %v3873 = vld [vmem:[%s2992 + $0xb0] sm:$0xff]
      %v3874 = vld [vmem:[%s2992 + $0xc0] sm:$0xff]
      %v3875 = vld [vmem:[%s2992 + $0xc8] sm:$0xff]
      %v3876 = vld [vmem:[%s2992 + $0xd8] sm:$0xff]
      %v3877 = vld [vmem:[%s2992 + $0xe0] sm:$0xff]
      %v3878 = vld [vmem:[%s2992 + $0xf0] sm:$0xff]
      %v3879 = vld [vmem:[%s2992 + $0xf8] sm:$0xff]
      %v3880 = vld [vmem:[%s2992 + $0x108] sm:$0xff]
      %v3881 = vld [vmem:[%s2992 + $0x110] sm:$0xff]
      %v3882 = vld [vmem:[%s2992 + $0x120] sm:$0xff]
      %v3883 = vld [vmem:[%s2992 + $0x128] sm:$0xff]
      %v3884 = vld [vmem:[%s2992 + $0x138] sm:$0xff]
      %v3885 = vld [vmem:[%s2992 + $0x140] sm:$0xff]
      %v3886 = vld [vmem:[%s2992 + $0x150] sm:$0xff]
      %v3887 = vld [vmem:[%s2992 + $0x158] sm:$0xff]
      %v3888 = vld [vmem:[%s2992 + $0x168] sm:$0xff]
      %v3889 = vld [vmem:[%s2992 + $0x170] sm:$0xff]
      %v3890 = vpack.c.bf16 %v3859, %v3858
      %v3891 = vpack.c.bf16 %v3861, %v3860
      %v3892 = vpack.c.bf16 %v3863, %v3862
      %v3893 = vpack.c.bf16 %v3865, %v3864
      %v3894 = vpack.c.bf16 %v3867, %v3866
      %v3895 = vpack.c.bf16 %v3869, %v3868
      %v3896 = vpack.c.bf16 %v3871, %v3870
      %v3897 = vpack.c.bf16 %v3873, %v3872
      %v3898 = vpack.c.bf16 %v3875, %v3874
      %v3899 = vpack.c.bf16 %v3877, %v3876
      %v3900 = vpack.c.bf16 %v3879, %v3878
      %v3901 = vpack.c.bf16 %v3881, %v3880
      %v3902 = vpack.c.bf16 %v3883, %v3882
      %v3903 = vpack.c.bf16 %v3885, %v3884
      %v3904 = vpack.c.bf16 %v3887, %v3886
      %v3905 = vpack.c.bf16 %v3889, %v3888
      %s3906 = scalar_lea.vmem %s3, 12
      %v3907 = vld [vmem:[%s3906] sm:$0xf]
      %v3909 = vsel %vm2936, %v3890, 0
      %v3912 = vsel %vm2936, %v3891, 0
      %v3915 = vsel %vm2936, %v3892, 0
      %v3918 = vsel %vm2936, %v3893, 0
      %v3921 = vsel %vm2936, %v3894, 0
      %v3924 = vsel %vm2936, %v3895, 0
      %v3927 = vsel %vm2936, %v3896, 0
      %v3930 = vsel %vm2936, %v3897, 0
      %v3933 = vsel %vm2936, %v3898, 0
      %v3936 = vsel %vm2936, %v3899, 0
      %v3939 = vsel %vm2936, %v3900, 0
      %v3942 = vsel %vm2936, %v3901, 0
      %v3945 = vsel %vm2936, %v3902, 0
      %v3948 = vsel %vm2936, %v3903, 0
      %v3951 = vsel %vm2936, %v3904, 0
      %v3954 = vsel %vm2936, %v3905, 0
      %v3957 = vsel %vm3187, %v3907, 0
      %3959 = vmatprep.subr.bf16.mxu0 0
      %3960 = vmatpush1.bf16.msra.mxu0 %v3957
      %3961 = vmatprep.subr.bf16.mxu0 0
      %3962 = vmatpush1.bf16.msra.mxu0 0
      %3963 = vmatprep.subr.bf16.mxu0 0
      %3964 = vmatpush1.bf16.msra.mxu0 0
      %3965 = vmatprep.subr.bf16.mxu0 0
      %3966 = vmatpush1.bf16.msra.mxu0 0
      %3967 = vmatprep.subr.bf16.mxu0 0
      %3968 = vmatpush1.bf16.msra.mxu0 0
      %3969 = vmatprep.subr.bf16.mxu0 0
      %3970 = vmatpush1.bf16.msra.mxu0 0
      %3971 = vmatprep.subr.bf16.mxu0 0
      %3972 = vmatpush1.bf16.msra.mxu0 0
      %3973 = vmatprep.subr.bf16.mxu0 0
      %3974 = vmatpush1.bf16.msra.mxu0 0
      %3975 = vmatprep.subr.bf16.mxu0 0
      %3976 = vmatpush1.bf16.msra.mxu0 0
      %3977 = vmatprep.subr.bf16.mxu0 0
      %3978 = vmatpush1.bf16.msra.mxu0 0
      %3979 = vmatprep.subr.bf16.mxu0 0
      %3980 = vmatpush1.bf16.msra.mxu0 0
      %3981 = vmatprep.subr.bf16.mxu0 0
      %3982 = vmatpush1.bf16.msra.mxu0 0
      %3983 = vmatprep.subr.bf16.mxu0 0
      %3984 = vmatpush1.bf16.msra.mxu0 0
      %3985 = vmatprep.subr.bf16.mxu0 0
      %3986 = vmatpush1.bf16.msra.mxu0 0
      %3987 = vmatprep.subr.bf16.mxu0 0
      %3988 = vmatpush1.bf16.msra.mxu0 0
      %3989 = vmatprep.subr.bf16.mxu0 0
      %3990 = vmatpush1.bf16.msra.mxu0 0
      %3991 = vmatprep.mubr.bf16.mxu0 0
      %3992 = vmatmul.mubr.bf16.gmra.mrb[0].mxu0 %v3909
      %v3993 = vpop.f32.mrb[0].mxu0
      %v3994 = vadd.f32 0.0, %v3993
      %v3995 = vpop.f32.mrb[0].mxu0
      %v3996 = vpop.f32.mrb[0].mxu0
      %v3997 = vadd.f32 0.0, %v3996
      %v3998 = vpop.f32.mrb[0].mxu0
      %3999 = vmatprep.mubr.bf16.mxu0 0
      %4000 = vmatmul.mubr.bf16.gmra.mrb[0].mxu0 %v3912
      %v4001 = vpop.f32.mrb[0].mxu0
      %v4002 = vadd.f32 0.0, %v4001
      %v4003 = vpop.f32.mrb[0].mxu0
      %v4004 = vpop.f32.mrb[0].mxu0
      %v4005 = vadd.f32 0.0, %v4004
      %v4006 = vpop.f32.mrb[0].mxu0
      %4007 = vmatprep.mubr.bf16.mxu0 0
      %4008 = vmatmul.mubr.bf16.gmra.mrb[0].mxu0 %v3915
      %v4009 = vpop.f32.mrb[0].mxu0
      %v4010 = vadd.f32 0.0, %v4009
      %v4011 = vpop.f32.mrb[0].mxu0
      %v4012 = vpop.f32.mrb[0].mxu0
      %v4013 = vadd.f32 0.0, %v4012
      %v4014 = vpop.f32.mrb[0].mxu0
      %4015 = vmatprep.mubr.bf16.mxu0 0
      %4016 = vmatmul.mubr.bf16.gmra.mrb[0].mxu0 %v3918
      %v4017 = vpop.f32.mrb[0].mxu0
      %v4018 = vadd.f32 0.0, %v4017
      %v4019 = vpop.f32.mrb[0].mxu0
      %v4020 = vpop.f32.mrb[0].mxu0
      %v4021 = vadd.f32 0.0, %v4020
      %v4022 = vpop.f32.mrb[0].mxu0
      %4023 = vmatprep.mubr.bf16.mxu0 0
      %4024 = vmatmul.mubr.bf16.gmra.mrb[0].mxu0 %v3921
      %v4025 = vpop.f32.mrb[0].mxu0
      %v4026 = vadd.f32 0.0, %v4025
      %v4027 = vpop.f32.mrb[0].mxu0
      %v4028 = vpop.f32.mrb[0].mxu0
      %v4029 = vadd.f32 0.0, %v4028
      %v4030 = vpop.f32.mrb[0].mxu0
      %4031 = vmatprep.mubr.bf16.mxu0 0
      %4032 = vmatmul.mubr.bf16.gmra.mrb[0].mxu0 %v3924
      %v4033 = vpop.f32.mrb[0].mxu0
      %v4034 = vadd.f32 0.0, %v4033
      %v4035 = vpop.f32.mrb[0].mxu0
      %v4036 = vpop.f32.mrb[0].mxu0
      %v4037 = vadd.f32 0.0, %v4036
      %v4038 = vpop.f32.mrb[0].mxu0
      %4039 = vmatprep.mubr.bf16.mxu0 0
      %4040 = vmatmul.mubr.bf16.gmra.mrb[0].mxu0 %v3927
      %v4041 = vpop.f32.mrb[0].mxu0
      %v4042 = vadd.f32 0.0, %v4041
      %v4043 = vpop.f32.mrb[0].mxu0
      %v4044 = vpop.f32.mrb[0].mxu0
      %v4045 = vadd.f32 0.0, %v4044
      %v4046 = vpop.f32.mrb[0].mxu0
      %4047 = vmatprep.mubr.bf16.mxu0 0
      %4048 = vmatmul.mubr.bf16.gmra.mrb[0].mxu0 %v3930
      %v4049 = vpop.f32.mrb[0].mxu0
      %v4050 = vadd.f32 0.0, %v4049
      %v4051 = vpop.f32.mrb[0].mxu0
      %v4052 = vpop.f32.mrb[0].mxu0
      %v4053 = vadd.f32 0.0, %v4052
      %v4054 = vpop.f32.mrb[0].mxu0
      %4055 = vmatprep.mubr.bf16.mxu0 0
      %4056 = vmatmul.mubr.bf16.gmra.mrb[0].mxu0 %v3933
      %v4057 = vpop.f32.mrb[0].mxu0
      %v4058 = vadd.f32 0.0, %v4057
      %v4059 = vpop.f32.mrb[0].mxu0
      %v4060 = vpop.f32.mrb[0].mxu0
      %v4061 = vadd.f32 0.0, %v4060
      %v4062 = vpop.f32.mrb[0].mxu0
      %4063 = vmatprep.mubr.bf16.mxu0 0
      %4064 = vmatmul.mubr.bf16.gmra.mrb[0].mxu0 %v3936
      %v4065 = vpop.f32.mrb[0].mxu0
      %v4066 = vadd.f32 0.0, %v4065
      %v4067 = vpop.f32.mrb[0].mxu0
      %v4068 = vpop.f32.mrb[0].mxu0
      %v4069 = vadd.f32 0.0, %v4068
      %v4070 = vpop.f32.mrb[0].mxu0
      %4071 = vmatprep.mubr.bf16.mxu0 0
      %4072 = vmatmul.mubr.bf16.gmra.mrb[0].mxu0 %v3939
      %v4073 = vpop.f32.mrb[0].mxu0
      %v4074 = vadd.f32 0.0, %v4073
      %v4075 = vpop.f32.mrb[0].mxu0
      %v4076 = vpop.f32.mrb[0].mxu0
      %v4077 = vadd.f32 0.0, %v4076
      %v4078 = vpop.f32.mrb[0].mxu0
      %4079 = vmatprep.mubr.bf16.mxu0 0
      %4080 = vmatmul.mubr.bf16.gmra.mrb[0].mxu0 %v3942
      %v4081 = vpop.f32.mrb[0].mxu0
      %v4082 = vadd.f32 0.0, %v4081
      %v4083 = vpop.f32.mrb[0].mxu0
      %v4084 = vpop.f32.mrb[0].mxu0
      %v4085 = vadd.f32 0.0, %v4084
      %v4086 = vpop.f32.mrb[0].mxu0
      %4087 = vmatprep.mubr.bf16.mxu0 0
      %4088 = vmatmul.mubr.bf16.gmra.mrb[0].mxu0 %v3945
      %v4089 = vpop.f32.mrb[0].mxu0
      %v4090 = vadd.f32 0.0, %v4089
      %v4091 = vpop.f32.mrb[0].mxu0
      %v4092 = vpop.f32.mrb[0].mxu0
      %v4093 = vadd.f32 0.0, %v4092
      %v4094 = vpop.f32.mrb[0].mxu0
      %4095 = vmatprep.mubr.bf16.mxu0 0
      %4096 = vmatmul.mubr.bf16.gmra.mrb[0].mxu0 %v3948
      %v4097 = vpop.f32.mrb[0].mxu0
      %v4098 = vadd.f32 0.0, %v4097
      %v4099 = vpop.f32.mrb[0].mxu0
      %v4100 = vpop.f32.mrb[0].mxu0
      %v4101 = vadd.f32 0.0, %v4100
      %v4102 = vpop.f32.mrb[0].mxu0
      %4103 = vmatprep.mubr.bf16.mxu0 0
      %4104 = vmatmul.mubr.bf16.gmra.mrb[0].mxu0 %v3951
      %v4105 = vpop.f32.mrb[0].mxu0
      %v4106 = vadd.f32 0.0, %v4105
      %v4107 = vpop.f32.mrb[0].mxu0
      %v4108 = vpop.f32.mrb[0].mxu0
      %v4109 = vadd.f32 0.0, %v4108
      %v4110 = vpop.f32.mrb[0].mxu0
      %4111 = vmatprep.mubr.bf16.mxu0 0
      %4112 = vmatmul.mubr.bf16.gmra.mrb[0].mxu0 %v3954
      %v4113 = vpop.f32.mrb[0].mxu0
      %v4114 = vadd.f32 0.0, %v4113
      %v4115 = vpop.f32.mrb[0].mxu0
      %v4116 = vpop.f32.mrb[0].mxu0
      %v4117 = vadd.f32 0.0, %v4116
      %v4118 = vpop.f32.mrb[0].mxu0
      %4119 = vdwg.mxu0
      %v4120 = vadd.f32 %v3826, %v3994
      %v4121 = vadd.f32 %v3827, %v3997
      %v4122 = vadd.f32 %v3828, %v4002
      %v4123 = vadd.f32 %v3829, %v4005
      %v4124 = vadd.f32 %v3830, %v4010
      %v4125 = vadd.f32 %v3831, %v4013
      %v4126 = vadd.f32 %v3832, %v4018
      %v4127 = vadd.f32 %v3833, %v4021
      %v4128 = vadd.f32 %v3834, %v4026
      %v4129 = vadd.f32 %v3835, %v4029
      %v4130 = vadd.f32 %v3836, %v4034
      %v4131 = vadd.f32 %v3837, %v4037
      %v4132 = vadd.f32 %v3838, %v4042
      %v4133 = vadd.f32 %v3839, %v4045
      %v4134 = vadd.f32 %v3840, %v4050
      %v4135 = vadd.f32 %v3841, %v4053
      %v4136 = vadd.f32 %v3842, %v4058
      %v4137 = vadd.f32 %v3843, %v4061
      %v4138 = vadd.f32 %v3844, %v4066
      %v4139 = vadd.f32 %v3845, %v4069
      %v4140 = vadd.f32 %v3846, %v4074
      %v4141 = vadd.f32 %v3847, %v4077
      %v4142 = vadd.f32 %v3848, %v4082
      %v4143 = vadd.f32 %v3849, %v4085
      %v4144 = vadd.f32 %v3850, %v4090
      %v4145 = vadd.f32 %v3851, %v4093
      %v4146 = vadd.f32 %v3852, %v4098
      %v4147 = vadd.f32 %v3853, %v4101
      %v4148 = vadd.f32 %v3854, %v4106
      %v4149 = vadd.f32 %v3855, %v4109
      %v4150 = vadd.f32 %v3856, %v4114
      %v4151 = vadd.f32 %v3857, %v4117
      %v4152 = vld [vmem:[%s2992 + $0x1] sm:$0xff]
      %v4153 = vld [vmem:[%s2992 + $0x9] sm:$0xff]
      %v4154 = vld [vmem:[%s2992 + $0x19] sm:$0xff]
      %v4155 = vld [vmem:[%s2992 + $0x21] sm:$0xff]
      %v4156 = vld [vmem:[%s2992 + $0x31] sm:$0xff]
      %v4157 = vld [vmem:[%s2992 + $0x39] sm:$0xff]
      %v4158 = vld [vmem:[%s2992 + $0x49] sm:$0xff]
      %v4159 = vld [vmem:[%s2992 + $0x51] sm:$0xff]
      %v4160 = vld [vmem:[%s2992 + $0x61] sm:$0xff]
      %v4161 = vld [vmem:[%s2992 + $0x69] sm:$0xff]
      %v4162 = vld [vmem:[%s2992 + $0x79] sm:$0xff]
      %v4163 = vld [vmem:[%s2992 + $0x81] sm:$0xff]
      %v4164 = vld [vmem:[%s2992 + $0x91] sm:$0xff]
      %v4165 = vld [vmem:[%s2992 + $0x99] sm:$0xff]
      %v4166 = vld [vmem:[%s2992 + $0xa9] sm:$0xff]
      %v4167 = vld [vmem:[%s2992 + $0xb1] sm:$0xff]
      %v4168 = vld [vmem:[%s2992 + $0xc1] sm:$0xff]
      %v4169 = vld [vmem:[%s2992 + $0xc9] sm:$0xff]
      %v4170 = vld [vmem:[%s2992 + $0xd9] sm:$0xff]
      %v4171 = vld [vmem:[%s2992 + $0xe1] sm:$0xff]
      %v4172 = vld [vmem:[%s2992 + $0xf1] sm:$0xff]
      %v4173 = vld [vmem:[%s2992 + $0xf9] sm:$0xff]
      %v4174 = vld [vmem:[%s2992 + $0x109] sm:$0xff]
      %v4175 = vld [vmem:[%s2992 + $0x111] sm:$0xff]
      %v4176 = vld [vmem:[%s2992 + $0x121] sm:$0xff]
      %v4177 = vld [vmem:[%s2992 + $0x129] sm:$0xff]
      %v4178 = vld [vmem:[%s2992 + $0x139] sm:$0xff]
      %v4179 = vld [vmem:[%s2992 + $0x141] sm:$0xff]
      %v4180 = vld [vmem:[%s2992 + $0x151] sm:$0xff]
      %v4181 = vld [vmem:[%s2992 + $0x159] sm:$0xff]
      %v4182 = vld [vmem:[%s2992 + $0x169] sm:$0xff]
      %v4183 = vld [vmem:[%s2992 + $0x171] sm:$0xff]
      %v4184 = vpack.c.bf16 %v4153, %v4152
      %v4185 = vpack.c.bf16 %v4155, %v4154
      %v4186 = vpack.c.bf16 %v4157, %v4156
      %v4187 = vpack.c.bf16 %v4159, %v4158
      %v4188 = vpack.c.bf16 %v4161, %v4160
      %v4189 = vpack.c.bf16 %v4163, %v4162
      %v4190 = vpack.c.bf16 %v4165, %v4164
      %v4191 = vpack.c.bf16 %v4167, %v4166
      %v4192 = vpack.c.bf16 %v4169, %v4168
      %v4193 = vpack.c.bf16 %v4171, %v4170
      %v4194 = vpack.c.bf16 %v4173, %v4172
      %v4195 = vpack.c.bf16 %v4175, %v4174
      %v4196 = vpack.c.bf16 %v4177, %v4176
      %v4197 = vpack.c.bf16 %v4179, %v4178
      %v4198 = vpack.c.bf16 %v4181, %v4180
      %v4199 = vpack.c.bf16 %v4183, %v4182
      %s4200 = scalar_lea.vmem %s3, 16
      %v4201 = vld [vmem:[%s4200] sm:$0xf]
      %v4203 = vsel %vm2936, %v4184, 0
      %v4206 = vsel %vm2936, %v4185, 0
      %v4209 = vsel %vm2936, %v4186, 0
      %v4212 = vsel %vm2936, %v4187, 0
      %v4215 = vsel %vm2936, %v4188, 0
      %v4218 = vsel %vm2936, %v4189, 0
      %v4221 = vsel %vm2936, %v4190, 0
      %v4224 = vsel %vm2936, %v4191, 0
      %v4227 = vsel %vm2936, %v4192, 0
      %v4230 = vsel %vm2936, %v4193, 0
      %v4233 = vsel %vm2936, %v4194, 0
      %v4236 = vsel %vm2936, %v4195, 0
      %v4239 = vsel %vm2936, %v4196, 0
      %v4242 = vsel %vm2936, %v4197, 0
      %v4245 = vsel %vm2936, %v4198, 0
      %v4248 = vsel %vm2936, %v4199, 0
      %v4251 = vsel %vm3187, %v4201, 0
      %4253 = vmatprep.subr.bf16.mxu0 0
      %4254 = vmatpush1.bf16.msra.mxu0 %v4251
      %4255 = vmatprep.subr.bf16.mxu0 0
      %4256 = vmatpush1.bf16.msra.mxu0 0
      %4257 = vmatprep.subr.bf16.mxu0 0
      %4258 = vmatpush1.bf16.msra.mxu0 0
      %4259 = vmatprep.subr.bf16.mxu0 0
      %4260 = vmatpush1.bf16.msra.mxu0 0
      %4261 = vmatprep.subr.bf16.mxu0 0
      %4262 = vmatpush1.bf16.msra.mxu0 0
      %4263 = vmatprep.subr.bf16.mxu0 0
      %4264 = vmatpush1.bf16.msra.mxu0 0
      %4265 = vmatprep.subr.bf16.mxu0 0
      %4266 = vmatpush1.bf16.msra.mxu0 0
      %4267 = vmatprep.subr.bf16.mxu0 0
      %4268 = vmatpush1.bf16.msra.mxu0 0
      %4269 = vmatprep.subr.bf16.mxu0 0
      %4270 = vmatpush1.bf16.msra.mxu0 0
      %4271 = vmatprep.subr.bf16.mxu0 0
      %4272 = vmatpush1.bf16.msra.mxu0 0
      %4273 = vmatprep.subr.bf16.mxu0 0
      %4274 = vmatpush1.bf16.msra.mxu0 0
      %4275 = vmatprep.subr.bf16.mxu0 0
      %4276 = vmatpush1.bf16.msra.mxu0 0
      %4277 = vmatprep.subr.bf16.mxu0 0
      %4278 = vmatpush1.bf16.msra.mxu0 0
      %4279 = vmatprep.subr.bf16.mxu0 0
      %4280 = vmatpush1.bf16.msra.mxu0 0
      %4281 = vmatprep.subr.bf16.mxu0 0
      %4282 = vmatpush1.bf16.msra.mxu0 0
      %4283 = vmatprep.subr.bf16.mxu0 0
      %4284 = vmatpush1.bf16.msra.mxu0 0
      %4285 = vmatprep.mubr.bf16.mxu0 0
      %4286 = vmatmul.mubr.bf16.gmra.mrb[0].mxu0 %v4203
      %v4287 = vpop.f32.mrb[0].mxu0
      %v4288 = vadd.f32 0.0, %v4287
      %v4289 = vpop.f32.mrb[0].mxu0
      %v4290 = vpop.f32.mrb[0].mxu0
      %v4291 = vadd.f32 0.0, %v4290
      %v4292 = vpop.f32.mrb[0].mxu0
      %4293 = vmatprep.mubr.bf16.mxu0 0
      %4294 = vmatmul.mubr.bf16.gmra.mrb[0].mxu0 %v4206
      %v4295 = vpop.f32.mrb[0].mxu0
      %v4296 = vadd.f32 0.0, %v4295
      %v4297 = vpop.f32.mrb[0].mxu0
      %v4298 = vpop.f32.mrb[0].mxu0
      %v4299 = vadd.f32 0.0, %v4298
      %v4300 = vpop.f32.mrb[0].mxu0
      %4301 = vmatprep.mubr.bf16.mxu0 0
      %4302 = vmatmul.mubr.bf16.gmra.mrb[0].mxu0 %v4209
      %v4303 = vpop.f32.mrb[0].mxu0
      %v4304 = vadd.f32 0.0, %v4303
      %v4305 = vpop.f32.mrb[0].mxu0
      %v4306 = vpop.f32.mrb[0].mxu0
      %v4307 = vadd.f32 0.0, %v4306
      %v4308 = vpop.f32.mrb[0].mxu0
      %4309 = vmatprep.mubr.bf16.mxu0 0
      %4310 = vmatmul.mubr.bf16.gmra.mrb[0].mxu0 %v4212
      %v4311 = vpop.f32.mrb[0].mxu0
      %v4312 = vadd.f32 0.0, %v4311
      %v4313 = vpop.f32.mrb[0].mxu0
      %v4314 = vpop.f32.mrb[0].mxu0
      %v4315 = vadd.f32 0.0, %v4314
      %v4316 = vpop.f32.mrb[0].mxu0
      %4317 = vmatprep.mubr.bf16.mxu0 0
      %4318 = vmatmul.mubr.bf16.gmra.mrb[0].mxu0 %v4215
      %v4319 = vpop.f32.mrb[0].mxu0
      %v4320 = vadd.f32 0.0, %v4319
      %v4321 = vpop.f32.mrb[0].mxu0
      %v4322 = vpop.f32.mrb[0].mxu0
      %v4323 = vadd.f32 0.0, %v4322
      %v4324 = vpop.f32.mrb[0].mxu0
      %4325 = vmatprep.mubr.bf16.mxu0 0
      %4326 = vmatmul.mubr.bf16.gmra.mrb[0].mxu0 %v4218
      %v4327 = vpop.f32.mrb[0].mxu0
      %v4328 = vadd.f32 0.0, %v4327
      %v4329 = vpop.f32.mrb[0].mxu0
      %v4330 = vpop.f32.mrb[0].mxu0
      %v4331 = vadd.f32 0.0, %v4330
      %v4332 = vpop.f32.mrb[0].mxu0
      %4333 = vmatprep.mubr.bf16.mxu0 0
      %4334 = vmatmul.mubr.bf16.gmra.mrb[0].mxu0 %v4221
      %v4335 = vpop.f32.mrb[0].mxu0
      %v4336 = vadd.f32 0.0, %v4335
      %v4337 = vpop.f32.mrb[0].mxu0
      %v4338 = vpop.f32.mrb[0].mxu0
      %v4339 = vadd.f32 0.0, %v4338
      %v4340 = vpop.f32.mrb[0].mxu0
      %4341 = vmatprep.mubr.bf16.mxu0 0
      %4342 = vmatmul.mubr.bf16.gmra.mrb[0].mxu0 %v4224
      %v4343 = vpop.f32.mrb[0].mxu0
      %v4344 = vadd.f32 0.0, %v4343
      %v4345 = vpop.f32.mrb[0].mxu0
      %v4346 = vpop.f32.mrb[0].mxu0
      %v4347 = vadd.f32 0.0, %v4346
      %v4348 = vpop.f32.mrb[0].mxu0
      %4349 = vmatprep.mubr.bf16.mxu0 0
      %4350 = vmatmul.mubr.bf16.gmra.mrb[0].mxu0 %v4227
      %v4351 = vpop.f32.mrb[0].mxu0
      %v4352 = vadd.f32 0.0, %v4351
      %v4353 = vpop.f32.mrb[0].mxu0
      %v4354 = vpop.f32.mrb[0].mxu0
      %v4355 = vadd.f32 0.0, %v4354
      %v4356 = vpop.f32.mrb[0].mxu0
      %4357 = vmatprep.mubr.bf16.mxu0 0
      %4358 = vmatmul.mubr.bf16.gmra.mrb[0].mxu0 %v4230
      %v4359 = vpop.f32.mrb[0].mxu0
      %v4360 = vadd.f32 0.0, %v4359
      %v4361 = vpop.f32.mrb[0].mxu0
      %v4362 = vpop.f32.mrb[0].mxu0
      %v4363 = vadd.f32 0.0, %v4362
      %v4364 = vpop.f32.mrb[0].mxu0
      %4365 = vmatprep.mubr.bf16.mxu0 0
      %4366 = vmatmul.mubr.bf16.gmra.mrb[0].mxu0 %v4233
      %v4367 = vpop.f32.mrb[0].mxu0
      %v4368 = vadd.f32 0.0, %v4367
      %v4369 = vpop.f32.mrb[0].mxu0
      %v4370 = vpop.f32.mrb[0].mxu0
      %v4371 = vadd.f32 0.0, %v4370
      %v4372 = vpop.f32.mrb[0].mxu0
      %4373 = vmatprep.mubr.bf16.mxu0 0
      %4374 = vmatmul.mubr.bf16.gmra.mrb[0].mxu0 %v4236
      %v4375 = vpop.f32.mrb[0].mxu0
      %v4376 = vadd.f32 0.0, %v4375
      %v4377 = vpop.f32.mrb[0].mxu0
      %v4378 = vpop.f32.mrb[0].mxu0
      %v4379 = vadd.f32 0.0, %v4378
      %v4380 = vpop.f32.mrb[0].mxu0
      %4381 = vmatprep.mubr.bf16.mxu0 0
      %4382 = vmatmul.mubr.bf16.gmra.mrb[0].mxu0 %v4239
      %v4383 = vpop.f32.mrb[0].mxu0
      %v4384 = vadd.f32 0.0, %v4383
      %v4385 = vpop.f32.mrb[0].mxu0
      %v4386 = vpop.f32.mrb[0].mxu0
      %v4387 = vadd.f32 0.0, %v4386
      %v4388 = vpop.f32.mrb[0].mxu0
      %4389 = vmatprep.mubr.bf16.mxu0 0
      %4390 = vmatmul.mubr.bf16.gmra.mrb[0].mxu0 %v4242
      %v4391 = vpop.f32.mrb[0].mxu0
      %v4392 = vadd.f32 0.0, %v4391
      %v4393 = vpop.f32.mrb[0].mxu0
      %v4394 = vpop.f32.mrb[0].mxu0
      %v4395 = vadd.f32 0.0, %v4394
      %v4396 = vpop.f32.mrb[0].mxu0
      %4397 = vmatprep.mubr.bf16.mxu0 0
      %4398 = vmatmul.mubr.bf16.gmra.mrb[0].mxu0 %v4245
      %v4399 = vpop.f32.mrb[0].mxu0
      %v4400 = vadd.f32 0.0, %v4399
      %v4401 = vpop.f32.mrb[0].mxu0
      %v4402 = vpop.f32.mrb[0].mxu0
      %v4403 = vadd.f32 0.0, %v4402
      %v4404 = vpop.f32.mrb[0].mxu0
      %4405 = vmatprep.mubr.bf16.mxu0 0
      %4406 = vmatmul.mubr.bf16.gmra.mrb[0].mxu0 %v4248
      %v4407 = vpop.f32.mrb[0].mxu0
      %v4408 = vadd.f32 0.0, %v4407
      %v4409 = vpop.f32.mrb[0].mxu0
      %v4410 = vpop.f32.mrb[0].mxu0
      %v4411 = vadd.f32 0.0, %v4410
      %v4412 = vpop.f32.mrb[0].mxu0
      %4413 = vdwg.mxu0
      %v4414 = vadd.f32 %v4120, %v4288
      %v4415 = vadd.f32 %v4121, %v4291
      %v4416 = vadd.f32 %v4122, %v4296
      %v4417 = vadd.f32 %v4123, %v4299
      %v4418 = vadd.f32 %v4124, %v4304
      %v4419 = vadd.f32 %v4125, %v4307
      %v4420 = vadd.f32 %v4126, %v4312
      %v4421 = vadd.f32 %v4127, %v4315
      %v4422 = vadd.f32 %v4128, %v4320
      %v4423 = vadd.f32 %v4129, %v4323
      %v4424 = vadd.f32 %v4130, %v4328
      %v4425 = vadd.f32 %v4131, %v4331
      %v4426 = vadd.f32 %v4132, %v4336
      %v4427 = vadd.f32 %v4133, %v4339
      %v4428 = vadd.f32 %v4134, %v4344
      %v4429 = vadd.f32 %v4135, %v4347
      %v4430 = vadd.f32 %v4136, %v4352
      %v4431 = vadd.f32 %v4137, %v4355
      %v4432 = vadd.f32 %v4138, %v4360
      %v4433 = vadd.f32 %v4139, %v4363
      %v4434 = vadd.f32 %v4140, %v4368
      %v4435 = vadd.f32 %v4141, %v4371
      %v4436 = vadd.f32 %v4142, %v4376
      %v4437 = vadd.f32 %v4143, %v4379
      %v4438 = vadd.f32 %v4144, %v4384
      %v4439 = vadd.f32 %v4145, %v4387
      %v4440 = vadd.f32 %v4146, %v4392
      %v4441 = vadd.f32 %v4147, %v4395
      %v4442 = vadd.f32 %v4148, %v4400
      %v4443 = vadd.f32 %v4149, %v4403
      %v4444 = vadd.f32 %v4150, %v4408
      %v4445 = vadd.f32 %v4151, %v4411
      %v4446 = vld [vmem:[%s2992 + $0x2] sm:$0xff]
      %v4447 = vld [vmem:[%s2992 + $0xa] sm:$0xff]
      %v4448 = vld [vmem:[%s2992 + $0x1a] sm:$0xff]
      %v4449 = vld [vmem:[%s2992 + $0x22] sm:$0xff]
      %v4450 = vld [vmem:[%s2992 + $0x32] sm:$0xff]
      %v4451 = vld [vmem:[%s2992 + $0x3a] sm:$0xff]
      %v4452 = vld [vmem:[%s2992 + $0x4a] sm:$0xff]
      %v4453 = vld [vmem:[%s2992 + $0x52] sm:$0xff]
      %v4454 = vld [vmem:[%s2992 + $0x62] sm:$0xff]
      %v4455 = vld [vmem:[%s2992 + $0x6a] sm:$0xff]
      %v4456 = vld [vmem:[%s2992 + $0x7a] sm:$0xff]
      %v4457 = vld [vmem:[%s2992 + $0x82] sm:$0xff]
      %v4458 = vld [vmem:[%s2992 + $0x92] sm:$0xff]
      %v4459 = vld [vmem:[%s2992 + $0x9a] sm:$0xff]
      %v4460 = vld [vmem:[%s2992 + $0xaa] sm:$0xff]
      %v4461 = vld [vmem:[%s2992 + $0xb2] sm:$0xff]
      %v4462 = vld [vmem:[%s2992 + $0xc2] sm:$0xff]
      %v4463 = vld [vmem:[%s2992 + $0xca] sm:$0xff]
      %v4464 = vld [vmem:[%s2992 + $0xda] sm:$0xff]
      %v4465 = vld [vmem:[%s2992 + $0xe2] sm:$0xff]
      %v4466 = vld [vmem:[%s2992 + $0xf2] sm:$0xff]
      %v4467 = vld [vmem:[%s2992 + $0xfa] sm:$0xff]
      %v4468 = vld [vmem:[%s2992 + $0x10a] sm:$0xff]
      %v4469 = vld [vmem:[%s2992 + $0x112] sm:$0xff]
      %v4470 = vld [vmem:[%s2992 + $0x122] sm:$0xff]
      %v4471 = vld [vmem:[%s2992 + $0x12a] sm:$0xff]
      %v4472 = vld [vmem:[%s2992 + $0x13a] sm:$0xff]
      %v4473 = vld [vmem:[%s2992 + $0x142] sm:$0xff]
      %v4474 = vld [vmem:[%s2992 + $0x152] sm:$0xff]
      %v4475 = vld [vmem:[%s2992 + $0x15a] sm:$0xff]
      %v4476 = vld [vmem:[%s2992 + $0x16a] sm:$0xff]
      %v4477 = vld [vmem:[%s2992 + $0x172] sm:$0xff]
      %v4478 = vpack.c.bf16 %v4447, %v4446
      %v4479 = vpack.c.bf16 %v4449, %v4448
      %v4480 = vpack.c.bf16 %v4451, %v4450
      %v4481 = vpack.c.bf16 %v4453, %v4452
      %v4482 = vpack.c.bf16 %v4455, %v4454
      %v4483 = vpack.c.bf16 %v4457, %v4456
      %v4484 = vpack.c.bf16 %v4459, %v4458
      %v4485 = vpack.c.bf16 %v4461, %v4460
      %v4486 = vpack.c.bf16 %v4463, %v4462
      %v4487 = vpack.c.bf16 %v4465, %v4464
      %v4488 = vpack.c.bf16 %v4467, %v4466
      %v4489 = vpack.c.bf16 %v4469, %v4468
      %v4490 = vpack.c.bf16 %v4471, %v4470
      %v4491 = vpack.c.bf16 %v4473, %v4472
      %v4492 = vpack.c.bf16 %v4475, %v4474
      %v4493 = vpack.c.bf16 %v4477, %v4476
      %s4494 = scalar_lea.vmem %s3, 20
      %v4495 = vld [vmem:[%s4494] sm:$0xf]
      %v4497 = vsel %vm2936, %v4478, 0
      %v4500 = vsel %vm2936, %v4479, 0
      %v4503 = vsel %vm2936, %v4480, 0
      %v4506 = vsel %vm2936, %v4481, 0
      %v4509 = vsel %vm2936, %v4482, 0
      %v4512 = vsel %vm2936, %v4483, 0
      %v4515 = vsel %vm2936, %v4484, 0
      %v4518 = vsel %vm2936, %v4485, 0
      %v4521 = vsel %vm2936, %v4486, 0
      %v4524 = vsel %vm2936, %v4487, 0
      %v4527 = vsel %vm2936, %v4488, 0
      %v4530 = vsel %vm2936, %v4489, 0
      %v4533 = vsel %vm2936, %v4490, 0
      %v4536 = vsel %vm2936, %v4491, 0
      %v4539 = vsel %vm2936, %v4492, 0
      %v4542 = vsel %vm2936, %v4493, 0
      %v4545 = vsel %vm3187, %v4495, 0
      %4547 = vmatprep.subr.bf16.mxu0 0
      %4548 = vmatpush1.bf16.msra.mxu0 %v4545
      %4549 = vmatprep.subr.bf16.mxu0 0
      %4550 = vmatpush1.bf16.msra.mxu0 0
      %4551 = vmatprep.subr.bf16.mxu0 0
      %4552 = vmatpush1.bf16.msra.mxu0 0
      %4553 = vmatprep.subr.bf16.mxu0 0
      %4554 = vmatpush1.bf16.msra.mxu0 0
      %4555 = vmatprep.subr.bf16.mxu0 0
      %4556 = vmatpush1.bf16.msra.mxu0 0
      %4557 = vmatprep.subr.bf16.mxu0 0
      %4558 = vmatpush1.bf16.msra.mxu0 0
      %4559 = vmatprep.subr.bf16.mxu0 0
      %4560 = vmatpush1.bf16.msra.mxu0 0
      %4561 = vmatprep.subr.bf16.mxu0 0
      %4562 = vmatpush1.bf16.msra.mxu0 0
      %4563 = vmatprep.subr.bf16.mxu0 0
      %4564 = vmatpush1.bf16.msra.mxu0 0
      %4565 = vmatprep.subr.bf16.mxu0 0
      %4566 = vmatpush1.bf16.msra.mxu0 0
      %4567 = vmatprep.subr.bf16.mxu0 0
      %4568 = vmatpush1.bf16.msra.mxu0 0
      %4569 = vmatprep.subr.bf16.mxu0 0
      %4570 = vmatpush1.bf16.msra.mxu0 0
      %4571 = vmatprep.subr.bf16.mxu0 0
      %4572 = vmatpush1.bf16.msra.mxu0 0
      %4573 = vmatprep.subr.bf16.mxu0 0
      %4574 = vmatpush1.bf16.msra.mxu0 0
      %4575 = vmatprep.subr.bf16.mxu0 0
      %4576 = vmatpush1.bf16.msra.mxu0 0
      %4577 = vmatprep.subr.bf16.mxu0 0
      %4578 = vmatpush1.bf16.msra.mxu0 0
      %4579 = vmatprep.mubr.bf16.mxu0 0
      %4580 = vmatmul.mubr.bf16.gmra.mrb[0].mxu0 %v4497
      %v4581 = vpop.f32.mrb[0].mxu0
      %v4582 = vadd.f32 0.0, %v4581
      %v4583 = vpop.f32.mrb[0].mxu0
      %v4584 = vpop.f32.mrb[0].mxu0
      %v4585 = vadd.f32 0.0, %v4584
      %v4586 = vpop.f32.mrb[0].mxu0
      %4587 = vmatprep.mubr.bf16.mxu0 0
      %4588 = vmatmul.mubr.bf16.gmra.mrb[0].mxu0 %v4500
      %v4589 = vpop.f32.mrb[0].mxu0
      %v4590 = vadd.f32 0.0, %v4589
      %v4591 = vpop.f32.mrb[0].mxu0
      %v4592 = vpop.f32.mrb[0].mxu0
      %v4593 = vadd.f32 0.0, %v4592
      %v4594 = vpop.f32.mrb[0].mxu0
      %4595 = vmatprep.mubr.bf16.mxu0 0
      %4596 = vmatmul.mubr.bf16.gmra.mrb[0].mxu0 %v4503
      %v4597 = vpop.f32.mrb[0].mxu0
      %v4598 = vadd.f32 0.0, %v4597
      %v4599 = vpop.f32.mrb[0].mxu0
      %v4600 = vpop.f32.mrb[0].mxu0
      %v4601 = vadd.f32 0.0, %v4600
      %v4602 = vpop.f32.mrb[0].mxu0
      %4603 = vmatprep.mubr.bf16.mxu0 0
      %4604 = vmatmul.mubr.bf16.gmra.mrb[0].mxu0 %v4506
      %v4605 = vpop.f32.mrb[0].mxu0
      %v4606 = vadd.f32 0.0, %v4605
      %v4607 = vpop.f32.mrb[0].mxu0
      %v4608 = vpop.f32.mrb[0].mxu0
      %v4609 = vadd.f32 0.0, %v4608
      %v4610 = vpop.f32.mrb[0].mxu0
      %4611 = vmatprep.mubr.bf16.mxu0 0
      %4612 = vmatmul.mubr.bf16.gmra.mrb[0].mxu0 %v4509
      %v4613 = vpop.f32.mrb[0].mxu0
      %v4614 = vadd.f32 0.0, %v4613
      %v4615 = vpop.f32.mrb[0].mxu0
      %v4616 = vpop.f32.mrb[0].mxu0
      %v4617 = vadd.f32 0.0, %v4616
      %v4618 = vpop.f32.mrb[0].mxu0
      %4619 = vmatprep.mubr.bf16.mxu0 0
      %4620 = vmatmul.mubr.bf16.gmra.mrb[0].mxu0 %v4512
      %v4621 = vpop.f32.mrb[0].mxu0
      %v4622 = vadd.f32 0.0, %v4621
      %v4623 = vpop.f32.mrb[0].mxu0
      %v4624 = vpop.f32.mrb[0].mxu0
      %v4625 = vadd.f32 0.0, %v4624
      %v4626 = vpop.f32.mrb[0].mxu0
      %4627 = vmatprep.mubr.bf16.mxu0 0
      %4628 = vmatmul.mubr.bf16.gmra.mrb[0].mxu0 %v4515
      %v4629 = vpop.f32.mrb[0].mxu0
      %v4630 = vadd.f32 0.0, %v4629
      %v4631 = vpop.f32.mrb[0].mxu0
      %v4632 = vpop.f32.mrb[0].mxu0
      %v4633 = vadd.f32 0.0, %v4632
      %v4634 = vpop.f32.mrb[0].mxu0
      %4635 = vmatprep.mubr.bf16.mxu0 0
      %4636 = vmatmul.mubr.bf16.gmra.mrb[0].mxu0 %v4518
      %v4637 = vpop.f32.mrb[0].mxu0
      %v4638 = vadd.f32 0.0, %v4637
      %v4639 = vpop.f32.mrb[0].mxu0
      %v4640 = vpop.f32.mrb[0].mxu0
      %v4641 = vadd.f32 0.0, %v4640
      %v4642 = vpop.f32.mrb[0].mxu0
      %4643 = vmatprep.mubr.bf16.mxu0 0
      %4644 = vmatmul.mubr.bf16.gmra.mrb[0].mxu0 %v4521
      %v4645 = vpop.f32.mrb[0].mxu0
      %v4646 = vadd.f32 0.0, %v4645
      %v4647 = vpop.f32.mrb[0].mxu0
      %v4648 = vpop.f32.mrb[0].mxu0
      %v4649 = vadd.f32 0.0, %v4648
      %v4650 = vpop.f32.mrb[0].mxu0
      %4651 = vmatprep.mubr.bf16.mxu0 0
      %4652 = vmatmul.mubr.bf16.gmra.mrb[0].mxu0 %v4524
      %v4653 = vpop.f32.mrb[0].mxu0
      %v4654 = vadd.f32 0.0, %v4653
      %v4655 = vpop.f32.mrb[0].mxu0
      %v4656 = vpop.f32.mrb[0].mxu0
      %v4657 = vadd.f32 0.0, %v4656
      %v4658 = vpop.f32.mrb[0].mxu0
      %4659 = vmatprep.mubr.bf16.mxu0 0
      %4660 = vmatmul.mubr.bf16.gmra.mrb[0].mxu0 %v4527
      %v4661 = vpop.f32.mrb[0].mxu0
      %v4662 = vadd.f32 0.0, %v4661
      %v4663 = vpop.f32.mrb[0].mxu0
      %v4664 = vpop.f32.mrb[0].mxu0
      %v4665 = vadd.f32 0.0, %v4664
      %v4666 = vpop.f32.mrb[0].mxu0
      %4667 = vmatprep.mubr.bf16.mxu0 0
      %4668 = vmatmul.mubr.bf16.gmra.mrb[0].mxu0 %v4530
      %v4669 = vpop.f32.mrb[0].mxu0
      %v4670 = vadd.f32 0.0, %v4669
      %v4671 = vpop.f32.mrb[0].mxu0
      %v4672 = vpop.f32.mrb[0].mxu0
      %v4673 = vadd.f32 0.0, %v4672
      %v4674 = vpop.f32.mrb[0].mxu0
      %4675 = vmatprep.mubr.bf16.mxu0 0
      %4676 = vmatmul.mubr.bf16.gmra.mrb[0].mxu0 %v4533
      %v4677 = vpop.f32.mrb[0].mxu0
      %v4678 = vadd.f32 0.0, %v4677
      %v4679 = vpop.f32.mrb[0].mxu0
      %v4680 = vpop.f32.mrb[0].mxu0
      %v4681 = vadd.f32 0.0, %v4680
      %v4682 = vpop.f32.mrb[0].mxu0
      %4683 = vmatprep.mubr.bf16.mxu0 0
      %4684 = vmatmul.mubr.bf16.gmra.mrb[0].mxu0 %v4536
      %v4685 = vpop.f32.mrb[0].mxu0
      %v4686 = vadd.f32 0.0, %v4685
      %v4687 = vpop.f32.mrb[0].mxu0
      %v4688 = vpop.f32.mrb[0].mxu0
      %v4689 = vadd.f32 0.0, %v4688
      %v4690 = vpop.f32.mrb[0].mxu0
      %4691 = vmatprep.mubr.bf16.mxu0 0
      %4692 = vmatmul.mubr.bf16.gmra.mrb[0].mxu0 %v4539
      %v4693 = vpop.f32.mrb[0].mxu0
      %v4694 = vadd.f32 0.0, %v4693
      %v4695 = vpop.f32.mrb[0].mxu0
      %v4696 = vpop.f32.mrb[0].mxu0
      %v4697 = vadd.f32 0.0, %v4696
      %v4698 = vpop.f32.mrb[0].mxu0
      %4699 = vmatprep.mubr.bf16.mxu0 0
      %4700 = vmatmul.mubr.bf16.gmra.mrb[0].mxu0 %v4542
      %v4701 = vpop.f32.mrb[0].mxu0
      %v4702 = vadd.f32 0.0, %v4701
      %v4703 = vpop.f32.mrb[0].mxu0
      %v4704 = vpop.f32.mrb[0].mxu0
      %v4705 = vadd.f32 0.0, %v4704
      %v4706 = vpop.f32.mrb[0].mxu0
      %4707 = vdwg.mxu0
      %v4708 = vadd.f32 %v4414, %v4582
      %v4709 = vadd.f32 %v4415, %v4585
      %v4710 = vadd.f32 %v4416, %v4590
      %v4711 = vadd.f32 %v4417, %v4593
      %v4712 = vadd.f32 %v4418, %v4598
      %v4713 = vadd.f32 %v4419, %v4601
      %v4714 = vadd.f32 %v4420, %v4606
      %v4715 = vadd.f32 %v4421, %v4609
      %v4716 = vadd.f32 %v4422, %v4614
      %v4717 = vadd.f32 %v4423, %v4617
      %v4718 = vadd.f32 %v4424, %v4622
      %v4719 = vadd.f32 %v4425, %v4625
      %v4720 = vadd.f32 %v4426, %v4630
      %v4721 = vadd.f32 %v4427, %v4633
      %v4722 = vadd.f32 %v4428, %v4638
      %v4723 = vadd.f32 %v4429, %v4641
      %v4724 = vadd.f32 %v4430, %v4646
      %v4725 = vadd.f32 %v4431, %v4649
      %v4726 = vadd.f32 %v4432, %v4654
      %v4727 = vadd.f32 %v4433, %v4657
      %v4728 = vadd.f32 %v4434, %v4662
      %v4729 = vadd.f32 %v4435, %v4665
      %v4730 = vadd.f32 %v4436, %v4670
      %v4731 = vadd.f32 %v4437, %v4673
      %v4732 = vadd.f32 %v4438, %v4678
      %v4733 = vadd.f32 %v4439, %v4681
      %v4734 = vadd.f32 %v4440, %v4686
      %v4735 = vadd.f32 %v4441, %v4689
      %v4736 = vadd.f32 %v4442, %v4694
      %v4737 = vadd.f32 %v4443, %v4697
      %v4738 = vadd.f32 %v4444, %v4702
      %v4739 = vadd.f32 %v4445, %v4705
      %v4740 = vld [vmem:[%s2995] sm:$0xff]
      %v4741 = vld [vmem:[%s2995 + $0x8] sm:$0xff]
      %v4742 = vld [vmem:[%s2995 + $0x18] sm:$0xff]
      %v4743 = vld [vmem:[%s2995 + $0x20] sm:$0xff]
      %v4744 = vld [vmem:[%s2995 + $0x30] sm:$0xff]
      %v4745 = vld [vmem:[%s2995 + $0x38] sm:$0xff]
      %v4746 = vld [vmem:[%s2995 + $0x48] sm:$0xff]
      %v4747 = vld [vmem:[%s2995 + $0x50] sm:$0xff]
      %v4748 = vld [vmem:[%s2995 + $0x60] sm:$0xff]
      %v4749 = vld [vmem:[%s2995 + $0x68] sm:$0xff]
      %v4750 = vld [vmem:[%s2995 + $0x78] sm:$0xff]
      %v4751 = vld [vmem:[%s2995 + $0x80] sm:$0xff]
      %v4752 = vld [vmem:[%s2995 + $0x90] sm:$0xff]
      %v4753 = vld [vmem:[%s2995 + $0x98] sm:$0xff]
      %v4754 = vld [vmem:[%s2995 + $0xa8] sm:$0xff]
      %v4755 = vld [vmem:[%s2995 + $0xb0] sm:$0xff]
      %v4756 = vld [vmem:[%s2995 + $0xc0] sm:$0xff]
      %v4757 = vld [vmem:[%s2995 + $0xc8] sm:$0xff]
      %v4758 = vld [vmem:[%s2995 + $0xd8] sm:$0xff]
      %v4759 = vld [vmem:[%s2995 + $0xe0] sm:$0xff]
      %v4760 = vld [vmem:[%s2995 + $0xf0] sm:$0xff]
      %v4761 = vld [vmem:[%s2995 + $0xf8] sm:$0xff]
      %v4762 = vld [vmem:[%s2995 + $0x108] sm:$0xff]
      %v4763 = vld [vmem:[%s2995 + $0x110] sm:$0xff]
      %v4764 = vld [vmem:[%s2995 + $0x120] sm:$0xff]
      %v4765 = vld [vmem:[%s2995 + $0x128] sm:$0xff]
      %v4766 = vld [vmem:[%s2995 + $0x138] sm:$0xff]
      %v4767 = vld [vmem:[%s2995 + $0x140] sm:$0xff]
      %v4768 = vld [vmem:[%s2995 + $0x150] sm:$0xff]
      %v4769 = vld [vmem:[%s2995 + $0x158] sm:$0xff]
      %v4770 = vld [vmem:[%s2995 + $0x168] sm:$0xff]
      %v4771 = vld [vmem:[%s2995 + $0x170] sm:$0xff]
      %v4772 = vpack.c.bf16 %v4741, %v4740
      %v4773 = vpack.c.bf16 %v4743, %v4742
      %v4774 = vpack.c.bf16 %v4745, %v4744
      %v4775 = vpack.c.bf16 %v4747, %v4746
      %v4776 = vpack.c.bf16 %v4749, %v4748
      %v4777 = vpack.c.bf16 %v4751, %v4750
      %v4778 = vpack.c.bf16 %v4753, %v4752
      %v4779 = vpack.c.bf16 %v4755, %v4754
      %v4780 = vpack.c.bf16 %v4757, %v4756
      %v4781 = vpack.c.bf16 %v4759, %v4758
      %v4782 = vpack.c.bf16 %v4761, %v4760
      %v4783 = vpack.c.bf16 %v4763, %v4762
      %v4784 = vpack.c.bf16 %v4765, %v4764
      %v4785 = vpack.c.bf16 %v4767, %v4766
      %v4786 = vpack.c.bf16 %v4769, %v4768
      %v4787 = vpack.c.bf16 %v4771, %v4770
      %s4788 = scalar_lea.vmem %s3, 24
      %v4789 = vld [vmem:[%s4788] sm:$0xf]
      %v4791 = vsel %vm2936, %v4772, 0
      %v4794 = vsel %vm2936, %v4773, 0
      %v4797 = vsel %vm2936, %v4774, 0
      %v4800 = vsel %vm2936, %v4775, 0
      %v4803 = vsel %vm2936, %v4776, 0
      %v4806 = vsel %vm2936, %v4777, 0
      %v4809 = vsel %vm2936, %v4778, 0
      %v4812 = vsel %vm2936, %v4779, 0
      %v4815 = vsel %vm2936, %v4780, 0
      %v4818 = vsel %vm2936, %v4781, 0
      %v4821 = vsel %vm2936, %v4782, 0
      %v4824 = vsel %vm2936, %v4783, 0
      %v4827 = vsel %vm2936, %v4784, 0
      %v4830 = vsel %vm2936, %v4785, 0
      %v4833 = vsel %vm2936, %v4786, 0
      %v4836 = vsel %vm2936, %v4787, 0
      %v4839 = vsel %vm3187, %v4789, 0
      %4841 = vmatprep.subr.bf16.mxu0 0
      %4842 = vmatpush1.bf16.msra.mxu0 %v4839
      %4843 = vmatprep.subr.bf16.mxu0 0
      %4844 = vmatpush1.bf16.msra.mxu0 0
      %4845 = vmatprep.subr.bf16.mxu0 0
      %4846 = vmatpush1.bf16.msra.mxu0 0
      %4847 = vmatprep.subr.bf16.mxu0 0
      %4848 = vmatpush1.bf16.msra.mxu0 0
      %4849 = vmatprep.subr.bf16.mxu0 0
      %4850 = vmatpush1.bf16.msra.mxu0 0
      %4851 = vmatprep.subr.bf16.mxu0 0
      %4852 = vmatpush1.bf16.msra.mxu0 0
      %4853 = vmatprep.subr.bf16.mxu0 0
      %4854 = vmatpush1.bf16.msra.mxu0 0
      %4855 = vmatprep.subr.bf16.mxu0 0
      %4856 = vmatpush1.bf16.msra.mxu0 0
      %4857 = vmatprep.subr.bf16.mxu0 0
      %4858 = vmatpush1.bf16.msra.mxu0 0
      %4859 = vmatprep.subr.bf16.mxu0 0
      %4860 = vmatpush1.bf16.msra.mxu0 0
      %4861 = vmatprep.subr.bf16.mxu0 0
      %4862 = vmatpush1.bf16.msra.mxu0 0
      %4863 = vmatprep.subr.bf16.mxu0 0
      %4864 = vmatpush1.bf16.msra.mxu0 0
      %4865 = vmatprep.subr.bf16.mxu0 0
      %4866 = vmatpush1.bf16.msra.mxu0 0
      %4867 = vmatprep.subr.bf16.mxu0 0
      %4868 = vmatpush1.bf16.msra.mxu0 0
      %4869 = vmatprep.subr.bf16.mxu0 0
      %4870 = vmatpush1.bf16.msra.mxu0 0
      %4871 = vmatprep.subr.bf16.mxu0 0
      %4872 = vmatpush1.bf16.msra.mxu0 0
      %4873 = vmatprep.mubr.bf16.mxu0 0
      %4874 = vmatmul.mubr.bf16.gmra.mrb[0].mxu0 %v4791
      %v4875 = vpop.f32.mrb[0].mxu0
      %v4876 = vadd.f32 0.0, %v4875
      %v4877 = vpop.f32.mrb[0].mxu0
      %v4878 = vpop.f32.mrb[0].mxu0
      %v4879 = vadd.f32 0.0, %v4878
      %v4880 = vpop.f32.mrb[0].mxu0
      %4881 = vmatprep.mubr.bf16.mxu0 0
      %4882 = vmatmul.mubr.bf16.gmra.mrb[0].mxu0 %v4794
      %v4883 = vpop.f32.mrb[0].mxu0
      %v4884 = vadd.f32 0.0, %v4883
      %v4885 = vpop.f32.mrb[0].mxu0
      %v4886 = vpop.f32.mrb[0].mxu0
      %v4887 = vadd.f32 0.0, %v4886
      %v4888 = vpop.f32.mrb[0].mxu0
      %4889 = vmatprep.mubr.bf16.mxu0 0
      %4890 = vmatmul.mubr.bf16.gmra.mrb[0].mxu0 %v4797
      %v4891 = vpop.f32.mrb[0].mxu0
      %v4892 = vadd.f32 0.0, %v4891
      %v4893 = vpop.f32.mrb[0].mxu0
      %v4894 = vpop.f32.mrb[0].mxu0
      %v4895 = vadd.f32 0.0, %v4894
      %v4896 = vpop.f32.mrb[0].mxu0
      %4897 = vmatprep.mubr.bf16.mxu0 0
      %4898 = vmatmul.mubr.bf16.gmra.mrb[0].mxu0 %v4800
      %v4899 = vpop.f32.mrb[0].mxu0
      %v4900 = vadd.f32 0.0, %v4899
      %v4901 = vpop.f32.mrb[0].mxu0
      %v4902 = vpop.f32.mrb[0].mxu0
      %v4903 = vadd.f32 0.0, %v4902
      %v4904 = vpop.f32.mrb[0].mxu0
      %4905 = vmatprep.mubr.bf16.mxu0 0
      %4906 = vmatmul.mubr.bf16.gmra.mrb[0].mxu0 %v4803
      %v4907 = vpop.f32.mrb[0].mxu0
      %v4908 = vadd.f32 0.0, %v4907
      %v4909 = vpop.f32.mrb[0].mxu0
      %v4910 = vpop.f32.mrb[0].mxu0
      %v4911 = vadd.f32 0.0, %v4910
      %v4912 = vpop.f32.mrb[0].mxu0
      %4913 = vmatprep.mubr.bf16.mxu0 0
      %4914 = vmatmul.mubr.bf16.gmra.mrb[0].mxu0 %v4806
      %v4915 = vpop.f32.mrb[0].mxu0
      %v4916 = vadd.f32 0.0, %v4915
      %v4917 = vpop.f32.mrb[0].mxu0
      %v4918 = vpop.f32.mrb[0].mxu0
      %v4919 = vadd.f32 0.0, %v4918
      %v4920 = vpop.f32.mrb[0].mxu0
      %4921 = vmatprep.mubr.bf16.mxu0 0
      %4922 = vmatmul.mubr.bf16.gmra.mrb[0].mxu0 %v4809
      %v4923 = vpop.f32.mrb[0].mxu0
      %v4924 = vadd.f32 0.0, %v4923
      %v4925 = vpop.f32.mrb[0].mxu0
      %v4926 = vpop.f32.mrb[0].mxu0
      %v4927 = vadd.f32 0.0, %v4926
      %v4928 = vpop.f32.mrb[0].mxu0
      %4929 = vmatprep.mubr.bf16.mxu0 0
      %4930 = vmatmul.mubr.bf16.gmra.mrb[0].mxu0 %v4812
      %v4931 = vpop.f32.mrb[0].mxu0
      %v4932 = vadd.f32 0.0, %v4931
      %v4933 = vpop.f32.mrb[0].mxu0
      %v4934 = vpop.f32.mrb[0].mxu0
      %v4935 = vadd.f32 0.0, %v4934
      %v4936 = vpop.f32.mrb[0].mxu0
      %4937 = vmatprep.mubr.bf16.mxu0 0
      %4938 = vmatmul.mubr.bf16.gmra.mrb[0].mxu0 %v4815
      %v4939 = vpop.f32.mrb[0].mxu0
      %v4940 = vadd.f32 0.0, %v4939
      %v4941 = vpop.f32.mrb[0].mxu0
      %v4942 = vpop.f32.mrb[0].mxu0
      %v4943 = vadd.f32 0.0, %v4942
      %v4944 = vpop.f32.mrb[0].mxu0
      %4945 = vmatprep.mubr.bf16.mxu0 0
      %4946 = vmatmul.mubr.bf16.gmra.mrb[0].mxu0 %v4818
      %v4947 = vpop.f32.mrb[0].mxu0
      %v4948 = vadd.f32 0.0, %v4947
      %v4949 = vpop.f32.mrb[0].mxu0
      %v4950 = vpop.f32.mrb[0].mxu0
      %v4951 = vadd.f32 0.0, %v4950
      %v4952 = vpop.f32.mrb[0].mxu0
      %4953 = vmatprep.mubr.bf16.mxu0 0
      %4954 = vmatmul.mubr.bf16.gmra.mrb[0].mxu0 %v4821
      %v4955 = vpop.f32.mrb[0].mxu0
      %v4956 = vadd.f32 0.0, %v4955
      %v4957 = vpop.f32.mrb[0].mxu0
      %v4958 = vpop.f32.mrb[0].mxu0
      %v4959 = vadd.f32 0.0, %v4958
      %v4960 = vpop.f32.mrb[0].mxu0
      %4961 = vmatprep.mubr.bf16.mxu0 0
      %4962 = vmatmul.mubr.bf16.gmra.mrb[0].mxu0 %v4824
      %v4963 = vpop.f32.mrb[0].mxu0
      %v4964 = vadd.f32 0.0, %v4963
      %v4965 = vpop.f32.mrb[0].mxu0
      %v4966 = vpop.f32.mrb[0].mxu0
      %v4967 = vadd.f32 0.0, %v4966
      %v4968 = vpop.f32.mrb[0].mxu0
      %4969 = vmatprep.mubr.bf16.mxu0 0
      %4970 = vmatmul.mubr.bf16.gmra.mrb[0].mxu0 %v4827
      %v4971 = vpop.f32.mrb[0].mxu0
      %v4972 = vadd.f32 0.0, %v4971
      %v4973 = vpop.f32.mrb[0].mxu0
      %v4974 = vpop.f32.mrb[0].mxu0
      %v4975 = vadd.f32 0.0, %v4974
      %v4976 = vpop.f32.mrb[0].mxu0
      %4977 = vmatprep.mubr.bf16.mxu0 0
      %4978 = vmatmul.mubr.bf16.gmra.mrb[0].mxu0 %v4830
      %v4979 = vpop.f32.mrb[0].mxu0
      %v4980 = vadd.f32 0.0, %v4979
      %v4981 = vpop.f32.mrb[0].mxu0
      %v4982 = vpop.f32.mrb[0].mxu0
      %v4983 = vadd.f32 0.0, %v4982
      %v4984 = vpop.f32.mrb[0].mxu0
      %4985 = vmatprep.mubr.bf16.mxu0 0
      %4986 = vmatmul.mubr.bf16.gmra.mrb[0].mxu0 %v4833
      %v4987 = vpop.f32.mrb[0].mxu0
      %v4988 = vadd.f32 0.0, %v4987
      %v4989 = vpop.f32.mrb[0].mxu0
      %v4990 = vpop.f32.mrb[0].mxu0
      %v4991 = vadd.f32 0.0, %v4990
      %v4992 = vpop.f32.mrb[0].mxu0
      %4993 = vmatprep.mubr.bf16.mxu0 0
      %4994 = vmatmul.mubr.bf16.gmra.mrb[0].mxu0 %v4836
      %v4995 = vpop.f32.mrb[0].mxu0
      %v4996 = vadd.f32 0.0, %v4995
      %v4997 = vpop.f32.mrb[0].mxu0
      %v4998 = vpop.f32.mrb[0].mxu0
      %v4999 = vadd.f32 0.0, %v4998
      %v5000 = vpop.f32.mrb[0].mxu0
      %5001 = vdwg.mxu0
      %v5002 = vadd.f32 %v4708, %v4876
      %v5003 = vadd.f32 %v4709, %v4879
      %v5004 = vadd.f32 %v4710, %v4884
      %v5005 = vadd.f32 %v4711, %v4887
      %v5006 = vadd.f32 %v4712, %v4892
      %v5007 = vadd.f32 %v4713, %v4895
      %v5008 = vadd.f32 %v4714, %v4900
      %v5009 = vadd.f32 %v4715, %v4903
      %v5010 = vadd.f32 %v4716, %v4908
      %v5011 = vadd.f32 %v4717, %v4911
      %v5012 = vadd.f32 %v4718, %v4916
      %v5013 = vadd.f32 %v4719, %v4919
      %v5014 = vadd.f32 %v4720, %v4924
      %v5015 = vadd.f32 %v4721, %v4927
      %v5016 = vadd.f32 %v4722, %v4932
      %v5017 = vadd.f32 %v4723, %v4935
      %v5018 = vadd.f32 %v4724, %v4940
      %v5019 = vadd.f32 %v4725, %v4943
      %v5020 = vadd.f32 %v4726, %v4948
      %v5021 = vadd.f32 %v4727, %v4951
      %v5022 = vadd.f32 %v4728, %v4956
      %v5023 = vadd.f32 %v4729, %v4959
      %v5024 = vadd.f32 %v4730, %v4964
      %v5025 = vadd.f32 %v4731, %v4967
      %v5026 = vadd.f32 %v4732, %v4972
      %v5027 = vadd.f32 %v4733, %v4975
      %v5028 = vadd.f32 %v4734, %v4980
      %v5029 = vadd.f32 %v4735, %v4983
      %v5030 = vadd.f32 %v4736, %v4988
      %v5031 = vadd.f32 %v4737, %v4991
      %v5032 = vadd.f32 %v4738, %v4996
      %v5033 = vadd.f32 %v4739, %v4999
      %v5034 = vld [vmem:[%s2995 + $0x1] sm:$0xff]
      %v5035 = vld [vmem:[%s2995 + $0x9] sm:$0xff]
      %v5036 = vld [vmem:[%s2995 + $0x19] sm:$0xff]
      %v5037 = vld [vmem:[%s2995 + $0x21] sm:$0xff]
      %v5038 = vld [vmem:[%s2995 + $0x31] sm:$0xff]
      %v5039 = vld [vmem:[%s2995 + $0x39] sm:$0xff]
      %v5040 = vld [vmem:[%s2995 + $0x49] sm:$0xff]
      %v5041 = vld [vmem:[%s2995 + $0x51] sm:$0xff]
      %v5042 = vld [vmem:[%s2995 + $0x61] sm:$0xff]
      %v5043 = vld [vmem:[%s2995 + $0x69] sm:$0xff]
      %v5044 = vld [vmem:[%s2995 + $0x79] sm:$0xff]
      %v5045 = vld [vmem:[%s2995 + $0x81] sm:$0xff]
      %v5046 = vld [vmem:[%s2995 + $0x91] sm:$0xff]
      %v5047 = vld [vmem:[%s2995 + $0x99] sm:$0xff]
      %v5048 = vld [vmem:[%s2995 + $0xa9] sm:$0xff]
      %v5049 = vld [vmem:[%s2995 + $0xb1] sm:$0xff]
      %v5050 = vld [vmem:[%s2995 + $0xc1] sm:$0xff]
      %v5051 = vld [vmem:[%s2995 + $0xc9] sm:$0xff]
      %v5052 = vld [vmem:[%s2995 + $0xd9] sm:$0xff]
      %v5053 = vld [vmem:[%s2995 + $0xe1] sm:$0xff]
      %v5054 = vld [vmem:[%s2995 + $0xf1] sm:$0xff]
      %v5055 = vld [vmem:[%s2995 + $0xf9] sm:$0xff]
      %v5056 = vld [vmem:[%s2995 + $0x109] sm:$0xff]
      %v5057 = vld [vmem:[%s2995 + $0x111] sm:$0xff]
      %v5058 = vld [vmem:[%s2995 + $0x121] sm:$0xff]
      %v5059 = vld [vmem:[%s2995 + $0x129] sm:$0xff]
      %v5060 = vld [vmem:[%s2995 + $0x139] sm:$0xff]
      %v5061 = vld [vmem:[%s2995 + $0x141] sm:$0xff]
      %v5062 = vld [vmem:[%s2995 + $0x151] sm:$0xff]
      %v5063 = vld [vmem:[%s2995 + $0x159] sm:$0xff]
      %v5064 = vld [vmem:[%s2995 + $0x169] sm:$0xff]
      %v5065 = vld [vmem:[%s2995 + $0x171] sm:$0xff]
      %v5066 = vpack.c.bf16 %v5035, %v5034
      %v5067 = vpack.c.bf16 %v5037, %v5036
      %v5068 = vpack.c.bf16 %v5039, %v5038
      %v5069 = vpack.c.bf16 %v5041, %v5040
      %v5070 = vpack.c.bf16 %v5043, %v5042
      %v5071 = vpack.c.bf16 %v5045, %v5044
      %v5072 = vpack.c.bf16 %v5047, %v5046
      %v5073 = vpack.c.bf16 %v5049, %v5048
      %v5074 = vpack.c.bf16 %v5051, %v5050
      %v5075 = vpack.c.bf16 %v5053, %v5052
      %v5076 = vpack.c.bf16 %v5055, %v5054
      %v5077 = vpack.c.bf16 %v5057, %v5056
      %v5078 = vpack.c.bf16 %v5059, %v5058
      %v5079 = vpack.c.bf16 %v5061, %v5060
      %v5080 = vpack.c.bf16 %v5063, %v5062
      %v5081 = vpack.c.bf16 %v5065, %v5064
      %s5082 = scalar_lea.vmem %s3, 28
      %v5083 = vld [vmem:[%s5082] sm:$0xf]
      %v5085 = vsel %vm2936, %v5066, 0
      %v5088 = vsel %vm2936, %v5067, 0
      %v5091 = vsel %vm2936, %v5068, 0
      %v5094 = vsel %vm2936, %v5069, 0
      %v5097 = vsel %vm2936, %v5070, 0
      %v5100 = vsel %vm2936, %v5071, 0
      %v5103 = vsel %vm2936, %v5072, 0
      %v5106 = vsel %vm2936, %v5073, 0
      %v5109 = vsel %vm2936, %v5074, 0
      %v5112 = vsel %vm2936, %v5075, 0
      %v5115 = vsel %vm2936, %v5076, 0
      %v5118 = vsel %vm2936, %v5077, 0
      %v5121 = vsel %vm2936, %v5078, 0
      %v5124 = vsel %vm2936, %v5079, 0
      %v5127 = vsel %vm2936, %v5080, 0
      %v5130 = vsel %vm2936, %v5081, 0
      %v5133 = vsel %vm3187, %v5083, 0
      %5135 = vmatprep.subr.bf16.mxu0 0
      %5136 = vmatpush1.bf16.msra.mxu0 %v5133
      %5137 = vmatprep.subr.bf16.mxu0 0
      %5138 = vmatpush1.bf16.msra.mxu0 0
      %5139 = vmatprep.subr.bf16.mxu0 0
      %5140 = vmatpush1.bf16.msra.mxu0 0
      %5141 = vmatprep.subr.bf16.mxu0 0
      %5142 = vmatpush1.bf16.msra.mxu0 0
      %5143 = vmatprep.subr.bf16.mxu0 0
      %5144 = vmatpush1.bf16.msra.mxu0 0
      %5145 = vmatprep.subr.bf16.mxu0 0
      %5146 = vmatpush1.bf16.msra.mxu0 0
      %5147 = vmatprep.subr.bf16.mxu0 0
      %5148 = vmatpush1.bf16.msra.mxu0 0
      %5149 = vmatprep.subr.bf16.mxu0 0
      %5150 = vmatpush1.bf16.msra.mxu0 0
      %5151 = vmatprep.subr.bf16.mxu0 0
      %5152 = vmatpush1.bf16.msra.mxu0 0
      %5153 = vmatprep.subr.bf16.mxu0 0
      %5154 = vmatpush1.bf16.msra.mxu0 0
      %5155 = vmatprep.subr.bf16.mxu0 0
      %5156 = vmatpush1.bf16.msra.mxu0 0
      %5157 = vmatprep.subr.bf16.mxu0 0
      %5158 = vmatpush1.bf16.msra.mxu0 0
      %5159 = vmatprep.subr.bf16.mxu0 0
      %5160 = vmatpush1.bf16.msra.mxu0 0
      %5161 = vmatprep.subr.bf16.mxu0 0
      %5162 = vmatpush1.bf16.msra.mxu0 0
      %5163 = vmatprep.subr.bf16.mxu0 0
      %5164 = vmatpush1.bf16.msra.mxu0 0
      %5165 = vmatprep.subr.bf16.mxu0 0
      %5166 = vmatpush1.bf16.msra.mxu0 0
      %5167 = vmatprep.mubr.bf16.mxu0 0
      %5168 = vmatmul.mubr.bf16.gmra.mrb[0].mxu0 %v5085
      %v5169 = vpop.f32.mrb[0].mxu0
      %v5170 = vadd.f32 0.0, %v5169
      %v5171 = vpop.f32.mrb[0].mxu0
      %v5172 = vpop.f32.mrb[0].mxu0
      %v5173 = vadd.f32 0.0, %v5172
      %v5174 = vpop.f32.mrb[0].mxu0
      %5175 = vmatprep.mubr.bf16.mxu0 0
      %5176 = vmatmul.mubr.bf16.gmra.mrb[0].mxu0 %v5088
      %v5177 = vpop.f32.mrb[0].mxu0
      %v5178 = vadd.f32 0.0, %v5177
      %v5179 = vpop.f32.mrb[0].mxu0
      %v5180 = vpop.f32.mrb[0].mxu0
      %v5181 = vadd.f32 0.0, %v5180
      %v5182 = vpop.f32.mrb[0].mxu0
      %5183 = vmatprep.mubr.bf16.mxu0 0
      %5184 = vmatmul.mubr.bf16.gmra.mrb[0].mxu0 %v5091
      %v5185 = vpop.f32.mrb[0].mxu0
      %v5186 = vadd.f32 0.0, %v5185
      %v5187 = vpop.f32.mrb[0].mxu0
      %v5188 = vpop.f32.mrb[0].mxu0
      %v5189 = vadd.f32 0.0, %v5188
      %v5190 = vpop.f32.mrb[0].mxu0
      %5191 = vmatprep.mubr.bf16.mxu0 0
      %5192 = vmatmul.mubr.bf16.gmra.mrb[0].mxu0 %v5094
      %v5193 = vpop.f32.mrb[0].mxu0
      %v5194 = vadd.f32 0.0, %v5193
      %v5195 = vpop.f32.mrb[0].mxu0
      %v5196 = vpop.f32.mrb[0].mxu0
      %v5197 = vadd.f32 0.0, %v5196
      %v5198 = vpop.f32.mrb[0].mxu0
      %5199 = vmatprep.mubr.bf16.mxu0 0
      %5200 = vmatmul.mubr.bf16.gmra.mrb[0].mxu0 %v5097
      %v5201 = vpop.f32.mrb[0].mxu0
      %v5202 = vadd.f32 0.0, %v5201
      %v5203 = vpop.f32.mrb[0].mxu0
      %v5204 = vpop.f32.mrb[0].mxu0
      %v5205 = vadd.f32 0.0, %v5204
      %v5206 = vpop.f32.mrb[0].mxu0
      %5207 = vmatprep.mubr.bf16.mxu0 0
      %5208 = vmatmul.mubr.bf16.gmra.mrb[0].mxu0 %v5100
      %v5209 = vpop.f32.mrb[0].mxu0
      %v5210 = vadd.f32 0.0, %v5209
      %v5211 = vpop.f32.mrb[0].mxu0
      %v5212 = vpop.f32.mrb[0].mxu0
      %v5213 = vadd.f32 0.0, %v5212
      %v5214 = vpop.f32.mrb[0].mxu0
      %5215 = vmatprep.mubr.bf16.mxu0 0
      %5216 = vmatmul.mubr.bf16.gmra.mrb[0].mxu0 %v5103
      %v5217 = vpop.f32.mrb[0].mxu0
      %v5218 = vadd.f32 0.0, %v5217
      %v5219 = vpop.f32.mrb[0].mxu0
      %v5220 = vpop.f32.mrb[0].mxu0
      %v5221 = vadd.f32 0.0, %v5220
      %v5222 = vpop.f32.mrb[0].mxu0
      %5223 = vmatprep.mubr.bf16.mxu0 0
      %5224 = vmatmul.mubr.bf16.gmra.mrb[0].mxu0 %v5106
      %v5225 = vpop.f32.mrb[0].mxu0
      %v5226 = vadd.f32 0.0, %v5225
      %v5227 = vpop.f32.mrb[0].mxu0
      %v5228 = vpop.f32.mrb[0].mxu0
      %v5229 = vadd.f32 0.0, %v5228
      %v5230 = vpop.f32.mrb[0].mxu0
      %5231 = vmatprep.mubr.bf16.mxu0 0
      %5232 = vmatmul.mubr.bf16.gmra.mrb[0].mxu0 %v5109
      %v5233 = vpop.f32.mrb[0].mxu0
      %v5234 = vadd.f32 0.0, %v5233
      %v5235 = vpop.f32.mrb[0].mxu0
      %v5236 = vpop.f32.mrb[0].mxu0
      %v5237 = vadd.f32 0.0, %v5236
      %v5238 = vpop.f32.mrb[0].mxu0
      %5239 = vmatprep.mubr.bf16.mxu0 0
      %5240 = vmatmul.mubr.bf16.gmra.mrb[0].mxu0 %v5112
      %v5241 = vpop.f32.mrb[0].mxu0
      %v5242 = vadd.f32 0.0, %v5241
      %v5243 = vpop.f32.mrb[0].mxu0
      %v5244 = vpop.f32.mrb[0].mxu0
      %v5245 = vadd.f32 0.0, %v5244
      %v5246 = vpop.f32.mrb[0].mxu0
      %5247 = vmatprep.mubr.bf16.mxu0 0
      %5248 = vmatmul.mubr.bf16.gmra.mrb[0].mxu0 %v5115
      %v5249 = vpop.f32.mrb[0].mxu0
      %v5250 = vadd.f32 0.0, %v5249
      %v5251 = vpop.f32.mrb[0].mxu0
      %v5252 = vpop.f32.mrb[0].mxu0
      %v5253 = vadd.f32 0.0, %v5252
      %v5254 = vpop.f32.mrb[0].mxu0
      %5255 = vmatprep.mubr.bf16.mxu0 0
      %5256 = vmatmul.mubr.bf16.gmra.mrb[0].mxu0 %v5118
      %v5257 = vpop.f32.mrb[0].mxu0
      %v5258 = vadd.f32 0.0, %v5257
      %v5259 = vpop.f32.mrb[0].mxu0
      %v5260 = vpop.f32.mrb[0].mxu0
      %v5261 = vadd.f32 0.0, %v5260
      %v5262 = vpop.f32.mrb[0].mxu0
      %5263 = vmatprep.mubr.bf16.mxu0 0
      %5264 = vmatmul.mubr.bf16.gmra.mrb[0].mxu0 %v5121
      %v5265 = vpop.f32.mrb[0].mxu0
      %v5266 = vadd.f32 0.0, %v5265
      %v5267 = vpop.f32.mrb[0].mxu0
      %v5268 = vpop.f32.mrb[0].mxu0
      %v5269 = vadd.f32 0.0, %v5268
      %v5270 = vpop.f32.mrb[0].mxu0
      %5271 = vmatprep.mubr.bf16.mxu0 0
      %5272 = vmatmul.mubr.bf16.gmra.mrb[0].mxu0 %v5124
      %v5273 = vpop.f32.mrb[0].mxu0
      %v5274 = vadd.f32 0.0, %v5273
      %v5275 = vpop.f32.mrb[0].mxu0
      %v5276 = vpop.f32.mrb[0].mxu0
      %v5277 = vadd.f32 0.0, %v5276
      %v5278 = vpop.f32.mrb[0].mxu0
      %5279 = vmatprep.mubr.bf16.mxu0 0
      %5280 = vmatmul.mubr.bf16.gmra.mrb[0].mxu0 %v5127
      %v5281 = vpop.f32.mrb[0].mxu0
      %v5282 = vadd.f32 0.0, %v5281
      %v5283 = vpop.f32.mrb[0].mxu0
      %v5284 = vpop.f32.mrb[0].mxu0
      %v5285 = vadd.f32 0.0, %v5284
      %v5286 = vpop.f32.mrb[0].mxu0
      %5287 = vmatprep.mubr.bf16.mxu0 0
      %5288 = vmatmul.mubr.bf16.gmra.mrb[0].mxu0 %v5130
      %v5289 = vpop.f32.mrb[0].mxu0
      %v5290 = vadd.f32 0.0, %v5289
      %v5291 = vpop.f32.mrb[0].mxu0
      %v5292 = vpop.f32.mrb[0].mxu0
      %v5293 = vadd.f32 0.0, %v5292
      %v5294 = vpop.f32.mrb[0].mxu0
      %5295 = vdwg.mxu0
      %v5296 = vadd.f32 %v5002, %v5170
      %v5297 = vadd.f32 %v5003, %v5173
      %v5298 = vadd.f32 %v5004, %v5178
      %v5299 = vadd.f32 %v5005, %v5181
      %v5300 = vadd.f32 %v5006, %v5186
      %v5301 = vadd.f32 %v5007, %v5189
      %v5302 = vadd.f32 %v5008, %v5194
      %v5303 = vadd.f32 %v5009, %v5197
      %v5304 = vadd.f32 %v5010, %v5202
      %v5305 = vadd.f32 %v5011, %v5205
      %v5306 = vadd.f32 %v5012, %v5210
      %v5307 = vadd.f32 %v5013, %v5213
      %v5308 = vadd.f32 %v5014, %v5218
      %v5309 = vadd.f32 %v5015, %v5221
      %v5310 = vadd.f32 %v5016, %v5226
      %v5311 = vadd.f32 %v5017, %v5229
      %v5312 = vadd.f32 %v5018, %v5234
      %v5313 = vadd.f32 %v5019, %v5237
      %v5314 = vadd.f32 %v5020, %v5242
      %v5315 = vadd.f32 %v5021, %v5245
      %v5316 = vadd.f32 %v5022, %v5250
      %v5317 = vadd.f32 %v5023, %v5253
      %v5318 = vadd.f32 %v5024, %v5258
      %v5319 = vadd.f32 %v5025, %v5261
      %v5320 = vadd.f32 %v5026, %v5266
      %v5321 = vadd.f32 %v5027, %v5269
      %v5322 = vadd.f32 %v5028, %v5274
      %v5323 = vadd.f32 %v5029, %v5277
      %v5324 = vadd.f32 %v5030, %v5282
      %v5325 = vadd.f32 %v5031, %v5285
      %v5326 = vadd.f32 %v5032, %v5290
      %v5327 = vadd.f32 %v5033, %v5293
      %v5328 = vld [vmem:[%s2995 + $0x2] sm:$0xff]
      %v5329 = vld [vmem:[%s2995 + $0xa] sm:$0xff]
      %v5330 = vld [vmem:[%s2995 + $0x1a] sm:$0xff]
      %v5331 = vld [vmem:[%s2995 + $0x22] sm:$0xff]
      %v5332 = vld [vmem:[%s2995 + $0x32] sm:$0xff]
      %v5333 = vld [vmem:[%s2995 + $0x3a] sm:$0xff]
      %v5334 = vld [vmem:[%s2995 + $0x4a] sm:$0xff]
      %v5335 = vld [vmem:[%s2995 + $0x52] sm:$0xff]
      %v5336 = vld [vmem:[%s2995 + $0x62] sm:$0xff]
      %v5337 = vld [vmem:[%s2995 + $0x6a] sm:$0xff]
      %v5338 = vld [vmem:[%s2995 + $0x7a] sm:$0xff]
      %v5339 = vld [vmem:[%s2995 + $0x82] sm:$0xff]
      %v5340 = vld [vmem:[%s2995 + $0x92] sm:$0xff]
      %v5341 = vld [vmem:[%s2995 + $0x9a] sm:$0xff]
      %v5342 = vld [vmem:[%s2995 + $0xaa] sm:$0xff]
      %v5343 = vld [vmem:[%s2995 + $0xb2] sm:$0xff]
      %v5344 = vld [vmem:[%s2995 + $0xc2] sm:$0xff]
      %v5345 = vld [vmem:[%s2995 + $0xca] sm:$0xff]
      %v5346 = vld [vmem:[%s2995 + $0xda] sm:$0xff]
      %v5347 = vld [vmem:[%s2995 + $0xe2] sm:$0xff]
      %v5348 = vld [vmem:[%s2995 + $0xf2] sm:$0xff]
      %v5349 = vld [vmem:[%s2995 + $0xfa] sm:$0xff]
      %v5350 = vld [vmem:[%s2995 + $0x10a] sm:$0xff]
      %v5351 = vld [vmem:[%s2995 + $0x112] sm:$0xff]
      %v5352 = vld [vmem:[%s2995 + $0x122] sm:$0xff]
      %v5353 = vld [vmem:[%s2995 + $0x12a] sm:$0xff]
      %v5354 = vld [vmem:[%s2995 + $0x13a] sm:$0xff]
      %v5355 = vld [vmem:[%s2995 + $0x142] sm:$0xff]
      %v5356 = vld [vmem:[%s2995 + $0x152] sm:$0xff]
      %v5357 = vld [vmem:[%s2995 + $0x15a] sm:$0xff]
      %v5358 = vld [vmem:[%s2995 + $0x16a] sm:$0xff]
      %v5359 = vld [vmem:[%s2995 + $0x172] sm:$0xff]
      %v5360 = vpack.c.bf16 %v5329, %v5328
      %v5361 = vpack.c.bf16 %v5331, %v5330
      %v5362 = vpack.c.bf16 %v5333, %v5332
      %v5363 = vpack.c.bf16 %v5335, %v5334
      %v5364 = vpack.c.bf16 %v5337, %v5336
      %v5365 = vpack.c.bf16 %v5339, %v5338
      %v5366 = vpack.c.bf16 %v5341, %v5340
      %v5367 = vpack.c.bf16 %v5343, %v5342
      %v5368 = vpack.c.bf16 %v5345, %v5344
      %v5369 = vpack.c.bf16 %v5347, %v5346
      %v5370 = vpack.c.bf16 %v5349, %v5348
      %v5371 = vpack.c.bf16 %v5351, %v5350
      %v5372 = vpack.c.bf16 %v5353, %v5352
      %v5373 = vpack.c.bf16 %v5355, %v5354
      %v5374 = vpack.c.bf16 %v5357, %v5356
      %v5375 = vpack.c.bf16 %v5359, %v5358
      %s5376 = scalar_lea.vmem %s3, 32
      %v5377 = vld [vmem:[%s5376] sm:$0xf]
      %v5379 = vsel %vm2936, %v5360, 0
      %v5382 = vsel %vm2936, %v5361, 0
      %v5385 = vsel %vm2936, %v5362, 0
      %v5388 = vsel %vm2936, %v5363, 0
      %v5391 = vsel %vm2936, %v5364, 0
      %v5394 = vsel %vm2936, %v5365, 0
      %v5397 = vsel %vm2936, %v5366, 0
      %v5400 = vsel %vm2936, %v5367, 0
      %v5403 = vsel %vm2936, %v5368, 0
      %v5406 = vsel %vm2936, %v5369, 0
      %v5409 = vsel %vm2936, %v5370, 0
      %v5412 = vsel %vm2936, %v5371, 0
      %v5415 = vsel %vm2936, %v5372, 0
      %v5418 = vsel %vm2936, %v5373, 0
      %v5421 = vsel %vm2936, %v5374, 0
      %v5424 = vsel %vm2936, %v5375, 0
      %v5427 = vsel %vm3187, %v5377, 0
      %5429 = vmatprep.subr.bf16.mxu0 0
      %5430 = vmatpush1.bf16.msra.mxu0 %v5427
      %5431 = vmatprep.subr.bf16.mxu0 0
      %5432 = vmatpush1.bf16.msra.mxu0 0
      %5433 = vmatprep.subr.bf16.mxu0 0
      %5434 = vmatpush1.bf16.msra.mxu0 0
      %5435 = vmatprep.subr.bf16.mxu0 0
      %5436 = vmatpush1.bf16.msra.mxu0 0
      %5437 = vmatprep.subr.bf16.mxu0 0
      %5438 = vmatpush1.bf16.msra.mxu0 0
      %5439 = vmatprep.subr.bf16.mxu0 0
      %5440 = vmatpush1.bf16.msra.mxu0 0
      %5441 = vmatprep.subr.bf16.mxu0 0
      %5442 = vmatpush1.bf16.msra.mxu0 0
      %5443 = vmatprep.subr.bf16.mxu0 0
      %5444 = vmatpush1.bf16.msra.mxu0 0
      %5445 = vmatprep.subr.bf16.mxu0 0
      %5446 = vmatpush1.bf16.msra.mxu0 0
      %5447 = vmatprep.subr.bf16.mxu0 0
      %5448 = vmatpush1.bf16.msra.mxu0 0
      %5449 = vmatprep.subr.bf16.mxu0 0
      %5450 = vmatpush1.bf16.msra.mxu0 0
      %5451 = vmatprep.subr.bf16.mxu0 0
      %5452 = vmatpush1.bf16.msra.mxu0 0
      %5453 = vmatprep.subr.bf16.mxu0 0
      %5454 = vmatpush1.bf16.msra.mxu0 0
      %5455 = vmatprep.subr.bf16.mxu0 0
      %5456 = vmatpush1.bf16.msra.mxu0 0
      %5457 = vmatprep.subr.bf16.mxu0 0
      %5458 = vmatpush1.bf16.msra.mxu0 0
      %5459 = vmatprep.subr.bf16.mxu0 0
      %5460 = vmatpush1.bf16.msra.mxu0 0
      %5461 = vmatprep.mubr.bf16.mxu0 0
      %5462 = vmatmul.mubr.bf16.gmra.mrb[0].mxu0 %v5379
      %v5463 = vpop.f32.mrb[0].mxu0
      %v5464 = vadd.f32 0.0, %v5463
      %v5465 = vpop.f32.mrb[0].mxu0
      %v5466 = vpop.f32.mrb[0].mxu0
      %v5467 = vadd.f32 0.0, %v5466
      %v5468 = vpop.f32.mrb[0].mxu0
      %5469 = vmatprep.mubr.bf16.mxu0 0
      %5470 = vmatmul.mubr.bf16.gmra.mrb[0].mxu0 %v5382
      %v5471 = vpop.f32.mrb[0].mxu0
      %v5472 = vadd.f32 0.0, %v5471
      %v5473 = vpop.f32.mrb[0].mxu0
      %v5474 = vpop.f32.mrb[0].mxu0
      %v5475 = vadd.f32 0.0, %v5474
      %v5476 = vpop.f32.mrb[0].mxu0
      %5477 = vmatprep.mubr.bf16.mxu0 0
      %5478 = vmatmul.mubr.bf16.gmra.mrb[0].mxu0 %v5385
      %v5479 = vpop.f32.mrb[0].mxu0
      %v5480 = vadd.f32 0.0, %v5479
      %v5481 = vpop.f32.mrb[0].mxu0
      %v5482 = vpop.f32.mrb[0].mxu0
      %v5483 = vadd.f32 0.0, %v5482
      %v5484 = vpop.f32.mrb[0].mxu0
      %5485 = vmatprep.mubr.bf16.mxu0 0
      %5486 = vmatmul.mubr.bf16.gmra.mrb[0].mxu0 %v5388
      %v5487 = vpop.f32.mrb[0].mxu0
      %v5488 = vadd.f32 0.0, %v5487
      %v5489 = vpop.f32.mrb[0].mxu0
      %v5490 = vpop.f32.mrb[0].mxu0
      %v5491 = vadd.f32 0.0, %v5490
      %v5492 = vpop.f32.mrb[0].mxu0
      %5493 = vmatprep.mubr.bf16.mxu0 0
      %5494 = vmatmul.mubr.bf16.gmra.mrb[0].mxu0 %v5391
      %v5495 = vpop.f32.mrb[0].mxu0
      %v5496 = vadd.f32 0.0, %v5495
      %v5497 = vpop.f32.mrb[0].mxu0
      %v5498 = vpop.f32.mrb[0].mxu0
      %v5499 = vadd.f32 0.0, %v5498
      %v5500 = vpop.f32.mrb[0].mxu0
      %5501 = vmatprep.mubr.bf16.mxu0 0
      %5502 = vmatmul.mubr.bf16.gmra.mrb[0].mxu0 %v5394
      %v5503 = vpop.f32.mrb[0].mxu0
      %v5504 = vadd.f32 0.0, %v5503
      %v5505 = vpop.f32.mrb[0].mxu0
      %v5506 = vpop.f32.mrb[0].mxu0
      %v5507 = vadd.f32 0.0, %v5506
      %v5508 = vpop.f32.mrb[0].mxu0
      %5509 = vmatprep.mubr.bf16.mxu0 0
      %5510 = vmatmul.mubr.bf16.gmra.mrb[0].mxu0 %v5397
      %v5511 = vpop.f32.mrb[0].mxu0
      %v5512 = vadd.f32 0.0, %v5511
      %v5513 = vpop.f32.mrb[0].mxu0
      %v5514 = vpop.f32.mrb[0].mxu0
      %v5515 = vadd.f32 0.0, %v5514
      %v5516 = vpop.f32.mrb[0].mxu0
      %5517 = vmatprep.mubr.bf16.mxu0 0
      %5518 = vmatmul.mubr.bf16.gmra.mrb[0].mxu0 %v5400
      %v5519 = vpop.f32.mrb[0].mxu0
      %v5520 = vadd.f32 0.0, %v5519
      %v5521 = vpop.f32.mrb[0].mxu0
      %v5522 = vpop.f32.mrb[0].mxu0
      %v5523 = vadd.f32 0.0, %v5522
      %v5524 = vpop.f32.mrb[0].mxu0
      %5525 = vmatprep.mubr.bf16.mxu0 0
      %5526 = vmatmul.mubr.bf16.gmra.mrb[0].mxu0 %v5403
      %v5527 = vpop.f32.mrb[0].mxu0
      %v5528 = vadd.f32 0.0, %v5527
      %v5529 = vpop.f32.mrb[0].mxu0
      %v5530 = vpop.f32.mrb[0].mxu0
      %v5531 = vadd.f32 0.0, %v5530
      %v5532 = vpop.f32.mrb[0].mxu0
      %5533 = vmatprep.mubr.bf16.mxu0 0
      %5534 = vmatmul.mubr.bf16.gmra.mrb[0].mxu0 %v5406
      %v5535 = vpop.f32.mrb[0].mxu0
      %v5536 = vadd.f32 0.0, %v5535
      %v5537 = vpop.f32.mrb[0].mxu0
      %v5538 = vpop.f32.mrb[0].mxu0
      %v5539 = vadd.f32 0.0, %v5538
      %v5540 = vpop.f32.mrb[0].mxu0
      %5541 = vmatprep.mubr.bf16.mxu0 0
      %5542 = vmatmul.mubr.bf16.gmra.mrb[0].mxu0 %v5409
      %v5543 = vpop.f32.mrb[0].mxu0
      %v5544 = vadd.f32 0.0, %v5543
      %v5545 = vpop.f32.mrb[0].mxu0
      %v5546 = vpop.f32.mrb[0].mxu0
      %v5547 = vadd.f32 0.0, %v5546
      %v5548 = vpop.f32.mrb[0].mxu0
      %5549 = vmatprep.mubr.bf16.mxu0 0
      %5550 = vmatmul.mubr.bf16.gmra.mrb[0].mxu0 %v5412
      %v5551 = vpop.f32.mrb[0].mxu0
      %v5552 = vadd.f32 0.0, %v5551
      %v5553 = vpop.f32.mrb[0].mxu0
      %v5554 = vpop.f32.mrb[0].mxu0
      %v5555 = vadd.f32 0.0, %v5554
      %v5556 = vpop.f32.mrb[0].mxu0
      %5557 = vmatprep.mubr.bf16.mxu0 0
      %5558 = vmatmul.mubr.bf16.gmra.mrb[0].mxu0 %v5415
      %v5559 = vpop.f32.mrb[0].mxu0
      %v5560 = vadd.f32 0.0, %v5559
      %v5561 = vpop.f32.mrb[0].mxu0
      %v5562 = vpop.f32.mrb[0].mxu0
      %v5563 = vadd.f32 0.0, %v5562
      %v5564 = vpop.f32.mrb[0].mxu0
      %5565 = vmatprep.mubr.bf16.mxu0 0
      %5566 = vmatmul.mubr.bf16.gmra.mrb[0].mxu0 %v5418
      %v5567 = vpop.f32.mrb[0].mxu0
      %v5568 = vadd.f32 0.0, %v5567
      %v5569 = vpop.f32.mrb[0].mxu0
      %v5570 = vpop.f32.mrb[0].mxu0
      %v5571 = vadd.f32 0.0, %v5570
      %v5572 = vpop.f32.mrb[0].mxu0
      %5573 = vmatprep.mubr.bf16.mxu0 0
      %5574 = vmatmul.mubr.bf16.gmra.mrb[0].mxu0 %v5421
      %v5575 = vpop.f32.mrb[0].mxu0
      %v5576 = vadd.f32 0.0, %v5575
      %v5577 = vpop.f32.mrb[0].mxu0
      %v5578 = vpop.f32.mrb[0].mxu0
      %v5579 = vadd.f32 0.0, %v5578
      %v5580 = vpop.f32.mrb[0].mxu0
      %5581 = vmatprep.mubr.bf16.mxu0 0
      %5582 = vmatmul.mubr.bf16.gmra.mrb[0].mxu0 %v5424
      %v5583 = vpop.f32.mrb[0].mxu0
      %v5584 = vadd.f32 0.0, %v5583
      %v5585 = vpop.f32.mrb[0].mxu0
      %v5586 = vpop.f32.mrb[0].mxu0
      %v5587 = vadd.f32 0.0, %v5586
      %v5588 = vpop.f32.mrb[0].mxu0
      %5589 = vdwg.mxu0
      %v5590 = vadd.f32 %v5296, %v5464
      %v5591 = vadd.f32 %v5297, %v5467
      %v5592 = vadd.f32 %v5298, %v5472
      %v5593 = vadd.f32 %v5299, %v5475
      %v5594 = vadd.f32 %v5300, %v5480
      %v5595 = vadd.f32 %v5301, %v5483
      %v5596 = vadd.f32 %v5302, %v5488
      %v5597 = vadd.f32 %v5303, %v5491
      %v5598 = vadd.f32 %v5304, %v5496
      %v5599 = vadd.f32 %v5305, %v5499
      %v5600 = vadd.f32 %v5306, %v5504
      %v5601 = vadd.f32 %v5307, %v5507
      %v5602 = vadd.f32 %v5308, %v5512
      %v5603 = vadd.f32 %v5309, %v5515
      %v5604 = vadd.f32 %v5310, %v5520
      %v5605 = vadd.f32 %v5311, %v5523
      %v5606 = vadd.f32 %v5312, %v5528
      %v5607 = vadd.f32 %v5313, %v5531
      %v5608 = vadd.f32 %v5314, %v5536
      %v5609 = vadd.f32 %v5315, %v5539
      %v5610 = vadd.f32 %v5316, %v5544
      %v5611 = vadd.f32 %v5317, %v5547
      %v5612 = vadd.f32 %v5318, %v5552
      %v5613 = vadd.f32 %v5319, %v5555
      %v5614 = vadd.f32 %v5320, %v5560
      %v5615 = vadd.f32 %v5321, %v5563
      %v5616 = vadd.f32 %v5322, %v5568
      %v5617 = vadd.f32 %v5323, %v5571
      %v5618 = vadd.f32 %v5324, %v5576
      %v5619 = vadd.f32 %v5325, %v5579
      %v5620 = vadd.f32 %v5326, %v5584
      %v5621 = vadd.f32 %v5327, %v5587
      %v5622 = vld [vmem:[%s4] sm:$0x1]
      %v5624 = vlaneseq
      %v5625 = vshrl.u32 %v5624, 7
      %v5626 = vsub.s32 0, %v5625
      %v5627 = vrot.slane %v5622, %v5626
      %v5629 = vadd.f32 %v5590, %v5627
      %v5630 = vadd.f32 %v5591, %v5627
      %v5631 = vadd.f32 %v5592, %v5627
      %v5632 = vadd.f32 %v5593, %v5627
      %v5633 = vadd.f32 %v5594, %v5627
      %v5634 = vadd.f32 %v5595, %v5627
      %v5635 = vadd.f32 %v5596, %v5627
      %v5636 = vadd.f32 %v5597, %v5627
      %v5637 = vadd.f32 %v5598, %v5627
      %v5638 = vadd.f32 %v5599, %v5627
      %v5639 = vadd.f32 %v5600, %v5627
      %v5640 = vadd.f32 %v5601, %v5627
      %v5641 = vadd.f32 %v5602, %v5627
      %v5642 = vadd.f32 %v5603, %v5627
      %v5643 = vadd.f32 %v5604, %v5627
      %v5644 = vadd.f32 %v5605, %v5627
      %v5645 = vadd.f32 %v5606, %v5627
      %v5646 = vadd.f32 %v5607, %v5627
      %v5647 = vadd.f32 %v5608, %v5627
      %v5648 = vadd.f32 %v5609, %v5627
      %v5649 = vadd.f32 %v5610, %v5627
      %v5650 = vadd.f32 %v5611, %v5627
      %v5651 = vadd.f32 %v5612, %v5627
      %v5652 = vadd.f32 %v5613, %v5627
      %v5653 = vadd.f32 %v5614, %v5627
      %v5654 = vadd.f32 %v5615, %v5627
      %v5655 = vadd.f32 %v5616, %v5627
      %v5656 = vadd.f32 %v5617, %v5627
      %v5657 = vadd.f32 %v5618, %v5627
      %v5658 = vadd.f32 %v5619, %v5627
      %v5659 = vadd.f32 %v5620, %v5627
      %v5660 = vadd.f32 %v5621, %v5627
      %v5661 = vld [vmem:[%s1099 + $0x1] sm:$0xff]
      %v5662 = vld [vmem:[%s1099 + $0x9] sm:$0xff]
      %v5663 = vld [vmem:[%s1099 + $0x19] sm:$0xff]
      %v5664 = vld [vmem:[%s1099 + $0x21] sm:$0xff]
      %v5665 = vld [vmem:[%s1099 + $0x31] sm:$0xff]
      %v5666 = vld [vmem:[%s1099 + $0x39] sm:$0xff]
      %v5667 = vld [vmem:[%s1099 + $0x49] sm:$0xff]
      %v5668 = vld [vmem:[%s1099 + $0x51] sm:$0xff]
      %v5669 = vld [vmem:[%s1099 + $0x61] sm:$0xff]
      %v5670 = vld [vmem:[%s1099 + $0x69] sm:$0xff]
      %v5671 = vld [vmem:[%s1099 + $0x79] sm:$0xff]
      %v5672 = vld [vmem:[%s1099 + $0x81] sm:$0xff]
      %v5673 = vld [vmem:[%s1099 + $0x91] sm:$0xff]
      %v5674 = vld [vmem:[%s1099 + $0x99] sm:$0xff]
      %v5675 = vld [vmem:[%s1099 + $0xa9] sm:$0xff]
      %v5676 = vld [vmem:[%s1099 + $0xb1] sm:$0xff]
      %v5677 = vld [vmem:[%s1099 + $0xc1] sm:$0xff]
      %v5678 = vld [vmem:[%s1099 + $0xc9] sm:$0xff]
      %v5679 = vld [vmem:[%s1099 + $0xd9] sm:$0xff]
      %v5680 = vld [vmem:[%s1099 + $0xe1] sm:$0xff]
      %v5681 = vld [vmem:[%s1099 + $0xf1] sm:$0xff]
      %v5682 = vld [vmem:[%s1099 + $0xf9] sm:$0xff]
      %v5683 = vld [vmem:[%s1099 + $0x109] sm:$0xff]
      %v5684 = vld [vmem:[%s1099 + $0x111] sm:$0xff]
      %v5685 = vld [vmem:[%s1099 + $0x121] sm:$0xff]
      %v5686 = vld [vmem:[%s1099 + $0x129] sm:$0xff]
      %v5687 = vld [vmem:[%s1099 + $0x139] sm:$0xff]
      %v5688 = vld [vmem:[%s1099 + $0x141] sm:$0xff]
      %v5689 = vld [vmem:[%s1099 + $0x151] sm:$0xff]
      %v5690 = vld [vmem:[%s1099 + $0x159] sm:$0xff]
      %v5691 = vld [vmem:[%s1099 + $0x169] sm:$0xff]
      %v5692 = vld [vmem:[%s1099 + $0x171] sm:$0xff]
      %v5693 = vpack.c.bf16 %v5662, %v5661
      %v5694 = vpack.c.bf16 %v5664, %v5663
      %v5695 = vpack.c.bf16 %v5666, %v5665
      %v5696 = vpack.c.bf16 %v5668, %v5667
      %v5697 = vpack.c.bf16 %v5670, %v5669
      %v5698 = vpack.c.bf16 %v5672, %v5671
      %v5699 = vpack.c.bf16 %v5674, %v5673
      %v5700 = vpack.c.bf16 %v5676, %v5675
      %v5701 = vpack.c.bf16 %v5678, %v5677
      %v5702 = vpack.c.bf16 %v5680, %v5679
      %v5703 = vpack.c.bf16 %v5682, %v5681
      %v5704 = vpack.c.bf16 %v5684, %v5683
      %v5705 = vpack.c.bf16 %v5686, %v5685
      %v5706 = vpack.c.bf16 %v5688, %v5687
      %v5707 = vpack.c.bf16 %v5690, %v5689
      %v5708 = vpack.c.bf16 %v5692, %v5691
      %v5709 = vld [vmem:[%s5] sm:$0x3]
      %v5710 = vld [vmem:[%s6] sm:$0x1]
      %v5712 = vlaneseq
      %v5713 = vshrl.u32 %v5712, 7
      %v5714 = vsub.s32 0, %v5713
      %v5715 = vrot.slane %v5710, %v5714
      %v5718 = vsel %vm379, %v5693, 0
      %v5721 = vsel %vm379, %v5694, 0
      %v5724 = vsel %vm379, %v5695, 0
      %v5727 = vsel %vm379, %v5696, 0
      %v5730 = vsel %vm379, %v5697, 0
      %v5733 = vsel %vm379, %v5698, 0
      %v5736 = vsel %vm379, %v5699, 0
      %v5739 = vsel %vm379, %v5700, 0
      %v5742 = vsel %vm379, %v5701, 0
      %v5745 = vsel %vm379, %v5702, 0
      %v5748 = vsel %vm379, %v5703, 0
      %v5751 = vsel %vm379, %v5704, 0
      %v5754 = vsel %vm379, %v5705, 0
      %v5757 = vsel %vm379, %v5706, 0
      %v5760 = vsel %vm379, %v5707, 0
      %v5763 = vsel %vm379, %v5708, 0
      %v5766 = vsel %vm428, %v5709, 0
      %5768 = vmatprep.subr.bf16.mxu0 0
      %5769 = vmatpush1.bf16.msra.mxu0 %v5766
      %5770 = vmatprep.subr.bf16.mxu0 0
      %5771 = vmatpush1.bf16.msra.mxu0 0
      %5772 = vmatprep.subr.bf16.mxu0 0
      %5773 = vmatpush1.bf16.msra.mxu0 0
      %5774 = vmatprep.subr.bf16.mxu0 0
      %5775 = vmatpush1.bf16.msra.mxu0 0
      %5776 = vmatprep.subr.bf16.mxu0 0
      %5777 = vmatpush1.bf16.msra.mxu0 0
      %5778 = vmatprep.subr.bf16.mxu0 0
      %5779 = vmatpush1.bf16.msra.mxu0 0
      %5780 = vmatprep.subr.bf16.mxu0 0
      %5781 = vmatpush1.bf16.msra.mxu0 0
      %5782 = vmatprep.subr.bf16.mxu0 0
      %5783 = vmatpush1.bf16.msra.mxu0 0
      %5784 = vmatprep.subr.bf16.mxu0 0
      %5785 = vmatpush1.bf16.msra.mxu0 0
      %5786 = vmatprep.subr.bf16.mxu0 0
      %5787 = vmatpush1.bf16.msra.mxu0 0
      %5788 = vmatprep.subr.bf16.mxu0 0
      %5789 = vmatpush1.bf16.msra.mxu0 0
      %5790 = vmatprep.subr.bf16.mxu0 0
      %5791 = vmatpush1.bf16.msra.mxu0 0
      %5792 = vmatprep.subr.bf16.mxu0 0
      %5793 = vmatpush1.bf16.msra.mxu0 0
      %5794 = vmatprep.subr.bf16.mxu0 0
      %5795 = vmatpush1.bf16.msra.mxu0 0
      %5796 = vmatprep.subr.bf16.mxu0 0
      %5797 = vmatpush1.bf16.msra.mxu0 0
      %5798 = vmatprep.subr.bf16.mxu0 0
      %5799 = vmatpush1.bf16.msra.mxu0 0
      %5800 = vmatprep.mubr.bf16.mxu0 0
      %5801 = vmatmul.mubr.bf16.gmra.mrb[0].mxu0 %v5718
      %v5802 = vpop.f32.mrb[0].mxu0
      %v5803 = vadd.f32 %v5715, %v5802
      %v5804 = vpop.f32.mrb[0].mxu0
      %v5805 = vpop.f32.mrb[0].mxu0
      %v5806 = vadd.f32 %v5715, %v5805
      %v5807 = vpop.f32.mrb[0].mxu0
      %5808 = vmatprep.mubr.bf16.mxu0 0
      %5809 = vmatmul.mubr.bf16.gmra.mrb[0].mxu0 %v5721
      %v5810 = vpop.f32.mrb[0].mxu0
      %v5811 = vadd.f32 %v5715, %v5810
      %v5812 = vpop.f32.mrb[0].mxu0
      %v5813 = vpop.f32.mrb[0].mxu0
      %v5814 = vadd.f32 %v5715, %v5813
      %v5815 = vpop.f32.mrb[0].mxu0
      %5816 = vmatprep.mubr.bf16.mxu0 0
      %5817 = vmatmul.mubr.bf16.gmra.mrb[0].mxu0 %v5724
      %v5818 = vpop.f32.mrb[0].mxu0
      %v5819 = vadd.f32 %v5715, %v5818
      %v5820 = vpop.f32.mrb[0].mxu0
      %v5821 = vpop.f32.mrb[0].mxu0
      %v5822 = vadd.f32 %v5715, %v5821
      %v5823 = vpop.f32.mrb[0].mxu0
      %5824 = vmatprep.mubr.bf16.mxu0 0
      %5825 = vmatmul.mubr.bf16.gmra.mrb[0].mxu0 %v5727
      %v5826 = vpop.f32.mrb[0].mxu0
      %v5827 = vadd.f32 %v5715, %v5826
      %v5828 = vpop.f32.mrb[0].mxu0
      %v5829 = vpop.f32.mrb[0].mxu0
      %v5830 = vadd.f32 %v5715, %v5829
      %v5831 = vpop.f32.mrb[0].mxu0
      %5832 = vmatprep.mubr.bf16.mxu0 0
      %5833 = vmatmul.mubr.bf16.gmra.mrb[0].mxu0 %v5730
      %v5834 = vpop.f32.mrb[0].mxu0
      %v5835 = vadd.f32 %v5715, %v5834
      %v5836 = vpop.f32.mrb[0].mxu0
      %v5837 = vpop.f32.mrb[0].mxu0
      %v5838 = vadd.f32 %v5715, %v5837
      %v5839 = vpop.f32.mrb[0].mxu0
      %5840 = vmatprep.mubr.bf16.mxu0 0
      %5841 = vmatmul.mubr.bf16.gmra.mrb[0].mxu0 %v5733
      %v5842 = vpop.f32.mrb[0].mxu0
      %v5843 = vadd.f32 %v5715, %v5842
      %v5844 = vpop.f32.mrb[0].mxu0
      %v5845 = vpop.f32.mrb[0].mxu0
      %v5846 = vadd.f32 %v5715, %v5845
      %v5847 = vpop.f32.mrb[0].mxu0
      %5848 = vmatprep.mubr.bf16.mxu0 0
      %5849 = vmatmul.mubr.bf16.gmra.mrb[0].mxu0 %v5736
      %v5850 = vpop.f32.mrb[0].mxu0
      %v5851 = vadd.f32 %v5715, %v5850
      %v5852 = vpop.f32.mrb[0].mxu0
      %v5853 = vpop.f32.mrb[0].mxu0
      %v5854 = vadd.f32 %v5715, %v5853
      %v5855 = vpop.f32.mrb[0].mxu0
      %5856 = vmatprep.mubr.bf16.mxu0 0
      %5857 = vmatmul.mubr.bf16.gmra.mrb[0].mxu0 %v5739
      %v5858 = vpop.f32.mrb[0].mxu0
      %v5859 = vadd.f32 %v5715, %v5858
      %v5860 = vpop.f32.mrb[0].mxu0
      %v5861 = vpop.f32.mrb[0].mxu0
      %v5862 = vadd.f32 %v5715, %v5861
      %v5863 = vpop.f32.mrb[0].mxu0
      %5864 = vmatprep.mubr.bf16.mxu0 0
      %5865 = vmatmul.mubr.bf16.gmra.mrb[0].mxu0 %v5742
      %v5866 = vpop.f32.mrb[0].mxu0
      %v5867 = vadd.f32 %v5715, %v5866
      %v5868 = vpop.f32.mrb[0].mxu0
      %v5869 = vpop.f32.mrb[0].mxu0
      %v5870 = vadd.f32 %v5715, %v5869
      %v5871 = vpop.f32.mrb[0].mxu0
      %5872 = vmatprep.mubr.bf16.mxu0 0
      %5873 = vmatmul.mubr.bf16.gmra.mrb[0].mxu0 %v5745
      %v5874 = vpop.f32.mrb[0].mxu0
      %v5875 = vadd.f32 %v5715, %v5874
      %v5876 = vpop.f32.mrb[0].mxu0
      %v5877 = vpop.f32.mrb[0].mxu0
      %v5878 = vadd.f32 %v5715, %v5877
      %v5879 = vpop.f32.mrb[0].mxu0
      %5880 = vmatprep.mubr.bf16.mxu0 0
      %5881 = vmatmul.mubr.bf16.gmra.mrb[0].mxu0 %v5748
      %v5882 = vpop.f32.mrb[0].mxu0
      %v5883 = vadd.f32 %v5715, %v5882
      %v5884 = vpop.f32.mrb[0].mxu0
      %v5885 = vpop.f32.mrb[0].mxu0
      %v5886 = vadd.f32 %v5715, %v5885
      %v5887 = vpop.f32.mrb[0].mxu0
      %5888 = vmatprep.mubr.bf16.mxu0 0
      %5889 = vmatmul.mubr.bf16.gmra.mrb[0].mxu0 %v5751
      %v5890 = vpop.f32.mrb[0].mxu0
      %v5891 = vadd.f32 %v5715, %v5890
      %v5892 = vpop.f32.mrb[0].mxu0
      %v5893 = vpop.f32.mrb[0].mxu0
      %v5894 = vadd.f32 %v5715, %v5893
      %v5895 = vpop.f32.mrb[0].mxu0
      %5896 = vmatprep.mubr.bf16.mxu0 0
      %5897 = vmatmul.mubr.bf16.gmra.mrb[0].mxu0 %v5754
      %v5898 = vpop.f32.mrb[0].mxu0
      %v5899 = vadd.f32 %v5715, %v5898
      %v5900 = vpop.f32.mrb[0].mxu0
      %v5901 = vpop.f32.mrb[0].mxu0
      %v5902 = vadd.f32 %v5715, %v5901
      %v5903 = vpop.f32.mrb[0].mxu0
      %5904 = vmatprep.mubr.bf16.mxu0 0
      %5905 = vmatmul.mubr.bf16.gmra.mrb[0].mxu0 %v5757
      %v5906 = vpop.f32.mrb[0].mxu0
      %v5907 = vadd.f32 %v5715, %v5906
      %v5908 = vpop.f32.mrb[0].mxu0
      %v5909 = vpop.f32.mrb[0].mxu0
      %v5910 = vadd.f32 %v5715, %v5909
      %v5911 = vpop.f32.mrb[0].mxu0
      %5912 = vmatprep.mubr.bf16.mxu0 0
      %5913 = vmatmul.mubr.bf16.gmra.mrb[0].mxu0 %v5760
      %v5914 = vpop.f32.mrb[0].mxu0
      %v5915 = vadd.f32 %v5715, %v5914
      %v5916 = vpop.f32.mrb[0].mxu0
      %v5917 = vpop.f32.mrb[0].mxu0
      %v5918 = vadd.f32 %v5715, %v5917
      %v5919 = vpop.f32.mrb[0].mxu0
      %5920 = vmatprep.mubr.bf16.mxu0 0
      %5921 = vmatmul.mubr.bf16.gmra.mrb[0].mxu0 %v5763
      %v5922 = vpop.f32.mrb[0].mxu0
      %v5923 = vadd.f32 %v5715, %v5922
      %v5924 = vpop.f32.mrb[0].mxu0
      %v5925 = vpop.f32.mrb[0].mxu0
      %v5926 = vadd.f32 %v5715, %v5925
      %v5927 = vpop.f32.mrb[0].mxu0
      %5928 = vdwg.mxu0
      %v5929 = vadd.f32 %v5629, %v5803
      %v5930 = vadd.f32 %v5630, %v5806
      %v5931 = vadd.f32 %v5631, %v5811
      %v5932 = vadd.f32 %v5632, %v5814
      %v5933 = vadd.f32 %v5633, %v5819
      %v5934 = vadd.f32 %v5634, %v5822
      %v5935 = vadd.f32 %v5635, %v5827
      %v5936 = vadd.f32 %v5636, %v5830
      %v5937 = vadd.f32 %v5637, %v5835
      %v5938 = vadd.f32 %v5638, %v5838
      %v5939 = vadd.f32 %v5639, %v5843
      %v5940 = vadd.f32 %v5640, %v5846
      %v5941 = vadd.f32 %v5641, %v5851
      %v5942 = vadd.f32 %v5642, %v5854
      %v5943 = vadd.f32 %v5643, %v5859
      %v5944 = vadd.f32 %v5644, %v5862
      %v5945 = vadd.f32 %v5645, %v5867
      %v5946 = vadd.f32 %v5646, %v5870
      %v5947 = vadd.f32 %v5647, %v5875
      %v5948 = vadd.f32 %v5648, %v5878
      %v5949 = vadd.f32 %v5649, %v5883
      %v5950 = vadd.f32 %v5650, %v5886
      %v5951 = vadd.f32 %v5651, %v5891
      %v5952 = vadd.f32 %v5652, %v5894
      %v5953 = vadd.f32 %v5653, %v5899
      %v5954 = vadd.f32 %v5654, %v5902
      %v5955 = vadd.f32 %v5655, %v5907
      %v5956 = vadd.f32 %v5656, %v5910
      %v5957 = vadd.f32 %v5657, %v5915
      %v5958 = vadd.f32 %v5658, %v5918
      %v5959 = vadd.f32 %v5659, %v5923
      %v5960 = vadd.f32 %v5660, %v5926
      %v5961 = vmax.f32 %v5929, 0.0
      %v5962 = vmax.f32 %v5930, 0.0
      %v5963 = vmax.f32 %v5931, 0.0
      %v5964 = vmax.f32 %v5932, 0.0
      %v5965 = vmax.f32 %v5933, 0.0
      %v5966 = vmax.f32 %v5934, 0.0
      %v5967 = vmax.f32 %v5935, 0.0
      %v5968 = vmax.f32 %v5936, 0.0
      %v5969 = vmax.f32 %v5937, 0.0
      %v5970 = vmax.f32 %v5938, 0.0
      %v5971 = vmax.f32 %v5939, 0.0
      %v5972 = vmax.f32 %v5940, 0.0
      %v5973 = vmax.f32 %v5941, 0.0
      %v5974 = vmax.f32 %v5942, 0.0
      %v5975 = vmax.f32 %v5943, 0.0
      %v5976 = vmax.f32 %v5944, 0.0
      %v5977 = vmax.f32 %v5945, 0.0
      %v5978 = vmax.f32 %v5946, 0.0
      %v5979 = vmax.f32 %v5947, 0.0
      %v5980 = vmax.f32 %v5948, 0.0
      %v5981 = vmax.f32 %v5949, 0.0
      %v5982 = vmax.f32 %v5950, 0.0
      %v5983 = vmax.f32 %v5951, 0.0
      %v5984 = vmax.f32 %v5952, 0.0
      %v5985 = vmax.f32 %v5953, 0.0
      %v5986 = vmax.f32 %v5954, 0.0
      %v5987 = vmax.f32 %v5955, 0.0
      %v5988 = vmax.f32 %v5956, 0.0
      %v5989 = vmax.f32 %v5957, 0.0
      %v5990 = vmax.f32 %v5958, 0.0
      %v5991 = vmax.f32 %v5959, 0.0
      %v5992 = vmax.f32 %v5960, 0.0
      %5993 = vst.msk [vmem:[%s278] sm:$0xff] %vm2936, %v5961
      %5994 = vst.msk [vmem:[%s278 + $0x8] sm:$0xff] %vm2936, %v5962
      %5995 = vst.msk [vmem:[%s278 + $0x10] sm:$0xff] %vm2936, %v5963
      %5996 = vst.msk [vmem:[%s278 + $0x18] sm:$0xff] %vm2936, %v5964
      %5997 = vst.msk [vmem:[%s278 + $0x20] sm:$0xff] %vm2936, %v5965
      %5998 = vst.msk [vmem:[%s278 + $0x28] sm:$0xff] %vm2936, %v5966
      %5999 = vst.msk [vmem:[%s278 + $0x30] sm:$0xff] %vm2936, %v5967
      %6000 = vst.msk [vmem:[%s278 + $0x38] sm:$0xff] %vm2936, %v5968
      %6001 = vst.msk [vmem:[%s278 + $0x40] sm:$0xff] %vm2936, %v5969
      %6002 = vst.msk [vmem:[%s278 + $0x48] sm:$0xff] %vm2936, %v5970
      %6003 = vst.msk [vmem:[%s278 + $0x50] sm:$0xff] %vm2936, %v5971
      %6004 = vst.msk [vmem:[%s278 + $0x58] sm:$0xff] %vm2936, %v5972
      %6005 = vst.msk [vmem:[%s278 + $0x60] sm:$0xff] %vm2936, %v5973
      %6006 = vst.msk [vmem:[%s278 + $0x68] sm:$0xff] %vm2936, %v5974
      %6007 = vst.msk [vmem:[%s278 + $0x70] sm:$0xff] %vm2936, %v5975
      %6008 = vst.msk [vmem:[%s278 + $0x78] sm:$0xff] %vm2936, %v5976
      %6009 = vst.msk [vmem:[%s278 + $0x80] sm:$0xff] %vm2936, %v5977
      %6010 = vst.msk [vmem:[%s278 + $0x88] sm:$0xff] %vm2936, %v5978
      %6011 = vst.msk [vmem:[%s278 + $0x90] sm:$0xff] %vm2936, %v5979
      %6012 = vst.msk [vmem:[%s278 + $0x98] sm:$0xff] %vm2936, %v5980
      %6013 = vst.msk [vmem:[%s278 + $0xa0] sm:$0xff] %vm2936, %v5981
      %6014 = vst.msk [vmem:[%s278 + $0xa8] sm:$0xff] %vm2936, %v5982
      %6015 = vst.msk [vmem:[%s278 + $0xb0] sm:$0xff] %vm2936, %v5983
      %6016 = vst.msk [vmem:[%s278 + $0xb8] sm:$0xff] %vm2936, %v5984
      %6017 = vst.msk [vmem:[%s278 + $0xc0] sm:$0xff] %vm2936, %v5985
      %6018 = vst.msk [vmem:[%s278 + $0xc8] sm:$0xff] %vm2936, %v5986
      %6019 = vst.msk [vmem:[%s278 + $0xd0] sm:$0xff] %vm2936, %v5987
      %6020 = vst.msk [vmem:[%s278 + $0xd8] sm:$0xff] %vm2936, %v5988
      %6021 = vst.msk [vmem:[%s278 + $0xe0] sm:$0xff] %vm2936, %v5989
      %6022 = vst.msk [vmem:[%s278 + $0xe8] sm:$0xff] %vm2936, %v5990
      %6023 = vst.msk [vmem:[%s278 + $0xf0] sm:$0xff] %vm2936, %v5991
      %6024 = vst.msk [vmem:[%s278 + $0xf8] sm:$0xff] %vm2936, %v5992
      %p6025 = scmp.lt.s32.totalorder %s18, 1
      %s6026 = scalar_select %p6025, %s18, 1
      %s6027 = smul.addr %s6026, 32
      %s6028 = smul.addr %s6027, 8
      %s6029 = scalar_lea.vmem %s7, %s6028
      // Predicated region
      $region49: #{tpu_custom_call.1} parent=47 // pred_check
        %p6030 = pneg %p188
      $region50: #{tpu_custom_call.1} parent=47 // pred_check_branch
        %6032 = sbr.rel (%p6030) target = $region52
      $region51: #{tpu_custom_call.1} parent=47 // pred_region
        _
      $region52: #{tpu_custom_call.1} parent=47 // pred_fallthru
        _
    $region48: #{tpu_custom_call.1} parent=5 // pred_fallthru
      _
    %p6033 = scmp.le.s32.totalorder 2, %s13
    // Predicated region
    $region53: #{tpu_custom_call.1} parent=5 // pred_check
      %p6034 = pneg %p6033
    $region54: #{tpu_custom_call.1} parent=5 // pred_check_branch
      %6036 = sbr.rel (%p6034) target = $region56
    $region55: #{tpu_custom_call.1} parent=5 // pred_region
      %s6037 = ssub.s32 %s13, 2
      // Predicated region
      $region57: #{tpu_custom_call.1} parent=55 // pred_check
        %p6038 = pneg %p194
      $region58: #{tpu_custom_call.1} parent=55 // pred_check_branch
        %6040 = sbr.rel (%p6038) target = $region60
      $region59: #{tpu_custom_call.1} parent=55 // pred_region
        %p6041 = scmp.lt.s32.totalorder %s19, 1
        %s6042 = scalar_select %p6041, %s19, 1
        %s6043 = smul.addr %s6042, 32
        %s6044 = smul.addr %s6043, 8
        %s6045 = scalar_lea.vmem %s7, %s6044
      $region60: #{tpu_custom_call.1} parent=55 // pred_fallthru
        _
    $region56: #{tpu_custom_call.1} parent=5 // pred_fallthru
      _
  $region6: #{tpu_custom_call.1} parent=0 // loop_footer
    %s17 = sadd.s32 1, %s13
  $region7: #{tpu_custom_call.1} parent=0 // loop_footer_branch
    %12 = sbr.rel target = $region3
  $region8: #{tpu_custom_call.1} parent=0 // loop_exit
    _

</llo_original>
